<compile_context>
chip_gen: v5e
topology: v5e:2x2
jax: 0.10.0
libtpu: 0.0.40
codegen_flags: <defaults>
</compile_context>

<pallas_src>
import functools

import jax
import jax.numpy as jnp
from jax.experimental import pallas as pl
from jax.experimental.pallas import tpu as pltpu


def _second_stream_kernel(x_ref, w1_ref, wr1_ref, wr2_ref, wvu_ref, bvu_ref,
                          ww_ref, bw_ref, wc_ref, bc_ref, out_ref,
                          m_sc, l_sc, acc_sc,
                          *, n_total, tile_n, d, mask_needed):
    i = pl.program_id(0)
    last = pl.num_programs(0) - 1

    @pl.when(i == 0)
    def _init():
        m_sc[...] = jnp.full_like(m_sc, -jnp.inf)
        l_sc[...] = jnp.zeros_like(l_sc)
        acc_sc[...] = jnp.zeros_like(acc_sc)

    # f32 tile from HBM, cast to bf16 in-kernel for the MXU (no wrapper-side cast pass).
    x = x_ref[...].astype(jnp.bfloat16)                                          # (TN, L)
    if mask_needed:
        row = i * tile_n + jax.lax.broadcasted_iota(jnp.int32, (tile_n, 1), 0)
        valid = row < n_total
        x = jnp.where(valid, x, jnp.zeros_like(x))                               # zero padded rows

    # ---- DimReduction: Linear(L->L, no bias) + ReLU, then one residual block ----
    h = jnp.maximum(
        jnp.dot(x, w1_ref[...], preferred_element_type=jnp.float32), 0.0)        # (TN, L) f32
    t = jnp.maximum(
        jnp.dot(h.astype(jnp.bfloat16), wr1_ref[...],
                preferred_element_type=jnp.float32), 0.0)
    t = jnp.maximum(
        jnp.dot(t.astype(jnp.bfloat16), wr2_ref[...],
                preferred_element_type=jnp.float32), 0.0)
    h = h + t                                                                     # (TN, L) f32

    # ---- Attention_Gated: fused V/U projection (one (L, 2D) matmul) ----
    vu = jnp.dot(h.astype(jnp.bfloat16), wvu_ref[...],
                 preferred_element_type=jnp.float32) + bvu_ref[...]               # (TN, 2D)
    gated = jnp.tanh(vu[:, :d]) * jax.nn.sigmoid(vu[:, d:])                       # (TN, D)
    # attention_weights: Linear(D -> 1) as a lane reduction; bw is an SMEM scalar.
    logit = jnp.sum(gated * ww_ref[...], axis=-1, keepdims=True) + bw_ref[0]      # (TN, 1)
    if mask_needed:
        logit = jnp.where(valid, logit, -jnp.inf)

    # ---- online softmax over the instance axis ----
    m_prev = m_sc[...]                                                            # (1, 1)
    m_new = jnp.maximum(m_prev, jnp.max(logit, axis=0, keepdims=True))
    rescale = jnp.exp(m_prev - m_new)                                             # (1, 1)
    p = jnp.exp(logit - m_new)                                                    # (TN, 1)
    l_sc[...] = rescale * l_sc[...] + jnp.sum(p, axis=0, keepdims=True)
    m_sc[...] = m_new

    # ---- attention-weighted bag sum on the MXU: (1, TN) @ (TN, L) ----
    ones_row = jnp.ones((1, tile_n), jnp.float32)
    acc_sc[...] = rescale * acc_sc[...] + jnp.dot(
        ones_row, p * h, preferred_element_type=jnp.float32)                      # (1, L)

    # ---- finalize: normalize bag + Classifier_1fc (droprate = 0) ----
    @pl.when(i == last)
    def _finalize():
        bag = acc_sc[...] * pl.reciprocal(l_sc[...], approx=True)                 # (1, L)
        out_ref[...] = (jnp.dot(bag, wc_ref[...], preferred_element_type=jnp.float32)
                        + bc_ref[...]).astype(out_ref.dtype)                      # (1, num_cls)


def second_stream_classifier(x, kp, num_cls, *, tile_n=256):
    """x: (N, L) float32; kp: prepared params (see prepare_params). Returns (1, num_cls) f32."""
    n, L = x.shape
    d2 = kp["wvu"].shape[1]
    d = d2 // 2
    assert tile_n % 8 == 0
    grid = (pl.cdiv(n, tile_n),)
    mask_needed = (n % tile_n) != 0

    kernel = functools.partial(_second_stream_kernel, n_total=n, tile_n=tile_n,
                               d=d, mask_needed=mask_needed)
    const2 = lambda i: (0, 0)

    return pl.pallas_call(
        kernel,
        out_shape=jax.ShapeDtypeStruct((1, num_cls), jnp.float32),
        grid_spec=pltpu.PrefetchScalarGridSpec(
            num_scalar_prefetch=0,
            grid=grid,
            in_specs=[
                pl.BlockSpec((tile_n, L), lambda i: (i, 0)),        # x tile (f32, cast in-kernel)
                pl.BlockSpec((L, L), const2),                       # w1   (bf16)
                pl.BlockSpec((L, L), const2),                       # wr1  (bf16)
                pl.BlockSpec((L, L), const2),                       # wr2  (bf16)
                pl.BlockSpec((L, d2), const2),                      # wv||wu (bf16)
                pl.BlockSpec((1, d2), const2),                      # bv||bu (f32)
                pl.BlockSpec((1, d), const2),                       # ww (f32)
                pl.BlockSpec(memory_space=pltpu.MemorySpace.SMEM),  # bw scalar
                pl.BlockSpec((L, num_cls), const2),                 # wc (f32)
                pl.BlockSpec((1, num_cls), const2),                 # bc (f32)
            ],
            out_specs=pl.BlockSpec((1, num_cls), const2),
            scratch_shapes=[
                pltpu.VMEM((1, 1), jnp.float32),   # running max m
                pltpu.VMEM((1, 1), jnp.float32),   # running exp-sum l
                pltpu.VMEM((1, L), jnp.float32),   # bag accumulator
            ],
        ),
        compiler_params=pltpu.CompilerParams(
            dimension_semantics=("arbitrary",),          # reduction axis: carried scratch
            vmem_limit_bytes=32 * 1024 * 1024,           # fits v7x 64 MiB / default scope
        ),
    )(x, kp["w1"], kp["wr1"], kp["wr2"], kp["wvu"],
      kp["bvu"], kp["ww"], kp["bw"], kp["wc"], kp["bc"])


def init_params(key, L, D, K, num_cls):
    """Deterministic PyTorch-style uniform init: U(-1/sqrt(fan_in), 1/sqrt(fan_in))."""
    ks = jax.random.split(key, 12)

    def lin(k, out_f, in_f):
        bound = 1.0 / jnp.sqrt(jnp.asarray(in_f, jnp.float32))
        return jax.random.uniform(k, (out_f, in_f), jnp.float32, -bound, bound)

    def bias(k, out_f, in_f):
        bound = 1.0 / jnp.sqrt(jnp.asarray(in_f, jnp.float32))
        return jax.random.uniform(k, (out_f,), jnp.float32, -bound, bound)

    return {
        # DimReduction
        "w1":  lin(ks[0], L, L),           # fc1, no bias
        "wr1": lin(ks[1], L, L),           # residual block linear 1, no bias
        "wr2": lin(ks[2], L, L),           # residual block linear 2, no bias
        # Attention_Gated
        "wv": lin(ks[3], D, L), "bv": bias(ks[4], D, L),
        "wu": lin(ks[5], D, L), "bu": bias(ks[6], D, L),
        "ww": lin(ks[7], K, D), "bw": bias(ks[8], K, D),
        # Classifier_1fc
        "wc": lin(ks[9], num_cls, L), "bc": bias(ks[10], num_cls, L),
    }


def prepare_params(p):
    """One-time layout prep (hoisted out of the call path): feature-dim-last transposes,
    fused V/U projection, bf16 cast of the MXU weight operands."""
    return {
        "w1":  p["w1"].T.astype(jnp.bfloat16),                                    # (L, L)
        "wr1": p["wr1"].T.astype(jnp.bfloat16),                                   # (L, L)
        "wr2": p["wr2"].T.astype(jnp.bfloat16),                                   # (L, L)
        "wvu": jnp.concatenate([p["wv"].T, p["wu"].T], axis=1).astype(jnp.bfloat16),  # (L, 2D)
        "bvu": jnp.concatenate([p["bv"], p["bu"]])[None, :].astype(jnp.float32),      # (1, 2D)
        "ww":  p["ww"].astype(jnp.float32),                                       # (1, D), K == 1
        "bw":  p["bw"].astype(jnp.float32),                                       # (1,)
        "wc":  p["wc"].T.astype(jnp.float32),                                     # (L, num_cls)
        "bc":  p["bc"][None, :].astype(jnp.float32),                              # (1, num_cls)
    }


if __name__ == "__main__":
    # Module-default feature dims, small instance count; N not a multiple of tile_n so the
    # padded-row masking path is exercised (tiles of 256, 256, 88).
    N, L, D, K, num_cls = 600, 512, 128, 1, 2
    TILE_N = 256

    root = jax.random.PRNGKey(0)
    k_x, k_p = jax.random.split(root)
    x = jax.random.normal(k_x, (N, L), jnp.float32)
    params = init_params(k_p, L, D, K, num_cls)
    kp = prepare_params(params)

    pred = second_stream_classifier(x, kp, num_cls, tile_n=TILE_N)
    pred = jax.block_until_ready(pred)

    # Pure-JAX reference with the same bf16-operand / f32-accumulation matmuls.
    xb = x.astype(jnp.bfloat16)
    h = jnp.maximum(jnp.dot(xb, kp["w1"], preferred_element_type=jnp.float32), 0.0)
    t = jnp.maximum(jnp.dot(h.astype(jnp.bfloat16), kp["wr1"],
                            preferred_element_type=jnp.float32), 0.0)
    t = jnp.maximum(jnp.dot(t.astype(jnp.bfloat16), kp["wr2"],
                            preferred_element_type=jnp.float32), 0.0)
    h = h + t
    vu = jnp.dot(h.astype(jnp.bfloat16), kp["wvu"],
                 preferred_element_type=jnp.float32) + kp["bvu"]
    gated = jnp.tanh(vu[:, :D]) * jax.nn.sigmoid(vu[:, D:])
    a = jnp.sum(gated * kp["ww"], axis=-1) + kp["bw"][0]        # (N,)
    att = jax.nn.softmax(a)                                     # softmax over instances
    bag = jnp.sum(h * att[:, None], axis=0, keepdims=True)      # (1, L)
    ref = jnp.dot(bag, kp["wc"]) + kp["bc"]                     # (1, num_cls)

    assert pred.shape == (1, num_cls)
    assert jnp.allclose(pred, ref, atol=2e-3, rtol=2e-3), (pred, ref)
    print("KERNEL_OK")
</pallas_src>

<mosaic_0001>
module attributes {stable_mosaic.version = 11 : i64} {
  func.func @_second_stream_kernel(%arg0: i32, %arg1: memref<256x512xf32, #tpu.memory_space<vmem>>, %arg2: memref<512x512xbf16, #tpu.memory_space<vmem>>, %arg3: memref<512x512xbf16, #tpu.memory_space<vmem>>, %arg4: memref<512x512xbf16, #tpu.memory_space<vmem>>, %arg5: memref<512x256xbf16, #tpu.memory_space<vmem>>, %arg6: memref<1x256xf32, #tpu.memory_space<vmem>>, %arg7: memref<1x128xf32, #tpu.memory_space<vmem>>, %arg8: memref<1xf32, #tpu.memory_space<smem>>, %arg9: memref<512x2xf32, #tpu.memory_space<vmem>>, %arg10: memref<1x2xf32, #tpu.memory_space<vmem>>, %arg11: memref<1x2xf32, #tpu.memory_space<vmem>>, %arg12: memref<1x1xf32, #tpu.memory_space<vmem>>, %arg13: memref<1x1xf32, #tpu.memory_space<vmem>>, %arg14: memref<1x512xf32, #tpu.memory_space<vmem>>) attributes {dimension_semantics = [#tpu.dimension_semantics<arbitrary>], iteration_bounds = array<i64: 3>, scalar_prefetch = 0 : i64, scratch_operands = 3 : i64, tpu.core_type = #tpu.core_type<tc>, window_params = [{transform_indices = @transform_0, window_bounds = array<i64: 256, 512>}, {pipeline_mode = #tpu.pipeline_mode<synchronous>, transform_indices = @transform_1, window_bounds = array<i64: 512, 512>}, {pipeline_mode = #tpu.pipeline_mode<synchronous>, transform_indices = @transform_2, window_bounds = array<i64: 512, 512>}, {pipeline_mode = #tpu.pipeline_mode<synchronous>, transform_indices = @transform_3, window_bounds = array<i64: 512, 512>}, {pipeline_mode = #tpu.pipeline_mode<synchronous>, transform_indices = @transform_4, window_bounds = array<i64: 512, 256>}, {pipeline_mode = #tpu.pipeline_mode<synchronous>, transform_indices = @transform_5, window_bounds = array<i64: 1, 256>}, {pipeline_mode = #tpu.pipeline_mode<synchronous>, transform_indices = @transform_6, window_bounds = array<i64: 1, 128>}, {transform_indices = @transform_7, window_bounds = array<i64: 1>}, {pipeline_mode = #tpu.pipeline_mode<synchronous>, transform_indices = @transform_8, window_bounds = array<i64: 512, 2>}, {pipeline_mode = #tpu.pipeline_mode<synchronous>, transform_indices = @transform_9, window_bounds = array<i64: 1, 2>}, {pipeline_mode = #tpu.pipeline_mode<synchronous>, transform_indices = @transform_10, window_bounds = array<i64: 1, 2>}]} {
    %c0_i32 = arith.constant 0 : i32
    %0 = arith.cmpi eq, %arg0, %c0_i32 : i32
    %1 = arith.extui %0 : i1 to i32
    %c0_i32_0 = arith.constant 0 : i32
    %2 = arith.cmpi ne, %1, %c0_i32_0 : i32
    scf.if %2 {
      %cst_42 = arith.constant 0xFF800000 : f32
      %83 = vector.broadcast %cst_42 : f32 to vector<1x1xf32>
      %c0_43 = arith.constant 0 : index
      %c0_44 = arith.constant 0 : index
      %84 = vector.load %arg12[%c0_43, %c0_44] : memref<1x1xf32, #tpu.memory_space<vmem>>, vector<1x1xf32>
      tpu.vector_store %arg12[%c0_43, %c0_44], %83 {strides = array<i32>} : memref<1x1xf32, #tpu.memory_space<vmem>>, vector<1x1xf32>,
      %cst_45 = arith.constant 0.000000e+00 : f32
      %85 = vector.broadcast %cst_45 : f32 to vector<1x1xf32>
      %c0_46 = arith.constant 0 : index
      %c0_47 = arith.constant 0 : index
      %86 = vector.load %arg13[%c0_46, %c0_47] : memref<1x1xf32, #tpu.memory_space<vmem>>, vector<1x1xf32>
      tpu.vector_store %arg13[%c0_46, %c0_47], %85 {strides = array<i32>} : memref<1x1xf32, #tpu.memory_space<vmem>>, vector<1x1xf32>,
      %cst_48 = arith.constant 0.000000e+00 : f32
      %87 = vector.broadcast %cst_48 : f32 to vector<1x512xf32>
      %c0_49 = arith.constant 0 : index
      %c0_50 = arith.constant 0 : index
      %88 = vector.load %arg14[%c0_49, %c0_50] : memref<1x512xf32, #tpu.memory_space<vmem>>, vector<1x512xf32>
      tpu.vector_store %arg14[%c0_49, %c0_50], %87 {strides = array<i32>} : memref<1x512xf32, #tpu.memory_space<vmem>>, vector<1x512xf32>,
    } else {
    }
    %c0 = arith.constant 0 : index
    %c0_1 = arith.constant 0 : index
    %3 = vector.load %arg1[%c0, %c0_1] : memref<256x512xf32, #tpu.memory_space<vmem>>, vector<256x512xf32>
    %4 = arith.truncf %3 : vector<256x512xf32> to vector<256x512xbf16>
    %c256_i32 = arith.constant 256 : i32
    %5 = arith.muli %arg0, %c256_i32 : i32
    %6 = tpu.iota {dimensions = array<i32: 0>} : vector<256x1xi32>
    %7 = vector.broadcast %5 : i32 to vector<256x1xi32>
    %8 = arith.addi %7, %6 : vector<256x1xi32>
    %c600_i32 = arith.constant 600 : i32
    %9 = vector.broadcast %c600_i32 : i32 to vector<256x1xi32>
    %10 = arith.cmpi slt, %8, %9 : vector<256x1xi32>
    %cst = arith.constant 0.000000e+00 : bf16
    %11 = vector.broadcast %cst : bf16 to vector<256x512xbf16>
    %12 = vector.shape_cast %10 : vector<256x1xi1> to vector<256x1xi1>
    %13 = vector.broadcast %12 : vector<256x1xi1> to vector<256x512xi1>
    %14 = arith.select %13, %4, %11 : vector<256x512xi1>, vector<256x512xbf16>
    %c0_2 = arith.constant 0 : index
    %c0_3 = arith.constant 0 : index
    %15 = vector.load %arg2[%c0_2, %c0_3] : memref<512x512xbf16, #tpu.memory_space<vmem>>, vector<512x512xbf16>
    %cst_4 = arith.constant dense<0.000000e+00> : vector<256x512xf32>
    %16 = tpu.matmul %14, %15, %cst_4 {dimension_numbers = #tpu.dot_dimension_numbers<[1], [0], [0], [1], [0, 0, 1, 1], [], []>} : vector<256x512xbf16>, vector<512x512xbf16>, vector<256x512xf32> -> vector<256x512xf32>
    %cst_5 = arith.constant 0.000000e+00 : f32
    %17 = vector.broadcast %cst_5 : f32 to vector<256x512xf32>
    %18 = arith.maximumf %16, %17 : vector<256x512xf32>
    %19 = arith.truncf %18 : vector<256x512xf32> to vector<256x512xbf16>
    %c0_6 = arith.constant 0 : index
    %c0_7 = arith.constant 0 : index
    %20 = vector.load %arg3[%c0_6, %c0_7] : memref<512x512xbf16, #tpu.memory_space<vmem>>, vector<512x512xbf16>
    %cst_8 = arith.constant dense<0.000000e+00> : vector<256x512xf32>
    %21 = tpu.matmul %19, %20, %cst_8 {dimension_numbers = #tpu.dot_dimension_numbers<[1], [0], [0], [1], [0, 0, 1, 1], [], []>} : vector<256x512xbf16>, vector<512x512xbf16>, vector<256x512xf32> -> vector<256x512xf32>
    %cst_9 = arith.constant 0.000000e+00 : f32
    %22 = vector.broadcast %cst_9 : f32 to vector<256x512xf32>
    %23 = arith.maximumf %21, %22 : vector<256x512xf32>
    %24 = arith.truncf %23 : vector<256x512xf32> to vector<256x512xbf16>
    %c0_10 = arith.constant 0 : index
    %c0_11 = arith.constant 0 : index
    %25 = vector.load %arg4[%c0_10, %c0_11] : memref<512x512xbf16, #tpu.memory_space<vmem>>, vector<512x512xbf16>
    %cst_12 = arith.constant dense<0.000000e+00> : vector<256x512xf32>
    %26 = tpu.matmul %24, %25, %cst_12 {dimension_numbers = #tpu.dot_dimension_numbers<[1], [0], [0], [1], [0, 0, 1, 1], [], []>} : vector<256x512xbf16>, vector<512x512xbf16>, vector<256x512xf32> -> vector<256x512xf32>
    %cst_13 = arith.constant 0.000000e+00 : f32
    %27 = vector.broadcast %cst_13 : f32 to vector<256x512xf32>
    %28 = arith.maximumf %26, %27 : vector<256x512xf32>
    %29 = arith.addf %18, %28 : vector<256x512xf32>
    %30 = arith.truncf %29 : vector<256x512xf32> to vector<256x512xbf16>
    %c0_14 = arith.constant 0 : index
    %c0_15 = arith.constant 0 : index
    %31 = vector.load %arg5[%c0_14, %c0_15] : memref<512x256xbf16, #tpu.memory_space<vmem>>, vector<512x256xbf16>
    %cst_16 = arith.constant dense<0.000000e+00> : vector<256x256xf32>
    %32 = tpu.matmul %30, %31, %cst_16 {dimension_numbers = #tpu.dot_dimension_numbers<[1], [0], [0], [1], [0, 0, 1, 1], [], []>} : vector<256x512xbf16>, vector<512x256xbf16>, vector<256x256xf32> -> vector<256x256xf32>
    %c0_17 = arith.constant 0 : index
    %c0_18 = arith.constant 0 : index
    %33 = vector.load %arg6[%c0_17, %c0_18] : memref<1x256xf32, #tpu.memory_space<vmem>>, vector<1x256xf32>
    %34 = vector.broadcast %33 : vector<1x256xf32> to vector<256x256xf32>
    %35 = arith.addf %32, %34 : vector<256x256xf32>
    %36 = vector.extract_strided_slice %35 {offsets = [0, 0], sizes = [256, 128], strides = [1, 1]} : vector<256x256xf32> to vector<256x128xf32>
    %37 = math.tanh %36 : vector<256x128xf32>
    %38 = vector.extract_strided_slice %35 {offsets = [0, 128], sizes = [256, 128], strides = [1, 1]} : vector<256x256xf32> to vector<256x128xf32>
    %39 = arith.negf %38 : vector<256x128xf32>
    %40 = math.exp %39 : vector<256x128xf32>
    %cst_19 = arith.constant 1.000000e+00 : f32
    %41 = vector.broadcast %cst_19 : f32 to vector<256x128xf32>
    %42 = arith.addf %41, %40 : vector<256x128xf32>
    %43 = arith.divf %41, %42 : vector<256x128xf32>
    %44 = arith.mulf %37, %43 : vector<256x128xf32>
    %c0_20 = arith.constant 0 : index
    %c0_21 = arith.constant 0 : index
    %45 = vector.load %arg7[%c0_20, %c0_21] : memref<1x128xf32, #tpu.memory_space<vmem>>, vector<1x128xf32>
    %46 = vector.broadcast %45 : vector<1x128xf32> to vector<256x128xf32>
    %47 = arith.mulf %44, %46 : vector<256x128xf32>
    %cst_22 = arith.constant dense<0.000000e+00> : vector<256xf32>
    %48 = vector.multi_reduction <add>, %47, %cst_22 [1] : vector<256x128xf32> to vector<256xf32>
    %49 = vector.shape_cast %48 : vector<256xf32> to vector<256x1xf32>
    %c0_23 = arith.constant 0 : index
    %50 = memref.load %arg8[%c0_23] : memref<1xf32, #tpu.memory_space<smem>>
    %51 = vector.broadcast %50 : f32 to vector<256x1xf32>
    %52 = arith.addf %49, %51 : vector<256x1xf32>
    %cst_24 = arith.constant 0xFF800000 : f32
    %53 = vector.broadcast %cst_24 : f32 to vector<256x1xf32>
    %54 = arith.select %10, %52, %53 : vector<256x1xi1>, vector<256x1xf32>
    %c0_25 = arith.constant 0 : index
    %c0_26 = arith.constant 0 : index
    %55 = vector.load %arg12[%c0_25, %c0_26] : memref<1x1xf32, #tpu.memory_space<vmem>>, vector<1x1xf32>
    %cst_27 = arith.constant dense<0xFF800000> : vector<1xf32>
    %56 = vector.multi_reduction <maximumf>, %54, %cst_27 [0] : vector<256x1xf32> to vector<1xf32>
    %57 = vector.shape_cast %56 : vector<1xf32> to vector<1x1xf32>
    %58 = arith.maximumf %55, %57 : vector<1x1xf32>
    %59 = arith.subf %55, %58 : vector<1x1xf32>
    %60 = math.exp %59 : vector<1x1xf32>
    %61 = vector.broadcast %58 : vector<1x1xf32> to vector<256x1xf32>
    %62 = arith.subf %54, %61 : vector<256x1xf32>
    %63 = math.exp %62 : vector<256x1xf32>
    %c0_28 = arith.constant 0 : index
    %c0_29 = arith.constant 0 : index
    %64 = vector.load %arg13[%c0_28, %c0_29] : memref<1x1xf32, #tpu.memory_space<vmem>>, vector<1x1xf32>
    %65 = arith.mulf %60, %64 : vector<1x1xf32>
    %cst_30 = arith.constant dense<0.000000e+00> : vector<1xf32>
    %66 = vector.multi_reduction <add>, %63, %cst_30 [0] : vector<256x1xf32> to vector<1xf32>
    %67 = vector.shape_cast %66 : vector<1xf32> to vector<1x1xf32>
    %68 = arith.addf %65, %67 : vector<1x1xf32>
    %c0_31 = arith.constant 0 : index
    %c0_32 = arith.constant 0 : index
    %69 = vector.load %arg13[%c0_31, %c0_32] : memref<1x1xf32, #tpu.memory_space<vmem>>, vector<1x1xf32>
    tpu.vector_store %arg13[%c0_31, %c0_32], %68 {strides = array<i32>} : memref<1x1xf32, #tpu.memory_space<vmem>>, vector<1x1xf32>,
    %c0_33 = arith.constant 0 : index
    %c0_34 = arith.constant 0 : index
    %70 = vector.load %arg12[%c0_33, %c0_34] : memref<1x1xf32, #tpu.memory_space<vmem>>, vector<1x1xf32>
    tpu.vector_store %arg12[%c0_33, %c0_34], %58 {strides = array<i32>} : memref<1x1xf32, #tpu.memory_space<vmem>>, vector<1x1xf32>,
    %cst_35 = arith.constant 1.000000e+00 : f32
    %71 = vector.broadcast %cst_35 : f32 to vector<1x256xf32>
    %c0_36 = arith.constant 0 : index
    %c0_37 = arith.constant 0 : index
    %72 = vector.load %arg14[%c0_36, %c0_37] : memref<1x512xf32, #tpu.memory_space<vmem>>, vector<1x512xf32>
    %73 = vector.broadcast %60 : vector<1x1xf32> to vector<1x512xf32>
    %74 = arith.mulf %73, %72 : vector<1x512xf32>
    %75 = vector.broadcast %63 : vector<256x1xf32> to vector<256x512xf32>
    %76 = arith.mulf %75, %29 : vector<256x512xf32>
    %cst_38 = arith.constant dense<0.000000e+00> : vector<1x512xf32>
    %77 = tpu.matmul %71, %76, %cst_38 {dimension_numbers = #tpu.dot_dimension_numbers<[1], [0], [0], [1], [0, 0, 1, 1], [], []>} : vector<1x256xf32>, vector<256x512xf32>, vector<1x512xf32> -> vector<1x512xf32>
    %78 = arith.addf %74, %77 : vector<1x512xf32>
    %c0_39 = arith.constant 0 : index
    %c0_40 = arith.constant 0 : index
    %79 = vector.load %arg14[%c0_39, %c0_40] : memref<1x512xf32, #tpu.memory_space<vmem>>, vector<1x512xf32>
    tpu.vector_store %arg14[%c0_39, %c0_40], %78 {strides = array<i32>} : memref<1x512xf32, #tpu.memory_space<vmem>>, vector<1x512xf32>,
    %c2_i32 = arith.constant 2 : i32
    %80 = arith.cmpi eq, %arg0, %c2_i32 : i32
    %81 = arith.extui %80 : i1 to i32
    %c0_i32_41 = arith.constant 0 : i32
    %82 = arith.cmpi ne, %81, %c0_i32_41 : i32
    scf.if %82 {
      %c0_42 = arith.constant 0 : index
      %c0_43 = arith.constant 0 : index
      %83 = vector.load %arg14[%c0_42, %c0_43] : memref<1x512xf32, #tpu.memory_space<vmem>>, vector<1x512xf32>
      %c0_44 = arith.constant 0 : index
      %c0_45 = arith.constant 0 : index
      %84 = vector.load %arg13[%c0_44, %c0_45] : memref<1x1xf32, #tpu.memory_space<vmem>>, vector<1x1xf32>
      %85 = tpu.reciprocal %84 {approx = true} : vector<1x1xf32> -> vector<1x1xf32>
      %86 = vector.broadcast %85 : vector<1x1xf32> to vector<1x512xf32>
      %87 = arith.mulf %83, %86 : vector<1x512xf32>
      %c0_46 = arith.constant 0 : index
      %c0_47 = arith.constant 0 : index
      %88 = vector.load %arg9[%c0_46, %c0_47] : memref<512x2xf32, #tpu.memory_space<vmem>>, vector<512x2xf32>
      %cst_48 = arith.constant dense<0.000000e+00> : vector<1x2xf32>
      %89 = tpu.matmul %87, %88, %cst_48 {dimension_numbers = #tpu.dot_dimension_numbers<[1], [0], [0], [1], [0, 0, 1, 1], [], []>} : vector<1x512xf32>, vector<512x2xf32>, vector<1x2xf32> -> vector<1x2xf32>
      %c0_49 = arith.constant 0 : index
      %c0_50 = arith.constant 0 : index
      %90 = vector.load %arg10[%c0_49, %c0_50] : memref<1x2xf32, #tpu.memory_space<vmem>>, vector<1x2xf32>
      %91 = arith.addf %89, %90 : vector<1x2xf32>
      %c0_51 = arith.constant 0 : index
      %c0_52 = arith.constant 0 : index
      %92 = vector.load %arg11[%c0_51, %c0_52] : memref<1x2xf32, #tpu.memory_space<vmem>>, vector<1x2xf32>
      tpu.vector_store %arg11[%c0_51, %c0_52], %91 {strides = array<i32>} : memref<1x2xf32, #tpu.memory_space<vmem>>, vector<1x2xf32>,
    } else {
    }
    return
  }
  func.func @transform_0(%arg0: i32) -> (i32, i32) {
    %c0_i32 = arith.constant 0 : i32
    %c0_i32_0 = arith.constant 0 : i32
    return %arg0, %c0_i32 : i32, i32
  }
  func.func @transform_1(%arg0: i32) -> (i32, i32) {
    %c0_i32 = arith.constant 0 : i32
    %c0_i32_0 = arith.constant 0 : i32
    %c0_i32_1 = arith.constant 0 : i32
    return %c0_i32, %c0_i32_0 : i32, i32
  }
  func.func @transform_2(%arg0: i32) -> (i32, i32) {
    %c0_i32 = arith.constant 0 : i32
    %c0_i32_0 = arith.constant 0 : i32
    %c0_i32_1 = arith.constant 0 : i32
    return %c0_i32, %c0_i32_0 : i32, i32
  }
  func.func @transform_3(%arg0: i32) -> (i32, i32) {
    %c0_i32 = arith.constant 0 : i32
    %c0_i32_0 = arith.constant 0 : i32
    %c0_i32_1 = arith.constant 0 : i32
    return %c0_i32, %c0_i32_0 : i32, i32
  }
  func.func @transform_4(%arg0: i32) -> (i32, i32) {
    %c0_i32 = arith.constant 0 : i32
    %c0_i32_0 = arith.constant 0 : i32
    %c0_i32_1 = arith.constant 0 : i32
    return %c0_i32, %c0_i32_0 : i32, i32
  }
  func.func @transform_5(%arg0: i32) -> (i32, i32) {
    %c0_i32 = arith.constant 0 : i32
    %c0_i32_0 = arith.constant 0 : i32
    %c0_i32_1 = arith.constant 0 : i32
    return %c0_i32, %c0_i32_0 : i32, i32
  }
  func.func @transform_6(%arg0: i32) -> (i32, i32) {
    %c0_i32 = arith.constant 0 : i32
    %c0_i32_0 = arith.constant 0 : i32
    %c0_i32_1 = arith.constant 0 : i32
    return %c0_i32, %c0_i32_0 : i32, i32
  }
  func.func @transform_7(%arg0: i32) -> i32 {
    %c0_i32 = arith.constant 0 : i32
    %c0_i32_0 = arith.constant 0 : i32
    return %c0_i32 : i32
  }
  func.func @transform_8(%arg0: i32) -> (i32, i32) {
    %c0_i32 = arith.constant 0 : i32
    %c0_i32_0 = arith.constant 0 : i32
    %c0_i32_1 = arith.constant 0 : i32
    return %c0_i32, %c0_i32_0 : i32, i32
  }
  func.func @transform_9(%arg0: i32) -> (i32, i32) {
    %c0_i32 = arith.constant 0 : i32
    %c0_i32_0 = arith.constant 0 : i32
    %c0_i32_1 = arith.constant 0 : i32
    return %c0_i32, %c0_i32_0 : i32, i32
  }
  func.func @transform_10(%arg0: i32) -> (i32, i32) {
    %c0_i32 = arith.constant 0 : i32
    %c0_i32_0 = arith.constant 0 : i32
    %c0_i32_1 = arith.constant 0 : i32
    return %c0_i32, %c0_i32_0 : i32, i32
  }
}

</mosaic_0001>

<llo_original>
// kernel: tpu_custom_call.1
$region0: #{tpu_custom_call.1}
  #allocation0 [shape = 'u32[]', space=smem, size = 0x4, offset = 0x4, fixed_abs, tag = 'smem constant byte address 0x4 - core index']
  #allocation1 [shape = 'u32[72,128]{1,0:T(1,128)}', space=vmem, size = 0x9000, scoped, tag = 'internal scratch']
  #allocation2 [shape = 'f32[1,1]{1,0:T(1,128)}', space=vmem, size = 0x200, scoped, tag = 'scratch operand']
  #allocation3 [shape = 'f32[1,1]{1,0:T(1,128)}', space=vmem, size = 0x200, scoped, tag = 'scratch operand']
  #allocation4 [shape = 'f32[1,512]{1,0:T(1,128)}', space=vmem, size = 0x800, scoped, tag = 'scratch operand']
  #allocation5 [shape = 'f32[1]{0:T(128)S(6)}', space=smem, size = 0x200, scoped, tag = 'scoped memory for tpu_custom_call.1']
  %s0 = inlined_call_operand.hbm [shape: f32[600,512], index: 0, kind: input, shape index: {}]
  %s1 = inlined_call_operand.hbm [shape: bf16[512,512], index: 1, kind: input, shape index: {}]
  %s2 = inlined_call_operand.hbm [shape: bf16[512,512], index: 2, kind: input, shape index: {}]
  %s3 = inlined_call_operand.hbm [shape: bf16[512,512], index: 3, kind: input, shape index: {}]
  %s4 = inlined_call_operand.hbm [shape: bf16[512,256], index: 4, kind: input, shape index: {}]
  %s5 = inlined_call_operand.hbm [shape: f32[1,256], index: 5, kind: input, shape index: {}]
  %s6 = inlined_call_operand.hbm [shape: f32[1,128], index: 6, kind: input, shape index: {}]
  %s7 = inlined_call_operand.<no memory space> [shape: f32[1], index: 7, kind: input, shape index: {}]
  %s8 = inlined_call_operand.vmem [shape: f32[512,2], index: 8, kind: input, shape index: {}]
  %s9 = inlined_call_operand.hbm [shape: f32[1,2], index: 9, kind: input, shape index: {}]
  %s10 = inlined_call_operand.hbm [shape: f32[1,2], index: 10, kind: output, shape index: {}]
  %s11 = sld [smem:[#allocation0]]
  $region113: #{tpu_custom_call.1} parent=0
    _
  %s13 = ssub.s32 1, %s11
  %s14 = scalar_select 0, %s13, %s11
  %15 = sst [smem:[#allocation5]] %s7
  $region1: #{tpu_custom_call.1} parent=0
    #allocation6 [shape = 'u8[1048576]{0}', space=vmem, size = 0x100000, scoped, tag = 'input window, operand 0']
    #allocation7 [shape = 's32[2]{0}', space=sflag, size = 0x8, scoped, tag = 'scoped memory for tpu_custom_call.1']
    #allocation8 [shape = 's32[2]{0}', space=sflag, size = 0x8, scoped, tag = 'scoped memory for tpu_custom_call.1']
    #allocation9 [shape = 'u8[524288]{0}', space=vmem, size = 0x80000, scoped, tag = 'input window, operand 1, single buffered']
    #allocation10 [shape = 's32[1]{0}', space=sflag, size = 0x4, scoped, tag = 'scoped memory for tpu_custom_call.1']
    #allocation11 [shape = 'u8[524288]{0}', space=vmem, size = 0x80000, scoped, tag = 'input window, operand 2, single buffered']
    #allocation12 [shape = 'u8[524288]{0}', space=vmem, size = 0x80000, scoped, tag = 'input window, operand 3, single buffered']
    #allocation13 [shape = 's32[1]{0}', space=sflag, size = 0x4, scoped, tag = 'scoped memory for tpu_custom_call.1']
    #allocation14 [shape = 'u8[262144]{0}', space=vmem, size = 0x40000, scoped, tag = 'input window, operand 4, single buffered']
    #allocation15 [shape = 'u8[1024]{0}', space=vmem, size = 0x400, scoped, tag = 'input window, operand 5, single buffered']
    #allocation16 [shape = 's32[1]{0}', space=sflag, size = 0x4, scoped, tag = 'scoped memory for tpu_custom_call.1']
    #allocation17 [shape = 'u8[512]{0}', space=vmem, size = 0x400, scoped, tag = 'input window, operand 6, single buffered']
    #allocation18 [shape = 'u8[512]{0}', space=vmem, size = 0x400, scoped, tag = 'input window, operand 9, single buffered']
    #allocation19 [shape = 's32[1]{0}', space=sflag, size = 0x4, scoped, tag = 'scoped memory for tpu_custom_call.1']
    #allocation20 [shape = 'u8[512]{0}', space=vmem, size = 0x400, scoped, tag = 'output window, operand 0, single buffered']
    %16 = vsyncpa [#allocation7], 0
    %s17 = scalar_lea.sflag [#allocation7], 1
    %18 = vsyncpa %s17, 0
    %19 = vsyncpa [#allocation10], 0
    %20 = vsyncpa [#allocation13], 0
    %21 = vsyncpa [#allocation16], 0
    %22 = vsyncpa [#allocation19], 0
    %23 = vsyncpa [#allocation8], 0
    loop: start=0, step=1, limit=5
    $region2: #{tpu_custom_call.1} parent=1 // loop_pre_header
      _
    $region3: #{tpu_custom_call.1} parent=1 // loop_header
      %s25 = sphi 0, %s29
      %p26 = scmp.ge.s32.totalorder %s25, 5
      %s35 = sphi 0, %s37
      %s38 = sphi 0, %s35
      %s39 = sphi 0, %s38
      %s55 = sphi 0, %s39
      %s59 = sphi 0, %s59
      %s61 = sphi 0, %s59
      %s62 = sphi 0, %s61
      %s76 = sphi 0, %s62
      %s80 = sphi 0, %s80
      %s82 = sphi 0, %s80
      %s83 = sphi 0, %s82
      %s97 = sphi 0, %s83
      %s101 = sphi 0, %s101
      %s103 = sphi 0, %s101
      %s104 = sphi 0, %s103
      %s118 = sphi 0, %s104
      %s122 = sphi 0, %s122
      %s124 = sphi 0, %s122
      %s125 = sphi 0, %s124
      %s139 = sphi 0, %s125
      %s143 = sphi 0, %s143
      %s145 = sphi 0, %s143
      %s146 = sphi 0, %s145
      %s160 = sphi 0, %s146
      %s164 = sphi 0, %s164
      %s166 = sphi 0, %s164
      %s167 = sphi 0, %s166
      %s181 = sphi 0, %s167
      %s185 = sphi 0, %s185
      %s187 = sphi 0, %s185
      %s188 = sphi 0, %s187
      %s202 = sphi 0, %s188
      %s206 = sphi 0, %s206
      %s208 = sphi 0, %s206
      %s209 = sphi 0, %s208
      %s223 = sphi 0, %s209
      %s227 = sphi 0, %s227
      %s229 = sphi 0, %s227
      %s230 = sphi 0, %s229
      %s244 = sphi 0, %s230
      %s248 = sphi 0, %s248
      %s250 = sphi 0, %s248
      %s251 = sphi 0, %s250
      %s265 = sphi 0, %s251
    $region4: #{tpu_custom_call.1} parent=1 // loop_header_branch
      %28 = sbr.rel (%p26) target = $region8
    $region5: #{tpu_custom_call.1} parent=1 // loop_body
      %s30 = ssub.s32 %s25, 1
      %s31 = ssub.s32 %s25, 2
      %s32 = sadd.s32 %s25, 1
      %s33 = ssub.s32 %s25, %s32
      %p34 = scmp.eq.s32.totalorder %s33, 0
      %s36 = sadd.s32 %s35, 1
      %s37 = scalar_select %p34, %s35, %s36
      %p40 = pneg %p34
      %p41 = scmp.eq.s32.totalorder %s25, 2
      %p42 = por %p40, %p41
      %p43 = scmp.ne.s32.totalorder %s35, %s38
      %p44 = scmp.eq.s32.totalorder %s25, 0
      %p45 = por %p43, %p44
      %p46 = scmp.ne.s32.totalorder %s35, %s38
      %p47 = scmp.eq.s32.totalorder %s30, 2
      %p48 = por %p46, %p47
      %p49 = scmp.ne.s32.totalorder %s38, %s39
      %p50 = scmp.eq.s32.totalorder %s30, 0
      %p51 = por %p49, %p50
      %p52 = scmp.ne.s32.totalorder %s38, %s39
      %p53 = scmp.eq.s32.totalorder %s31, 2
      %p54 = por %p52, %p53
      %p56 = scmp.ne.s32.totalorder %s39, %s55
      %p57 = scmp.eq.s32.totalorder %s31, 0
      %p58 = por %p56, %p57
      %s60 = sadd.s32 %s59, 1
      %p63 = scmp.eq.s32.totalorder %s25, 2
      %p64 = scmp.ne.s32.totalorder %s59, %s61
      %p65 = scmp.eq.s32.totalorder %s25, 0
      %p66 = por %p64, %p65
      %p67 = scmp.ne.s32.totalorder %s59, %s61
      %p68 = scmp.eq.s32.totalorder %s30, 2
      %p69 = por %p67, %p68
      %p70 = scmp.ne.s32.totalorder %s61, %s62
      %p71 = scmp.eq.s32.totalorder %s30, 0
      %p72 = por %p70, %p71
      %p73 = scmp.ne.s32.totalorder %s61, %s62
      %p74 = scmp.eq.s32.totalorder %s31, 2
      %p75 = por %p73, %p74
      %p77 = scmp.ne.s32.totalorder %s62, %s76
      %p78 = scmp.eq.s32.totalorder %s31, 0
      %p79 = por %p77, %p78
      %s81 = sadd.s32 %s80, 1
      %p84 = scmp.eq.s32.totalorder %s25, 2
      %p85 = scmp.ne.s32.totalorder %s80, %s82
      %p86 = scmp.eq.s32.totalorder %s25, 0
      %p87 = por %p85, %p86
      %p88 = scmp.ne.s32.totalorder %s80, %s82
      %p89 = scmp.eq.s32.totalorder %s30, 2
      %p90 = por %p88, %p89
      %p91 = scmp.ne.s32.totalorder %s82, %s83
      %p92 = scmp.eq.s32.totalorder %s30, 0
      %p93 = por %p91, %p92
      %p94 = scmp.ne.s32.totalorder %s82, %s83
      %p95 = scmp.eq.s32.totalorder %s31, 2
      %p96 = por %p94, %p95
      %p98 = scmp.ne.s32.totalorder %s83, %s97
      %p99 = scmp.eq.s32.totalorder %s31, 0
      %p100 = por %p98, %p99
      %s102 = sadd.s32 %s101, 1
      %p105 = scmp.eq.s32.totalorder %s25, 2
      %p106 = scmp.ne.s32.totalorder %s101, %s103
      %p107 = scmp.eq.s32.totalorder %s25, 0
      %p108 = por %p106, %p107
      %p109 = scmp.ne.s32.totalorder %s101, %s103
      %p110 = scmp.eq.s32.totalorder %s30, 2
      %p111 = por %p109, %p110
      %p112 = scmp.ne.s32.totalorder %s103, %s104
      %p113 = scmp.eq.s32.totalorder %s30, 0
      %p114 = por %p112, %p113
      %p115 = scmp.ne.s32.totalorder %s103, %s104
      %p116 = scmp.eq.s32.totalorder %s31, 2
      %p117 = por %p115, %p116
      %p119 = scmp.ne.s32.totalorder %s104, %s118
      %p120 = scmp.eq.s32.totalorder %s31, 0
      %p121 = por %p119, %p120
      %s123 = sadd.s32 %s122, 1
      %p126 = scmp.eq.s32.totalorder %s25, 2
      %p127 = scmp.ne.s32.totalorder %s122, %s124
      %p128 = scmp.eq.s32.totalorder %s25, 0
      %p129 = por %p127, %p128
      %p130 = scmp.ne.s32.totalorder %s122, %s124
      %p131 = scmp.eq.s32.totalorder %s30, 2
      %p132 = por %p130, %p131
      %p133 = scmp.ne.s32.totalorder %s124, %s125
      %p134 = scmp.eq.s32.totalorder %s30, 0
      %p135 = por %p133, %p134
      %p136 = scmp.ne.s32.totalorder %s124, %s125
      %p137 = scmp.eq.s32.totalorder %s31, 2
      %p138 = por %p136, %p137
      %p140 = scmp.ne.s32.totalorder %s125, %s139
      %p141 = scmp.eq.s32.totalorder %s31, 0
      %p142 = por %p140, %p141
      %s144 = sadd.s32 %s143, 1
      %p147 = scmp.eq.s32.totalorder %s25, 2
      %p148 = scmp.ne.s32.totalorder %s143, %s145
      %p149 = scmp.eq.s32.totalorder %s25, 0
      %p150 = por %p148, %p149
      %p151 = scmp.ne.s32.totalorder %s143, %s145
      %p152 = scmp.eq.s32.totalorder %s30, 2
      %p153 = por %p151, %p152
      %p154 = scmp.ne.s32.totalorder %s145, %s146
      %p155 = scmp.eq.s32.totalorder %s30, 0
      %p156 = por %p154, %p155
      %p157 = scmp.ne.s32.totalorder %s145, %s146
      %p158 = scmp.eq.s32.totalorder %s31, 2
      %p159 = por %p157, %p158
      %p161 = scmp.ne.s32.totalorder %s146, %s160
      %p162 = scmp.eq.s32.totalorder %s31, 0
      %p163 = por %p161, %p162
      %s165 = sadd.s32 %s164, 1
      %p168 = scmp.eq.s32.totalorder %s25, 2
      %p169 = scmp.ne.s32.totalorder %s164, %s166
      %p170 = scmp.eq.s32.totalorder %s25, 0
      %p171 = por %p169, %p170
      %p172 = scmp.ne.s32.totalorder %s164, %s166
      %p173 = scmp.eq.s32.totalorder %s30, 2
      %p174 = por %p172, %p173
      %p175 = scmp.ne.s32.totalorder %s166, %s167
      %p176 = scmp.eq.s32.totalorder %s30, 0
      %p177 = por %p175, %p176
      %p178 = scmp.ne.s32.totalorder %s166, %s167
      %p179 = scmp.eq.s32.totalorder %s31, 2
      %p180 = por %p178, %p179
      %p182 = scmp.ne.s32.totalorder %s167, %s181
      %p183 = scmp.eq.s32.totalorder %s31, 0
      %p184 = por %p182, %p183
      %s186 = sadd.s32 %s185, 1
      %p189 = scmp.eq.s32.totalorder %s25, 2
      %p190 = scmp.ne.s32.totalorder %s185, %s187
      %p191 = scmp.eq.s32.totalorder %s25, 0
      %p192 = por %p190, %p191
      %p193 = scmp.ne.s32.totalorder %s185, %s187
      %p194 = scmp.eq.s32.totalorder %s30, 2
      %p195 = por %p193, %p194
      %p196 = scmp.ne.s32.totalorder %s187, %s188
      %p197 = scmp.eq.s32.totalorder %s30, 0
      %p198 = por %p196, %p197
      %p199 = scmp.ne.s32.totalorder %s187, %s188
      %p200 = scmp.eq.s32.totalorder %s31, 2
      %p201 = por %p199, %p200
      %p203 = scmp.ne.s32.totalorder %s188, %s202
      %p204 = scmp.eq.s32.totalorder %s31, 0
      %p205 = por %p203, %p204
      %s207 = sadd.s32 %s206, 1
      %p210 = scmp.eq.s32.totalorder %s25, 2
      %p211 = scmp.ne.s32.totalorder %s206, %s208
      %p212 = scmp.eq.s32.totalorder %s25, 0
      %p213 = por %p211, %p212
      %p214 = scmp.ne.s32.totalorder %s206, %s208
      %p215 = scmp.eq.s32.totalorder %s30, 2
      %p216 = por %p214, %p215
      %p217 = scmp.ne.s32.totalorder %s208, %s209
      %p218 = scmp.eq.s32.totalorder %s30, 0
      %p219 = por %p217, %p218
      %p220 = scmp.ne.s32.totalorder %s208, %s209
      %p221 = scmp.eq.s32.totalorder %s31, 2
      %p222 = por %p220, %p221
      %p224 = scmp.ne.s32.totalorder %s209, %s223
      %p225 = scmp.eq.s32.totalorder %s31, 0
      %p226 = por %p224, %p225
      %s228 = sadd.s32 %s227, 1
      %p231 = scmp.eq.s32.totalorder %s25, 2
      %p232 = scmp.ne.s32.totalorder %s227, %s229
      %p233 = scmp.eq.s32.totalorder %s25, 0
      %p234 = por %p232, %p233
      %p235 = scmp.ne.s32.totalorder %s227, %s229
      %p236 = scmp.eq.s32.totalorder %s30, 2
      %p237 = por %p235, %p236
      %p238 = scmp.ne.s32.totalorder %s229, %s230
      %p239 = scmp.eq.s32.totalorder %s30, 0
      %p240 = por %p238, %p239
      %p241 = scmp.ne.s32.totalorder %s229, %s230
      %p242 = scmp.eq.s32.totalorder %s31, 2
      %p243 = por %p241, %p242
      %p245 = scmp.ne.s32.totalorder %s230, %s244
      %p246 = scmp.eq.s32.totalorder %s31, 0
      %p247 = por %p245, %p246
      %s249 = sadd.s32 %s248, 1
      %p252 = scmp.eq.s32.totalorder %s25, 2
      %p253 = scmp.ne.s32.totalorder %s248, %s250
      %p254 = scmp.eq.s32.totalorder %s25, 0
      %p255 = por %p253, %p254
      %p256 = scmp.ne.s32.totalorder %s248, %s250
      %p257 = scmp.eq.s32.totalorder %s30, 2
      %p258 = por %p256, %p257
      %p259 = scmp.ne.s32.totalorder %s250, %s251
      %p260 = scmp.eq.s32.totalorder %s30, 0
      %p261 = por %p259, %p260
      %p262 = scmp.ne.s32.totalorder %s250, %s251
      %p263 = scmp.eq.s32.totalorder %s31, 2
      %p264 = por %p262, %p263
      %p266 = scmp.ne.s32.totalorder %s251, %s265
      %p267 = scmp.eq.s32.totalorder %s31, 0
      %p268 = por %p266, %p267
      %p269 = scmp.le.s32.totalorder 1, %s25
      %p270 = scmp.lt.s32.totalorder %s25, 4
      %p271 = pnand %p269, %p270
      %p272 = pneg %p271
      // Predicated region
      $region9: #{tpu_custom_call.1} parent=5 // pred_check
        _
      $region10: #{tpu_custom_call.1} parent=5 // pred_check_branch
        %274 = sbr.rel (%p271) target = $region12
      $region11: #{tpu_custom_call.1} parent=5 // pred_region
        %s275 = ssub.s32 %s25, 1
        // Predicated region
        $region13: #{tpu_custom_call.1} parent=11 // pred_check
          %p276 = pneg %p72
        $region14: #{tpu_custom_call.1} parent=11 // pred_check_branch
          %278 = sbr.rel (%p276) target = $region16
        $region15: #{tpu_custom_call.1} parent=11 // pred_region
          %280 = vsyncadd [#allocation10], 0
          %s281 = sshll.u32 %s1, 4
          %s282 = int_to_ptr.hbm [resolvable:$true] %s281
          %s283 = sshll.u32 [#allocation9], 4
          %s284 = int_to_ptr.vmem [resolvable:$true] %s283
          %289 = dma.hbm_to_vmem [thread:$0]  %s282, 16384, %s284, [#allocation10], 256, 256, 16
        $region16: #{tpu_custom_call.1} parent=11 // pred_fallthru
          _
        // Predicated region
        $region17: #{tpu_custom_call.1} parent=11 // pred_check
          %p290 = pneg %p93
        $region18: #{tpu_custom_call.1} parent=11 // pred_check_branch
          %292 = sbr.rel (%p290) target = $region20
        $region19: #{tpu_custom_call.1} parent=11 // pred_region
          %294 = vsyncadd [#allocation10], 0
          %s295 = sshll.u32 %s2, 4
          %s296 = int_to_ptr.hbm [resolvable:$true] %s295
          %s297 = sshll.u32 [#allocation11], 4
          %s298 = int_to_ptr.vmem [resolvable:$true] %s297
          %303 = dma.hbm_to_vmem [thread:$0]  %s296, 16384, %s298, [#allocation10], 256, 256, 16
        $region20: #{tpu_custom_call.1} parent=11 // pred_fallthru
          _
        // Predicated region
        $region21: #{tpu_custom_call.1} parent=11 // pred_check
          %p304 = pneg %p114
        $region22: #{tpu_custom_call.1} parent=11 // pred_check_branch
          %306 = sbr.rel (%p304) target = $region24
        $region23: #{tpu_custom_call.1} parent=11 // pred_region
          %308 = vsyncadd [#allocation13], 0
          %s309 = sshll.u32 %s3, 4
          %s310 = int_to_ptr.hbm [resolvable:$true] %s309
          %s311 = sshll.u32 [#allocation12], 4
          %s312 = int_to_ptr.vmem [resolvable:$true] %s311
          %317 = dma.hbm_to_vmem [thread:$0]  %s310, 16384, %s312, [#allocation13], 256, 256, 16
        $region24: #{tpu_custom_call.1} parent=11 // pred_fallthru
          _
        // Predicated region
        $region25: #{tpu_custom_call.1} parent=11 // pred_check
          %p318 = pneg %p135
        $region26: #{tpu_custom_call.1} parent=11 // pred_check_branch
          %320 = sbr.rel (%p318) target = $region28
        $region27: #{tpu_custom_call.1} parent=11 // pred_region
          %322 = vsyncadd [#allocation13], 0
          %s323 = sshll.u32 %s4, 4
          %s324 = int_to_ptr.hbm [resolvable:$true] %s323
          %s325 = sshll.u32 [#allocation14], 4
          %s326 = int_to_ptr.vmem [resolvable:$true] %s325
          %331 = dma.hbm_to_vmem [thread:$0]  %s324, 8192, %s326, [#allocation13], 128, 128, 8
        $region28: #{tpu_custom_call.1} parent=11 // pred_fallthru
          _
        // Predicated region
        $region29: #{tpu_custom_call.1} parent=11 // pred_check
          %p332 = pneg %p156
        $region30: #{tpu_custom_call.1} parent=11 // pred_check_branch
          %334 = sbr.rel (%p332) target = $region32
        $region31: #{tpu_custom_call.1} parent=11 // pred_region
          %336 = vsyncadd [#allocation16], 0
          %s338 = sshll.u32 %s5, 4
          %s339 = int_to_ptr.hbm [resolvable:$true] %s338
          %s340 = sshll.u32 [#allocation15], 4
          %s341 = int_to_ptr.vmem [resolvable:$true] %s340
          %343 = dma.hbm_to_vmem [thread:$0]  %s339, 32, %s341, [#allocation16]
        $region32: #{tpu_custom_call.1} parent=11 // pred_fallthru
          _
        // Predicated region
        $region33: #{tpu_custom_call.1} parent=11 // pred_check
          %p344 = pneg %p177
        $region34: #{tpu_custom_call.1} parent=11 // pred_check_branch
          %346 = sbr.rel (%p344) target = $region36
        $region35: #{tpu_custom_call.1} parent=11 // pred_region
          %348 = vsyncadd [#allocation16], 0
          %s350 = sshll.u32 %s6, 4
          %s351 = int_to_ptr.hbm [resolvable:$true] %s350
          %s352 = sshll.u32 [#allocation17], 4
          %s353 = int_to_ptr.vmem [resolvable:$true] %s352
          %355 = dma.hbm_to_vmem [thread:$0]  %s351, 16, %s353, [#allocation16]
        $region36: #{tpu_custom_call.1} parent=11 // pred_fallthru
          _
        // Predicated region
        $region37: #{tpu_custom_call.1} parent=11 // pred_check
          %p356 = pneg %p198
        $region38: #{tpu_custom_call.1} parent=11 // pred_check_branch
          %358 = sbr.rel (%p356) target = $region40
        $region39: #{tpu_custom_call.1} parent=11 // pred_region
          _
        $region40: #{tpu_custom_call.1} parent=11 // pred_fallthru
          _
        // Predicated region
        $region41: #{tpu_custom_call.1} parent=11 // pred_check
          %p359 = pneg %p219
        $region42: #{tpu_custom_call.1} parent=11 // pred_check_branch
          %361 = sbr.rel (%p359) target = $region44
        $region43: #{tpu_custom_call.1} parent=11 // pred_region
          _
        $region44: #{tpu_custom_call.1} parent=11 // pred_fallthru
          _
        // Predicated region
        $region45: #{tpu_custom_call.1} parent=11 // pred_check
          %p362 = pneg %p240
        $region46: #{tpu_custom_call.1} parent=11 // pred_check_branch
          %364 = sbr.rel (%p362) target = $region48
        $region47: #{tpu_custom_call.1} parent=11 // pred_region
          %366 = vsyncadd [#allocation19], 0
          %s368 = sshll.u32 %s9, 4
          %s369 = int_to_ptr.hbm [resolvable:$true] %s368
          %s370 = sshll.u32 [#allocation18], 4
          %s371 = int_to_ptr.vmem [resolvable:$true] %s370
          %373 = dma.hbm_to_vmem [thread:$0]  %s369, 16, %s371, [#allocation19]
        $region48: #{tpu_custom_call.1} parent=11 // pred_fallthru
          _
      $region12: #{tpu_custom_call.1} parent=5 // pred_fallthru
        _
      %p374 = scmp.lt.s32.totalorder %s25, 3
      // Predicated region
      $region49: #{tpu_custom_call.1} parent=5 // pred_check
        %p375 = pneg %p374
      $region50: #{tpu_custom_call.1} parent=5 // pred_check_branch
        %377 = sbr.rel (%p375) target = $region52
      $region51: #{tpu_custom_call.1} parent=5 // pred_region
        // Predicated region
        $region53: #{tpu_custom_call.1} parent=51 // pred_check
          %p378 = pneg %p45
        $region54: #{tpu_custom_call.1} parent=51 // pred_check_branch
          %380 = sbr.rel (%p378) target = $region56
        $region55: #{tpu_custom_call.1} parent=51 // pred_region
          %s381 = sand.u32 %s35, 1
          %s382 = scalar_lea.sflag [#allocation7], %s381
          %s383 = sand.u32 %s35, 1
          %s384 = smul.addr %s383, 1024
          %s385 = scalar_lea.vmem [#allocation6], %s384
          %s386 = smul.u32 32, %s25
          %s387 = ssub.s32 75, %s386
          %p388 = scmp.lt.s32.totalorder %s387, 32
          %s389 = scalar_select %p388, %s387, 32
          %s390 = smul.u32 8, %s389
          %s391 = smul.u32 %s390, 4
          %s392 = ssub.s32 1024, %s391
          %s393 = sshll.u32 %s392, 4
          %394 = vsyncadd %s382, %s393
          %p395 = scmp.ne.s32.totalorder 0, %s391
          %s396 = smul.addr %s386, 4
          %s397 = smul.addr %s396, 8
          %s398 = scalar_lea.hbm %s0, %s397
          %s399 = smul.u32 32, %s389
          %s400 = sshll.u32 %s398, 4
          %s401 = int_to_ptr.hbm [resolvable:$true] %s400
          %s402 = sshll.u32 %s385, 4
          %s403 = int_to_ptr.vmem [resolvable:$true] %s402
          %s404 = sshll.u32 %s399, 4
          %408 = dma.hbm_to_vmem [thread:$0]  (%p395), %s401, %s404, %s403, %s382, 512, 512, 32
        $region56: #{tpu_custom_call.1} parent=51 // pred_fallthru
          _
      $region52: #{tpu_custom_call.1} parent=5 // pred_fallthru
        _
      %p409 = scmp.le.s32.totalorder 1, %s25
      %p410 = scmp.lt.s32.totalorder %s25, 4
      %p411 = pnand %p409, %p410
      %p412 = pneg %p411
      // Predicated region
      $region57: #{tpu_custom_call.1} parent=5 // pred_check
        _
      $region58: #{tpu_custom_call.1} parent=5 // pred_check_branch
        %414 = sbr.rel (%p411) target = $region60
      $region59: #{tpu_custom_call.1} parent=5 // pred_region
        %s415 = ssub.s32 %s25, 1
        %s416 = sand.u32 %s38, 1
        %s417 = scalar_lea.sflag [#allocation7], %s416
        %s418 = sand.u32 %s38, 1
        %s419 = smul.addr %s418, 1024
        %s420 = scalar_lea.vmem [#allocation6], %s419
        // Predicated region
        $region61: #{tpu_custom_call.1} parent=59 // pred_check
          %p421 = pneg %p51
        $region62: #{tpu_custom_call.1} parent=59 // pred_check_branch
          %423 = sbr.rel (%p421) target = $region64
        $region63: #{tpu_custom_call.1} parent=59 // pred_region
          %425 = dma.done %s417, 16384
        $region64: #{tpu_custom_call.1} parent=59 // pred_fallthru
          _
        // Predicated region
        $region65: #{tpu_custom_call.1} parent=59 // pred_check
          %p426 = pneg %p72
        $region66: #{tpu_custom_call.1} parent=59 // pred_check_branch
          %428 = sbr.rel (%p426) target = $region68
        $region67: #{tpu_custom_call.1} parent=59 // pred_region
          %430 = dma.done [#allocation10], 16384
        $region68: #{tpu_custom_call.1} parent=59 // pred_fallthru
          _
        // Predicated region
        $region69: #{tpu_custom_call.1} parent=59 // pred_check
          %p431 = pneg %p93
        $region70: #{tpu_custom_call.1} parent=59 // pred_check_branch
          %433 = sbr.rel (%p431) target = $region72
        $region71: #{tpu_custom_call.1} parent=59 // pred_region
          %435 = dma.done [#allocation10], 16384
        $region72: #{tpu_custom_call.1} parent=59 // pred_fallthru
          _
        // Predicated region
        $region73: #{tpu_custom_call.1} parent=59 // pred_check
          %p436 = pneg %p114
        $region74: #{tpu_custom_call.1} parent=59 // pred_check_branch
          %438 = sbr.rel (%p436) target = $region76
        $region75: #{tpu_custom_call.1} parent=59 // pred_region
          %440 = dma.done [#allocation13], 16384
        $region76: #{tpu_custom_call.1} parent=59 // pred_fallthru
          _
        // Predicated region
        $region77: #{tpu_custom_call.1} parent=59 // pred_check
          %p441 = pneg %p135
        $region78: #{tpu_custom_call.1} parent=59 // pred_check_branch
          %443 = sbr.rel (%p441) target = $region80
        $region79: #{tpu_custom_call.1} parent=59 // pred_region
          %445 = dma.done [#allocation13], 8192
        $region80: #{tpu_custom_call.1} parent=59 // pred_fallthru
          _
        // Predicated region
        $region81: #{tpu_custom_call.1} parent=59 // pred_check
          %p446 = pneg %p156
        $region82: #{tpu_custom_call.1} parent=59 // pred_check_branch
          %448 = sbr.rel (%p446) target = $region84
        $region83: #{tpu_custom_call.1} parent=59 // pred_region
          %450 = dma.done [#allocation16], 32
        $region84: #{tpu_custom_call.1} parent=59 // pred_fallthru
          _
        // Predicated region
        $region85: #{tpu_custom_call.1} parent=59 // pred_check
          %p451 = pneg %p177
        $region86: #{tpu_custom_call.1} parent=59 // pred_check_branch
          %453 = sbr.rel (%p451) target = $region88
        $region87: #{tpu_custom_call.1} parent=59 // pred_region
          %455 = dma.done [#allocation16], 16
        $region88: #{tpu_custom_call.1} parent=59 // pred_fallthru
          _
        // Predicated region
        $region89: #{tpu_custom_call.1} parent=59 // pred_check
          %p456 = pneg %p240
        $region90: #{tpu_custom_call.1} parent=59 // pred_check_branch
          %458 = sbr.rel (%p456) target = $region92
        $region91: #{tpu_custom_call.1} parent=59 // pred_region
          %460 = dma.done [#allocation19], 16
        $region92: #{tpu_custom_call.1} parent=59 // pred_fallthru
          _
        %s461 = sand.u32 %s38, 1
        %s462 = scalar_lea.sflag [#allocation7], %s461
        %s463 = sand.u32 %s38, 1
        %s464 = smul.addr %s463, 1024
        %s465 = scalar_lea.vmem [#allocation6], %s464
        %p466 = pneg %p51
        %p467 = pneg %p48
        %p468 = pneg %p72
        %p469 = pneg %p69
        %p470 = pneg %p93
        %p471 = pneg %p90
        %p472 = pneg %p114
        %p473 = pneg %p111
        %p474 = pneg %p135
        %p475 = pneg %p132
        %p476 = pneg %p156
        %p477 = pneg %p153
        %p478 = pneg %p177
        %p479 = pneg %p174
        %p480 = pneg %p198
        %p481 = pneg %p195
        %p482 = pneg %p219
        %p483 = pneg %p216
        %p484 = pneg %p240
        %p485 = pneg %p237
        %p486 = pneg %p261
        %p487 = pneg %p258
        %s488 = smul.u32 32, %s30
        %s489 = ssub.s32 75, %s488
        %p490 = scmp.lt.s32.totalorder %s489, 32
        %s491 = scalar_select %p490, %s489, 32
        %s492 = smul.u32 8, %s491
        %s493 = smul.u32 %s492, 4
        %p495 = scmp.eq.s32.totalorder %s30, 0
        // Predicated region
        $region93: #{tpu_custom_call.1} parent=59 // pred_check
          %p496 = pneg %p495
        $region94: #{tpu_custom_call.1} parent=59 // pred_check_branch
          %498 = sbr.rel (%p496) target = $region96
        $region95: #{tpu_custom_call.1} parent=59 // pred_region
          %vm499 = vcmask 0
          %500 = vst.msk [vmem:[#allocation2] sm:$0x1] %vm499, -inf
          %501 = vst.msk [vmem:[#allocation3] sm:$0x1] %vm499, 0.0
          %v502 = vlaneseq
          %vm503 = vcmp.ge.s32.totalorder %v502, 0
          %vm504 = vcmp.lt.s32.totalorder %v502, 512
          %vm505 = vmand %vm503, %vm504
          %506 = vst.msk [vmem:[#allocation4] sm:$0xf] %vm505, 0.0
        $region96: #{tpu_custom_call.1} parent=59 // pred_fallthru
          _
        %v507 = vld [vmem:[%s420] sm:$0xff]
        %v508 = vld [vmem:[%s420 + $0x8] sm:$0xff]
        %v509 = vld [vmem:[%s420 + $0x10] sm:$0xff]
        %v510 = vld [vmem:[%s420 + $0x18] sm:$0xff]
        %v511 = vld [vmem:[%s420 + $0x20] sm:$0xff]
        %v512 = vld [vmem:[%s420 + $0x28] sm:$0xff]
        %v513 = vld [vmem:[%s420 + $0x30] sm:$0xff]
        %v514 = vld [vmem:[%s420 + $0x38] sm:$0xff]
        %v515 = vld [vmem:[%s420 + $0x40] sm:$0xff]
        %v516 = vld [vmem:[%s420 + $0x48] sm:$0xff]
        %v517 = vld [vmem:[%s420 + $0x50] sm:$0xff]
        %v518 = vld [vmem:[%s420 + $0x58] sm:$0xff]
        %v519 = vld [vmem:[%s420 + $0x60] sm:$0xff]
        %v520 = vld [vmem:[%s420 + $0x68] sm:$0xff]
        %v521 = vld [vmem:[%s420 + $0x70] sm:$0xff]
        %v522 = vld [vmem:[%s420 + $0x78] sm:$0xff]
        %v523 = vld [vmem:[%s420 + $0x80] sm:$0xff]
        %v524 = vld [vmem:[%s420 + $0x88] sm:$0xff]
        %v525 = vld [vmem:[%s420 + $0x90] sm:$0xff]
        %v526 = vld [vmem:[%s420 + $0x98] sm:$0xff]
        %v527 = vld [vmem:[%s420 + $0xa0] sm:$0xff]
        %v528 = vld [vmem:[%s420 + $0xa8] sm:$0xff]
        %v529 = vld [vmem:[%s420 + $0xb0] sm:$0xff]
        %v530 = vld [vmem:[%s420 + $0xb8] sm:$0xff]
        %v531 = vld [vmem:[%s420 + $0xc0] sm:$0xff]
        %v532 = vld [vmem:[%s420 + $0xc8] sm:$0xff]
        %v533 = vld [vmem:[%s420 + $0xd0] sm:$0xff]
        %v534 = vld [vmem:[%s420 + $0xd8] sm:$0xff]
        %v535 = vld [vmem:[%s420 + $0xe0] sm:$0xff]
        %v536 = vld [vmem:[%s420 + $0xe8] sm:$0xff]
        %v537 = vld [vmem:[%s420 + $0xf0] sm:$0xff]
        %v538 = vld [vmem:[%s420 + $0xf8] sm:$0xff]
        %v539 = vld [vmem:[%s420 + $0x100] sm:$0xff]
        %v540 = vld [vmem:[%s420 + $0x108] sm:$0xff]
        %v541 = vld [vmem:[%s420 + $0x110] sm:$0xff]
        %v542 = vld [vmem:[%s420 + $0x118] sm:$0xff]
        %v543 = vld [vmem:[%s420 + $0x120] sm:$0xff]
        %v544 = vld [vmem:[%s420 + $0x128] sm:$0xff]
        %v545 = vld [vmem:[%s420 + $0x130] sm:$0xff]
        %v546 = vld [vmem:[%s420 + $0x138] sm:$0xff]
        %v547 = vld [vmem:[%s420 + $0x140] sm:$0xff]
        %v548 = vld [vmem:[%s420 + $0x148] sm:$0xff]
        %v549 = vld [vmem:[%s420 + $0x150] sm:$0xff]
        %v550 = vld [vmem:[%s420 + $0x158] sm:$0xff]
        %v551 = vld [vmem:[%s420 + $0x160] sm:$0xff]
        %v552 = vld [vmem:[%s420 + $0x168] sm:$0xff]
        %v553 = vld [vmem:[%s420 + $0x170] sm:$0xff]
        %v554 = vld [vmem:[%s420 + $0x178] sm:$0xff]
        %v555 = vld [vmem:[%s420 + $0x180] sm:$0xff]
        %v556 = vld [vmem:[%s420 + $0x188] sm:$0xff]
        %v557 = vld [vmem:[%s420 + $0x190] sm:$0xff]
        %v558 = vld [vmem:[%s420 + $0x198] sm:$0xff]
        %v559 = vld [vmem:[%s420 + $0x1a0] sm:$0xff]
        %v560 = vld [vmem:[%s420 + $0x1a8] sm:$0xff]
        %v561 = vld [vmem:[%s420 + $0x1b0] sm:$0xff]
        %v562 = vld [vmem:[%s420 + $0x1b8] sm:$0xff]
        %v563 = vld [vmem:[%s420 + $0x1c0] sm:$0xff]
        %v564 = vld [vmem:[%s420 + $0x1c8] sm:$0xff]
        %v565 = vld [vmem:[%s420 + $0x1d0] sm:$0xff]
        %v566 = vld [vmem:[%s420 + $0x1d8] sm:$0xff]
        %v567 = vld [vmem:[%s420 + $0x1e0] sm:$0xff]
        %v568 = vld [vmem:[%s420 + $0x1e8] sm:$0xff]
        %v569 = vld [vmem:[%s420 + $0x1f0] sm:$0xff]
        %v570 = vld [vmem:[%s420 + $0x1f8] sm:$0xff]
        %v571 = vld [vmem:[%s420 + $0x200] sm:$0xff]
        %v572 = vld [vmem:[%s420 + $0x208] sm:$0xff]
        %v573 = vld [vmem:[%s420 + $0x210] sm:$0xff]
        %v574 = vld [vmem:[%s420 + $0x218] sm:$0xff]
        %v575 = vld [vmem:[%s420 + $0x220] sm:$0xff]
        %v576 = vld [vmem:[%s420 + $0x228] sm:$0xff]
        %v577 = vld [vmem:[%s420 + $0x230] sm:$0xff]
        %v578 = vld [vmem:[%s420 + $0x238] sm:$0xff]
        %v579 = vld [vmem:[%s420 + $0x240] sm:$0xff]
        %v580 = vld [vmem:[%s420 + $0x248] sm:$0xff]
        %v581 = vld [vmem:[%s420 + $0x250] sm:$0xff]
        %v582 = vld [vmem:[%s420 + $0x258] sm:$0xff]
        %v583 = vld [vmem:[%s420 + $0x260] sm:$0xff]
        %v584 = vld [vmem:[%s420 + $0x268] sm:$0xff]
        %v585 = vld [vmem:[%s420 + $0x270] sm:$0xff]
        %v586 = vld [vmem:[%s420 + $0x278] sm:$0xff]
        %v587 = vld [vmem:[%s420 + $0x280] sm:$0xff]
        %v588 = vld [vmem:[%s420 + $0x288] sm:$0xff]
        %v589 = vld [vmem:[%s420 + $0x290] sm:$0xff]
        %v590 = vld [vmem:[%s420 + $0x298] sm:$0xff]
        %v591 = vld [vmem:[%s420 + $0x2a0] sm:$0xff]
        %v592 = vld [vmem:[%s420 + $0x2a8] sm:$0xff]
        %v593 = vld [vmem:[%s420 + $0x2b0] sm:$0xff]
        %v594 = vld [vmem:[%s420 + $0x2b8] sm:$0xff]
        %v595 = vld [vmem:[%s420 + $0x2c0] sm:$0xff]
        %v596 = vld [vmem:[%s420 + $0x2c8] sm:$0xff]
        %v597 = vld [vmem:[%s420 + $0x2d0] sm:$0xff]
        %v598 = vld [vmem:[%s420 + $0x2d8] sm:$0xff]
        %v599 = vld [vmem:[%s420 + $0x2e0] sm:$0xff]
        %v600 = vld [vmem:[%s420 + $0x2e8] sm:$0xff]
        %v601 = vld [vmem:[%s420 + $0x2f0] sm:$0xff]
        %v602 = vld [vmem:[%s420 + $0x2f8] sm:$0xff]
        %v603 = vld [vmem:[%s420 + $0x300] sm:$0xff]
        %v604 = vld [vmem:[%s420 + $0x308] sm:$0xff]
        %v605 = vld [vmem:[%s420 + $0x310] sm:$0xff]
        %v606 = vld [vmem:[%s420 + $0x318] sm:$0xff]
        %v607 = vld [vmem:[%s420 + $0x320] sm:$0xff]
        %v608 = vld [vmem:[%s420 + $0x328] sm:$0xff]
        %v609 = vld [vmem:[%s420 + $0x330] sm:$0xff]
        %v610 = vld [vmem:[%s420 + $0x338] sm:$0xff]
        %v611 = vld [vmem:[%s420 + $0x340] sm:$0xff]
        %v612 = vld [vmem:[%s420 + $0x348] sm:$0xff]
        %v613 = vld [vmem:[%s420 + $0x350] sm:$0xff]
        %v614 = vld [vmem:[%s420 + $0x358] sm:$0xff]
        %v615 = vld [vmem:[%s420 + $0x360] sm:$0xff]
        %v616 = vld [vmem:[%s420 + $0x368] sm:$0xff]
        %v617 = vld [vmem:[%s420 + $0x370] sm:$0xff]
        %v618 = vld [vmem:[%s420 + $0x378] sm:$0xff]
        %v619 = vld [vmem:[%s420 + $0x380] sm:$0xff]
        %v620 = vld [vmem:[%s420 + $0x388] sm:$0xff]
        %v621 = vld [vmem:[%s420 + $0x390] sm:$0xff]
        %v622 = vld [vmem:[%s420 + $0x398] sm:$0xff]
        %v623 = vld [vmem:[%s420 + $0x3a0] sm:$0xff]
        %v624 = vld [vmem:[%s420 + $0x3a8] sm:$0xff]
        %v625 = vld [vmem:[%s420 + $0x3b0] sm:$0xff]
        %v626 = vld [vmem:[%s420 + $0x3b8] sm:$0xff]
        %v627 = vld [vmem:[%s420 + $0x3c0] sm:$0xff]
        %v628 = vld [vmem:[%s420 + $0x3c8] sm:$0xff]
        %v629 = vld [vmem:[%s420 + $0x3d0] sm:$0xff]
        %v630 = vld [vmem:[%s420 + $0x3d8] sm:$0xff]
        %v631 = vld [vmem:[%s420 + $0x3e0] sm:$0xff]
        %v632 = vld [vmem:[%s420 + $0x3e8] sm:$0xff]
        %v633 = vld [vmem:[%s420 + $0x3f0] sm:$0xff]
        %v634 = vld [vmem:[%s420 + $0x3f8] sm:$0xff]
        %v635 = vpack.c.bf16 %v508, %v507
        %v636 = vpack.c.bf16 %v510, %v509
        %v637 = vpack.c.bf16 %v512, %v511
        %v638 = vpack.c.bf16 %v514, %v513
        %v639 = vpack.c.bf16 %v516, %v515
        %v640 = vpack.c.bf16 %v518, %v517
        %v641 = vpack.c.bf16 %v520, %v519
        %v642 = vpack.c.bf16 %v522, %v521
        %v643 = vpack.c.bf16 %v524, %v523
        %v644 = vpack.c.bf16 %v526, %v525
        %v645 = vpack.c.bf16 %v528, %v527
        %v646 = vpack.c.bf16 %v530, %v529
        %v647 = vpack.c.bf16 %v532, %v531
        %v648 = vpack.c.bf16 %v534, %v533
        %v649 = vpack.c.bf16 %v536, %v535
        %v650 = vpack.c.bf16 %v538, %v537
        %v651 = vpack.c.bf16 %v540, %v539
        %v652 = vpack.c.bf16 %v542, %v541
        %v653 = vpack.c.bf16 %v544, %v543
        %v654 = vpack.c.bf16 %v546, %v545
        %v655 = vpack.c.bf16 %v548, %v547
        %v656 = vpack.c.bf16 %v550, %v549
        %v657 = vpack.c.bf16 %v552, %v551
        %v658 = vpack.c.bf16 %v554, %v553
        %v659 = vpack.c.bf16 %v556, %v555
        %v660 = vpack.c.bf16 %v558, %v557
        %v661 = vpack.c.bf16 %v560, %v559
        %v662 = vpack.c.bf16 %v562, %v561
        %v663 = vpack.c.bf16 %v564, %v563
        %v664 = vpack.c.bf16 %v566, %v565
        %v665 = vpack.c.bf16 %v568, %v567
        %v666 = vpack.c.bf16 %v570, %v569
        %v667 = vpack.c.bf16 %v572, %v571
        %v668 = vpack.c.bf16 %v574, %v573
        %v669 = vpack.c.bf16 %v576, %v575
        %v670 = vpack.c.bf16 %v578, %v577
        %v671 = vpack.c.bf16 %v580, %v579
        %v672 = vpack.c.bf16 %v582, %v581
        %v673 = vpack.c.bf16 %v584, %v583
        %v674 = vpack.c.bf16 %v586, %v585
        %v675 = vpack.c.bf16 %v588, %v587
        %v676 = vpack.c.bf16 %v590, %v589
        %v677 = vpack.c.bf16 %v592, %v591
        %v678 = vpack.c.bf16 %v594, %v593
        %v679 = vpack.c.bf16 %v596, %v595
        %v680 = vpack.c.bf16 %v598, %v597
        %v681 = vpack.c.bf16 %v600, %v599
        %v682 = vpack.c.bf16 %v602, %v601
        %v683 = vpack.c.bf16 %v604, %v603
        %v684 = vpack.c.bf16 %v606, %v605
        %v685 = vpack.c.bf16 %v608, %v607
        %v686 = vpack.c.bf16 %v610, %v609
        %v687 = vpack.c.bf16 %v612, %v611
        %v688 = vpack.c.bf16 %v614, %v613
        %v689 = vpack.c.bf16 %v616, %v615
        %v690 = vpack.c.bf16 %v618, %v617
        %v691 = vpack.c.bf16 %v620, %v619
        %v692 = vpack.c.bf16 %v622, %v621
        %v693 = vpack.c.bf16 %v624, %v623
        %v694 = vpack.c.bf16 %v626, %v625
        %v695 = vpack.c.bf16 %v628, %v627
        %v696 = vpack.c.bf16 %v630, %v629
        %v697 = vpack.c.bf16 %v632, %v631
        %v698 = vpack.c.bf16 %v634, %v633
        %s699 = smul.u32 %s30, 256
        %v700 = vlaneseq
        %v701 = vshrl.u32 %v700, 7
        %v702 = vadd.s32 %v701, 8
        %v703 = vadd.s32 %v701, 16
        %v704 = vadd.s32 %v701, 24
        %v705 = vadd.s32 %v701, 32
        %v706 = vadd.s32 %v701, 40
        %v707 = vadd.s32 %v701, 48
        %v708 = vadd.s32 %v701, 56
        %v709 = vadd.s32 %v701, 64
        %v710 = vadd.s32 %v701, 72
        %v711 = vadd.s32 %v701, 80
        %v712 = vadd.s32 %v701, 88
        %v713 = vadd.s32 %v701, 96
        %v714 = vadd.s32 %v701, 104
        %v715 = vadd.s32 %v701, 112
        %v716 = vadd.s32 %v701, 120
        %v717 = vadd.s32 %v701, 128
        %v718 = vadd.s32 %v701, 136
        %v719 = vadd.s32 %v701, 144
        %v720 = vadd.s32 %v701, 152
        %v721 = vadd.s32 %v701, 160
        %v722 = vadd.s32 %v701, 168
        %v723 = vadd.s32 %v701, 176
        %v724 = vadd.s32 %v701, 184
        %v725 = vadd.s32 %v701, 192
        %v726 = vadd.s32 %v701, 200
        %v727 = vadd.s32 %v701, 208
        %v728 = vadd.s32 %v701, 216
        %v729 = vadd.s32 %v701, 224
        %v730 = vadd.s32 %v701, 232
        %v731 = vadd.s32 %v701, 240
        %v732 = vadd.s32 %v701, 248
        %v733 = vstv %s699
        %v734 = vadd.s32 %v733, %v701
        %v735 = vadd.s32 %v733, %v702
        %v736 = vadd.s32 %v733, %v703
        %v737 = vadd.s32 %v733, %v704
        %v738 = vadd.s32 %v733, %v705
        %v739 = vadd.s32 %v733, %v706
        %v740 = vadd.s32 %v733, %v707
        %v741 = vadd.s32 %v733, %v708
        %v742 = vadd.s32 %v733, %v709
        %v743 = vadd.s32 %v733, %v710
        %v744 = vadd.s32 %v733, %v711
        %v745 = vadd.s32 %v733, %v712
        %v746 = vadd.s32 %v733, %v713
        %v747 = vadd.s32 %v733, %v714
        %v748 = vadd.s32 %v733, %v715
        %v749 = vadd.s32 %v733, %v716
        %v750 = vadd.s32 %v733, %v717
        %v751 = vadd.s32 %v733, %v718
        %v752 = vadd.s32 %v733, %v719
        %v753 = vadd.s32 %v733, %v720
        %v754 = vadd.s32 %v733, %v721
        %v755 = vadd.s32 %v733, %v722
        %v756 = vadd.s32 %v733, %v723
        %v757 = vadd.s32 %v733, %v724
        %v758 = vadd.s32 %v733, %v725
        %v759 = vadd.s32 %v733, %v726
        %v760 = vadd.s32 %v733, %v727
        %v761 = vadd.s32 %v733, %v728
        %v762 = vadd.s32 %v733, %v729
        %v763 = vadd.s32 %v733, %v730
        %v764 = vadd.s32 %v733, %v731
        %v765 = vadd.s32 %v733, %v732
        %vm766 = vcmp.lt.s32.totalorder %v734, 600
        %vm767 = vcmp.lt.s32.totalorder %v735, 600
        %vm768 = vcmp.lt.s32.totalorder %v736, 600
        %vm769 = vcmp.lt.s32.totalorder %v737, 600
        %vm770 = vcmp.lt.s32.totalorder %v738, 600
        %vm771 = vcmp.lt.s32.totalorder %v739, 600
        %vm772 = vcmp.lt.s32.totalorder %v740, 600
        %vm773 = vcmp.lt.s32.totalorder %v741, 600
        %vm774 = vcmp.lt.s32.totalorder %v742, 600
        %vm775 = vcmp.lt.s32.totalorder %v743, 600
        %vm776 = vcmp.lt.s32.totalorder %v744, 600
        %vm777 = vcmp.lt.s32.totalorder %v745, 600
        %vm778 = vcmp.lt.s32.totalorder %v746, 600
        %vm779 = vcmp.lt.s32.totalorder %v747, 600
        %vm780 = vcmp.lt.s32.totalorder %v748, 600
        %vm781 = vcmp.lt.s32.totalorder %v749, 600
        %vm782 = vcmp.lt.s32.totalorder %v750, 600
        %vm783 = vcmp.lt.s32.totalorder %v751, 600
        %vm784 = vcmp.lt.s32.totalorder %v752, 600
        %vm785 = vcmp.lt.s32.totalorder %v753, 600
        %vm786 = vcmp.lt.s32.totalorder %v754, 600
        %vm787 = vcmp.lt.s32.totalorder %v755, 600
        %vm788 = vcmp.lt.s32.totalorder %v756, 600
        %vm789 = vcmp.lt.s32.totalorder %v757, 600
        %vm790 = vcmp.lt.s32.totalorder %v758, 600
        %vm791 = vcmp.lt.s32.totalorder %v759, 600
        %vm792 = vcmp.lt.s32.totalorder %v760, 600
        %vm793 = vcmp.lt.s32.totalorder %v761, 600
        %vm794 = vcmp.lt.s32.totalorder %v762, 600
        %vm795 = vcmp.lt.s32.totalorder %v763, 600
        %vm796 = vcmp.lt.s32.totalorder %v764, 600
        %vm797 = vcmp.lt.s32.totalorder %v765, 600
        %v798 = vsel %vm766, 1, 0
        %v799 = vsel %vm767, 1, 0
        %v800 = vsel %vm768, 1, 0
        %v801 = vsel %vm769, 1, 0
        %v802 = vsel %vm770, 1, 0
        %v803 = vsel %vm771, 1, 0
        %v804 = vsel %vm772, 1, 0
        %v805 = vsel %vm773, 1, 0
        %v806 = vsel %vm774, 1, 0
        %v807 = vsel %vm775, 1, 0
        %v808 = vsel %vm776, 1, 0
        %v809 = vsel %vm777, 1, 0
        %v810 = vsel %vm778, 1, 0
        %v811 = vsel %vm779, 1, 0
        %v812 = vsel %vm780, 1, 0
        %v813 = vsel %vm781, 1, 0
        %v814 = vsel %vm782, 1, 0
        %v815 = vsel %vm783, 1, 0
        %v816 = vsel %vm784, 1, 0
        %v817 = vsel %vm785, 1, 0
        %v818 = vsel %vm786, 1, 0
        %v819 = vsel %vm787, 1, 0
        %v820 = vsel %vm788, 1, 0
        %v821 = vsel %vm789, 1, 0
        %v822 = vsel %vm790, 1, 0
        %v823 = vsel %vm791, 1, 0
        %v824 = vsel %vm792, 1, 0
        %v825 = vsel %vm793, 1, 0
        %v826 = vsel %vm794, 1, 0
        %v827 = vsel %vm795, 1, 0
        %v828 = vsel %vm796, 1, 0
        %v829 = vsel %vm797, 1, 0
        %vm830 = vcmp.eq.s32.totalorder %v798, 1
        %vm831 = vcmp.eq.s32.totalorder %v799, 1
        %vm832 = vcmp.eq.s32.totalorder %v800, 1
        %vm833 = vcmp.eq.s32.totalorder %v801, 1
        %vm834 = vcmp.eq.s32.totalorder %v802, 1
        %vm835 = vcmp.eq.s32.totalorder %v803, 1
        %vm836 = vcmp.eq.s32.totalorder %v804, 1
        %vm837 = vcmp.eq.s32.totalorder %v805, 1
        %vm838 = vcmp.eq.s32.totalorder %v806, 1
        %vm839 = vcmp.eq.s32.totalorder %v807, 1
        %vm840 = vcmp.eq.s32.totalorder %v808, 1
        %vm841 = vcmp.eq.s32.totalorder %v809, 1
        %vm842 = vcmp.eq.s32.totalorder %v810, 1
        %vm843 = vcmp.eq.s32.totalorder %v811, 1
        %vm844 = vcmp.eq.s32.totalorder %v812, 1
        %vm845 = vcmp.eq.s32.totalorder %v813, 1
        %vm846 = vcmp.eq.s32.totalorder %v814, 1
        %vm847 = vcmp.eq.s32.totalorder %v815, 1
        %vm848 = vcmp.eq.s32.totalorder %v816, 1
        %vm849 = vcmp.eq.s32.totalorder %v817, 1
        %vm850 = vcmp.eq.s32.totalorder %v818, 1
        %vm851 = vcmp.eq.s32.totalorder %v819, 1
        %vm852 = vcmp.eq.s32.totalorder %v820, 1
        %vm853 = vcmp.eq.s32.totalorder %v821, 1
        %vm854 = vcmp.eq.s32.totalorder %v822, 1
        %vm855 = vcmp.eq.s32.totalorder %v823, 1
        %vm856 = vcmp.eq.s32.totalorder %v824, 1
        %vm857 = vcmp.eq.s32.totalorder %v825, 1
        %vm858 = vcmp.eq.s32.totalorder %v826, 1
        %vm859 = vcmp.eq.s32.totalorder %v827, 1
        %vm860 = vcmp.eq.s32.totalorder %v828, 1
        %vm861 = vcmp.eq.s32.totalorder %v829, 1
        %vm862 = vmpackc.low %vm830, %vm830
        %vm863 = vmpackc.low %vm831, %vm831
        %vm864 = vmpackc.low %vm832, %vm832
        %vm865 = vmpackc.low %vm833, %vm833
        %vm866 = vmpackc.low %vm834, %vm834
        %vm867 = vmpackc.low %vm835, %vm835
        %vm868 = vmpackc.low %vm836, %vm836
        %vm869 = vmpackc.low %vm837, %vm837
        %vm870 = vmpackc.low %vm838, %vm838
        %vm871 = vmpackc.low %vm839, %vm839
        %vm872 = vmpackc.low %vm840, %vm840
        %vm873 = vmpackc.low %vm841, %vm841
        %vm874 = vmpackc.low %vm842, %vm842
        %vm875 = vmpackc.low %vm843, %vm843
        %vm876 = vmpackc.low %vm844, %vm844
        %vm877 = vmpackc.low %vm845, %vm845
        %vm878 = vmpackc.low %vm846, %vm846
        %vm879 = vmpackc.low %vm847, %vm847
        %vm880 = vmpackc.low %vm848, %vm848
        %vm881 = vmpackc.low %vm849, %vm849
        %vm882 = vmpackc.low %vm850, %vm850
        %vm883 = vmpackc.low %vm851, %vm851
        %vm884 = vmpackc.low %vm852, %vm852
        %vm885 = vmpackc.low %vm853, %vm853
        %vm886 = vmpackc.low %vm854, %vm854
        %vm887 = vmpackc.low %vm855, %vm855
        %vm888 = vmpackc.low %vm856, %vm856
        %vm889 = vmpackc.low %vm857, %vm857
        %vm890 = vmpackc.low %vm858, %vm858
        %vm891 = vmpackc.low %vm859, %vm859
        %vm892 = vmpackc.low %vm860, %vm860
        %vm893 = vmpackc.low %vm861, %vm861
        %v894 = vsel %vm862, %v635, 0
        %v895 = vsel %vm862, %v636, 0
        %v896 = vsel %vm863, %v637, 0
        %v897 = vsel %vm863, %v638, 0
        %v898 = vsel %vm864, %v639, 0
        %v899 = vsel %vm864, %v640, 0
        %v900 = vsel %vm865, %v641, 0
        %v901 = vsel %vm865, %v642, 0
        %v902 = vsel %vm866, %v643, 0
        %v903 = vsel %vm866, %v644, 0
        %v904 = vsel %vm867, %v645, 0
        %v905 = vsel %vm867, %v646, 0
        %v906 = vsel %vm868, %v647, 0
        %v907 = vsel %vm868, %v648, 0
        %v908 = vsel %vm869, %v649, 0
        %v909 = vsel %vm869, %v650, 0
        %v910 = vsel %vm870, %v651, 0
        %v911 = vsel %vm870, %v652, 0
        %v912 = vsel %vm871, %v653, 0
        %v913 = vsel %vm871, %v654, 0
        %v914 = vsel %vm872, %v655, 0
        %v915 = vsel %vm872, %v656, 0
        %v916 = vsel %vm873, %v657, 0
        %v917 = vsel %vm873, %v658, 0
        %v918 = vsel %vm874, %v659, 0
        %v919 = vsel %vm874, %v660, 0
        %v920 = vsel %vm875, %v661, 0
        %v921 = vsel %vm875, %v662, 0
        %v922 = vsel %vm876, %v663, 0
        %v923 = vsel %vm876, %v664, 0
        %v924 = vsel %vm877, %v665, 0
        %v925 = vsel %vm877, %v666, 0
        %v926 = vsel %vm878, %v667, 0
        %v927 = vsel %vm878, %v668, 0
        %v928 = vsel %vm879, %v669, 0
        %v929 = vsel %vm879, %v670, 0
        %v930 = vsel %vm880, %v671, 0
        %v931 = vsel %vm880, %v672, 0
        %v932 = vsel %vm881, %v673, 0
        %v933 = vsel %vm881, %v674, 0
        %v934 = vsel %vm882, %v675, 0
        %v935 = vsel %vm882, %v676, 0
        %v936 = vsel %vm883, %v677, 0
        %v937 = vsel %vm883, %v678, 0
        %v938 = vsel %vm884, %v679, 0
        %v939 = vsel %vm884, %v680, 0
        %v940 = vsel %vm885, %v681, 0
        %v941 = vsel %vm885, %v682, 0
        %v942 = vsel %vm886, %v683, 0
        %v943 = vsel %vm886, %v684, 0
        %v944 = vsel %vm887, %v685, 0
        %v945 = vsel %vm887, %v686, 0
        %v946 = vsel %vm888, %v687, 0
        %v947 = vsel %vm888, %v688, 0
        %v948 = vsel %vm889, %v689, 0
        %v949 = vsel %vm889, %v690, 0
        %v950 = vsel %vm890, %v691, 0
        %v951 = vsel %vm890, %v692, 0
        %v952 = vsel %vm891, %v693, 0
        %v953 = vsel %vm891, %v694, 0
        %v954 = vsel %vm892, %v695, 0
        %v955 = vsel %vm892, %v696, 0
        %v956 = vsel %vm893, %v697, 0
        %v957 = vsel %vm893, %v698, 0
        %v958 = vld [vmem:[#allocation9] sm:$0xff]
        %v959 = vld [vmem:[#allocation9 + $0x8] sm:$0xff]
        %v960 = vld [vmem:[#allocation9 + $0x10] sm:$0xff]
        %v961 = vld [vmem:[#allocation9 + $0x18] sm:$0xff]
        %v962 = vld [vmem:[#allocation9 + $0x20] sm:$0xff]
        %v963 = vld [vmem:[#allocation9 + $0x28] sm:$0xff]
        %v964 = vld [vmem:[#allocation9 + $0x30] sm:$0xff]
        %v965 = vld [vmem:[#allocation9 + $0x38] sm:$0xff]
        %v966 = vld [vmem:[#allocation9 + $0x40] sm:$0xff]
        %v967 = vld [vmem:[#allocation9 + $0x48] sm:$0xff]
        %v968 = vld [vmem:[#allocation9 + $0x50] sm:$0xff]
        %v969 = vld [vmem:[#allocation9 + $0x58] sm:$0xff]
        %v970 = vld [vmem:[#allocation9 + $0x60] sm:$0xff]
        %v971 = vld [vmem:[#allocation9 + $0x68] sm:$0xff]
        %v972 = vld [vmem:[#allocation9 + $0x70] sm:$0xff]
        %v973 = vld [vmem:[#allocation9 + $0x78] sm:$0xff]
        %v974 = vld [vmem:[#allocation9 + $0x80] sm:$0xff]
        %v975 = vld [vmem:[#allocation9 + $0x88] sm:$0xff]
        %v976 = vld [vmem:[#allocation9 + $0x90] sm:$0xff]
        %v977 = vld [vmem:[#allocation9 + $0x98] sm:$0xff]
        %v978 = vld [vmem:[#allocation9 + $0xa0] sm:$0xff]
        %v979 = vld [vmem:[#allocation9 + $0xa8] sm:$0xff]
        %v980 = vld [vmem:[#allocation9 + $0xb0] sm:$0xff]
        %v981 = vld [vmem:[#allocation9 + $0xb8] sm:$0xff]
        %v982 = vld [vmem:[#allocation9 + $0xc0] sm:$0xff]
        %v983 = vld [vmem:[#allocation9 + $0xc8] sm:$0xff]
        %v984 = vld [vmem:[#allocation9 + $0xd0] sm:$0xff]
        %v985 = vld [vmem:[#allocation9 + $0xd8] sm:$0xff]
        %v986 = vld [vmem:[#allocation9 + $0xe0] sm:$0xff]
        %v987 = vld [vmem:[#allocation9 + $0xe8] sm:$0xff]
        %v988 = vld [vmem:[#allocation9 + $0xf0] sm:$0xff]
        %v989 = vld [vmem:[#allocation9 + $0xf8] sm:$0xff]
        %v990 = vld [vmem:[#allocation9 + $0x100] sm:$0xff]
        %v991 = vld [vmem:[#allocation9 + $0x108] sm:$0xff]
        %v992 = vld [vmem:[#allocation9 + $0x110] sm:$0xff]
        %v993 = vld [vmem:[#allocation9 + $0x118] sm:$0xff]
        %v994 = vld [vmem:[#allocation9 + $0x120] sm:$0xff]
        %v995 = vld [vmem:[#allocation9 + $0x128] sm:$0xff]
        %v996 = vld [vmem:[#allocation9 + $0x130] sm:$0xff]
        %v997 = vld [vmem:[#allocation9 + $0x138] sm:$0xff]
        %v998 = vld [vmem:[#allocation9 + $0x140] sm:$0xff]
        %v999 = vld [vmem:[#allocation9 + $0x148] sm:$0xff]
        %v1000 = vld [vmem:[#allocation9 + $0x150] sm:$0xff]
        %v1001 = vld [vmem:[#allocation9 + $0x158] sm:$0xff]
        %v1002 = vld [vmem:[#allocation9 + $0x160] sm:$0xff]
        %v1003 = vld [vmem:[#allocation9 + $0x168] sm:$0xff]
        %v1004 = vld [vmem:[#allocation9 + $0x170] sm:$0xff]
        %v1005 = vld [vmem:[#allocation9 + $0x178] sm:$0xff]
        %v1006 = vld [vmem:[#allocation9 + $0x180] sm:$0xff]
        %v1007 = vld [vmem:[#allocation9 + $0x188] sm:$0xff]
        %v1008 = vld [vmem:[#allocation9 + $0x190] sm:$0xff]
        %v1009 = vld [vmem:[#allocation9 + $0x198] sm:$0xff]
        %v1010 = vld [vmem:[#allocation9 + $0x1a0] sm:$0xff]
        %v1011 = vld [vmem:[#allocation9 + $0x1a8] sm:$0xff]
        %v1012 = vld [vmem:[#allocation9 + $0x1b0] sm:$0xff]
        %v1013 = vld [vmem:[#allocation9 + $0x1b8] sm:$0xff]
        %v1014 = vld [vmem:[#allocation9 + $0x1c0] sm:$0xff]
        %v1015 = vld [vmem:[#allocation9 + $0x1c8] sm:$0xff]
        %v1016 = vld [vmem:[#allocation9 + $0x1d0] sm:$0xff]
        %v1017 = vld [vmem:[#allocation9 + $0x1d8] sm:$0xff]
        %v1018 = vld [vmem:[#allocation9 + $0x1e0] sm:$0xff]
        %v1019 = vld [vmem:[#allocation9 + $0x1e8] sm:$0xff]
        %v1020 = vld [vmem:[#allocation9 + $0x1f0] sm:$0xff]
        %v1021 = vld [vmem:[#allocation9 + $0x1f8] sm:$0xff]
        %v1022 = vld [vmem:[#allocation9 + $0x200] sm:$0xff]
        %v1023 = vld [vmem:[#allocation9 + $0x208] sm:$0xff]
        %v1024 = vld [vmem:[#allocation9 + $0x210] sm:$0xff]
        %v1025 = vld [vmem:[#allocation9 + $0x218] sm:$0xff]
        %v1026 = vld [vmem:[#allocation9 + $0x220] sm:$0xff]
        %v1027 = vld [vmem:[#allocation9 + $0x228] sm:$0xff]
        %v1028 = vld [vmem:[#allocation9 + $0x230] sm:$0xff]
        %v1029 = vld [vmem:[#allocation9 + $0x238] sm:$0xff]
        %v1030 = vld [vmem:[#allocation9 + $0x240] sm:$0xff]
        %v1031 = vld [vmem:[#allocation9 + $0x248] sm:$0xff]
        %v1032 = vld [vmem:[#allocation9 + $0x250] sm:$0xff]
        %v1033 = vld [vmem:[#allocation9 + $0x258] sm:$0xff]
        %v1034 = vld [vmem:[#allocation9 + $0x260] sm:$0xff]
        %v1035 = vld [vmem:[#allocation9 + $0x268] sm:$0xff]
        %v1036 = vld [vmem:[#allocation9 + $0x270] sm:$0xff]
        %v1037 = vld [vmem:[#allocation9 + $0x278] sm:$0xff]
        %v1038 = vld [vmem:[#allocation9 + $0x280] sm:$0xff]
        %v1039 = vld [vmem:[#allocation9 + $0x288] sm:$0xff]
        %v1040 = vld [vmem:[#allocation9 + $0x290] sm:$0xff]
        %v1041 = vld [vmem:[#allocation9 + $0x298] sm:$0xff]
        %v1042 = vld [vmem:[#allocation9 + $0x2a0] sm:$0xff]
        %v1043 = vld [vmem:[#allocation9 + $0x2a8] sm:$0xff]
        %v1044 = vld [vmem:[#allocation9 + $0x2b0] sm:$0xff]
        %v1045 = vld [vmem:[#allocation9 + $0x2b8] sm:$0xff]
        %v1046 = vld [vmem:[#allocation9 + $0x2c0] sm:$0xff]
        %v1047 = vld [vmem:[#allocation9 + $0x2c8] sm:$0xff]
        %v1048 = vld [vmem:[#allocation9 + $0x2d0] sm:$0xff]
        %v1049 = vld [vmem:[#allocation9 + $0x2d8] sm:$0xff]
        %v1050 = vld [vmem:[#allocation9 + $0x2e0] sm:$0xff]
        %v1051 = vld [vmem:[#allocation9 + $0x2e8] sm:$0xff]
        %v1052 = vld [vmem:[#allocation9 + $0x2f0] sm:$0xff]
        %v1053 = vld [vmem:[#allocation9 + $0x2f8] sm:$0xff]
        %v1054 = vld [vmem:[#allocation9 + $0x300] sm:$0xff]
        %v1055 = vld [vmem:[#allocation9 + $0x308] sm:$0xff]
        %v1056 = vld [vmem:[#allocation9 + $0x310] sm:$0xff]
        %v1057 = vld [vmem:[#allocation9 + $0x318] sm:$0xff]
        %v1058 = vld [vmem:[#allocation9 + $0x320] sm:$0xff]
        %v1059 = vld [vmem:[#allocation9 + $0x328] sm:$0xff]
        %v1060 = vld [vmem:[#allocation9 + $0x330] sm:$0xff]
        %v1061 = vld [vmem:[#allocation9 + $0x338] sm:$0xff]
        %v1062 = vld [vmem:[#allocation9 + $0x340] sm:$0xff]
        %v1063 = vld [vmem:[#allocation9 + $0x348] sm:$0xff]
        %v1064 = vld [vmem:[#allocation9 + $0x350] sm:$0xff]
        %v1065 = vld [vmem:[#allocation9 + $0x358] sm:$0xff]
        %v1066 = vld [vmem:[#allocation9 + $0x360] sm:$0xff]
        %v1067 = vld [vmem:[#allocation9 + $0x368] sm:$0xff]
        %v1068 = vld [vmem:[#allocation9 + $0x370] sm:$0xff]
        %v1069 = vld [vmem:[#allocation9 + $0x378] sm:$0xff]
        %v1070 = vld [vmem:[#allocation9 + $0x380] sm:$0xff]
        %v1071 = vld [vmem:[#allocation9 + $0x388] sm:$0xff]
        %v1072 = vld [vmem:[#allocation9 + $0x390] sm:$0xff]
        %v1073 = vld [vmem:[#allocation9 + $0x398] sm:$0xff]
        %v1074 = vld [vmem:[#allocation9 + $0x3a0] sm:$0xff]
        %v1075 = vld [vmem:[#allocation9 + $0x3a8] sm:$0xff]
        %v1076 = vld [vmem:[#allocation9 + $0x3b0] sm:$0xff]
        %v1077 = vld [vmem:[#allocation9 + $0x3b8] sm:$0xff]
        %v1078 = vld [vmem:[#allocation9 + $0x3c0] sm:$0xff]
        %v1079 = vld [vmem:[#allocation9 + $0x3c8] sm:$0xff]
        %v1080 = vld [vmem:[#allocation9 + $0x3d0] sm:$0xff]
        %v1081 = vld [vmem:[#allocation9 + $0x3d8] sm:$0xff]
        %v1082 = vld [vmem:[#allocation9 + $0x3e0] sm:$0xff]
        %v1083 = vld [vmem:[#allocation9 + $0x3e8] sm:$0xff]
        %v1084 = vld [vmem:[#allocation9 + $0x3f0] sm:$0xff]
        %v1085 = vld [vmem:[#allocation9 + $0x3f8] sm:$0xff]
        %v1150 = vunpack.c.l.b16 %v894
        %v1151 = vunpack.c.h.b16 %v894
        %v1152 = vunpack.c.l.b16 %v895
        %v1153 = vunpack.c.h.b16 %v895
        %v1154 = vunpack.c.l.b16 %v896
        %v1155 = vunpack.c.h.b16 %v896
        %v1156 = vunpack.c.l.b16 %v897
        %v1157 = vunpack.c.h.b16 %v897
        %v1158 = vunpack.c.l.b16 %v898
        %v1159 = vunpack.c.h.b16 %v898
        %v1160 = vunpack.c.l.b16 %v899
        %v1161 = vunpack.c.h.b16 %v899
        %v1162 = vunpack.c.l.b16 %v900
        %v1163 = vunpack.c.h.b16 %v900
        %v1164 = vunpack.c.l.b16 %v901
        %v1165 = vunpack.c.h.b16 %v901
        %v1166 = vunpack.c.l.b16 %v902
        %v1167 = vunpack.c.h.b16 %v902
        %v1168 = vunpack.c.l.b16 %v903
        %v1169 = vunpack.c.h.b16 %v903
        %v1170 = vunpack.c.l.b16 %v904
        %v1171 = vunpack.c.h.b16 %v904
        %v1172 = vunpack.c.l.b16 %v905
        %v1173 = vunpack.c.h.b16 %v905
        %v1174 = vunpack.c.l.b16 %v906
        %v1175 = vunpack.c.h.b16 %v906
        %v1176 = vunpack.c.l.b16 %v907
        %v1177 = vunpack.c.h.b16 %v907
        %v1178 = vunpack.c.l.b16 %v908
        %v1179 = vunpack.c.h.b16 %v908
        %v1180 = vunpack.c.l.b16 %v909
        %v1181 = vunpack.c.h.b16 %v909
        %v1182 = vunpack.c.l.b16 %v910
        %v1183 = vunpack.c.h.b16 %v910
        %v1184 = vunpack.c.l.b16 %v911
        %v1185 = vunpack.c.h.b16 %v911
        %v1186 = vunpack.c.l.b16 %v912
        %v1187 = vunpack.c.h.b16 %v912
        %v1188 = vunpack.c.l.b16 %v913
        %v1189 = vunpack.c.h.b16 %v913
        %v1190 = vunpack.c.l.b16 %v914
        %v1191 = vunpack.c.h.b16 %v914
        %v1192 = vunpack.c.l.b16 %v915
        %v1193 = vunpack.c.h.b16 %v915
        %v1194 = vunpack.c.l.b16 %v916
        %v1195 = vunpack.c.h.b16 %v916
        %v1196 = vunpack.c.l.b16 %v917
        %v1197 = vunpack.c.h.b16 %v917
        %v1198 = vunpack.c.l.b16 %v918
        %v1199 = vunpack.c.h.b16 %v918
        %v1200 = vunpack.c.l.b16 %v919
        %v1201 = vunpack.c.h.b16 %v919
        %v1202 = vunpack.c.l.b16 %v920
        %v1203 = vunpack.c.h.b16 %v920
        %v1204 = vunpack.c.l.b16 %v921
        %v1205 = vunpack.c.h.b16 %v921
        %v1206 = vunpack.c.l.b16 %v922
        %v1207 = vunpack.c.h.b16 %v922
        %v1208 = vunpack.c.l.b16 %v923
        %v1209 = vunpack.c.h.b16 %v923
        %v1210 = vunpack.c.l.b16 %v924
        %v1211 = vunpack.c.h.b16 %v924
        %v1212 = vunpack.c.l.b16 %v925
        %v1213 = vunpack.c.h.b16 %v925
        %v1214 = vunpack.c.l.b16 %v926
        %v1215 = vunpack.c.h.b16 %v926
        %v1216 = vunpack.c.l.b16 %v927
        %v1217 = vunpack.c.h.b16 %v927
        %v1218 = vunpack.c.l.b16 %v928
        %v1219 = vunpack.c.h.b16 %v928
        %v1220 = vunpack.c.l.b16 %v929
        %v1221 = vunpack.c.h.b16 %v929
        %v1222 = vunpack.c.l.b16 %v930
        %v1223 = vunpack.c.h.b16 %v930
        %v1224 = vunpack.c.l.b16 %v931
        %v1225 = vunpack.c.h.b16 %v931
        %v1226 = vunpack.c.l.b16 %v932
        %v1227 = vunpack.c.h.b16 %v932
        %v1228 = vunpack.c.l.b16 %v933
        %v1229 = vunpack.c.h.b16 %v933
        %v1230 = vunpack.c.l.b16 %v934
        %v1231 = vunpack.c.h.b16 %v934
        %v1232 = vunpack.c.l.b16 %v935
        %v1233 = vunpack.c.h.b16 %v935
        %v1234 = vunpack.c.l.b16 %v936
        %v1235 = vunpack.c.h.b16 %v936
        %v1236 = vunpack.c.l.b16 %v937
        %v1237 = vunpack.c.h.b16 %v937
        %v1238 = vunpack.c.l.b16 %v938
        %v1239 = vunpack.c.h.b16 %v938
        %v1240 = vunpack.c.l.b16 %v939
        %v1241 = vunpack.c.h.b16 %v939
        %v1242 = vunpack.c.l.b16 %v940
        %v1243 = vunpack.c.h.b16 %v940
        %v1244 = vunpack.c.l.b16 %v941
        %v1245 = vunpack.c.h.b16 %v941
        %v1246 = vunpack.c.l.b16 %v942
        %v1247 = vunpack.c.h.b16 %v942
        %v1248 = vunpack.c.l.b16 %v943
        %v1249 = vunpack.c.h.b16 %v943
        %v1250 = vunpack.c.l.b16 %v944
        %v1251 = vunpack.c.h.b16 %v944
        %v1252 = vunpack.c.l.b16 %v945
        %v1253 = vunpack.c.h.b16 %v945
        %v1254 = vunpack.c.l.b16 %v946
        %v1255 = vunpack.c.h.b16 %v946
        %v1256 = vunpack.c.l.b16 %v947
        %v1257 = vunpack.c.h.b16 %v947
        %v1258 = vunpack.c.l.b16 %v948
        %v1259 = vunpack.c.h.b16 %v948
        %v1260 = vunpack.c.l.b16 %v949
        %v1261 = vunpack.c.h.b16 %v949
        %v1262 = vunpack.c.l.b16 %v950
        %v1263 = vunpack.c.h.b16 %v950
        %v1264 = vunpack.c.l.b16 %v951
        %v1265 = vunpack.c.h.b16 %v951
        %v1266 = vunpack.c.l.b16 %v952
        %v1267 = vunpack.c.h.b16 %v952
        %v1268 = vunpack.c.l.b16 %v953
        %v1269 = vunpack.c.h.b16 %v953
        %v1270 = vunpack.c.l.b16 %v954
        %v1271 = vunpack.c.h.b16 %v954
        %v1272 = vunpack.c.l.b16 %v955
        %v1273 = vunpack.c.h.b16 %v955
        %v1274 = vunpack.c.l.b16 %v956
        %v1275 = vunpack.c.h.b16 %v956
        %v1276 = vunpack.c.l.b16 %v957
        %v1277 = vunpack.c.h.b16 %v957
        %v1278 = vpack.c.b16 %v1154, %v1150
        %v1279 = vpack.c.b16 %v1155, %v1151
        %v1280 = vpack.c.b16 %v1156, %v1152
        %v1281 = vpack.c.b16 %v1157, %v1153
        %v1282 = vpack.c.b16 %v1162, %v1158
        %v1283 = vpack.c.b16 %v1163, %v1159
        %v1284 = vpack.c.b16 %v1164, %v1160
        %v1285 = vpack.c.b16 %v1165, %v1161
        %v1286 = vpack.c.b16 %v1170, %v1166
        %v1287 = vpack.c.b16 %v1171, %v1167
        %v1288 = vpack.c.b16 %v1172, %v1168
        %v1289 = vpack.c.b16 %v1173, %v1169
        %v1290 = vpack.c.b16 %v1178, %v1174
        %v1291 = vpack.c.b16 %v1179, %v1175
        %v1292 = vpack.c.b16 %v1180, %v1176
        %v1293 = vpack.c.b16 %v1181, %v1177
        %v1294 = vpack.c.b16 %v1186, %v1182
        %v1295 = vpack.c.b16 %v1187, %v1183
        %v1296 = vpack.c.b16 %v1188, %v1184
        %v1297 = vpack.c.b16 %v1189, %v1185
        %v1298 = vpack.c.b16 %v1194, %v1190
        %v1299 = vpack.c.b16 %v1195, %v1191
        %v1300 = vpack.c.b16 %v1196, %v1192
        %v1301 = vpack.c.b16 %v1197, %v1193
        %v1302 = vpack.c.b16 %v1202, %v1198
        %v1303 = vpack.c.b16 %v1203, %v1199
        %v1304 = vpack.c.b16 %v1204, %v1200
        %v1305 = vpack.c.b16 %v1205, %v1201
        %v1306 = vpack.c.b16 %v1210, %v1206
        %v1307 = vpack.c.b16 %v1211, %v1207
        %v1308 = vpack.c.b16 %v1212, %v1208
        %v1309 = vpack.c.b16 %v1213, %v1209
        %v1310 = vpack.c.b16 %v1218, %v1214
        %v1311 = vpack.c.b16 %v1219, %v1215
        %v1312 = vpack.c.b16 %v1220, %v1216
        %v1313 = vpack.c.b16 %v1221, %v1217
        %v1314 = vpack.c.b16 %v1226, %v1222
        %v1315 = vpack.c.b16 %v1227, %v1223
        %v1316 = vpack.c.b16 %v1228, %v1224
        %v1317 = vpack.c.b16 %v1229, %v1225
        %v1318 = vpack.c.b16 %v1234, %v1230
        %v1319 = vpack.c.b16 %v1235, %v1231
        %v1320 = vpack.c.b16 %v1236, %v1232
        %v1321 = vpack.c.b16 %v1237, %v1233
        %v1322 = vpack.c.b16 %v1242, %v1238
        %v1323 = vpack.c.b16 %v1243, %v1239
        %v1324 = vpack.c.b16 %v1244, %v1240
        %v1325 = vpack.c.b16 %v1245, %v1241
        %v1326 = vpack.c.b16 %v1250, %v1246
        %v1327 = vpack.c.b16 %v1251, %v1247
        %v1328 = vpack.c.b16 %v1252, %v1248
        %v1329 = vpack.c.b16 %v1253, %v1249
        %v1330 = vpack.c.b16 %v1258, %v1254
        %v1331 = vpack.c.b16 %v1259, %v1255
        %v1332 = vpack.c.b16 %v1260, %v1256
        %v1333 = vpack.c.b16 %v1261, %v1257
        %v1334 = vpack.c.b16 %v1266, %v1262
        %v1335 = vpack.c.b16 %v1267, %v1263
        %v1336 = vpack.c.b16 %v1268, %v1264
        %v1337 = vpack.c.b16 %v1269, %v1265
        %v1338 = vpack.c.b16 %v1274, %v1270
        %v1339 = vpack.c.b16 %v1275, %v1271
        %v1340 = vpack.c.b16 %v1276, %v1272
        %v1341 = vpack.c.b16 %v1277, %v1273
        %v1534 = vunpack.c.l.b16 %v958
        %v1535 = vunpack.c.h.b16 %v958
        %v1536 = vunpack.c.l.b16 %v959
        %v1537 = vunpack.c.h.b16 %v959
        %v1538 = vunpack.c.l.b16 %v960
        %v1539 = vunpack.c.h.b16 %v960
        %v1540 = vunpack.c.l.b16 %v961
        %v1541 = vunpack.c.h.b16 %v961
        %v1542 = vunpack.c.l.b16 %v962
        %v1543 = vunpack.c.h.b16 %v962
        %v1544 = vunpack.c.l.b16 %v963
        %v1545 = vunpack.c.h.b16 %v963
        %v1546 = vunpack.c.l.b16 %v964
        %v1547 = vunpack.c.h.b16 %v964
        %v1548 = vunpack.c.l.b16 %v965
        %v1549 = vunpack.c.h.b16 %v965
        %v1550 = vunpack.c.l.b16 %v966
        %v1551 = vunpack.c.h.b16 %v966
        %v1552 = vunpack.c.l.b16 %v967
        %v1553 = vunpack.c.h.b16 %v967
        %v1554 = vunpack.c.l.b16 %v968
        %v1555 = vunpack.c.h.b16 %v968
        %v1556 = vunpack.c.l.b16 %v969
        %v1557 = vunpack.c.h.b16 %v969
        %v1558 = vunpack.c.l.b16 %v970
        %v1559 = vunpack.c.h.b16 %v970
        %v1560 = vunpack.c.l.b16 %v971
        %v1561 = vunpack.c.h.b16 %v971
        %v1562 = vunpack.c.l.b16 %v972
        %v1563 = vunpack.c.h.b16 %v972
        %v1564 = vunpack.c.l.b16 %v973
        %v1565 = vunpack.c.h.b16 %v973
        %v1566 = vunpack.c.l.b16 %v974
        %v1567 = vunpack.c.h.b16 %v974
        %v1568 = vunpack.c.l.b16 %v975
        %v1569 = vunpack.c.h.b16 %v975
        %v1570 = vunpack.c.l.b16 %v976
        %v1571 = vunpack.c.h.b16 %v976
        %v1572 = vunpack.c.l.b16 %v977
        %v1573 = vunpack.c.h.b16 %v977
        %v1574 = vunpack.c.l.b16 %v978
        %v1575 = vunpack.c.h.b16 %v978
        %v1576 = vunpack.c.l.b16 %v979
        %v1577 = vunpack.c.h.b16 %v979
        %v1578 = vunpack.c.l.b16 %v980
        %v1579 = vunpack.c.h.b16 %v980
        %v1580 = vunpack.c.l.b16 %v981
        %v1581 = vunpack.c.h.b16 %v981
        %v1582 = vunpack.c.l.b16 %v982
        %v1583 = vunpack.c.h.b16 %v982
        %v1584 = vunpack.c.l.b16 %v983
        %v1585 = vunpack.c.h.b16 %v983
        %v1586 = vunpack.c.l.b16 %v984
        %v1587 = vunpack.c.h.b16 %v984
        %v1588 = vunpack.c.l.b16 %v985
        %v1589 = vunpack.c.h.b16 %v985
        %v1590 = vunpack.c.l.b16 %v986
        %v1591 = vunpack.c.h.b16 %v986
        %v1592 = vunpack.c.l.b16 %v987
        %v1593 = vunpack.c.h.b16 %v987
        %v1594 = vunpack.c.l.b16 %v988
        %v1595 = vunpack.c.h.b16 %v988
        %v1596 = vunpack.c.l.b16 %v989
        %v1597 = vunpack.c.h.b16 %v989
        %v1598 = vunpack.c.l.b16 %v990
        %v1599 = vunpack.c.h.b16 %v990
        %v1600 = vunpack.c.l.b16 %v991
        %v1601 = vunpack.c.h.b16 %v991
        %v1602 = vunpack.c.l.b16 %v992
        %v1603 = vunpack.c.h.b16 %v992
        %v1604 = vunpack.c.l.b16 %v993
        %v1605 = vunpack.c.h.b16 %v993
        %v1606 = vunpack.c.l.b16 %v994
        %v1607 = vunpack.c.h.b16 %v994
        %v1608 = vunpack.c.l.b16 %v995
        %v1609 = vunpack.c.h.b16 %v995
        %v1610 = vunpack.c.l.b16 %v996
        %v1611 = vunpack.c.h.b16 %v996
        %v1612 = vunpack.c.l.b16 %v997
        %v1613 = vunpack.c.h.b16 %v997
        %v1614 = vunpack.c.l.b16 %v998
        %v1615 = vunpack.c.h.b16 %v998
        %v1616 = vunpack.c.l.b16 %v999
        %v1617 = vunpack.c.h.b16 %v999
        %v1618 = vunpack.c.l.b16 %v1000
        %v1619 = vunpack.c.h.b16 %v1000
        %v1620 = vunpack.c.l.b16 %v1001
        %v1621 = vunpack.c.h.b16 %v1001
        %v1622 = vunpack.c.l.b16 %v1002
        %v1623 = vunpack.c.h.b16 %v1002
        %v1624 = vunpack.c.l.b16 %v1003
        %v1625 = vunpack.c.h.b16 %v1003
        %v1626 = vunpack.c.l.b16 %v1004
        %v1627 = vunpack.c.h.b16 %v1004
        %v1628 = vunpack.c.l.b16 %v1005
        %v1629 = vunpack.c.h.b16 %v1005
        %v1630 = vunpack.c.l.b16 %v1006
        %v1631 = vunpack.c.h.b16 %v1006
        %v1632 = vunpack.c.l.b16 %v1007
        %v1633 = vunpack.c.h.b16 %v1007
        %v1634 = vunpack.c.l.b16 %v1008
        %v1635 = vunpack.c.h.b16 %v1008
        %v1636 = vunpack.c.l.b16 %v1009
        %v1637 = vunpack.c.h.b16 %v1009
        %v1638 = vunpack.c.l.b16 %v1010
        %v1639 = vunpack.c.h.b16 %v1010
        %v1640 = vunpack.c.l.b16 %v1011
        %v1641 = vunpack.c.h.b16 %v1011
        %v1642 = vunpack.c.l.b16 %v1012
        %v1643 = vunpack.c.h.b16 %v1012
        %v1644 = vunpack.c.l.b16 %v1013
        %v1645 = vunpack.c.h.b16 %v1013
        %v1646 = vunpack.c.l.b16 %v1014
        %v1647 = vunpack.c.h.b16 %v1014
        %v1648 = vunpack.c.l.b16 %v1015
        %v1649 = vunpack.c.h.b16 %v1015
        %v1650 = vunpack.c.l.b16 %v1016
        %v1651 = vunpack.c.h.b16 %v1016
        %v1652 = vunpack.c.l.b16 %v1017
        %v1653 = vunpack.c.h.b16 %v1017
        %v1654 = vunpack.c.l.b16 %v1018
        %v1655 = vunpack.c.h.b16 %v1018
        %v1656 = vunpack.c.l.b16 %v1019
        %v1657 = vunpack.c.h.b16 %v1019
        %v1658 = vunpack.c.l.b16 %v1020
        %v1659 = vunpack.c.h.b16 %v1020
        %v1660 = vunpack.c.l.b16 %v1021
        %v1661 = vunpack.c.h.b16 %v1021
        %v1662 = vunpack.c.l.b16 %v1022
        %v1663 = vunpack.c.h.b16 %v1022
        %v1664 = vunpack.c.l.b16 %v1023
        %v1665 = vunpack.c.h.b16 %v1023
        %v1666 = vunpack.c.l.b16 %v1024
        %v1667 = vunpack.c.h.b16 %v1024
        %v1668 = vunpack.c.l.b16 %v1025
        %v1669 = vunpack.c.h.b16 %v1025
        %v1670 = vunpack.c.l.b16 %v1026
        %v1671 = vunpack.c.h.b16 %v1026
        %v1672 = vunpack.c.l.b16 %v1027
        %v1673 = vunpack.c.h.b16 %v1027
        %v1674 = vunpack.c.l.b16 %v1028
        %v1675 = vunpack.c.h.b16 %v1028
        %v1676 = vunpack.c.l.b16 %v1029
        %v1677 = vunpack.c.h.b16 %v1029
        %v1678 = vunpack.c.l.b16 %v1030
        %v1679 = vunpack.c.h.b16 %v1030
        %v1680 = vunpack.c.l.b16 %v1031
        %v1681 = vunpack.c.h.b16 %v1031
        %v1682 = vunpack.c.l.b16 %v1032
        %v1683 = vunpack.c.h.b16 %v1032
        %v1684 = vunpack.c.l.b16 %v1033
        %v1685 = vunpack.c.h.b16 %v1033
        %v1686 = vunpack.c.l.b16 %v1034
        %v1687 = vunpack.c.h.b16 %v1034
        %v1688 = vunpack.c.l.b16 %v1035
        %v1689 = vunpack.c.h.b16 %v1035
        %v1690 = vunpack.c.l.b16 %v1036
        %v1691 = vunpack.c.h.b16 %v1036
        %v1692 = vunpack.c.l.b16 %v1037
        %v1693 = vunpack.c.h.b16 %v1037
        %v1694 = vunpack.c.l.b16 %v1038
        %v1695 = vunpack.c.h.b16 %v1038
        %v1696 = vunpack.c.l.b16 %v1039
        %v1697 = vunpack.c.h.b16 %v1039
        %v1698 = vunpack.c.l.b16 %v1040
        %v1699 = vunpack.c.h.b16 %v1040
        %v1700 = vunpack.c.l.b16 %v1041
        %v1701 = vunpack.c.h.b16 %v1041
        %v1702 = vunpack.c.l.b16 %v1042
        %v1703 = vunpack.c.h.b16 %v1042
        %v1704 = vunpack.c.l.b16 %v1043
        %v1705 = vunpack.c.h.b16 %v1043
        %v1706 = vunpack.c.l.b16 %v1044
        %v1707 = vunpack.c.h.b16 %v1044
        %v1708 = vunpack.c.l.b16 %v1045
        %v1709 = vunpack.c.h.b16 %v1045
        %v1710 = vunpack.c.l.b16 %v1046
        %v1711 = vunpack.c.h.b16 %v1046
        %v1712 = vunpack.c.l.b16 %v1047
        %v1713 = vunpack.c.h.b16 %v1047
        %v1714 = vunpack.c.l.b16 %v1048
        %v1715 = vunpack.c.h.b16 %v1048
        %v1716 = vunpack.c.l.b16 %v1049
        %v1717 = vunpack.c.h.b16 %v1049
        %v1718 = vunpack.c.l.b16 %v1050
        %v1719 = vunpack.c.h.b16 %v1050
        %v1720 = vunpack.c.l.b16 %v1051
        %v1721 = vunpack.c.h.b16 %v1051
        %v1722 = vunpack.c.l.b16 %v1052
        %v1723 = vunpack.c.h.b16 %v1052
        %v1724 = vunpack.c.l.b16 %v1053
        %v1725 = vunpack.c.h.b16 %v1053
        %v1726 = vunpack.c.l.b16 %v1054
        %v1727 = vunpack.c.h.b16 %v1054
        %v1728 = vunpack.c.l.b16 %v1055
        %v1729 = vunpack.c.h.b16 %v1055
        %v1730 = vunpack.c.l.b16 %v1056
        %v1731 = vunpack.c.h.b16 %v1056
        %v1732 = vunpack.c.l.b16 %v1057
        %v1733 = vunpack.c.h.b16 %v1057
        %v1734 = vunpack.c.l.b16 %v1058
        %v1735 = vunpack.c.h.b16 %v1058
        %v1736 = vunpack.c.l.b16 %v1059
        %v1737 = vunpack.c.h.b16 %v1059
        %v1738 = vunpack.c.l.b16 %v1060
        %v1739 = vunpack.c.h.b16 %v1060
        %v1740 = vunpack.c.l.b16 %v1061
        %v1741 = vunpack.c.h.b16 %v1061
        %v1742 = vunpack.c.l.b16 %v1062
        %v1743 = vunpack.c.h.b16 %v1062
        %v1744 = vunpack.c.l.b16 %v1063
        %v1745 = vunpack.c.h.b16 %v1063
        %v1746 = vunpack.c.l.b16 %v1064
        %v1747 = vunpack.c.h.b16 %v1064
        %v1748 = vunpack.c.l.b16 %v1065
        %v1749 = vunpack.c.h.b16 %v1065
        %v1750 = vunpack.c.l.b16 %v1066
        %v1751 = vunpack.c.h.b16 %v1066
        %v1752 = vunpack.c.l.b16 %v1067
        %v1753 = vunpack.c.h.b16 %v1067
        %v1754 = vunpack.c.l.b16 %v1068
        %v1755 = vunpack.c.h.b16 %v1068
        %v1756 = vunpack.c.l.b16 %v1069
        %v1757 = vunpack.c.h.b16 %v1069
        %v1758 = vunpack.c.l.b16 %v1070
        %v1759 = vunpack.c.h.b16 %v1070
        %v1760 = vunpack.c.l.b16 %v1071
        %v1761 = vunpack.c.h.b16 %v1071
        %v1762 = vunpack.c.l.b16 %v1072
        %v1763 = vunpack.c.h.b16 %v1072
        %v1764 = vunpack.c.l.b16 %v1073
        %v1765 = vunpack.c.h.b16 %v1073
        %v1766 = vunpack.c.l.b16 %v1074
        %v1767 = vunpack.c.h.b16 %v1074
        %v1768 = vunpack.c.l.b16 %v1075
        %v1769 = vunpack.c.h.b16 %v1075
        %v1770 = vunpack.c.l.b16 %v1076
        %v1771 = vunpack.c.h.b16 %v1076
        %v1772 = vunpack.c.l.b16 %v1077
        %v1773 = vunpack.c.h.b16 %v1077
        %v1774 = vunpack.c.l.b16 %v1078
        %v1775 = vunpack.c.h.b16 %v1078
        %v1776 = vunpack.c.l.b16 %v1079
        %v1777 = vunpack.c.h.b16 %v1079
        %v1778 = vunpack.c.l.b16 %v1080
        %v1779 = vunpack.c.h.b16 %v1080
        %v1780 = vunpack.c.l.b16 %v1081
        %v1781 = vunpack.c.h.b16 %v1081
        %v1782 = vunpack.c.l.b16 %v1082
        %v1783 = vunpack.c.h.b16 %v1082
        %v1784 = vunpack.c.l.b16 %v1083
        %v1785 = vunpack.c.h.b16 %v1083
        %v1786 = vunpack.c.l.b16 %v1084
        %v1787 = vunpack.c.h.b16 %v1084
        %v1788 = vunpack.c.l.b16 %v1085
        %v1789 = vunpack.c.h.b16 %v1085
        %v1790 = vpack.c.b16 %v1538, %v1534
        %v1791 = vpack.c.b16 %v1539, %v1535
        %v1792 = vpack.c.b16 %v1540, %v1536
        %v1793 = vpack.c.b16 %v1541, %v1537
        %v1794 = vpack.c.b16 %v1546, %v1542
        %v1795 = vpack.c.b16 %v1547, %v1543
        %v1796 = vpack.c.b16 %v1548, %v1544
        %v1797 = vpack.c.b16 %v1549, %v1545
        %v1798 = vpack.c.b16 %v1554, %v1550
        %v1799 = vpack.c.b16 %v1555, %v1551
        %v1800 = vpack.c.b16 %v1556, %v1552
        %v1801 = vpack.c.b16 %v1557, %v1553
        %v1802 = vpack.c.b16 %v1562, %v1558
        %v1803 = vpack.c.b16 %v1563, %v1559
        %v1804 = vpack.c.b16 %v1564, %v1560
        %v1805 = vpack.c.b16 %v1565, %v1561
        %v1806 = vpack.c.b16 %v1570, %v1566
        %v1807 = vpack.c.b16 %v1571, %v1567
        %v1808 = vpack.c.b16 %v1572, %v1568
        %v1809 = vpack.c.b16 %v1573, %v1569
        %v1810 = vpack.c.b16 %v1578, %v1574
        %v1811 = vpack.c.b16 %v1579, %v1575
        %v1812 = vpack.c.b16 %v1580, %v1576
        %v1813 = vpack.c.b16 %v1581, %v1577
        %v1814 = vpack.c.b16 %v1586, %v1582
        %v1815 = vpack.c.b16 %v1587, %v1583
        %v1816 = vpack.c.b16 %v1588, %v1584
        %v1817 = vpack.c.b16 %v1589, %v1585
        %v1818 = vpack.c.b16 %v1594, %v1590
        %v1819 = vpack.c.b16 %v1595, %v1591
        %v1820 = vpack.c.b16 %v1596, %v1592
        %v1821 = vpack.c.b16 %v1597, %v1593
        %v1822 = vpack.c.b16 %v1602, %v1598
        %v1823 = vpack.c.b16 %v1603, %v1599
        %v1824 = vpack.c.b16 %v1604, %v1600
        %v1825 = vpack.c.b16 %v1605, %v1601
        %v1826 = vpack.c.b16 %v1610, %v1606
        %v1827 = vpack.c.b16 %v1611, %v1607
        %v1828 = vpack.c.b16 %v1612, %v1608
        %v1829 = vpack.c.b16 %v1613, %v1609
        %v1830 = vpack.c.b16 %v1618, %v1614
        %v1831 = vpack.c.b16 %v1619, %v1615
        %v1832 = vpack.c.b16 %v1620, %v1616
        %v1833 = vpack.c.b16 %v1621, %v1617
        %v1834 = vpack.c.b16 %v1626, %v1622
        %v1835 = vpack.c.b16 %v1627, %v1623
        %v1836 = vpack.c.b16 %v1628, %v1624
        %v1837 = vpack.c.b16 %v1629, %v1625
        %v1838 = vpack.c.b16 %v1634, %v1630
        %v1839 = vpack.c.b16 %v1635, %v1631
        %v1840 = vpack.c.b16 %v1636, %v1632
        %v1841 = vpack.c.b16 %v1637, %v1633
        %v1842 = vpack.c.b16 %v1642, %v1638
        %v1843 = vpack.c.b16 %v1643, %v1639
        %v1844 = vpack.c.b16 %v1644, %v1640
        %v1845 = vpack.c.b16 %v1645, %v1641
        %v1846 = vpack.c.b16 %v1650, %v1646
        %v1847 = vpack.c.b16 %v1651, %v1647
        %v1848 = vpack.c.b16 %v1652, %v1648
        %v1849 = vpack.c.b16 %v1653, %v1649
        %v1850 = vpack.c.b16 %v1658, %v1654
        %v1851 = vpack.c.b16 %v1659, %v1655
        %v1852 = vpack.c.b16 %v1660, %v1656
        %v1853 = vpack.c.b16 %v1661, %v1657
        %v1854 = vpack.c.b16 %v1666, %v1662
        %v1855 = vpack.c.b16 %v1667, %v1663
        %v1856 = vpack.c.b16 %v1668, %v1664
        %v1857 = vpack.c.b16 %v1669, %v1665
        %v1858 = vpack.c.b16 %v1674, %v1670
        %v1859 = vpack.c.b16 %v1675, %v1671
        %v1860 = vpack.c.b16 %v1676, %v1672
        %v1861 = vpack.c.b16 %v1677, %v1673
        %v1862 = vpack.c.b16 %v1682, %v1678
        %v1863 = vpack.c.b16 %v1683, %v1679
        %v1864 = vpack.c.b16 %v1684, %v1680
        %v1865 = vpack.c.b16 %v1685, %v1681
        %v1866 = vpack.c.b16 %v1690, %v1686
        %v1867 = vpack.c.b16 %v1691, %v1687
        %v1868 = vpack.c.b16 %v1692, %v1688
        %v1869 = vpack.c.b16 %v1693, %v1689
        %v1870 = vpack.c.b16 %v1698, %v1694
        %v1871 = vpack.c.b16 %v1699, %v1695
        %v1872 = vpack.c.b16 %v1700, %v1696
        %v1873 = vpack.c.b16 %v1701, %v1697
        %v1874 = vpack.c.b16 %v1706, %v1702
        %v1875 = vpack.c.b16 %v1707, %v1703
        %v1876 = vpack.c.b16 %v1708, %v1704
        %v1877 = vpack.c.b16 %v1709, %v1705
        %v1878 = vpack.c.b16 %v1714, %v1710
        %v1879 = vpack.c.b16 %v1715, %v1711
        %v1880 = vpack.c.b16 %v1716, %v1712
        %v1881 = vpack.c.b16 %v1717, %v1713
        %v1882 = vpack.c.b16 %v1722, %v1718
        %v1883 = vpack.c.b16 %v1723, %v1719
        %v1884 = vpack.c.b16 %v1724, %v1720
        %v1885 = vpack.c.b16 %v1725, %v1721
        %v1886 = vpack.c.b16 %v1730, %v1726
        %v1887 = vpack.c.b16 %v1731, %v1727
        %v1888 = vpack.c.b16 %v1732, %v1728
        %v1889 = vpack.c.b16 %v1733, %v1729
        %v1890 = vpack.c.b16 %v1738, %v1734
        %v1891 = vpack.c.b16 %v1739, %v1735
        %v1892 = vpack.c.b16 %v1740, %v1736
        %v1893 = vpack.c.b16 %v1741, %v1737
        %v1894 = vpack.c.b16 %v1746, %v1742
        %v1895 = vpack.c.b16 %v1747, %v1743
        %v1896 = vpack.c.b16 %v1748, %v1744
        %v1897 = vpack.c.b16 %v1749, %v1745
        %v1898 = vpack.c.b16 %v1754, %v1750
        %v1899 = vpack.c.b16 %v1755, %v1751
        %v1900 = vpack.c.b16 %v1756, %v1752
        %v1901 = vpack.c.b16 %v1757, %v1753
        %v1902 = vpack.c.b16 %v1762, %v1758
        %v1903 = vpack.c.b16 %v1763, %v1759
        %v1904 = vpack.c.b16 %v1764, %v1760
        %v1905 = vpack.c.b16 %v1765, %v1761
        %v1906 = vpack.c.b16 %v1770, %v1766
        %v1907 = vpack.c.b16 %v1771, %v1767
        %v1908 = vpack.c.b16 %v1772, %v1768
        %v1909 = vpack.c.b16 %v1773, %v1769
        %v1910 = vpack.c.b16 %v1778, %v1774
        %v1911 = vpack.c.b16 %v1779, %v1775
        %v1912 = vpack.c.b16 %v1780, %v1776
        %v1913 = vpack.c.b16 %v1781, %v1777
        %v1914 = vpack.c.b16 %v1786, %v1782
        %v1915 = vpack.c.b16 %v1787, %v1783
        %v1916 = vpack.c.b16 %v1788, %v1784
        %v1917 = vpack.c.b16 %v1789, %v1785
        %2046 = vmatpush.bf16.msra.mxu0 %v1818
        %2047 = vmatpush.bf16.msra.mxu0 %v1814
        %2048 = vmatpush.bf16.msra.mxu0 %v1810
        %2049 = vmatpush.bf16.msra.mxu0 %v1806
        %2050 = vmatpush.bf16.msra.mxu0 %v1802
        %2051 = vmatpush.bf16.msra.mxu0 %v1798
        %2052 = vmatpush.bf16.msra.mxu0 %v1794
        %2053 = vmatpush.bf16.msra.mxu0 %v1790
        %2054 = vmatmul.bf16.gmra.mxu0 %v1278
        %v2055 = vpop.f32.mrf.mxu0
        %v2056 = vadd.f32 0.0, %v2055
        %v2057 = vpop.f32.mrf.mxu0
        %v2058 = vadd.f32 0.0, %v2057
        %2059 = vmatmul.bf16.gmra.mxu0 %v1282
        %v2060 = vpop.f32.mrf.mxu0
        %v2061 = vadd.f32 0.0, %v2060
        %v2062 = vpop.f32.mrf.mxu0
        %v2063 = vadd.f32 0.0, %v2062
        %2064 = vmatmul.bf16.gmra.mxu0 %v1286
        %v2065 = vpop.f32.mrf.mxu0
        %v2066 = vadd.f32 0.0, %v2065
        %v2067 = vpop.f32.mrf.mxu0
        %v2068 = vadd.f32 0.0, %v2067
        %2069 = vmatmul.bf16.gmra.mxu0 %v1290
        %v2070 = vpop.f32.mrf.mxu0
        %v2071 = vadd.f32 0.0, %v2070
        %v2072 = vpop.f32.mrf.mxu0
        %v2073 = vadd.f32 0.0, %v2072
        %2074 = vmatmul.bf16.gmra.mxu0 %v1294
        %v2075 = vpop.f32.mrf.mxu0
        %v2076 = vadd.f32 0.0, %v2075
        %v2077 = vpop.f32.mrf.mxu0
        %v2078 = vadd.f32 0.0, %v2077
        %2079 = vmatmul.bf16.gmra.mxu0 %v1298
        %v2080 = vpop.f32.mrf.mxu0
        %v2081 = vadd.f32 0.0, %v2080
        %v2082 = vpop.f32.mrf.mxu0
        %v2083 = vadd.f32 0.0, %v2082
        %2084 = vmatmul.bf16.gmra.mxu0 %v1302
        %v2085 = vpop.f32.mrf.mxu0
        %v2086 = vadd.f32 0.0, %v2085
        %v2087 = vpop.f32.mrf.mxu0
        %v2088 = vadd.f32 0.0, %v2087
        %2089 = vmatmul.bf16.gmra.mxu0 %v1306
        %v2090 = vpop.f32.mrf.mxu0
        %v2091 = vadd.f32 0.0, %v2090
        %v2092 = vpop.f32.mrf.mxu0
        %v2093 = vadd.f32 0.0, %v2092
        %2094 = vmatmul.bf16.gmra.mxu0 %v1310
        %v2095 = vpop.f32.mrf.mxu0
        %v2096 = vadd.f32 0.0, %v2095
        %v2097 = vpop.f32.mrf.mxu0
        %v2098 = vadd.f32 0.0, %v2097
        %2099 = vmatmul.bf16.gmra.mxu0 %v1314
        %v2100 = vpop.f32.mrf.mxu0
        %v2101 = vadd.f32 0.0, %v2100
        %v2102 = vpop.f32.mrf.mxu0
        %v2103 = vadd.f32 0.0, %v2102
        %2104 = vmatmul.bf16.gmra.mxu0 %v1318
        %v2105 = vpop.f32.mrf.mxu0
        %v2106 = vadd.f32 0.0, %v2105
        %v2107 = vpop.f32.mrf.mxu0
        %v2108 = vadd.f32 0.0, %v2107
        %2109 = vmatmul.bf16.gmra.mxu0 %v1322
        %v2110 = vpop.f32.mrf.mxu0
        %v2111 = vadd.f32 0.0, %v2110
        %v2112 = vpop.f32.mrf.mxu0
        %v2113 = vadd.f32 0.0, %v2112
        %2114 = vmatmul.bf16.gmra.mxu0 %v1326
        %v2115 = vpop.f32.mrf.mxu0
        %v2116 = vadd.f32 0.0, %v2115
        %v2117 = vpop.f32.mrf.mxu0
        %v2118 = vadd.f32 0.0, %v2117
        %2119 = vmatmul.bf16.gmra.mxu0 %v1330
        %v2120 = vpop.f32.mrf.mxu0
        %v2121 = vadd.f32 0.0, %v2120
        %v2122 = vpop.f32.mrf.mxu0
        %v2123 = vadd.f32 0.0, %v2122
        %2124 = vmatmul.bf16.gmra.mxu0 %v1334
        %v2125 = vpop.f32.mrf.mxu0
        %v2126 = vadd.f32 0.0, %v2125
        %v2127 = vpop.f32.mrf.mxu0
        %v2128 = vadd.f32 0.0, %v2127
        %2129 = vmatmul.bf16.gmra.mxu0 %v1338
        %v2130 = vpop.f32.mrf.mxu0
        %v2131 = vadd.f32 0.0, %v2130
        %v2132 = vpop.f32.mrf.mxu0
        %v2133 = vadd.f32 0.0, %v2132
        %2134 = vdwg.mxu0
        %2135 = vmatpush.bf16.msra.mxu0 %v1850
        %2136 = vmatpush.bf16.msra.mxu0 %v1846
        %2137 = vmatpush.bf16.msra.mxu0 %v1842
        %2138 = vmatpush.bf16.msra.mxu0 %v1838
        %2139 = vmatpush.bf16.msra.mxu0 %v1834
        %2140 = vmatpush.bf16.msra.mxu0 %v1830
        %2141 = vmatpush.bf16.msra.mxu0 %v1826
        %2142 = vmatpush.bf16.msra.mxu0 %v1822
        %2143 = vmatmul.bf16.gmra.mxu0 %v1279
        %v2144 = vpop.f32.mrf.mxu0
        %v2145 = vadd.f32 %v2056, %v2144
        %v2146 = vpop.f32.mrf.mxu0
        %v2147 = vadd.f32 %v2058, %v2146
        %2148 = vmatmul.bf16.gmra.mxu0 %v1283
        %v2149 = vpop.f32.mrf.mxu0
        %v2150 = vadd.f32 %v2061, %v2149
        %v2151 = vpop.f32.mrf.mxu0
        %v2152 = vadd.f32 %v2063, %v2151
        %2153 = vmatmul.bf16.gmra.mxu0 %v1287
        %v2154 = vpop.f32.mrf.mxu0
        %v2155 = vadd.f32 %v2066, %v2154
        %v2156 = vpop.f32.mrf.mxu0
        %v2157 = vadd.f32 %v2068, %v2156
        %2158 = vmatmul.bf16.gmra.mxu0 %v1291
        %v2159 = vpop.f32.mrf.mxu0
        %v2160 = vadd.f32 %v2071, %v2159
        %v2161 = vpop.f32.mrf.mxu0
        %v2162 = vadd.f32 %v2073, %v2161
        %2163 = vmatmul.bf16.gmra.mxu0 %v1295
        %v2164 = vpop.f32.mrf.mxu0
        %v2165 = vadd.f32 %v2076, %v2164
        %v2166 = vpop.f32.mrf.mxu0
        %v2167 = vadd.f32 %v2078, %v2166
        %2168 = vmatmul.bf16.gmra.mxu0 %v1299
        %v2169 = vpop.f32.mrf.mxu0
        %v2170 = vadd.f32 %v2081, %v2169
        %v2171 = vpop.f32.mrf.mxu0
        %v2172 = vadd.f32 %v2083, %v2171
        %2173 = vmatmul.bf16.gmra.mxu0 %v1303
        %v2174 = vpop.f32.mrf.mxu0
        %v2175 = vadd.f32 %v2086, %v2174
        %v2176 = vpop.f32.mrf.mxu0
        %v2177 = vadd.f32 %v2088, %v2176
        %2178 = vmatmul.bf16.gmra.mxu0 %v1307
        %v2179 = vpop.f32.mrf.mxu0
        %v2180 = vadd.f32 %v2091, %v2179
        %v2181 = vpop.f32.mrf.mxu0
        %v2182 = vadd.f32 %v2093, %v2181
        %2183 = vmatmul.bf16.gmra.mxu0 %v1311
        %v2184 = vpop.f32.mrf.mxu0
        %v2185 = vadd.f32 %v2096, %v2184
        %v2186 = vpop.f32.mrf.mxu0
        %v2187 = vadd.f32 %v2098, %v2186
        %2188 = vmatmul.bf16.gmra.mxu0 %v1315
        %v2189 = vpop.f32.mrf.mxu0
        %v2190 = vadd.f32 %v2101, %v2189
        %v2191 = vpop.f32.mrf.mxu0
        %v2192 = vadd.f32 %v2103, %v2191
        %2193 = vmatmul.bf16.gmra.mxu0 %v1319
        %v2194 = vpop.f32.mrf.mxu0
        %v2195 = vadd.f32 %v2106, %v2194
        %v2196 = vpop.f32.mrf.mxu0
        %v2197 = vadd.f32 %v2108, %v2196
        %2198 = vmatmul.bf16.gmra.mxu0 %v1323
        %v2199 = vpop.f32.mrf.mxu0
        %v2200 = vadd.f32 %v2111, %v2199
        %v2201 = vpop.f32.mrf.mxu0
        %v2202 = vadd.f32 %v2113, %v2201
        %2203 = vmatmul.bf16.gmra.mxu0 %v1327
        %v2204 = vpop.f32.mrf.mxu0
        %v2205 = vadd.f32 %v2116, %v2204
        %v2206 = vpop.f32.mrf.mxu0
        %v2207 = vadd.f32 %v2118, %v2206
        %2208 = vmatmul.bf16.gmra.mxu0 %v1331
        %v2209 = vpop.f32.mrf.mxu0
        %v2210 = vadd.f32 %v2121, %v2209
        %v2211 = vpop.f32.mrf.mxu0
        %v2212 = vadd.f32 %v2123, %v2211
        %2213 = vmatmul.bf16.gmra.mxu0 %v1335
        %v2214 = vpop.f32.mrf.mxu0
        %v2215 = vadd.f32 %v2126, %v2214
        %v2216 = vpop.f32.mrf.mxu0
        %v2217 = vadd.f32 %v2128, %v2216
        %2218 = vmatmul.bf16.gmra.mxu0 %v1339
        %v2219 = vpop.f32.mrf.mxu0
        %v2220 = vadd.f32 %v2131, %v2219
        %v2221 = vpop.f32.mrf.mxu0
        %v2222 = vadd.f32 %v2133, %v2221
        %2223 = vdwg.mxu0
        %2224 = vmatpush.bf16.msra.mxu0 %v1882
        %2225 = vmatpush.bf16.msra.mxu0 %v1878
        %2226 = vmatpush.bf16.msra.mxu0 %v1874
        %2227 = vmatpush.bf16.msra.mxu0 %v1870
        %2228 = vmatpush.bf16.msra.mxu0 %v1866
        %2229 = vmatpush.bf16.msra.mxu0 %v1862
        %2230 = vmatpush.bf16.msra.mxu0 %v1858
        %2231 = vmatpush.bf16.msra.mxu0 %v1854
        %2232 = vmatmul.bf16.gmra.mxu0 %v1280
        %v2233 = vpop.f32.mrf.mxu0
        %v2234 = vadd.f32 %v2145, %v2233
        %v2235 = vpop.f32.mrf.mxu0
        %v2236 = vadd.f32 %v2147, %v2235
        %2237 = vmatmul.bf16.gmra.mxu0 %v1284
        %v2238 = vpop.f32.mrf.mxu0
        %v2239 = vadd.f32 %v2150, %v2238
        %v2240 = vpop.f32.mrf.mxu0
        %v2241 = vadd.f32 %v2152, %v2240
        %2242 = vmatmul.bf16.gmra.mxu0 %v1288
        %v2243 = vpop.f32.mrf.mxu0
        %v2244 = vadd.f32 %v2155, %v2243
        %v2245 = vpop.f32.mrf.mxu0
        %v2246 = vadd.f32 %v2157, %v2245
        %2247 = vmatmul.bf16.gmra.mxu0 %v1292
        %v2248 = vpop.f32.mrf.mxu0
        %v2249 = vadd.f32 %v2160, %v2248
        %v2250 = vpop.f32.mrf.mxu0
        %v2251 = vadd.f32 %v2162, %v2250
        %2252 = vmatmul.bf16.gmra.mxu0 %v1296
        %v2253 = vpop.f32.mrf.mxu0
        %v2254 = vadd.f32 %v2165, %v2253
        %v2255 = vpop.f32.mrf.mxu0
        %v2256 = vadd.f32 %v2167, %v2255
        %2257 = vmatmul.bf16.gmra.mxu0 %v1300
        %v2258 = vpop.f32.mrf.mxu0
        %v2259 = vadd.f32 %v2170, %v2258
        %v2260 = vpop.f32.mrf.mxu0
        %v2261 = vadd.f32 %v2172, %v2260
        %2262 = vmatmul.bf16.gmra.mxu0 %v1304
        %v2263 = vpop.f32.mrf.mxu0
        %v2264 = vadd.f32 %v2175, %v2263
        %v2265 = vpop.f32.mrf.mxu0
        %v2266 = vadd.f32 %v2177, %v2265
        %2267 = vmatmul.bf16.gmra.mxu0 %v1308
        %v2268 = vpop.f32.mrf.mxu0
        %v2269 = vadd.f32 %v2180, %v2268
        %v2270 = vpop.f32.mrf.mxu0
        %v2271 = vadd.f32 %v2182, %v2270
        %2272 = vmatmul.bf16.gmra.mxu0 %v1312
        %v2273 = vpop.f32.mrf.mxu0
        %v2274 = vadd.f32 %v2185, %v2273
        %v2275 = vpop.f32.mrf.mxu0
        %v2276 = vadd.f32 %v2187, %v2275
        %2277 = vmatmul.bf16.gmra.mxu0 %v1316
        %v2278 = vpop.f32.mrf.mxu0
        %v2279 = vadd.f32 %v2190, %v2278
        %v2280 = vpop.f32.mrf.mxu0
        %v2281 = vadd.f32 %v2192, %v2280
        %2282 = vmatmul.bf16.gmra.mxu0 %v1320
        %v2283 = vpop.f32.mrf.mxu0
        %v2284 = vadd.f32 %v2195, %v2283
        %v2285 = vpop.f32.mrf.mxu0
        %v2286 = vadd.f32 %v2197, %v2285
        %2287 = vmatmul.bf16.gmra.mxu0 %v1324
        %v2288 = vpop.f32.mrf.mxu0
        %v2289 = vadd.f32 %v2200, %v2288
        %v2290 = vpop.f32.mrf.mxu0
        %v2291 = vadd.f32 %v2202, %v2290
        %2292 = vmatmul.bf16.gmra.mxu0 %v1328
        %v2293 = vpop.f32.mrf.mxu0
        %v2294 = vadd.f32 %v2205, %v2293
        %v2295 = vpop.f32.mrf.mxu0
        %v2296 = vadd.f32 %v2207, %v2295
        %2297 = vmatmul.bf16.gmra.mxu0 %v1332
        %v2298 = vpop.f32.mrf.mxu0
        %v2299 = vadd.f32 %v2210, %v2298
        %v2300 = vpop.f32.mrf.mxu0
        %v2301 = vadd.f32 %v2212, %v2300
        %2302 = vmatmul.bf16.gmra.mxu0 %v1336
        %v2303 = vpop.f32.mrf.mxu0
        %v2304 = vadd.f32 %v2215, %v2303
        %v2305 = vpop.f32.mrf.mxu0
        %v2306 = vadd.f32 %v2217, %v2305
        %2307 = vmatmul.bf16.gmra.mxu0 %v1340
        %v2308 = vpop.f32.mrf.mxu0
        %v2309 = vadd.f32 %v2220, %v2308
        %v2310 = vpop.f32.mrf.mxu0
        %v2311 = vadd.f32 %v2222, %v2310
        %2312 = vdwg.mxu0
        %2313 = vmatpush.bf16.msra.mxu0 %v1914
        %2314 = vmatpush.bf16.msra.mxu0 %v1910
        %2315 = vmatpush.bf16.msra.mxu0 %v1906
        %2316 = vmatpush.bf16.msra.mxu0 %v1902
        %2317 = vmatpush.bf16.msra.mxu0 %v1898
        %2318 = vmatpush.bf16.msra.mxu0 %v1894
        %2319 = vmatpush.bf16.msra.mxu0 %v1890
        %2320 = vmatpush.bf16.msra.mxu0 %v1886
        %2321 = vmatmul.bf16.gmra.mxu0 %v1281
        %v2322 = vpop.f32.mrf.mxu0
        %v2323 = vadd.f32 %v2234, %v2322
        %v2324 = vpop.f32.mrf.mxu0
        %v2325 = vadd.f32 %v2236, %v2324
        %2326 = vmatmul.bf16.gmra.mxu0 %v1285
        %v2327 = vpop.f32.mrf.mxu0
        %v2328 = vadd.f32 %v2239, %v2327
        %v2329 = vpop.f32.mrf.mxu0
        %v2330 = vadd.f32 %v2241, %v2329
        %2331 = vmatmul.bf16.gmra.mxu0 %v1289
        %v2332 = vpop.f32.mrf.mxu0
        %v2333 = vadd.f32 %v2244, %v2332
        %v2334 = vpop.f32.mrf.mxu0
        %v2335 = vadd.f32 %v2246, %v2334
        %2336 = vmatmul.bf16.gmra.mxu0 %v1293
        %v2337 = vpop.f32.mrf.mxu0
        %v2338 = vadd.f32 %v2249, %v2337
        %v2339 = vpop.f32.mrf.mxu0
        %v2340 = vadd.f32 %v2251, %v2339
        %2341 = vmatmul.bf16.gmra.mxu0 %v1297
        %v2342 = vpop.f32.mrf.mxu0
        %v2343 = vadd.f32 %v2254, %v2342
        %v2344 = vpop.f32.mrf.mxu0
        %v2345 = vadd.f32 %v2256, %v2344
        %2346 = vmatmul.bf16.gmra.mxu0 %v1301
        %v2347 = vpop.f32.mrf.mxu0
        %v2348 = vadd.f32 %v2259, %v2347
        %v2349 = vpop.f32.mrf.mxu0
        %v2350 = vadd.f32 %v2261, %v2349
        %2351 = vmatmul.bf16.gmra.mxu0 %v1305
        %v2352 = vpop.f32.mrf.mxu0
        %v2353 = vadd.f32 %v2264, %v2352
        %v2354 = vpop.f32.mrf.mxu0
        %v2355 = vadd.f32 %v2266, %v2354
        %2356 = vmatmul.bf16.gmra.mxu0 %v1309
        %v2357 = vpop.f32.mrf.mxu0
        %v2358 = vadd.f32 %v2269, %v2357
        %v2359 = vpop.f32.mrf.mxu0
        %v2360 = vadd.f32 %v2271, %v2359
        %2361 = vmatmul.bf16.gmra.mxu0 %v1313
        %v2362 = vpop.f32.mrf.mxu0
        %v2363 = vadd.f32 %v2274, %v2362
        %v2364 = vpop.f32.mrf.mxu0
        %v2365 = vadd.f32 %v2276, %v2364
        %2366 = vmatmul.bf16.gmra.mxu0 %v1317
        %v2367 = vpop.f32.mrf.mxu0
        %v2368 = vadd.f32 %v2279, %v2367
        %v2369 = vpop.f32.mrf.mxu0
        %v2370 = vadd.f32 %v2281, %v2369
        %2371 = vmatmul.bf16.gmra.mxu0 %v1321
        %v2372 = vpop.f32.mrf.mxu0
        %v2373 = vadd.f32 %v2284, %v2372
        %v2374 = vpop.f32.mrf.mxu0
        %v2375 = vadd.f32 %v2286, %v2374
        %2376 = vmatmul.bf16.gmra.mxu0 %v1325
        %v2377 = vpop.f32.mrf.mxu0
        %v2378 = vadd.f32 %v2289, %v2377
        %v2379 = vpop.f32.mrf.mxu0
        %v2380 = vadd.f32 %v2291, %v2379
        %2381 = vmatmul.bf16.gmra.mxu0 %v1329
        %v2382 = vpop.f32.mrf.mxu0
        %v2383 = vadd.f32 %v2294, %v2382
        %v2384 = vpop.f32.mrf.mxu0
        %v2385 = vadd.f32 %v2296, %v2384
        %2386 = vmatmul.bf16.gmra.mxu0 %v1333
        %v2387 = vpop.f32.mrf.mxu0
        %v2388 = vadd.f32 %v2299, %v2387
        %v2389 = vpop.f32.mrf.mxu0
        %v2390 = vadd.f32 %v2301, %v2389
        %2391 = vmatmul.bf16.gmra.mxu0 %v1337
        %v2392 = vpop.f32.mrf.mxu0
        %v2393 = vadd.f32 %v2304, %v2392
        %v2394 = vpop.f32.mrf.mxu0
        %v2395 = vadd.f32 %v2306, %v2394
        %2396 = vmatmul.bf16.gmra.mxu0 %v1341
        %v2397 = vpop.f32.mrf.mxu0
        %v2398 = vadd.f32 %v2309, %v2397
        %v2399 = vpop.f32.mrf.mxu0
        %v2400 = vadd.f32 %v2311, %v2399
        %2401 = vdwg.mxu0
        %2402 = vmatpush.bf16.msra.mxu0 %v1819
        %2403 = vmatpush.bf16.msra.mxu0 %v1815
        %2404 = vmatpush.bf16.msra.mxu0 %v1811
        %2405 = vmatpush.bf16.msra.mxu0 %v1807
        %2406 = vmatpush.bf16.msra.mxu0 %v1803
        %2407 = vmatpush.bf16.msra.mxu0 %v1799
        %2408 = vmatpush.bf16.msra.mxu0 %v1795
        %2409 = vmatpush.bf16.msra.mxu0 %v1791
        %2410 = vmatmul.bf16.gmra.mxu0 %v1278
        %v2411 = vpop.f32.mrf.mxu0
        %v2412 = vadd.f32 0.0, %v2411
        %v2413 = vpop.f32.mrf.mxu0
        %v2414 = vadd.f32 0.0, %v2413
        %2415 = vmatmul.bf16.gmra.mxu0 %v1282
        %v2416 = vpop.f32.mrf.mxu0
        %v2417 = vadd.f32 0.0, %v2416
        %v2418 = vpop.f32.mrf.mxu0
        %v2419 = vadd.f32 0.0, %v2418
        %2420 = vmatmul.bf16.gmra.mxu0 %v1286
        %v2421 = vpop.f32.mrf.mxu0
        %v2422 = vadd.f32 0.0, %v2421
        %v2423 = vpop.f32.mrf.mxu0
        %v2424 = vadd.f32 0.0, %v2423
        %2425 = vmatmul.bf16.gmra.mxu0 %v1290
        %v2426 = vpop.f32.mrf.mxu0
        %v2427 = vadd.f32 0.0, %v2426
        %v2428 = vpop.f32.mrf.mxu0
        %v2429 = vadd.f32 0.0, %v2428
        %2430 = vmatmul.bf16.gmra.mxu0 %v1294
        %v2431 = vpop.f32.mrf.mxu0
        %v2432 = vadd.f32 0.0, %v2431
        %v2433 = vpop.f32.mrf.mxu0
        %v2434 = vadd.f32 0.0, %v2433
        %2435 = vmatmul.bf16.gmra.mxu0 %v1298
        %v2436 = vpop.f32.mrf.mxu0
        %v2437 = vadd.f32 0.0, %v2436
        %v2438 = vpop.f32.mrf.mxu0
        %v2439 = vadd.f32 0.0, %v2438
        %2440 = vmatmul.bf16.gmra.mxu0 %v1302
        %v2441 = vpop.f32.mrf.mxu0
        %v2442 = vadd.f32 0.0, %v2441
        %v2443 = vpop.f32.mrf.mxu0
        %v2444 = vadd.f32 0.0, %v2443
        %2445 = vmatmul.bf16.gmra.mxu0 %v1306
        %v2446 = vpop.f32.mrf.mxu0
        %v2447 = vadd.f32 0.0, %v2446
        %v2448 = vpop.f32.mrf.mxu0
        %v2449 = vadd.f32 0.0, %v2448
        %2450 = vmatmul.bf16.gmra.mxu0 %v1310
        %v2451 = vpop.f32.mrf.mxu0
        %v2452 = vadd.f32 0.0, %v2451
        %v2453 = vpop.f32.mrf.mxu0
        %v2454 = vadd.f32 0.0, %v2453
        %2455 = vmatmul.bf16.gmra.mxu0 %v1314
        %v2456 = vpop.f32.mrf.mxu0
        %v2457 = vadd.f32 0.0, %v2456
        %v2458 = vpop.f32.mrf.mxu0
        %v2459 = vadd.f32 0.0, %v2458
        %2460 = vmatmul.bf16.gmra.mxu0 %v1318
        %v2461 = vpop.f32.mrf.mxu0
        %v2462 = vadd.f32 0.0, %v2461
        %v2463 = vpop.f32.mrf.mxu0
        %v2464 = vadd.f32 0.0, %v2463
        %2465 = vmatmul.bf16.gmra.mxu0 %v1322
        %v2466 = vpop.f32.mrf.mxu0
        %v2467 = vadd.f32 0.0, %v2466
        %v2468 = vpop.f32.mrf.mxu0
        %v2469 = vadd.f32 0.0, %v2468
        %2470 = vmatmul.bf16.gmra.mxu0 %v1326
        %v2471 = vpop.f32.mrf.mxu0
        %v2472 = vadd.f32 0.0, %v2471
        %v2473 = vpop.f32.mrf.mxu0
        %v2474 = vadd.f32 0.0, %v2473
        %2475 = vmatmul.bf16.gmra.mxu0 %v1330
        %v2476 = vpop.f32.mrf.mxu0
        %v2477 = vadd.f32 0.0, %v2476
        %v2478 = vpop.f32.mrf.mxu0
        %v2479 = vadd.f32 0.0, %v2478
        %2480 = vmatmul.bf16.gmra.mxu0 %v1334
        %v2481 = vpop.f32.mrf.mxu0
        %v2482 = vadd.f32 0.0, %v2481
        %v2483 = vpop.f32.mrf.mxu0
        %v2484 = vadd.f32 0.0, %v2483
        %2485 = vmatmul.bf16.gmra.mxu0 %v1338
        %v2486 = vpop.f32.mrf.mxu0
        %v2487 = vadd.f32 0.0, %v2486
        %v2488 = vpop.f32.mrf.mxu0
        %v2489 = vadd.f32 0.0, %v2488
        %2490 = vdwg.mxu0
        %2491 = vmatpush.bf16.msra.mxu0 %v1851
        %2492 = vmatpush.bf16.msra.mxu0 %v1847
        %2493 = vmatpush.bf16.msra.mxu0 %v1843
        %2494 = vmatpush.bf16.msra.mxu0 %v1839
        %2495 = vmatpush.bf16.msra.mxu0 %v1835
        %2496 = vmatpush.bf16.msra.mxu0 %v1831
        %2497 = vmatpush.bf16.msra.mxu0 %v1827
        %2498 = vmatpush.bf16.msra.mxu0 %v1823
        %2499 = vmatmul.bf16.gmra.mxu0 %v1279
        %v2500 = vpop.f32.mrf.mxu0
        %v2501 = vadd.f32 %v2412, %v2500
        %v2502 = vpop.f32.mrf.mxu0
        %v2503 = vadd.f32 %v2414, %v2502
        %2504 = vmatmul.bf16.gmra.mxu0 %v1283
        %v2505 = vpop.f32.mrf.mxu0
        %v2506 = vadd.f32 %v2417, %v2505
        %v2507 = vpop.f32.mrf.mxu0
        %v2508 = vadd.f32 %v2419, %v2507
        %2509 = vmatmul.bf16.gmra.mxu0 %v1287
        %v2510 = vpop.f32.mrf.mxu0
        %v2511 = vadd.f32 %v2422, %v2510
        %v2512 = vpop.f32.mrf.mxu0
        %v2513 = vadd.f32 %v2424, %v2512
        %2514 = vmatmul.bf16.gmra.mxu0 %v1291
        %v2515 = vpop.f32.mrf.mxu0
        %v2516 = vadd.f32 %v2427, %v2515
        %v2517 = vpop.f32.mrf.mxu0
        %v2518 = vadd.f32 %v2429, %v2517
        %2519 = vmatmul.bf16.gmra.mxu0 %v1295
        %v2520 = vpop.f32.mrf.mxu0
        %v2521 = vadd.f32 %v2432, %v2520
        %v2522 = vpop.f32.mrf.mxu0
        %v2523 = vadd.f32 %v2434, %v2522
        %2524 = vmatmul.bf16.gmra.mxu0 %v1299
        %v2525 = vpop.f32.mrf.mxu0
        %v2526 = vadd.f32 %v2437, %v2525
        %v2527 = vpop.f32.mrf.mxu0
        %v2528 = vadd.f32 %v2439, %v2527
        %2529 = vmatmul.bf16.gmra.mxu0 %v1303
        %v2530 = vpop.f32.mrf.mxu0
        %v2531 = vadd.f32 %v2442, %v2530
        %v2532 = vpop.f32.mrf.mxu0
        %v2533 = vadd.f32 %v2444, %v2532
        %2534 = vmatmul.bf16.gmra.mxu0 %v1307
        %v2535 = vpop.f32.mrf.mxu0
        %v2536 = vadd.f32 %v2447, %v2535
        %v2537 = vpop.f32.mrf.mxu0
        %v2538 = vadd.f32 %v2449, %v2537
        %2539 = vmatmul.bf16.gmra.mxu0 %v1311
        %v2540 = vpop.f32.mrf.mxu0
        %v2541 = vadd.f32 %v2452, %v2540
        %v2542 = vpop.f32.mrf.mxu0
        %v2543 = vadd.f32 %v2454, %v2542
        %2544 = vmatmul.bf16.gmra.mxu0 %v1315
        %v2545 = vpop.f32.mrf.mxu0
        %v2546 = vadd.f32 %v2457, %v2545
        %v2547 = vpop.f32.mrf.mxu0
        %v2548 = vadd.f32 %v2459, %v2547
        %2549 = vmatmul.bf16.gmra.mxu0 %v1319
        %v2550 = vpop.f32.mrf.mxu0
        %v2551 = vadd.f32 %v2462, %v2550
        %v2552 = vpop.f32.mrf.mxu0
        %v2553 = vadd.f32 %v2464, %v2552
        %2554 = vmatmul.bf16.gmra.mxu0 %v1323
        %v2555 = vpop.f32.mrf.mxu0
        %v2556 = vadd.f32 %v2467, %v2555
        %v2557 = vpop.f32.mrf.mxu0
        %v2558 = vadd.f32 %v2469, %v2557
        %2559 = vmatmul.bf16.gmra.mxu0 %v1327
        %v2560 = vpop.f32.mrf.mxu0
        %v2561 = vadd.f32 %v2472, %v2560
        %v2562 = vpop.f32.mrf.mxu0
        %v2563 = vadd.f32 %v2474, %v2562
        %2564 = vmatmul.bf16.gmra.mxu0 %v1331
        %v2565 = vpop.f32.mrf.mxu0
        %v2566 = vadd.f32 %v2477, %v2565
        %v2567 = vpop.f32.mrf.mxu0
        %v2568 = vadd.f32 %v2479, %v2567
        %2569 = vmatmul.bf16.gmra.mxu0 %v1335
        %v2570 = vpop.f32.mrf.mxu0
        %v2571 = vadd.f32 %v2482, %v2570
        %v2572 = vpop.f32.mrf.mxu0
        %v2573 = vadd.f32 %v2484, %v2572
        %2574 = vmatmul.bf16.gmra.mxu0 %v1339
        %v2575 = vpop.f32.mrf.mxu0
        %v2576 = vadd.f32 %v2487, %v2575
        %v2577 = vpop.f32.mrf.mxu0
        %v2578 = vadd.f32 %v2489, %v2577
        %2579 = vdwg.mxu0
        %2580 = vmatpush.bf16.msra.mxu0 %v1883
        %2581 = vmatpush.bf16.msra.mxu0 %v1879
        %2582 = vmatpush.bf16.msra.mxu0 %v1875
        %2583 = vmatpush.bf16.msra.mxu0 %v1871
        %2584 = vmatpush.bf16.msra.mxu0 %v1867
        %2585 = vmatpush.bf16.msra.mxu0 %v1863
        %2586 = vmatpush.bf16.msra.mxu0 %v1859
        %2587 = vmatpush.bf16.msra.mxu0 %v1855
        %2588 = vmatmul.bf16.gmra.mxu0 %v1280
        %v2589 = vpop.f32.mrf.mxu0
        %v2590 = vadd.f32 %v2501, %v2589
        %v2591 = vpop.f32.mrf.mxu0
        %v2592 = vadd.f32 %v2503, %v2591
        %2593 = vmatmul.bf16.gmra.mxu0 %v1284
        %v2594 = vpop.f32.mrf.mxu0
        %v2595 = vadd.f32 %v2506, %v2594
        %v2596 = vpop.f32.mrf.mxu0
        %v2597 = vadd.f32 %v2508, %v2596
        %2598 = vmatmul.bf16.gmra.mxu0 %v1288
        %v2599 = vpop.f32.mrf.mxu0
        %v2600 = vadd.f32 %v2511, %v2599
        %v2601 = vpop.f32.mrf.mxu0
        %v2602 = vadd.f32 %v2513, %v2601
        %2603 = vmatmul.bf16.gmra.mxu0 %v1292
        %v2604 = vpop.f32.mrf.mxu0
        %v2605 = vadd.f32 %v2516, %v2604
        %v2606 = vpop.f32.mrf.mxu0
        %v2607 = vadd.f32 %v2518, %v2606
        %2608 = vmatmul.bf16.gmra.mxu0 %v1296
        %v2609 = vpop.f32.mrf.mxu0
        %v2610 = vadd.f32 %v2521, %v2609
        %v2611 = vpop.f32.mrf.mxu0
        %v2612 = vadd.f32 %v2523, %v2611
        %2613 = vmatmul.bf16.gmra.mxu0 %v1300
        %v2614 = vpop.f32.mrf.mxu0
        %v2615 = vadd.f32 %v2526, %v2614
        %v2616 = vpop.f32.mrf.mxu0
        %v2617 = vadd.f32 %v2528, %v2616
        %2618 = vmatmul.bf16.gmra.mxu0 %v1304
        %v2619 = vpop.f32.mrf.mxu0
        %v2620 = vadd.f32 %v2531, %v2619
        %v2621 = vpop.f32.mrf.mxu0
        %v2622 = vadd.f32 %v2533, %v2621
        %2623 = vmatmul.bf16.gmra.mxu0 %v1308
        %v2624 = vpop.f32.mrf.mxu0
        %v2625 = vadd.f32 %v2536, %v2624
        %v2626 = vpop.f32.mrf.mxu0
        %v2627 = vadd.f32 %v2538, %v2626
        %2628 = vmatmul.bf16.gmra.mxu0 %v1312
        %v2629 = vpop.f32.mrf.mxu0
        %v2630 = vadd.f32 %v2541, %v2629
        %v2631 = vpop.f32.mrf.mxu0
        %v2632 = vadd.f32 %v2543, %v2631
        %2633 = vmatmul.bf16.gmra.mxu0 %v1316
        %v2634 = vpop.f32.mrf.mxu0
        %v2635 = vadd.f32 %v2546, %v2634
        %v2636 = vpop.f32.mrf.mxu0
        %v2637 = vadd.f32 %v2548, %v2636
        %2638 = vmatmul.bf16.gmra.mxu0 %v1320
        %v2639 = vpop.f32.mrf.mxu0
        %v2640 = vadd.f32 %v2551, %v2639
        %v2641 = vpop.f32.mrf.mxu0
        %v2642 = vadd.f32 %v2553, %v2641
        %2643 = vmatmul.bf16.gmra.mxu0 %v1324
        %v2644 = vpop.f32.mrf.mxu0
        %v2645 = vadd.f32 %v2556, %v2644
        %v2646 = vpop.f32.mrf.mxu0
        %v2647 = vadd.f32 %v2558, %v2646
        %2648 = vmatmul.bf16.gmra.mxu0 %v1328
        %v2649 = vpop.f32.mrf.mxu0
        %v2650 = vadd.f32 %v2561, %v2649
        %v2651 = vpop.f32.mrf.mxu0
        %v2652 = vadd.f32 %v2563, %v2651
        %2653 = vmatmul.bf16.gmra.mxu0 %v1332
        %v2654 = vpop.f32.mrf.mxu0
        %v2655 = vadd.f32 %v2566, %v2654
        %v2656 = vpop.f32.mrf.mxu0
        %v2657 = vadd.f32 %v2568, %v2656
        %2658 = vmatmul.bf16.gmra.mxu0 %v1336
        %v2659 = vpop.f32.mrf.mxu0
        %v2660 = vadd.f32 %v2571, %v2659
        %v2661 = vpop.f32.mrf.mxu0
        %v2662 = vadd.f32 %v2573, %v2661
        %2663 = vmatmul.bf16.gmra.mxu0 %v1340
        %v2664 = vpop.f32.mrf.mxu0
        %v2665 = vadd.f32 %v2576, %v2664
        %v2666 = vpop.f32.mrf.mxu0
        %v2667 = vadd.f32 %v2578, %v2666
        %2668 = vdwg.mxu0
        %2669 = vmatpush.bf16.msra.mxu0 %v1915
        %2670 = vmatpush.bf16.msra.mxu0 %v1911
        %2671 = vmatpush.bf16.msra.mxu0 %v1907
        %2672 = vmatpush.bf16.msra.mxu0 %v1903
        %2673 = vmatpush.bf16.msra.mxu0 %v1899
        %2674 = vmatpush.bf16.msra.mxu0 %v1895
        %2675 = vmatpush.bf16.msra.mxu0 %v1891
        %2676 = vmatpush.bf16.msra.mxu0 %v1887
        %2677 = vmatmul.bf16.gmra.mxu0 %v1281
        %v2678 = vpop.f32.mrf.mxu0
        %v2679 = vadd.f32 %v2590, %v2678
        %v2680 = vpop.f32.mrf.mxu0
        %v2681 = vadd.f32 %v2592, %v2680
        %2682 = vmatmul.bf16.gmra.mxu0 %v1285
        %v2683 = vpop.f32.mrf.mxu0
        %v2684 = vadd.f32 %v2595, %v2683
        %v2685 = vpop.f32.mrf.mxu0
        %v2686 = vadd.f32 %v2597, %v2685
        %2687 = vmatmul.bf16.gmra.mxu0 %v1289
        %v2688 = vpop.f32.mrf.mxu0
        %v2689 = vadd.f32 %v2600, %v2688
        %v2690 = vpop.f32.mrf.mxu0
        %v2691 = vadd.f32 %v2602, %v2690
        %2692 = vmatmul.bf16.gmra.mxu0 %v1293
        %v2693 = vpop.f32.mrf.mxu0
        %v2694 = vadd.f32 %v2605, %v2693
        %v2695 = vpop.f32.mrf.mxu0
        %v2696 = vadd.f32 %v2607, %v2695
        %2697 = vmatmul.bf16.gmra.mxu0 %v1297
        %v2698 = vpop.f32.mrf.mxu0
        %v2699 = vadd.f32 %v2610, %v2698
        %v2700 = vpop.f32.mrf.mxu0
        %v2701 = vadd.f32 %v2612, %v2700
        %2702 = vmatmul.bf16.gmra.mxu0 %v1301
        %v2703 = vpop.f32.mrf.mxu0
        %v2704 = vadd.f32 %v2615, %v2703
        %v2705 = vpop.f32.mrf.mxu0
        %v2706 = vadd.f32 %v2617, %v2705
        %2707 = vmatmul.bf16.gmra.mxu0 %v1305
        %v2708 = vpop.f32.mrf.mxu0
        %v2709 = vadd.f32 %v2620, %v2708
        %v2710 = vpop.f32.mrf.mxu0
        %v2711 = vadd.f32 %v2622, %v2710
        %2712 = vmatmul.bf16.gmra.mxu0 %v1309
        %v2713 = vpop.f32.mrf.mxu0
        %v2714 = vadd.f32 %v2625, %v2713
        %v2715 = vpop.f32.mrf.mxu0
        %v2716 = vadd.f32 %v2627, %v2715
        %2717 = vmatmul.bf16.gmra.mxu0 %v1313
        %v2718 = vpop.f32.mrf.mxu0
        %v2719 = vadd.f32 %v2630, %v2718
        %v2720 = vpop.f32.mrf.mxu0
        %v2721 = vadd.f32 %v2632, %v2720
        %2722 = vmatmul.bf16.gmra.mxu0 %v1317
        %v2723 = vpop.f32.mrf.mxu0
        %v2724 = vadd.f32 %v2635, %v2723
        %v2725 = vpop.f32.mrf.mxu0
        %v2726 = vadd.f32 %v2637, %v2725
        %2727 = vmatmul.bf16.gmra.mxu0 %v1321
        %v2728 = vpop.f32.mrf.mxu0
        %v2729 = vadd.f32 %v2640, %v2728
        %v2730 = vpop.f32.mrf.mxu0
        %v2731 = vadd.f32 %v2642, %v2730
        %2732 = vmatmul.bf16.gmra.mxu0 %v1325
        %v2733 = vpop.f32.mrf.mxu0
        %v2734 = vadd.f32 %v2645, %v2733
        %v2735 = vpop.f32.mrf.mxu0
        %v2736 = vadd.f32 %v2647, %v2735
        %2737 = vmatmul.bf16.gmra.mxu0 %v1329
        %v2738 = vpop.f32.mrf.mxu0
        %v2739 = vadd.f32 %v2650, %v2738
        %v2740 = vpop.f32.mrf.mxu0
        %v2741 = vadd.f32 %v2652, %v2740
        %2742 = vmatmul.bf16.gmra.mxu0 %v1333
        %v2743 = vpop.f32.mrf.mxu0
        %v2744 = vadd.f32 %v2655, %v2743
        %v2745 = vpop.f32.mrf.mxu0
        %v2746 = vadd.f32 %v2657, %v2745
        %2747 = vmatmul.bf16.gmra.mxu0 %v1337
        %v2748 = vpop.f32.mrf.mxu0
        %v2749 = vadd.f32 %v2660, %v2748
        %v2750 = vpop.f32.mrf.mxu0
        %v2751 = vadd.f32 %v2662, %v2750
        %2752 = vmatmul.bf16.gmra.mxu0 %v1341
        %v2753 = vpop.f32.mrf.mxu0
        %v2754 = vadd.f32 %v2665, %v2753
        %v2755 = vpop.f32.mrf.mxu0
        %v2756 = vadd.f32 %v2667, %v2755
        %2757 = vdwg.mxu0
        %2758 = vmatpush.bf16.msra.mxu0 %v1820
        %2759 = vmatpush.bf16.msra.mxu0 %v1816
        %2760 = vmatpush.bf16.msra.mxu0 %v1812
        %2761 = vmatpush.bf16.msra.mxu0 %v1808
        %2762 = vmatpush.bf16.msra.mxu0 %v1804
        %2763 = vmatpush.bf16.msra.mxu0 %v1800
        %2764 = vmatpush.bf16.msra.mxu0 %v1796
        %2765 = vmatpush.bf16.msra.mxu0 %v1792
        %2766 = vmatmul.bf16.gmra.mxu0 %v1278
        %v2767 = vpop.f32.mrf.mxu0
        %v2768 = vadd.f32 0.0, %v2767
        %v2769 = vpop.f32.mrf.mxu0
        %v2770 = vadd.f32 0.0, %v2769
        %2771 = vmatmul.bf16.gmra.mxu0 %v1282
        %v2772 = vpop.f32.mrf.mxu0
        %v2773 = vadd.f32 0.0, %v2772
        %v2774 = vpop.f32.mrf.mxu0
        %v2775 = vadd.f32 0.0, %v2774
        %2776 = vmatmul.bf16.gmra.mxu0 %v1286
        %v2777 = vpop.f32.mrf.mxu0
        %v2778 = vadd.f32 0.0, %v2777
        %v2779 = vpop.f32.mrf.mxu0
        %v2780 = vadd.f32 0.0, %v2779
        %2781 = vmatmul.bf16.gmra.mxu0 %v1290
        %v2782 = vpop.f32.mrf.mxu0
        %v2783 = vadd.f32 0.0, %v2782
        %v2784 = vpop.f32.mrf.mxu0
        %v2785 = vadd.f32 0.0, %v2784
        %2786 = vmatmul.bf16.gmra.mxu0 %v1294
        %v2787 = vpop.f32.mrf.mxu0
        %v2788 = vadd.f32 0.0, %v2787
        %v2789 = vpop.f32.mrf.mxu0
        %v2790 = vadd.f32 0.0, %v2789
        %2791 = vmatmul.bf16.gmra.mxu0 %v1298
        %v2792 = vpop.f32.mrf.mxu0
        %v2793 = vadd.f32 0.0, %v2792
        %v2794 = vpop.f32.mrf.mxu0
        %v2795 = vadd.f32 0.0, %v2794
        %2796 = vmatmul.bf16.gmra.mxu0 %v1302
        %v2797 = vpop.f32.mrf.mxu0
        %v2798 = vadd.f32 0.0, %v2797
        %v2799 = vpop.f32.mrf.mxu0
        %v2800 = vadd.f32 0.0, %v2799
        %2801 = vmatmul.bf16.gmra.mxu0 %v1306
        %v2802 = vpop.f32.mrf.mxu0
        %v2803 = vadd.f32 0.0, %v2802
        %v2804 = vpop.f32.mrf.mxu0
        %v2805 = vadd.f32 0.0, %v2804
        %2806 = vmatmul.bf16.gmra.mxu0 %v1310
        %v2807 = vpop.f32.mrf.mxu0
        %v2808 = vadd.f32 0.0, %v2807
        %v2809 = vpop.f32.mrf.mxu0
        %v2810 = vadd.f32 0.0, %v2809
        %2811 = vmatmul.bf16.gmra.mxu0 %v1314
        %v2812 = vpop.f32.mrf.mxu0
        %v2813 = vadd.f32 0.0, %v2812
        %v2814 = vpop.f32.mrf.mxu0
        %v2815 = vadd.f32 0.0, %v2814
        %2816 = vmatmul.bf16.gmra.mxu0 %v1318
        %v2817 = vpop.f32.mrf.mxu0
        %v2818 = vadd.f32 0.0, %v2817
        %v2819 = vpop.f32.mrf.mxu0
        %v2820 = vadd.f32 0.0, %v2819
        %2821 = vmatmul.bf16.gmra.mxu0 %v1322
        %v2822 = vpop.f32.mrf.mxu0
        %v2823 = vadd.f32 0.0, %v2822
        %v2824 = vpop.f32.mrf.mxu0
        %v2825 = vadd.f32 0.0, %v2824
        %2826 = vmatmul.bf16.gmra.mxu0 %v1326
        %v2827 = vpop.f32.mrf.mxu0
        %v2828 = vadd.f32 0.0, %v2827
        %v2829 = vpop.f32.mrf.mxu0
        %v2830 = vadd.f32 0.0, %v2829
        %2831 = vmatmul.bf16.gmra.mxu0 %v1330
        %v2832 = vpop.f32.mrf.mxu0
        %v2833 = vadd.f32 0.0, %v2832
        %v2834 = vpop.f32.mrf.mxu0
        %v2835 = vadd.f32 0.0, %v2834
        %2836 = vmatmul.bf16.gmra.mxu0 %v1334
        %v2837 = vpop.f32.mrf.mxu0
        %v2838 = vadd.f32 0.0, %v2837
        %v2839 = vpop.f32.mrf.mxu0
        %v2840 = vadd.f32 0.0, %v2839
        %2841 = vmatmul.bf16.gmra.mxu0 %v1338
        %v2842 = vpop.f32.mrf.mxu0
        %v2843 = vadd.f32 0.0, %v2842
        %v2844 = vpop.f32.mrf.mxu0
        %v2845 = vadd.f32 0.0, %v2844
        %2846 = vdwg.mxu0
        %2847 = vmatpush.bf16.msra.mxu0 %v1852
        %2848 = vmatpush.bf16.msra.mxu0 %v1848
        %2849 = vmatpush.bf16.msra.mxu0 %v1844
        %2850 = vmatpush.bf16.msra.mxu0 %v1840
        %2851 = vmatpush.bf16.msra.mxu0 %v1836
        %2852 = vmatpush.bf16.msra.mxu0 %v1832
        %2853 = vmatpush.bf16.msra.mxu0 %v1828
        %2854 = vmatpush.bf16.msra.mxu0 %v1824
        %2855 = vmatmul.bf16.gmra.mxu0 %v1279
        %v2856 = vpop.f32.mrf.mxu0
        %v2857 = vadd.f32 %v2768, %v2856
        %v2858 = vpop.f32.mrf.mxu0
        %v2859 = vadd.f32 %v2770, %v2858
        %2860 = vmatmul.bf16.gmra.mxu0 %v1283
        %v2861 = vpop.f32.mrf.mxu0
        %v2862 = vadd.f32 %v2773, %v2861
        %v2863 = vpop.f32.mrf.mxu0
        %v2864 = vadd.f32 %v2775, %v2863
        %2865 = vmatmul.bf16.gmra.mxu0 %v1287
        %v2866 = vpop.f32.mrf.mxu0
        %v2867 = vadd.f32 %v2778, %v2866
        %v2868 = vpop.f32.mrf.mxu0
        %v2869 = vadd.f32 %v2780, %v2868
        %2870 = vmatmul.bf16.gmra.mxu0 %v1291
        %v2871 = vpop.f32.mrf.mxu0
        %v2872 = vadd.f32 %v2783, %v2871
        %v2873 = vpop.f32.mrf.mxu0
        %v2874 = vadd.f32 %v2785, %v2873
        %2875 = vmatmul.bf16.gmra.mxu0 %v1295
        %v2876 = vpop.f32.mrf.mxu0
        %v2877 = vadd.f32 %v2788, %v2876
        %v2878 = vpop.f32.mrf.mxu0
        %v2879 = vadd.f32 %v2790, %v2878
        %2880 = vmatmul.bf16.gmra.mxu0 %v1299
        %v2881 = vpop.f32.mrf.mxu0
        %v2882 = vadd.f32 %v2793, %v2881
        %v2883 = vpop.f32.mrf.mxu0
        %v2884 = vadd.f32 %v2795, %v2883
        %2885 = vmatmul.bf16.gmra.mxu0 %v1303
        %v2886 = vpop.f32.mrf.mxu0
        %v2887 = vadd.f32 %v2798, %v2886
        %v2888 = vpop.f32.mrf.mxu0
        %v2889 = vadd.f32 %v2800, %v2888
        %2890 = vmatmul.bf16.gmra.mxu0 %v1307
        %v2891 = vpop.f32.mrf.mxu0
        %v2892 = vadd.f32 %v2803, %v2891
        %v2893 = vpop.f32.mrf.mxu0
        %v2894 = vadd.f32 %v2805, %v2893
        %2895 = vmatmul.bf16.gmra.mxu0 %v1311
        %v2896 = vpop.f32.mrf.mxu0
        %v2897 = vadd.f32 %v2808, %v2896
        %v2898 = vpop.f32.mrf.mxu0
        %v2899 = vadd.f32 %v2810, %v2898
        %2900 = vmatmul.bf16.gmra.mxu0 %v1315
        %v2901 = vpop.f32.mrf.mxu0
        %v2902 = vadd.f32 %v2813, %v2901
        %v2903 = vpop.f32.mrf.mxu0
        %v2904 = vadd.f32 %v2815, %v2903
        %2905 = vmatmul.bf16.gmra.mxu0 %v1319
        %v2906 = vpop.f32.mrf.mxu0
        %v2907 = vadd.f32 %v2818, %v2906
        %v2908 = vpop.f32.mrf.mxu0
        %v2909 = vadd.f32 %v2820, %v2908
        %2910 = vmatmul.bf16.gmra.mxu0 %v1323
        %v2911 = vpop.f32.mrf.mxu0
        %v2912 = vadd.f32 %v2823, %v2911
        %v2913 = vpop.f32.mrf.mxu0
        %v2914 = vadd.f32 %v2825, %v2913
        %2915 = vmatmul.bf16.gmra.mxu0 %v1327
        %v2916 = vpop.f32.mrf.mxu0
        %v2917 = vadd.f32 %v2828, %v2916
        %v2918 = vpop.f32.mrf.mxu0
        %v2919 = vadd.f32 %v2830, %v2918
        %2920 = vmatmul.bf16.gmra.mxu0 %v1331
        %v2921 = vpop.f32.mrf.mxu0
        %v2922 = vadd.f32 %v2833, %v2921
        %v2923 = vpop.f32.mrf.mxu0
        %v2924 = vadd.f32 %v2835, %v2923
        %2925 = vmatmul.bf16.gmra.mxu0 %v1335
        %v2926 = vpop.f32.mrf.mxu0
        %v2927 = vadd.f32 %v2838, %v2926
        %v2928 = vpop.f32.mrf.mxu0
        %v2929 = vadd.f32 %v2840, %v2928
        %2930 = vmatmul.bf16.gmra.mxu0 %v1339
        %v2931 = vpop.f32.mrf.mxu0
        %v2932 = vadd.f32 %v2843, %v2931
        %v2933 = vpop.f32.mrf.mxu0
        %v2934 = vadd.f32 %v2845, %v2933
        %2935 = vdwg.mxu0
        %2936 = vmatpush.bf16.msra.mxu0 %v1884
        %2937 = vmatpush.bf16.msra.mxu0 %v1880
        %2938 = vmatpush.bf16.msra.mxu0 %v1876
        %2939 = vmatpush.bf16.msra.mxu0 %v1872
        %2940 = vmatpush.bf16.msra.mxu0 %v1868
        %2941 = vmatpush.bf16.msra.mxu0 %v1864
        %2942 = vmatpush.bf16.msra.mxu0 %v1860
        %2943 = vmatpush.bf16.msra.mxu0 %v1856
        %2944 = vmatmul.bf16.gmra.mxu0 %v1280
        %v2945 = vpop.f32.mrf.mxu0
        %v2946 = vadd.f32 %v2857, %v2945
        %v2947 = vpop.f32.mrf.mxu0
        %v2948 = vadd.f32 %v2859, %v2947
        %2949 = vmatmul.bf16.gmra.mxu0 %v1284
        %v2950 = vpop.f32.mrf.mxu0
        %v2951 = vadd.f32 %v2862, %v2950
        %v2952 = vpop.f32.mrf.mxu0
        %v2953 = vadd.f32 %v2864, %v2952
        %2954 = vmatmul.bf16.gmra.mxu0 %v1288
        %v2955 = vpop.f32.mrf.mxu0
        %v2956 = vadd.f32 %v2867, %v2955
        %v2957 = vpop.f32.mrf.mxu0
        %v2958 = vadd.f32 %v2869, %v2957
        %2959 = vmatmul.bf16.gmra.mxu0 %v1292
        %v2960 = vpop.f32.mrf.mxu0
        %v2961 = vadd.f32 %v2872, %v2960
        %v2962 = vpop.f32.mrf.mxu0
        %v2963 = vadd.f32 %v2874, %v2962
        %2964 = vmatmul.bf16.gmra.mxu0 %v1296
        %v2965 = vpop.f32.mrf.mxu0
        %v2966 = vadd.f32 %v2877, %v2965
        %v2967 = vpop.f32.mrf.mxu0
        %v2968 = vadd.f32 %v2879, %v2967
        %2969 = vmatmul.bf16.gmra.mxu0 %v1300
        %v2970 = vpop.f32.mrf.mxu0
        %v2971 = vadd.f32 %v2882, %v2970
        %v2972 = vpop.f32.mrf.mxu0
        %v2973 = vadd.f32 %v2884, %v2972
        %2974 = vmatmul.bf16.gmra.mxu0 %v1304
        %v2975 = vpop.f32.mrf.mxu0
        %v2976 = vadd.f32 %v2887, %v2975
        %v2977 = vpop.f32.mrf.mxu0
        %v2978 = vadd.f32 %v2889, %v2977
        %2979 = vmatmul.bf16.gmra.mxu0 %v1308
        %v2980 = vpop.f32.mrf.mxu0
        %v2981 = vadd.f32 %v2892, %v2980
        %v2982 = vpop.f32.mrf.mxu0
        %v2983 = vadd.f32 %v2894, %v2982
        %2984 = vmatmul.bf16.gmra.mxu0 %v1312
        %v2985 = vpop.f32.mrf.mxu0
        %v2986 = vadd.f32 %v2897, %v2985
        %v2987 = vpop.f32.mrf.mxu0
        %v2988 = vadd.f32 %v2899, %v2987
        %2989 = vmatmul.bf16.gmra.mxu0 %v1316
        %v2990 = vpop.f32.mrf.mxu0
        %v2991 = vadd.f32 %v2902, %v2990
        %v2992 = vpop.f32.mrf.mxu0
        %v2993 = vadd.f32 %v2904, %v2992
        %2994 = vmatmul.bf16.gmra.mxu0 %v1320
        %v2995 = vpop.f32.mrf.mxu0
        %v2996 = vadd.f32 %v2907, %v2995
        %v2997 = vpop.f32.mrf.mxu0
        %v2998 = vadd.f32 %v2909, %v2997
        %2999 = vmatmul.bf16.gmra.mxu0 %v1324
        %v3000 = vpop.f32.mrf.mxu0
        %v3001 = vadd.f32 %v2912, %v3000
        %v3002 = vpop.f32.mrf.mxu0
        %v3003 = vadd.f32 %v2914, %v3002
        %3004 = vmatmul.bf16.gmra.mxu0 %v1328
        %v3005 = vpop.f32.mrf.mxu0
        %v3006 = vadd.f32 %v2917, %v3005
        %v3007 = vpop.f32.mrf.mxu0
        %v3008 = vadd.f32 %v2919, %v3007
        %3009 = vmatmul.bf16.gmra.mxu0 %v1332
        %v3010 = vpop.f32.mrf.mxu0
        %v3011 = vadd.f32 %v2922, %v3010
        %v3012 = vpop.f32.mrf.mxu0
        %v3013 = vadd.f32 %v2924, %v3012
        %3014 = vmatmul.bf16.gmra.mxu0 %v1336
        %v3015 = vpop.f32.mrf.mxu0
        %v3016 = vadd.f32 %v2927, %v3015
        %v3017 = vpop.f32.mrf.mxu0
        %v3018 = vadd.f32 %v2929, %v3017
        %3019 = vmatmul.bf16.gmra.mxu0 %v1340
        %v3020 = vpop.f32.mrf.mxu0
        %v3021 = vadd.f32 %v2932, %v3020
        %v3022 = vpop.f32.mrf.mxu0
        %v3023 = vadd.f32 %v2934, %v3022
        %3024 = vdwg.mxu0
        %3025 = vmatpush.bf16.msra.mxu0 %v1916
        %3026 = vmatpush.bf16.msra.mxu0 %v1912
        %3027 = vmatpush.bf16.msra.mxu0 %v1908
        %3028 = vmatpush.bf16.msra.mxu0 %v1904
        %3029 = vmatpush.bf16.msra.mxu0 %v1900
        %3030 = vmatpush.bf16.msra.mxu0 %v1896
        %3031 = vmatpush.bf16.msra.mxu0 %v1892
        %3032 = vmatpush.bf16.msra.mxu0 %v1888
        %3033 = vmatmul.bf16.gmra.mxu0 %v1281
        %v3034 = vpop.f32.mrf.mxu0
        %v3035 = vadd.f32 %v2946, %v3034
        %v3036 = vpop.f32.mrf.mxu0
        %v3037 = vadd.f32 %v2948, %v3036
        %3038 = vmatmul.bf16.gmra.mxu0 %v1285
        %v3039 = vpop.f32.mrf.mxu0
        %v3040 = vadd.f32 %v2951, %v3039
        %v3041 = vpop.f32.mrf.mxu0
        %v3042 = vadd.f32 %v2953, %v3041
        %3043 = vmatmul.bf16.gmra.mxu0 %v1289
        %v3044 = vpop.f32.mrf.mxu0
        %v3045 = vadd.f32 %v2956, %v3044
        %v3046 = vpop.f32.mrf.mxu0
        %v3047 = vadd.f32 %v2958, %v3046
        %3048 = vmatmul.bf16.gmra.mxu0 %v1293
        %v3049 = vpop.f32.mrf.mxu0
        %v3050 = vadd.f32 %v2961, %v3049
        %v3051 = vpop.f32.mrf.mxu0
        %v3052 = vadd.f32 %v2963, %v3051
        %3053 = vmatmul.bf16.gmra.mxu0 %v1297
        %v3054 = vpop.f32.mrf.mxu0
        %v3055 = vadd.f32 %v2966, %v3054
        %v3056 = vpop.f32.mrf.mxu0
        %v3057 = vadd.f32 %v2968, %v3056
        %3058 = vmatmul.bf16.gmra.mxu0 %v1301
        %v3059 = vpop.f32.mrf.mxu0
        %v3060 = vadd.f32 %v2971, %v3059
        %v3061 = vpop.f32.mrf.mxu0
        %v3062 = vadd.f32 %v2973, %v3061
        %3063 = vmatmul.bf16.gmra.mxu0 %v1305
        %v3064 = vpop.f32.mrf.mxu0
        %v3065 = vadd.f32 %v2976, %v3064
        %v3066 = vpop.f32.mrf.mxu0
        %v3067 = vadd.f32 %v2978, %v3066
        %3068 = vmatmul.bf16.gmra.mxu0 %v1309
        %v3069 = vpop.f32.mrf.mxu0
        %v3070 = vadd.f32 %v2981, %v3069
        %v3071 = vpop.f32.mrf.mxu0
        %v3072 = vadd.f32 %v2983, %v3071
        %3073 = vmatmul.bf16.gmra.mxu0 %v1313
        %v3074 = vpop.f32.mrf.mxu0
        %v3075 = vadd.f32 %v2986, %v3074
        %v3076 = vpop.f32.mrf.mxu0
        %v3077 = vadd.f32 %v2988, %v3076
        %3078 = vmatmul.bf16.gmra.mxu0 %v1317
        %v3079 = vpop.f32.mrf.mxu0
        %v3080 = vadd.f32 %v2991, %v3079
        %v3081 = vpop.f32.mrf.mxu0
        %v3082 = vadd.f32 %v2993, %v3081
        %3083 = vmatmul.bf16.gmra.mxu0 %v1321
        %v3084 = vpop.f32.mrf.mxu0
        %v3085 = vadd.f32 %v2996, %v3084
        %v3086 = vpop.f32.mrf.mxu0
        %v3087 = vadd.f32 %v2998, %v3086
        %3088 = vmatmul.bf16.gmra.mxu0 %v1325
        %v3089 = vpop.f32.mrf.mxu0
        %v3090 = vadd.f32 %v3001, %v3089
        %v3091 = vpop.f32.mrf.mxu0
        %v3092 = vadd.f32 %v3003, %v3091
        %3093 = vmatmul.bf16.gmra.mxu0 %v1329
        %v3094 = vpop.f32.mrf.mxu0
        %v3095 = vadd.f32 %v3006, %v3094
        %v3096 = vpop.f32.mrf.mxu0
        %v3097 = vadd.f32 %v3008, %v3096
        %3098 = vmatmul.bf16.gmra.mxu0 %v1333
        %v3099 = vpop.f32.mrf.mxu0
        %v3100 = vadd.f32 %v3011, %v3099
        %v3101 = vpop.f32.mrf.mxu0
        %v3102 = vadd.f32 %v3013, %v3101
        %3103 = vmatmul.bf16.gmra.mxu0 %v1337
        %v3104 = vpop.f32.mrf.mxu0
        %v3105 = vadd.f32 %v3016, %v3104
        %v3106 = vpop.f32.mrf.mxu0
        %v3107 = vadd.f32 %v3018, %v3106
        %3108 = vmatmul.bf16.gmra.mxu0 %v1341
        %v3109 = vpop.f32.mrf.mxu0
        %v3110 = vadd.f32 %v3021, %v3109
        %v3111 = vpop.f32.mrf.mxu0
        %v3112 = vadd.f32 %v3023, %v3111
        %3113 = vdwg.mxu0
        %3114 = vmatpush.bf16.msra.mxu0 %v1821
        %3115 = vmatpush.bf16.msra.mxu0 %v1817
        %3116 = vmatpush.bf16.msra.mxu0 %v1813
        %3117 = vmatpush.bf16.msra.mxu0 %v1809
        %3118 = vmatpush.bf16.msra.mxu0 %v1805
        %3119 = vmatpush.bf16.msra.mxu0 %v1801
        %3120 = vmatpush.bf16.msra.mxu0 %v1797
        %3121 = vmatpush.bf16.msra.mxu0 %v1793
        %3122 = vmatmul.bf16.gmra.mxu0 %v1278
        %v3123 = vpop.f32.mrf.mxu0
        %v3124 = vadd.f32 0.0, %v3123
        %v3125 = vpop.f32.mrf.mxu0
        %v3126 = vadd.f32 0.0, %v3125
        %3127 = vmatmul.bf16.gmra.mxu0 %v1282
        %v3128 = vpop.f32.mrf.mxu0
        %v3129 = vadd.f32 0.0, %v3128
        %v3130 = vpop.f32.mrf.mxu0
        %v3131 = vadd.f32 0.0, %v3130
        %3132 = vmatmul.bf16.gmra.mxu0 %v1286
        %v3133 = vpop.f32.mrf.mxu0
        %v3134 = vadd.f32 0.0, %v3133
        %v3135 = vpop.f32.mrf.mxu0
        %v3136 = vadd.f32 0.0, %v3135
        %3137 = vmatmul.bf16.gmra.mxu0 %v1290
        %v3138 = vpop.f32.mrf.mxu0
        %v3139 = vadd.f32 0.0, %v3138
        %v3140 = vpop.f32.mrf.mxu0
        %v3141 = vadd.f32 0.0, %v3140
        %3142 = vmatmul.bf16.gmra.mxu0 %v1294
        %v3143 = vpop.f32.mrf.mxu0
        %v3144 = vadd.f32 0.0, %v3143
        %v3145 = vpop.f32.mrf.mxu0
        %v3146 = vadd.f32 0.0, %v3145
        %3147 = vmatmul.bf16.gmra.mxu0 %v1298
        %v3148 = vpop.f32.mrf.mxu0
        %v3149 = vadd.f32 0.0, %v3148
        %v3150 = vpop.f32.mrf.mxu0
        %v3151 = vadd.f32 0.0, %v3150
        %3152 = vmatmul.bf16.gmra.mxu0 %v1302
        %v3153 = vpop.f32.mrf.mxu0
        %v3154 = vadd.f32 0.0, %v3153
        %v3155 = vpop.f32.mrf.mxu0
        %v3156 = vadd.f32 0.0, %v3155
        %3157 = vmatmul.bf16.gmra.mxu0 %v1306
        %v3158 = vpop.f32.mrf.mxu0
        %v3159 = vadd.f32 0.0, %v3158
        %v3160 = vpop.f32.mrf.mxu0
        %v3161 = vadd.f32 0.0, %v3160
        %3162 = vmatmul.bf16.gmra.mxu0 %v1310
        %v3163 = vpop.f32.mrf.mxu0
        %v3164 = vadd.f32 0.0, %v3163
        %v3165 = vpop.f32.mrf.mxu0
        %v3166 = vadd.f32 0.0, %v3165
        %3167 = vmatmul.bf16.gmra.mxu0 %v1314
        %v3168 = vpop.f32.mrf.mxu0
        %v3169 = vadd.f32 0.0, %v3168
        %v3170 = vpop.f32.mrf.mxu0
        %v3171 = vadd.f32 0.0, %v3170
        %3172 = vmatmul.bf16.gmra.mxu0 %v1318
        %v3173 = vpop.f32.mrf.mxu0
        %v3174 = vadd.f32 0.0, %v3173
        %v3175 = vpop.f32.mrf.mxu0
        %v3176 = vadd.f32 0.0, %v3175
        %3177 = vmatmul.bf16.gmra.mxu0 %v1322
        %v3178 = vpop.f32.mrf.mxu0
        %v3179 = vadd.f32 0.0, %v3178
        %v3180 = vpop.f32.mrf.mxu0
        %v3181 = vadd.f32 0.0, %v3180
        %3182 = vmatmul.bf16.gmra.mxu0 %v1326
        %v3183 = vpop.f32.mrf.mxu0
        %v3184 = vadd.f32 0.0, %v3183
        %v3185 = vpop.f32.mrf.mxu0
        %v3186 = vadd.f32 0.0, %v3185
        %3187 = vmatmul.bf16.gmra.mxu0 %v1330
        %v3188 = vpop.f32.mrf.mxu0
        %v3189 = vadd.f32 0.0, %v3188
        %v3190 = vpop.f32.mrf.mxu0
        %v3191 = vadd.f32 0.0, %v3190
        %3192 = vmatmul.bf16.gmra.mxu0 %v1334
        %v3193 = vpop.f32.mrf.mxu0
        %v3194 = vadd.f32 0.0, %v3193
        %v3195 = vpop.f32.mrf.mxu0
        %v3196 = vadd.f32 0.0, %v3195
        %3197 = vmatmul.bf16.gmra.mxu0 %v1338
        %v3198 = vpop.f32.mrf.mxu0
        %v3199 = vadd.f32 0.0, %v3198
        %v3200 = vpop.f32.mrf.mxu0
        %v3201 = vadd.f32 0.0, %v3200
        %3202 = vdwg.mxu0
        %3203 = vmatpush.bf16.msra.mxu0 %v1853
        %3204 = vmatpush.bf16.msra.mxu0 %v1849
        %3205 = vmatpush.bf16.msra.mxu0 %v1845
        %3206 = vmatpush.bf16.msra.mxu0 %v1841
        %3207 = vmatpush.bf16.msra.mxu0 %v1837
        %3208 = vmatpush.bf16.msra.mxu0 %v1833
        %3209 = vmatpush.bf16.msra.mxu0 %v1829
        %3210 = vmatpush.bf16.msra.mxu0 %v1825
        %3211 = vmatmul.bf16.gmra.mxu0 %v1279
        %v3212 = vpop.f32.mrf.mxu0
        %v3213 = vadd.f32 %v3124, %v3212
        %v3214 = vpop.f32.mrf.mxu0
        %v3215 = vadd.f32 %v3126, %v3214
        %3216 = vmatmul.bf16.gmra.mxu0 %v1283
        %v3217 = vpop.f32.mrf.mxu0
        %v3218 = vadd.f32 %v3129, %v3217
        %v3219 = vpop.f32.mrf.mxu0
        %v3220 = vadd.f32 %v3131, %v3219
        %3221 = vmatmul.bf16.gmra.mxu0 %v1287
        %v3222 = vpop.f32.mrf.mxu0
        %v3223 = vadd.f32 %v3134, %v3222
        %v3224 = vpop.f32.mrf.mxu0
        %v3225 = vadd.f32 %v3136, %v3224
        %3226 = vmatmul.bf16.gmra.mxu0 %v1291
        %v3227 = vpop.f32.mrf.mxu0
        %v3228 = vadd.f32 %v3139, %v3227
        %v3229 = vpop.f32.mrf.mxu0
        %v3230 = vadd.f32 %v3141, %v3229
        %3231 = vmatmul.bf16.gmra.mxu0 %v1295
        %v3232 = vpop.f32.mrf.mxu0
        %v3233 = vadd.f32 %v3144, %v3232
        %v3234 = vpop.f32.mrf.mxu0
        %v3235 = vadd.f32 %v3146, %v3234
        %3236 = vmatmul.bf16.gmra.mxu0 %v1299
        %v3237 = vpop.f32.mrf.mxu0
        %v3238 = vadd.f32 %v3149, %v3237
        %v3239 = vpop.f32.mrf.mxu0
        %v3240 = vadd.f32 %v3151, %v3239
        %3241 = vmatmul.bf16.gmra.mxu0 %v1303
        %v3242 = vpop.f32.mrf.mxu0
        %v3243 = vadd.f32 %v3154, %v3242
        %v3244 = vpop.f32.mrf.mxu0
        %v3245 = vadd.f32 %v3156, %v3244
        %3246 = vmatmul.bf16.gmra.mxu0 %v1307
        %v3247 = vpop.f32.mrf.mxu0
        %v3248 = vadd.f32 %v3159, %v3247
        %v3249 = vpop.f32.mrf.mxu0
        %v3250 = vadd.f32 %v3161, %v3249
        %3251 = vmatmul.bf16.gmra.mxu0 %v1311
        %v3252 = vpop.f32.mrf.mxu0
        %v3253 = vadd.f32 %v3164, %v3252
        %v3254 = vpop.f32.mrf.mxu0
        %v3255 = vadd.f32 %v3166, %v3254
        %3256 = vmatmul.bf16.gmra.mxu0 %v1315
        %v3257 = vpop.f32.mrf.mxu0
        %v3258 = vadd.f32 %v3169, %v3257
        %v3259 = vpop.f32.mrf.mxu0
        %v3260 = vadd.f32 %v3171, %v3259
        %3261 = vmatmul.bf16.gmra.mxu0 %v1319
        %v3262 = vpop.f32.mrf.mxu0
        %v3263 = vadd.f32 %v3174, %v3262
        %v3264 = vpop.f32.mrf.mxu0
        %v3265 = vadd.f32 %v3176, %v3264
        %3266 = vmatmul.bf16.gmra.mxu0 %v1323
        %v3267 = vpop.f32.mrf.mxu0
        %v3268 = vadd.f32 %v3179, %v3267
        %v3269 = vpop.f32.mrf.mxu0
        %v3270 = vadd.f32 %v3181, %v3269
        %3271 = vmatmul.bf16.gmra.mxu0 %v1327
        %v3272 = vpop.f32.mrf.mxu0
        %v3273 = vadd.f32 %v3184, %v3272
        %v3274 = vpop.f32.mrf.mxu0
        %v3275 = vadd.f32 %v3186, %v3274
        %3276 = vmatmul.bf16.gmra.mxu0 %v1331
        %v3277 = vpop.f32.mrf.mxu0
        %v3278 = vadd.f32 %v3189, %v3277
        %v3279 = vpop.f32.mrf.mxu0
        %v3280 = vadd.f32 %v3191, %v3279
        %3281 = vmatmul.bf16.gmra.mxu0 %v1335
        %v3282 = vpop.f32.mrf.mxu0
        %v3283 = vadd.f32 %v3194, %v3282
        %v3284 = vpop.f32.mrf.mxu0
        %v3285 = vadd.f32 %v3196, %v3284
        %3286 = vmatmul.bf16.gmra.mxu0 %v1339
        %v3287 = vpop.f32.mrf.mxu0
        %v3288 = vadd.f32 %v3199, %v3287
        %v3289 = vpop.f32.mrf.mxu0
        %v3290 = vadd.f32 %v3201, %v3289
        %3291 = vdwg.mxu0
        %3292 = vmatpush.bf16.msra.mxu0 %v1885
        %3293 = vmatpush.bf16.msra.mxu0 %v1881
        %3294 = vmatpush.bf16.msra.mxu0 %v1877
        %3295 = vmatpush.bf16.msra.mxu0 %v1873
        %3296 = vmatpush.bf16.msra.mxu0 %v1869
        %3297 = vmatpush.bf16.msra.mxu0 %v1865
        %3298 = vmatpush.bf16.msra.mxu0 %v1861
        %3299 = vmatpush.bf16.msra.mxu0 %v1857
        %3300 = vmatmul.bf16.gmra.mxu0 %v1280
        %v3301 = vpop.f32.mrf.mxu0
        %v3302 = vadd.f32 %v3213, %v3301
        %v3303 = vpop.f32.mrf.mxu0
        %v3304 = vadd.f32 %v3215, %v3303
        %3305 = vmatmul.bf16.gmra.mxu0 %v1284
        %v3306 = vpop.f32.mrf.mxu0
        %v3307 = vadd.f32 %v3218, %v3306
        %v3308 = vpop.f32.mrf.mxu0
        %v3309 = vadd.f32 %v3220, %v3308
        %3310 = vmatmul.bf16.gmra.mxu0 %v1288
        %v3311 = vpop.f32.mrf.mxu0
        %v3312 = vadd.f32 %v3223, %v3311
        %v3313 = vpop.f32.mrf.mxu0
        %v3314 = vadd.f32 %v3225, %v3313
        %3315 = vmatmul.bf16.gmra.mxu0 %v1292
        %v3316 = vpop.f32.mrf.mxu0
        %v3317 = vadd.f32 %v3228, %v3316
        %v3318 = vpop.f32.mrf.mxu0
        %v3319 = vadd.f32 %v3230, %v3318
        %3320 = vmatmul.bf16.gmra.mxu0 %v1296
        %v3321 = vpop.f32.mrf.mxu0
        %v3322 = vadd.f32 %v3233, %v3321
        %v3323 = vpop.f32.mrf.mxu0
        %v3324 = vadd.f32 %v3235, %v3323
        %3325 = vmatmul.bf16.gmra.mxu0 %v1300
        %v3326 = vpop.f32.mrf.mxu0
        %v3327 = vadd.f32 %v3238, %v3326
        %v3328 = vpop.f32.mrf.mxu0
        %v3329 = vadd.f32 %v3240, %v3328
        %3330 = vmatmul.bf16.gmra.mxu0 %v1304
        %v3331 = vpop.f32.mrf.mxu0
        %v3332 = vadd.f32 %v3243, %v3331
        %v3333 = vpop.f32.mrf.mxu0
        %v3334 = vadd.f32 %v3245, %v3333
        %3335 = vmatmul.bf16.gmra.mxu0 %v1308
        %v3336 = vpop.f32.mrf.mxu0
        %v3337 = vadd.f32 %v3248, %v3336
        %v3338 = vpop.f32.mrf.mxu0
        %v3339 = vadd.f32 %v3250, %v3338
        %3340 = vmatmul.bf16.gmra.mxu0 %v1312
        %v3341 = vpop.f32.mrf.mxu0
        %v3342 = vadd.f32 %v3253, %v3341
        %v3343 = vpop.f32.mrf.mxu0
        %v3344 = vadd.f32 %v3255, %v3343
        %3345 = vmatmul.bf16.gmra.mxu0 %v1316
        %v3346 = vpop.f32.mrf.mxu0
        %v3347 = vadd.f32 %v3258, %v3346
        %v3348 = vpop.f32.mrf.mxu0
        %v3349 = vadd.f32 %v3260, %v3348
        %3350 = vmatmul.bf16.gmra.mxu0 %v1320
        %v3351 = vpop.f32.mrf.mxu0
        %v3352 = vadd.f32 %v3263, %v3351
        %v3353 = vpop.f32.mrf.mxu0
        %v3354 = vadd.f32 %v3265, %v3353
        %3355 = vmatmul.bf16.gmra.mxu0 %v1324
        %v3356 = vpop.f32.mrf.mxu0
        %v3357 = vadd.f32 %v3268, %v3356
        %v3358 = vpop.f32.mrf.mxu0
        %v3359 = vadd.f32 %v3270, %v3358
        %3360 = vmatmul.bf16.gmra.mxu0 %v1328
        %v3361 = vpop.f32.mrf.mxu0
        %v3362 = vadd.f32 %v3273, %v3361
        %v3363 = vpop.f32.mrf.mxu0
        %v3364 = vadd.f32 %v3275, %v3363
        %3365 = vmatmul.bf16.gmra.mxu0 %v1332
        %v3366 = vpop.f32.mrf.mxu0
        %v3367 = vadd.f32 %v3278, %v3366
        %v3368 = vpop.f32.mrf.mxu0
        %v3369 = vadd.f32 %v3280, %v3368
        %3370 = vmatmul.bf16.gmra.mxu0 %v1336
        %v3371 = vpop.f32.mrf.mxu0
        %v3372 = vadd.f32 %v3283, %v3371
        %v3373 = vpop.f32.mrf.mxu0
        %v3374 = vadd.f32 %v3285, %v3373
        %3375 = vmatmul.bf16.gmra.mxu0 %v1340
        %v3376 = vpop.f32.mrf.mxu0
        %v3377 = vadd.f32 %v3288, %v3376
        %v3378 = vpop.f32.mrf.mxu0
        %v3379 = vadd.f32 %v3290, %v3378
        %3380 = vdwg.mxu0
        %3381 = vmatpush.bf16.msra.mxu0 %v1917
        %3382 = vmatpush.bf16.msra.mxu0 %v1913
        %3383 = vmatpush.bf16.msra.mxu0 %v1909
        %3384 = vmatpush.bf16.msra.mxu0 %v1905
        %3385 = vmatpush.bf16.msra.mxu0 %v1901
        %3386 = vmatpush.bf16.msra.mxu0 %v1897
        %3387 = vmatpush.bf16.msra.mxu0 %v1893
        %3388 = vmatpush.bf16.msra.mxu0 %v1889
        %3389 = vmatmul.bf16.gmra.mxu0 %v1281
        %v3390 = vpop.f32.mrf.mxu0
        %v3391 = vadd.f32 %v3302, %v3390
        %v3392 = vpop.f32.mrf.mxu0
        %v3393 = vadd.f32 %v3304, %v3392
        %3394 = vmatmul.bf16.gmra.mxu0 %v1285
        %v3395 = vpop.f32.mrf.mxu0
        %v3396 = vadd.f32 %v3307, %v3395
        %v3397 = vpop.f32.mrf.mxu0
        %v3398 = vadd.f32 %v3309, %v3397
        %3399 = vmatmul.bf16.gmra.mxu0 %v1289
        %v3400 = vpop.f32.mrf.mxu0
        %v3401 = vadd.f32 %v3312, %v3400
        %v3402 = vpop.f32.mrf.mxu0
        %v3403 = vadd.f32 %v3314, %v3402
        %3404 = vmatmul.bf16.gmra.mxu0 %v1293
        %v3405 = vpop.f32.mrf.mxu0
        %v3406 = vadd.f32 %v3317, %v3405
        %v3407 = vpop.f32.mrf.mxu0
        %v3408 = vadd.f32 %v3319, %v3407
        %3409 = vmatmul.bf16.gmra.mxu0 %v1297
        %v3410 = vpop.f32.mrf.mxu0
        %v3411 = vadd.f32 %v3322, %v3410
        %v3412 = vpop.f32.mrf.mxu0
        %v3413 = vadd.f32 %v3324, %v3412
        %3414 = vmatmul.bf16.gmra.mxu0 %v1301
        %v3415 = vpop.f32.mrf.mxu0
        %v3416 = vadd.f32 %v3327, %v3415
        %v3417 = vpop.f32.mrf.mxu0
        %v3418 = vadd.f32 %v3329, %v3417
        %3419 = vmatmul.bf16.gmra.mxu0 %v1305
        %v3420 = vpop.f32.mrf.mxu0
        %v3421 = vadd.f32 %v3332, %v3420
        %v3422 = vpop.f32.mrf.mxu0
        %v3423 = vadd.f32 %v3334, %v3422
        %3424 = vmatmul.bf16.gmra.mxu0 %v1309
        %v3425 = vpop.f32.mrf.mxu0
        %v3426 = vadd.f32 %v3337, %v3425
        %v3427 = vpop.f32.mrf.mxu0
        %v3428 = vadd.f32 %v3339, %v3427
        %3429 = vmatmul.bf16.gmra.mxu0 %v1313
        %v3430 = vpop.f32.mrf.mxu0
        %v3431 = vadd.f32 %v3342, %v3430
        %v3432 = vpop.f32.mrf.mxu0
        %v3433 = vadd.f32 %v3344, %v3432
        %3434 = vmatmul.bf16.gmra.mxu0 %v1317
        %v3435 = vpop.f32.mrf.mxu0
        %v3436 = vadd.f32 %v3347, %v3435
        %v3437 = vpop.f32.mrf.mxu0
        %v3438 = vadd.f32 %v3349, %v3437
        %3439 = vmatmul.bf16.gmra.mxu0 %v1321
        %v3440 = vpop.f32.mrf.mxu0
        %v3441 = vadd.f32 %v3352, %v3440
        %v3442 = vpop.f32.mrf.mxu0
        %v3443 = vadd.f32 %v3354, %v3442
        %3444 = vmatmul.bf16.gmra.mxu0 %v1325
        %v3445 = vpop.f32.mrf.mxu0
        %v3446 = vadd.f32 %v3357, %v3445
        %v3447 = vpop.f32.mrf.mxu0
        %v3448 = vadd.f32 %v3359, %v3447
        %3449 = vmatmul.bf16.gmra.mxu0 %v1329
        %v3450 = vpop.f32.mrf.mxu0
        %v3451 = vadd.f32 %v3362, %v3450
        %v3452 = vpop.f32.mrf.mxu0
        %v3453 = vadd.f32 %v3364, %v3452
        %3454 = vmatmul.bf16.gmra.mxu0 %v1333
        %v3455 = vpop.f32.mrf.mxu0
        %v3456 = vadd.f32 %v3367, %v3455
        %v3457 = vpop.f32.mrf.mxu0
        %v3458 = vadd.f32 %v3369, %v3457
        %3459 = vmatmul.bf16.gmra.mxu0 %v1337
        %v3460 = vpop.f32.mrf.mxu0
        %v3461 = vadd.f32 %v3372, %v3460
        %v3462 = vpop.f32.mrf.mxu0
        %v3463 = vadd.f32 %v3374, %v3462
        %3464 = vmatmul.bf16.gmra.mxu0 %v1341
        %v3465 = vpop.f32.mrf.mxu0
        %v3466 = vadd.f32 %v3377, %v3465
        %v3467 = vpop.f32.mrf.mxu0
        %v3468 = vadd.f32 %v3379, %v3467
        %3469 = vdwg.mxu0
        %v3470 = vmax.f32 %v2323, 0.0
        %v3471 = vmax.f32 %v2679, 0.0
        %v3472 = vmax.f32 %v3035, 0.0
        %v3473 = vmax.f32 %v3391, 0.0
        %v3474 = vmax.f32 %v2325, 0.0
        %v3475 = vmax.f32 %v2681, 0.0
        %v3476 = vmax.f32 %v3037, 0.0
        %v3477 = vmax.f32 %v3393, 0.0
        %v3478 = vmax.f32 %v2328, 0.0
        %v3479 = vmax.f32 %v2684, 0.0
        %v3480 = vmax.f32 %v3040, 0.0
        %v3481 = vmax.f32 %v3396, 0.0
        %v3482 = vmax.f32 %v2330, 0.0
        %v3483 = vmax.f32 %v2686, 0.0
        %v3484 = vmax.f32 %v3042, 0.0
        %v3485 = vmax.f32 %v3398, 0.0
        %v3486 = vmax.f32 %v2333, 0.0
        %v3487 = vmax.f32 %v2689, 0.0
        %v3488 = vmax.f32 %v3045, 0.0
        %v3489 = vmax.f32 %v3401, 0.0
        %v3490 = vmax.f32 %v2335, 0.0
        %v3491 = vmax.f32 %v2691, 0.0
        %v3492 = vmax.f32 %v3047, 0.0
        %v3493 = vmax.f32 %v3403, 0.0
        %v3494 = vmax.f32 %v2338, 0.0
        %v3495 = vmax.f32 %v2694, 0.0
        %v3496 = vmax.f32 %v3050, 0.0
        %v3497 = vmax.f32 %v3406, 0.0
        %v3498 = vmax.f32 %v2340, 0.0
        %v3499 = vmax.f32 %v2696, 0.0
        %v3500 = vmax.f32 %v3052, 0.0
        %v3501 = vmax.f32 %v3408, 0.0
        %v3502 = vmax.f32 %v2343, 0.0
        %v3503 = vmax.f32 %v2699, 0.0
        %v3504 = vmax.f32 %v3055, 0.0
        %v3505 = vmax.f32 %v3411, 0.0
        %v3506 = vmax.f32 %v2345, 0.0
        %v3507 = vmax.f32 %v2701, 0.0
        %v3508 = vmax.f32 %v3057, 0.0
        %v3509 = vmax.f32 %v3413, 0.0
        %v3510 = vmax.f32 %v2348, 0.0
        %v3511 = vmax.f32 %v2704, 0.0
        %v3512 = vmax.f32 %v3060, 0.0
        %v3513 = vmax.f32 %v3416, 0.0
        %v3514 = vmax.f32 %v2350, 0.0
        %v3515 = vmax.f32 %v2706, 0.0
        %v3516 = vmax.f32 %v3062, 0.0
        %v3517 = vmax.f32 %v3418, 0.0
        %v3518 = vmax.f32 %v2353, 0.0
        %v3519 = vmax.f32 %v2709, 0.0
        %v3520 = vmax.f32 %v3065, 0.0
        %v3521 = vmax.f32 %v3421, 0.0
        %v3522 = vmax.f32 %v2355, 0.0
        %v3523 = vmax.f32 %v2711, 0.0
        %v3524 = vmax.f32 %v3067, 0.0
        %v3525 = vmax.f32 %v3423, 0.0
        %v3526 = vmax.f32 %v2358, 0.0
        %v3527 = vmax.f32 %v2714, 0.0
        %v3528 = vmax.f32 %v3070, 0.0
        %v3529 = vmax.f32 %v3426, 0.0
        %v3530 = vmax.f32 %v2360, 0.0
        %v3531 = vmax.f32 %v2716, 0.0
        %v3532 = vmax.f32 %v3072, 0.0
        %v3533 = vmax.f32 %v3428, 0.0
        %v3534 = vmax.f32 %v2363, 0.0
        %v3535 = vmax.f32 %v2719, 0.0
        %v3536 = vmax.f32 %v3075, 0.0
        %v3537 = vmax.f32 %v3431, 0.0
        %v3538 = vmax.f32 %v2365, 0.0
        %v3539 = vmax.f32 %v2721, 0.0
        %v3540 = vmax.f32 %v3077, 0.0
        %v3541 = vmax.f32 %v3433, 0.0
        %v3542 = vmax.f32 %v2368, 0.0
        %v3543 = vmax.f32 %v2724, 0.0
        %v3544 = vmax.f32 %v3080, 0.0
        %v3545 = vmax.f32 %v3436, 0.0
        %v3546 = vmax.f32 %v2370, 0.0
        %v3547 = vmax.f32 %v2726, 0.0
        %v3548 = vmax.f32 %v3082, 0.0
        %v3549 = vmax.f32 %v3438, 0.0
        %v3550 = vmax.f32 %v2373, 0.0
        %v3551 = vmax.f32 %v2729, 0.0
        %v3552 = vmax.f32 %v3085, 0.0
        %v3553 = vmax.f32 %v3441, 0.0
        %v3554 = vmax.f32 %v2375, 0.0
        %v3555 = vmax.f32 %v2731, 0.0
        %v3556 = vmax.f32 %v3087, 0.0
        %v3557 = vmax.f32 %v3443, 0.0
        %v3558 = vmax.f32 %v2378, 0.0
        %v3559 = vmax.f32 %v2734, 0.0
        %v3560 = vmax.f32 %v3090, 0.0
        %v3561 = vmax.f32 %v3446, 0.0
        %v3562 = vmax.f32 %v2380, 0.0
        %v3563 = vmax.f32 %v2736, 0.0
        %v3564 = vmax.f32 %v3092, 0.0
        %v3565 = vmax.f32 %v3448, 0.0
        %v3566 = vmax.f32 %v2383, 0.0
        %v3567 = vmax.f32 %v2739, 0.0
        %v3568 = vmax.f32 %v3095, 0.0
        %v3569 = vmax.f32 %v3451, 0.0
        %v3570 = vmax.f32 %v2385, 0.0
        %v3571 = vmax.f32 %v2741, 0.0
        %v3572 = vmax.f32 %v3097, 0.0
        %v3573 = vmax.f32 %v3453, 0.0
        %v3574 = vmax.f32 %v2388, 0.0
        %v3575 = vmax.f32 %v2744, 0.0
        %v3576 = vmax.f32 %v3100, 0.0
        %v3577 = vmax.f32 %v3456, 0.0
        %v3578 = vmax.f32 %v2390, 0.0
        %v3579 = vmax.f32 %v2746, 0.0
        %v3580 = vmax.f32 %v3102, 0.0
        %v3581 = vmax.f32 %v3458, 0.0
        %v3582 = vmax.f32 %v2393, 0.0
        %v3583 = vmax.f32 %v2749, 0.0
        %v3584 = vmax.f32 %v3105, 0.0
        %v3585 = vmax.f32 %v3461, 0.0
        %v3586 = vmax.f32 %v2395, 0.0
        %v3587 = vmax.f32 %v2751, 0.0
        %v3588 = vmax.f32 %v3107, 0.0
        %v3589 = vmax.f32 %v3463, 0.0
        %v3590 = vmax.f32 %v2398, 0.0
        %v3591 = vmax.f32 %v2754, 0.0
        %v3592 = vmax.f32 %v3110, 0.0
        %v3593 = vmax.f32 %v3466, 0.0
        %v3594 = vmax.f32 %v2400, 0.0
        %v3595 = vmax.f32 %v2756, 0.0
        %v3596 = vmax.f32 %v3112, 0.0
        %v3597 = vmax.f32 %v3468, 0.0
        %v3598 = vpack.c.bf16 %v3474, %v3470
        %v3599 = vpack.c.bf16 %v3475, %v3471
        %v3600 = vpack.c.bf16 %v3476, %v3472
        %v3601 = vpack.c.bf16 %v3477, %v3473
        %v3602 = vpack.c.bf16 %v3482, %v3478
        %v3603 = vpack.c.bf16 %v3483, %v3479
        %v3604 = vpack.c.bf16 %v3484, %v3480
        %v3605 = vpack.c.bf16 %v3485, %v3481
        %v3606 = vpack.c.bf16 %v3490, %v3486
        %v3607 = vpack.c.bf16 %v3491, %v3487
        %v3608 = vpack.c.bf16 %v3492, %v3488
        %v3609 = vpack.c.bf16 %v3493, %v3489
        %v3610 = vpack.c.bf16 %v3498, %v3494
        %v3611 = vpack.c.bf16 %v3499, %v3495
        %v3612 = vpack.c.bf16 %v3500, %v3496
        %v3613 = vpack.c.bf16 %v3501, %v3497
        %v3614 = vpack.c.bf16 %v3506, %v3502
        %v3615 = vpack.c.bf16 %v3507, %v3503
        %v3616 = vpack.c.bf16 %v3508, %v3504
        %v3617 = vpack.c.bf16 %v3509, %v3505
        %v3618 = vpack.c.bf16 %v3514, %v3510
        %v3619 = vpack.c.bf16 %v3515, %v3511
        %v3620 = vpack.c.bf16 %v3516, %v3512
        %v3621 = vpack.c.bf16 %v3517, %v3513
        %v3622 = vpack.c.bf16 %v3522, %v3518
        %v3623 = vpack.c.bf16 %v3523, %v3519
        %v3624 = vpack.c.bf16 %v3524, %v3520
        %v3625 = vpack.c.bf16 %v3525, %v3521
        %v3626 = vpack.c.bf16 %v3530, %v3526
        %v3627 = vpack.c.bf16 %v3531, %v3527
        %v3628 = vpack.c.bf16 %v3532, %v3528
        %v3629 = vpack.c.bf16 %v3533, %v3529
        %v3630 = vpack.c.bf16 %v3538, %v3534
        %v3631 = vpack.c.bf16 %v3539, %v3535
        %v3632 = vpack.c.bf16 %v3540, %v3536
        %v3633 = vpack.c.bf16 %v3541, %v3537
        %v3634 = vpack.c.bf16 %v3546, %v3542
        %v3635 = vpack.c.bf16 %v3547, %v3543
        %v3636 = vpack.c.bf16 %v3548, %v3544
        %v3637 = vpack.c.bf16 %v3549, %v3545
        %v3638 = vpack.c.bf16 %v3554, %v3550
        %v3639 = vpack.c.bf16 %v3555, %v3551
        %v3640 = vpack.c.bf16 %v3556, %v3552
        %v3641 = vpack.c.bf16 %v3557, %v3553
        %v3642 = vpack.c.bf16 %v3562, %v3558
        %v3643 = vpack.c.bf16 %v3563, %v3559
        %v3644 = vpack.c.bf16 %v3564, %v3560
        %v3645 = vpack.c.bf16 %v3565, %v3561
        %v3646 = vpack.c.bf16 %v3570, %v3566
        %v3647 = vpack.c.bf16 %v3571, %v3567
        %v3648 = vpack.c.bf16 %v3572, %v3568
        %v3649 = vpack.c.bf16 %v3573, %v3569
        %v3650 = vpack.c.bf16 %v3578, %v3574
        %v3651 = vpack.c.bf16 %v3579, %v3575
        %v3652 = vpack.c.bf16 %v3580, %v3576
        %v3653 = vpack.c.bf16 %v3581, %v3577
        %v3654 = vpack.c.bf16 %v3586, %v3582
        %v3655 = vpack.c.bf16 %v3587, %v3583
        %v3656 = vpack.c.bf16 %v3588, %v3584
        %v3657 = vpack.c.bf16 %v3589, %v3585
        %v3658 = vpack.c.bf16 %v3594, %v3590
        %v3659 = vpack.c.bf16 %v3595, %v3591
        %v3660 = vpack.c.bf16 %v3596, %v3592
        %v3661 = vpack.c.bf16 %v3597, %v3593
        %v3662 = vld [vmem:[#allocation11] sm:$0xff]
        %v3663 = vld [vmem:[#allocation11 + $0x8] sm:$0xff]
        %v3664 = vld [vmem:[#allocation11 + $0x10] sm:$0xff]
        %v3665 = vld [vmem:[#allocation11 + $0x18] sm:$0xff]
        %v3666 = vld [vmem:[#allocation11 + $0x20] sm:$0xff]
        %v3667 = vld [vmem:[#allocation11 + $0x28] sm:$0xff]
        %v3668 = vld [vmem:[#allocation11 + $0x30] sm:$0xff]
        %v3669 = vld [vmem:[#allocation11 + $0x38] sm:$0xff]
        %v3670 = vld [vmem:[#allocation11 + $0x40] sm:$0xff]
        %v3671 = vld [vmem:[#allocation11 + $0x48] sm:$0xff]
        %v3672 = vld [vmem:[#allocation11 + $0x50] sm:$0xff]
        %v3673 = vld [vmem:[#allocation11 + $0x58] sm:$0xff]
        %v3674 = vld [vmem:[#allocation11 + $0x60] sm:$0xff]
        %v3675 = vld [vmem:[#allocation11 + $0x68] sm:$0xff]
        %v3676 = vld [vmem:[#allocation11 + $0x70] sm:$0xff]
        %v3677 = vld [vmem:[#allocation11 + $0x78] sm:$0xff]
        %v3678 = vld [vmem:[#allocation11 + $0x80] sm:$0xff]
        %v3679 = vld [vmem:[#allocation11 + $0x88] sm:$0xff]
        %v3680 = vld [vmem:[#allocation11 + $0x90] sm:$0xff]
        %v3681 = vld [vmem:[#allocation11 + $0x98] sm:$0xff]
        %v3682 = vld [vmem:[#allocation11 + $0xa0] sm:$0xff]
        %v3683 = vld [vmem:[#allocation11 + $0xa8] sm:$0xff]
        %v3684 = vld [vmem:[#allocation11 + $0xb0] sm:$0xff]
        %v3685 = vld [vmem:[#allocation11 + $0xb8] sm:$0xff]
        %v3686 = vld [vmem:[#allocation11 + $0xc0] sm:$0xff]
        %v3687 = vld [vmem:[#allocation11 + $0xc8] sm:$0xff]
        %v3688 = vld [vmem:[#allocation11 + $0xd0] sm:$0xff]
        %v3689 = vld [vmem:[#allocation11 + $0xd8] sm:$0xff]
        %v3690 = vld [vmem:[#allocation11 + $0xe0] sm:$0xff]
        %v3691 = vld [vmem:[#allocation11 + $0xe8] sm:$0xff]
        %v3692 = vld [vmem:[#allocation11 + $0xf0] sm:$0xff]
        %v3693 = vld [vmem:[#allocation11 + $0xf8] sm:$0xff]
        %v3694 = vld [vmem:[#allocation11 + $0x100] sm:$0xff]
        %v3695 = vld [vmem:[#allocation11 + $0x108] sm:$0xff]
        %v3696 = vld [vmem:[#allocation11 + $0x110] sm:$0xff]
        %v3697 = vld [vmem:[#allocation11 + $0x118] sm:$0xff]
        %v3698 = vld [vmem:[#allocation11 + $0x120] sm:$0xff]
        %v3699 = vld [vmem:[#allocation11 + $0x128] sm:$0xff]
        %v3700 = vld [vmem:[#allocation11 + $0x130] sm:$0xff]
        %v3701 = vld [vmem:[#allocation11 + $0x138] sm:$0xff]
        %v3702 = vld [vmem:[#allocation11 + $0x140] sm:$0xff]
        %v3703 = vld [vmem:[#allocation11 + $0x148] sm:$0xff]
        %v3704 = vld [vmem:[#allocation11 + $0x150] sm:$0xff]
        %v3705 = vld [vmem:[#allocation11 + $0x158] sm:$0xff]
        %v3706 = vld [vmem:[#allocation11 + $0x160] sm:$0xff]
        %v3707 = vld [vmem:[#allocation11 + $0x168] sm:$0xff]
        %v3708 = vld [vmem:[#allocation11 + $0x170] sm:$0xff]
        %v3709 = vld [vmem:[#allocation11 + $0x178] sm:$0xff]
        %v3710 = vld [vmem:[#allocation11 + $0x180] sm:$0xff]
        %v3711 = vld [vmem:[#allocation11 + $0x188] sm:$0xff]
        %v3712 = vld [vmem:[#allocation11 + $0x190] sm:$0xff]
        %v3713 = vld [vmem:[#allocation11 + $0x198] sm:$0xff]
        %v3714 = vld [vmem:[#allocation11 + $0x1a0] sm:$0xff]
        %v3715 = vld [vmem:[#allocation11 + $0x1a8] sm:$0xff]
        %v3716 = vld [vmem:[#allocation11 + $0x1b0] sm:$0xff]
        %v3717 = vld [vmem:[#allocation11 + $0x1b8] sm:$0xff]
        %v3718 = vld [vmem:[#allocation11 + $0x1c0] sm:$0xff]
        %v3719 = vld [vmem:[#allocation11 + $0x1c8] sm:$0xff]
        %v3720 = vld [vmem:[#allocation11 + $0x1d0] sm:$0xff]
        %v3721 = vld [vmem:[#allocation11 + $0x1d8] sm:$0xff]
        %v3722 = vld [vmem:[#allocation11 + $0x1e0] sm:$0xff]
        %v3723 = vld [vmem:[#allocation11 + $0x1e8] sm:$0xff]
        %v3724 = vld [vmem:[#allocation11 + $0x1f0] sm:$0xff]
        %v3725 = vld [vmem:[#allocation11 + $0x1f8] sm:$0xff]
        %v3726 = vld [vmem:[#allocation11 + $0x200] sm:$0xff]
        %v3727 = vld [vmem:[#allocation11 + $0x208] sm:$0xff]
        %v3728 = vld [vmem:[#allocation11 + $0x210] sm:$0xff]
        %v3729 = vld [vmem:[#allocation11 + $0x218] sm:$0xff]
        %v3730 = vld [vmem:[#allocation11 + $0x220] sm:$0xff]
        %v3731 = vld [vmem:[#allocation11 + $0x228] sm:$0xff]
        %v3732 = vld [vmem:[#allocation11 + $0x230] sm:$0xff]
        %v3733 = vld [vmem:[#allocation11 + $0x238] sm:$0xff]
        %v3734 = vld [vmem:[#allocation11 + $0x240] sm:$0xff]
        %v3735 = vld [vmem:[#allocation11 + $0x248] sm:$0xff]
        %v3736 = vld [vmem:[#allocation11 + $0x250] sm:$0xff]
        %v3737 = vld [vmem:[#allocation11 + $0x258] sm:$0xff]
        %v3738 = vld [vmem:[#allocation11 + $0x260] sm:$0xff]
        %v3739 = vld [vmem:[#allocation11 + $0x268] sm:$0xff]
        %v3740 = vld [vmem:[#allocation11 + $0x270] sm:$0xff]
        %v3741 = vld [vmem:[#allocation11 + $0x278] sm:$0xff]
        %v3742 = vld [vmem:[#allocation11 + $0x280] sm:$0xff]
        %v3743 = vld [vmem:[#allocation11 + $0x288] sm:$0xff]
        %v3744 = vld [vmem:[#allocation11 + $0x290] sm:$0xff]
        %v3745 = vld [vmem:[#allocation11 + $0x298] sm:$0xff]
        %v3746 = vld [vmem:[#allocation11 + $0x2a0] sm:$0xff]
        %v3747 = vld [vmem:[#allocation11 + $0x2a8] sm:$0xff]
        %v3748 = vld [vmem:[#allocation11 + $0x2b0] sm:$0xff]
        %v3749 = vld [vmem:[#allocation11 + $0x2b8] sm:$0xff]
        %v3750 = vld [vmem:[#allocation11 + $0x2c0] sm:$0xff]
        %v3751 = vld [vmem:[#allocation11 + $0x2c8] sm:$0xff]
        %v3752 = vld [vmem:[#allocation11 + $0x2d0] sm:$0xff]
        %v3753 = vld [vmem:[#allocation11 + $0x2d8] sm:$0xff]
        %v3754 = vld [vmem:[#allocation11 + $0x2e0] sm:$0xff]
        %v3755 = vld [vmem:[#allocation11 + $0x2e8] sm:$0xff]
        %v3756 = vld [vmem:[#allocation11 + $0x2f0] sm:$0xff]
        %v3757 = vld [vmem:[#allocation11 + $0x2f8] sm:$0xff]
        %v3758 = vld [vmem:[#allocation11 + $0x300] sm:$0xff]
        %v3759 = vld [vmem:[#allocation11 + $0x308] sm:$0xff]
        %v3760 = vld [vmem:[#allocation11 + $0x310] sm:$0xff]
        %v3761 = vld [vmem:[#allocation11 + $0x318] sm:$0xff]
        %v3762 = vld [vmem:[#allocation11 + $0x320] sm:$0xff]
        %v3763 = vld [vmem:[#allocation11 + $0x328] sm:$0xff]
        %v3764 = vld [vmem:[#allocation11 + $0x330] sm:$0xff]
        %v3765 = vld [vmem:[#allocation11 + $0x338] sm:$0xff]
        %v3766 = vld [vmem:[#allocation11 + $0x340] sm:$0xff]
        %v3767 = vld [vmem:[#allocation11 + $0x348] sm:$0xff]
        %v3768 = vld [vmem:[#allocation11 + $0x350] sm:$0xff]
        %v3769 = vld [vmem:[#allocation11 + $0x358] sm:$0xff]
        %v3770 = vld [vmem:[#allocation11 + $0x360] sm:$0xff]
        %v3771 = vld [vmem:[#allocation11 + $0x368] sm:$0xff]
        %v3772 = vld [vmem:[#allocation11 + $0x370] sm:$0xff]
        %v3773 = vld [vmem:[#allocation11 + $0x378] sm:$0xff]
        %v3774 = vld [vmem:[#allocation11 + $0x380] sm:$0xff]
        %v3775 = vld [vmem:[#allocation11 + $0x388] sm:$0xff]
        %v3776 = vld [vmem:[#allocation11 + $0x390] sm:$0xff]
        %v3777 = vld [vmem:[#allocation11 + $0x398] sm:$0xff]
        %v3778 = vld [vmem:[#allocation11 + $0x3a0] sm:$0xff]
        %v3779 = vld [vmem:[#allocation11 + $0x3a8] sm:$0xff]
        %v3780 = vld [vmem:[#allocation11 + $0x3b0] sm:$0xff]
        %v3781 = vld [vmem:[#allocation11 + $0x3b8] sm:$0xff]
        %v3782 = vld [vmem:[#allocation11 + $0x3c0] sm:$0xff]
        %v3783 = vld [vmem:[#allocation11 + $0x3c8] sm:$0xff]
        %v3784 = vld [vmem:[#allocation11 + $0x3d0] sm:$0xff]
        %v3785 = vld [vmem:[#allocation11 + $0x3d8] sm:$0xff]
        %v3786 = vld [vmem:[#allocation11 + $0x3e0] sm:$0xff]
        %v3787 = vld [vmem:[#allocation11 + $0x3e8] sm:$0xff]
        %v3788 = vld [vmem:[#allocation11 + $0x3f0] sm:$0xff]
        %v3789 = vld [vmem:[#allocation11 + $0x3f8] sm:$0xff]
        %v3918 = vunpack.c.l.b16 %v3662
        %v3919 = vunpack.c.h.b16 %v3662
        %v3920 = vunpack.c.l.b16 %v3663
        %v3921 = vunpack.c.h.b16 %v3663
        %v3922 = vunpack.c.l.b16 %v3664
        %v3923 = vunpack.c.h.b16 %v3664
        %v3924 = vunpack.c.l.b16 %v3665
        %v3925 = vunpack.c.h.b16 %v3665
        %v3926 = vunpack.c.l.b16 %v3666
        %v3927 = vunpack.c.h.b16 %v3666
        %v3928 = vunpack.c.l.b16 %v3667
        %v3929 = vunpack.c.h.b16 %v3667
        %v3930 = vunpack.c.l.b16 %v3668
        %v3931 = vunpack.c.h.b16 %v3668
        %v3932 = vunpack.c.l.b16 %v3669
        %v3933 = vunpack.c.h.b16 %v3669
        %v3934 = vunpack.c.l.b16 %v3670
        %v3935 = vunpack.c.h.b16 %v3670
        %v3936 = vunpack.c.l.b16 %v3671
        %v3937 = vunpack.c.h.b16 %v3671
        %v3938 = vunpack.c.l.b16 %v3672
        %v3939 = vunpack.c.h.b16 %v3672
        %v3940 = vunpack.c.l.b16 %v3673
        %v3941 = vunpack.c.h.b16 %v3673
        %v3942 = vunpack.c.l.b16 %v3674
        %v3943 = vunpack.c.h.b16 %v3674
        %v3944 = vunpack.c.l.b16 %v3675
        %v3945 = vunpack.c.h.b16 %v3675
        %v3946 = vunpack.c.l.b16 %v3676
        %v3947 = vunpack.c.h.b16 %v3676
        %v3948 = vunpack.c.l.b16 %v3677
        %v3949 = vunpack.c.h.b16 %v3677
        %v3950 = vunpack.c.l.b16 %v3678
        %v3951 = vunpack.c.h.b16 %v3678
        %v3952 = vunpack.c.l.b16 %v3679
        %v3953 = vunpack.c.h.b16 %v3679
        %v3954 = vunpack.c.l.b16 %v3680
        %v3955 = vunpack.c.h.b16 %v3680
        %v3956 = vunpack.c.l.b16 %v3681
        %v3957 = vunpack.c.h.b16 %v3681
        %v3958 = vunpack.c.l.b16 %v3682
        %v3959 = vunpack.c.h.b16 %v3682
        %v3960 = vunpack.c.l.b16 %v3683
        %v3961 = vunpack.c.h.b16 %v3683
        %v3962 = vunpack.c.l.b16 %v3684
        %v3963 = vunpack.c.h.b16 %v3684
        %v3964 = vunpack.c.l.b16 %v3685
        %v3965 = vunpack.c.h.b16 %v3685
        %v3966 = vunpack.c.l.b16 %v3686
        %v3967 = vunpack.c.h.b16 %v3686
        %v3968 = vunpack.c.l.b16 %v3687
        %v3969 = vunpack.c.h.b16 %v3687
        %v3970 = vunpack.c.l.b16 %v3688
        %v3971 = vunpack.c.h.b16 %v3688
        %v3972 = vunpack.c.l.b16 %v3689
        %v3973 = vunpack.c.h.b16 %v3689
        %v3974 = vunpack.c.l.b16 %v3690
        %v3975 = vunpack.c.h.b16 %v3690
        %v3976 = vunpack.c.l.b16 %v3691
        %v3977 = vunpack.c.h.b16 %v3691
        %v3978 = vunpack.c.l.b16 %v3692
        %v3979 = vunpack.c.h.b16 %v3692
        %v3980 = vunpack.c.l.b16 %v3693
        %v3981 = vunpack.c.h.b16 %v3693
        %v3982 = vunpack.c.l.b16 %v3694
        %v3983 = vunpack.c.h.b16 %v3694
        %v3984 = vunpack.c.l.b16 %v3695
        %v3985 = vunpack.c.h.b16 %v3695
        %v3986 = vunpack.c.l.b16 %v3696
        %v3987 = vunpack.c.h.b16 %v3696
        %v3988 = vunpack.c.l.b16 %v3697
        %v3989 = vunpack.c.h.b16 %v3697
        %v3990 = vunpack.c.l.b16 %v3698
        %v3991 = vunpack.c.h.b16 %v3698
        %v3992 = vunpack.c.l.b16 %v3699
        %v3993 = vunpack.c.h.b16 %v3699
        %v3994 = vunpack.c.l.b16 %v3700
        %v3995 = vunpack.c.h.b16 %v3700
        %v3996 = vunpack.c.l.b16 %v3701
        %v3997 = vunpack.c.h.b16 %v3701
        %v3998 = vunpack.c.l.b16 %v3702
        %v3999 = vunpack.c.h.b16 %v3702
        %v4000 = vunpack.c.l.b16 %v3703
        %v4001 = vunpack.c.h.b16 %v3703
        %v4002 = vunpack.c.l.b16 %v3704
        %v4003 = vunpack.c.h.b16 %v3704
        %v4004 = vunpack.c.l.b16 %v3705
        %v4005 = vunpack.c.h.b16 %v3705
        %v4006 = vunpack.c.l.b16 %v3706
        %v4007 = vunpack.c.h.b16 %v3706
        %v4008 = vunpack.c.l.b16 %v3707
        %v4009 = vunpack.c.h.b16 %v3707
        %v4010 = vunpack.c.l.b16 %v3708
        %v4011 = vunpack.c.h.b16 %v3708
        %v4012 = vunpack.c.l.b16 %v3709
        %v4013 = vunpack.c.h.b16 %v3709
        %v4014 = vunpack.c.l.b16 %v3710
        %v4015 = vunpack.c.h.b16 %v3710
        %v4016 = vunpack.c.l.b16 %v3711
        %v4017 = vunpack.c.h.b16 %v3711
        %v4018 = vunpack.c.l.b16 %v3712
        %v4019 = vunpack.c.h.b16 %v3712
        %v4020 = vunpack.c.l.b16 %v3713
        %v4021 = vunpack.c.h.b16 %v3713
        %v4022 = vunpack.c.l.b16 %v3714
        %v4023 = vunpack.c.h.b16 %v3714
        %v4024 = vunpack.c.l.b16 %v3715
        %v4025 = vunpack.c.h.b16 %v3715
        %v4026 = vunpack.c.l.b16 %v3716
        %v4027 = vunpack.c.h.b16 %v3716
        %v4028 = vunpack.c.l.b16 %v3717
        %v4029 = vunpack.c.h.b16 %v3717
        %v4030 = vunpack.c.l.b16 %v3718
        %v4031 = vunpack.c.h.b16 %v3718
        %v4032 = vunpack.c.l.b16 %v3719
        %v4033 = vunpack.c.h.b16 %v3719
        %v4034 = vunpack.c.l.b16 %v3720
        %v4035 = vunpack.c.h.b16 %v3720
        %v4036 = vunpack.c.l.b16 %v3721
        %v4037 = vunpack.c.h.b16 %v3721
        %v4038 = vunpack.c.l.b16 %v3722
        %v4039 = vunpack.c.h.b16 %v3722
        %v4040 = vunpack.c.l.b16 %v3723
        %v4041 = vunpack.c.h.b16 %v3723
        %v4042 = vunpack.c.l.b16 %v3724
        %v4043 = vunpack.c.h.b16 %v3724
        %v4044 = vunpack.c.l.b16 %v3725
        %v4045 = vunpack.c.h.b16 %v3725
        %v4046 = vunpack.c.l.b16 %v3726
        %v4047 = vunpack.c.h.b16 %v3726
        %v4048 = vunpack.c.l.b16 %v3727
        %v4049 = vunpack.c.h.b16 %v3727
        %v4050 = vunpack.c.l.b16 %v3728
        %v4051 = vunpack.c.h.b16 %v3728
        %v4052 = vunpack.c.l.b16 %v3729
        %v4053 = vunpack.c.h.b16 %v3729
        %v4054 = vunpack.c.l.b16 %v3730
        %v4055 = vunpack.c.h.b16 %v3730
        %v4056 = vunpack.c.l.b16 %v3731
        %v4057 = vunpack.c.h.b16 %v3731
        %v4058 = vunpack.c.l.b16 %v3732
        %v4059 = vunpack.c.h.b16 %v3732
        %v4060 = vunpack.c.l.b16 %v3733
        %v4061 = vunpack.c.h.b16 %v3733
        %v4062 = vunpack.c.l.b16 %v3734
        %v4063 = vunpack.c.h.b16 %v3734
        %v4064 = vunpack.c.l.b16 %v3735
        %v4065 = vunpack.c.h.b16 %v3735
        %v4066 = vunpack.c.l.b16 %v3736
        %v4067 = vunpack.c.h.b16 %v3736
        %v4068 = vunpack.c.l.b16 %v3737
        %v4069 = vunpack.c.h.b16 %v3737
        %v4070 = vunpack.c.l.b16 %v3738
        %v4071 = vunpack.c.h.b16 %v3738
        %v4072 = vunpack.c.l.b16 %v3739
        %v4073 = vunpack.c.h.b16 %v3739
        %v4074 = vunpack.c.l.b16 %v3740
        %v4075 = vunpack.c.h.b16 %v3740
        %v4076 = vunpack.c.l.b16 %v3741
        %v4077 = vunpack.c.h.b16 %v3741
        %v4078 = vunpack.c.l.b16 %v3742
        %v4079 = vunpack.c.h.b16 %v3742
        %v4080 = vunpack.c.l.b16 %v3743
        %v4081 = vunpack.c.h.b16 %v3743
        %v4082 = vunpack.c.l.b16 %v3744
        %v4083 = vunpack.c.h.b16 %v3744
        %v4084 = vunpack.c.l.b16 %v3745
        %v4085 = vunpack.c.h.b16 %v3745
        %v4086 = vunpack.c.l.b16 %v3746
        %v4087 = vunpack.c.h.b16 %v3746
        %v4088 = vunpack.c.l.b16 %v3747
        %v4089 = vunpack.c.h.b16 %v3747
        %v4090 = vunpack.c.l.b16 %v3748
        %v4091 = vunpack.c.h.b16 %v3748
        %v4092 = vunpack.c.l.b16 %v3749
        %v4093 = vunpack.c.h.b16 %v3749
        %v4094 = vunpack.c.l.b16 %v3750
        %v4095 = vunpack.c.h.b16 %v3750
        %v4096 = vunpack.c.l.b16 %v3751
        %v4097 = vunpack.c.h.b16 %v3751
        %v4098 = vunpack.c.l.b16 %v3752
        %v4099 = vunpack.c.h.b16 %v3752
        %v4100 = vunpack.c.l.b16 %v3753
        %v4101 = vunpack.c.h.b16 %v3753
        %v4102 = vunpack.c.l.b16 %v3754
        %v4103 = vunpack.c.h.b16 %v3754
        %v4104 = vunpack.c.l.b16 %v3755
        %v4105 = vunpack.c.h.b16 %v3755
        %v4106 = vunpack.c.l.b16 %v3756
        %v4107 = vunpack.c.h.b16 %v3756
        %v4108 = vunpack.c.l.b16 %v3757
        %v4109 = vunpack.c.h.b16 %v3757
        %v4110 = vunpack.c.l.b16 %v3758
        %v4111 = vunpack.c.h.b16 %v3758
        %v4112 = vunpack.c.l.b16 %v3759
        %v4113 = vunpack.c.h.b16 %v3759
        %v4114 = vunpack.c.l.b16 %v3760
        %v4115 = vunpack.c.h.b16 %v3760
        %v4116 = vunpack.c.l.b16 %v3761
        %v4117 = vunpack.c.h.b16 %v3761
        %v4118 = vunpack.c.l.b16 %v3762
        %v4119 = vunpack.c.h.b16 %v3762
        %v4120 = vunpack.c.l.b16 %v3763
        %v4121 = vunpack.c.h.b16 %v3763
        %v4122 = vunpack.c.l.b16 %v3764
        %v4123 = vunpack.c.h.b16 %v3764
        %v4124 = vunpack.c.l.b16 %v3765
        %v4125 = vunpack.c.h.b16 %v3765
        %v4126 = vunpack.c.l.b16 %v3766
        %v4127 = vunpack.c.h.b16 %v3766
        %v4128 = vunpack.c.l.b16 %v3767
        %v4129 = vunpack.c.h.b16 %v3767
        %v4130 = vunpack.c.l.b16 %v3768
        %v4131 = vunpack.c.h.b16 %v3768
        %v4132 = vunpack.c.l.b16 %v3769
        %v4133 = vunpack.c.h.b16 %v3769
        %v4134 = vunpack.c.l.b16 %v3770
        %v4135 = vunpack.c.h.b16 %v3770
        %v4136 = vunpack.c.l.b16 %v3771
        %v4137 = vunpack.c.h.b16 %v3771
        %v4138 = vunpack.c.l.b16 %v3772
        %v4139 = vunpack.c.h.b16 %v3772
        %v4140 = vunpack.c.l.b16 %v3773
        %v4141 = vunpack.c.h.b16 %v3773
        %v4142 = vunpack.c.l.b16 %v3774
        %v4143 = vunpack.c.h.b16 %v3774
        %v4144 = vunpack.c.l.b16 %v3775
        %v4145 = vunpack.c.h.b16 %v3775
        %v4146 = vunpack.c.l.b16 %v3776
        %v4147 = vunpack.c.h.b16 %v3776
        %v4148 = vunpack.c.l.b16 %v3777
        %v4149 = vunpack.c.h.b16 %v3777
        %v4150 = vunpack.c.l.b16 %v3778
        %v4151 = vunpack.c.h.b16 %v3778
        %v4152 = vunpack.c.l.b16 %v3779
        %v4153 = vunpack.c.h.b16 %v3779
        %v4154 = vunpack.c.l.b16 %v3780
        %v4155 = vunpack.c.h.b16 %v3780
        %v4156 = vunpack.c.l.b16 %v3781
        %v4157 = vunpack.c.h.b16 %v3781
        %v4158 = vunpack.c.l.b16 %v3782
        %v4159 = vunpack.c.h.b16 %v3782
        %v4160 = vunpack.c.l.b16 %v3783
        %v4161 = vunpack.c.h.b16 %v3783
        %v4162 = vunpack.c.l.b16 %v3784
        %v4163 = vunpack.c.h.b16 %v3784
        %v4164 = vunpack.c.l.b16 %v3785
        %v4165 = vunpack.c.h.b16 %v3785
        %v4166 = vunpack.c.l.b16 %v3786
        %v4167 = vunpack.c.h.b16 %v3786
        %v4168 = vunpack.c.l.b16 %v3787
        %v4169 = vunpack.c.h.b16 %v3787
        %v4170 = vunpack.c.l.b16 %v3788
        %v4171 = vunpack.c.h.b16 %v3788
        %v4172 = vunpack.c.l.b16 %v3789
        %v4173 = vunpack.c.h.b16 %v3789
        %v4174 = vpack.c.b16 %v3922, %v3918
        %v4175 = vpack.c.b16 %v3923, %v3919
        %v4176 = vpack.c.b16 %v3924, %v3920
        %v4177 = vpack.c.b16 %v3925, %v3921
        %v4178 = vpack.c.b16 %v3930, %v3926
        %v4179 = vpack.c.b16 %v3931, %v3927
        %v4180 = vpack.c.b16 %v3932, %v3928
        %v4181 = vpack.c.b16 %v3933, %v3929
        %v4182 = vpack.c.b16 %v3938, %v3934
        %v4183 = vpack.c.b16 %v3939, %v3935
        %v4184 = vpack.c.b16 %v3940, %v3936
        %v4185 = vpack.c.b16 %v3941, %v3937
        %v4186 = vpack.c.b16 %v3946, %v3942
        %v4187 = vpack.c.b16 %v3947, %v3943
        %v4188 = vpack.c.b16 %v3948, %v3944
        %v4189 = vpack.c.b16 %v3949, %v3945
        %v4190 = vpack.c.b16 %v3954, %v3950
        %v4191 = vpack.c.b16 %v3955, %v3951
        %v4192 = vpack.c.b16 %v3956, %v3952
        %v4193 = vpack.c.b16 %v3957, %v3953
        %v4194 = vpack.c.b16 %v3962, %v3958
        %v4195 = vpack.c.b16 %v3963, %v3959
        %v4196 = vpack.c.b16 %v3964, %v3960
        %v4197 = vpack.c.b16 %v3965, %v3961
        %v4198 = vpack.c.b16 %v3970, %v3966
        %v4199 = vpack.c.b16 %v3971, %v3967
        %v4200 = vpack.c.b16 %v3972, %v3968
        %v4201 = vpack.c.b16 %v3973, %v3969
        %v4202 = vpack.c.b16 %v3978, %v3974
        %v4203 = vpack.c.b16 %v3979, %v3975
        %v4204 = vpack.c.b16 %v3980, %v3976
        %v4205 = vpack.c.b16 %v3981, %v3977
        %v4206 = vpack.c.b16 %v3986, %v3982
        %v4207 = vpack.c.b16 %v3987, %v3983
        %v4208 = vpack.c.b16 %v3988, %v3984
        %v4209 = vpack.c.b16 %v3989, %v3985
        %v4210 = vpack.c.b16 %v3994, %v3990
        %v4211 = vpack.c.b16 %v3995, %v3991
        %v4212 = vpack.c.b16 %v3996, %v3992
        %v4213 = vpack.c.b16 %v3997, %v3993
        %v4214 = vpack.c.b16 %v4002, %v3998
        %v4215 = vpack.c.b16 %v4003, %v3999
        %v4216 = vpack.c.b16 %v4004, %v4000
        %v4217 = vpack.c.b16 %v4005, %v4001
        %v4218 = vpack.c.b16 %v4010, %v4006
        %v4219 = vpack.c.b16 %v4011, %v4007
        %v4220 = vpack.c.b16 %v4012, %v4008
        %v4221 = vpack.c.b16 %v4013, %v4009
        %v4222 = vpack.c.b16 %v4018, %v4014
        %v4223 = vpack.c.b16 %v4019, %v4015
        %v4224 = vpack.c.b16 %v4020, %v4016
        %v4225 = vpack.c.b16 %v4021, %v4017
        %v4226 = vpack.c.b16 %v4026, %v4022
        %v4227 = vpack.c.b16 %v4027, %v4023
        %v4228 = vpack.c.b16 %v4028, %v4024
        %v4229 = vpack.c.b16 %v4029, %v4025
        %v4230 = vpack.c.b16 %v4034, %v4030
        %v4231 = vpack.c.b16 %v4035, %v4031
        %v4232 = vpack.c.b16 %v4036, %v4032
        %v4233 = vpack.c.b16 %v4037, %v4033
        %v4234 = vpack.c.b16 %v4042, %v4038
        %v4235 = vpack.c.b16 %v4043, %v4039
        %v4236 = vpack.c.b16 %v4044, %v4040
        %v4237 = vpack.c.b16 %v4045, %v4041
        %v4238 = vpack.c.b16 %v4050, %v4046
        %v4239 = vpack.c.b16 %v4051, %v4047
        %v4240 = vpack.c.b16 %v4052, %v4048
        %v4241 = vpack.c.b16 %v4053, %v4049
        %v4242 = vpack.c.b16 %v4058, %v4054
        %v4243 = vpack.c.b16 %v4059, %v4055
        %v4244 = vpack.c.b16 %v4060, %v4056
        %v4245 = vpack.c.b16 %v4061, %v4057
        %v4246 = vpack.c.b16 %v4066, %v4062
        %v4247 = vpack.c.b16 %v4067, %v4063
        %v4248 = vpack.c.b16 %v4068, %v4064
        %v4249 = vpack.c.b16 %v4069, %v4065
        %v4250 = vpack.c.b16 %v4074, %v4070
        %v4251 = vpack.c.b16 %v4075, %v4071
        %v4252 = vpack.c.b16 %v4076, %v4072
        %v4253 = vpack.c.b16 %v4077, %v4073
        %v4254 = vpack.c.b16 %v4082, %v4078
        %v4255 = vpack.c.b16 %v4083, %v4079
        %v4256 = vpack.c.b16 %v4084, %v4080
        %v4257 = vpack.c.b16 %v4085, %v4081
        %v4258 = vpack.c.b16 %v4090, %v4086
        %v4259 = vpack.c.b16 %v4091, %v4087
        %v4260 = vpack.c.b16 %v4092, %v4088
        %v4261 = vpack.c.b16 %v4093, %v4089
        %v4262 = vpack.c.b16 %v4098, %v4094
        %v4263 = vpack.c.b16 %v4099, %v4095
        %v4264 = vpack.c.b16 %v4100, %v4096
        %v4265 = vpack.c.b16 %v4101, %v4097
        %v4266 = vpack.c.b16 %v4106, %v4102
        %v4267 = vpack.c.b16 %v4107, %v4103
        %v4268 = vpack.c.b16 %v4108, %v4104
        %v4269 = vpack.c.b16 %v4109, %v4105
        %v4270 = vpack.c.b16 %v4114, %v4110
        %v4271 = vpack.c.b16 %v4115, %v4111
        %v4272 = vpack.c.b16 %v4116, %v4112
        %v4273 = vpack.c.b16 %v4117, %v4113
        %v4274 = vpack.c.b16 %v4122, %v4118
        %v4275 = vpack.c.b16 %v4123, %v4119
        %v4276 = vpack.c.b16 %v4124, %v4120
        %v4277 = vpack.c.b16 %v4125, %v4121
        %v4278 = vpack.c.b16 %v4130, %v4126
        %v4279 = vpack.c.b16 %v4131, %v4127
        %v4280 = vpack.c.b16 %v4132, %v4128
        %v4281 = vpack.c.b16 %v4133, %v4129
        %v4282 = vpack.c.b16 %v4138, %v4134
        %v4283 = vpack.c.b16 %v4139, %v4135
        %v4284 = vpack.c.b16 %v4140, %v4136
        %v4285 = vpack.c.b16 %v4141, %v4137
        %v4286 = vpack.c.b16 %v4146, %v4142
        %v4287 = vpack.c.b16 %v4147, %v4143
        %v4288 = vpack.c.b16 %v4148, %v4144
        %v4289 = vpack.c.b16 %v4149, %v4145
        %v4290 = vpack.c.b16 %v4154, %v4150
        %v4291 = vpack.c.b16 %v4155, %v4151
        %v4292 = vpack.c.b16 %v4156, %v4152
        %v4293 = vpack.c.b16 %v4157, %v4153
        %v4294 = vpack.c.b16 %v4162, %v4158
        %v4295 = vpack.c.b16 %v4163, %v4159
        %v4296 = vpack.c.b16 %v4164, %v4160
        %v4297 = vpack.c.b16 %v4165, %v4161
        %v4298 = vpack.c.b16 %v4170, %v4166
        %v4299 = vpack.c.b16 %v4171, %v4167
        %v4300 = vpack.c.b16 %v4172, %v4168
        %v4301 = vpack.c.b16 %v4173, %v4169
        %4430 = vmatpush.bf16.msra.mxu0 %v4202
        %4431 = vmatpush.bf16.msra.mxu0 %v4198
        %4432 = vmatpush.bf16.msra.mxu0 %v4194
        %4433 = vmatpush.bf16.msra.mxu0 %v4190
        %4434 = vmatpush.bf16.msra.mxu0 %v4186
        %4435 = vmatpush.bf16.msra.mxu0 %v4182
        %4436 = vmatpush.bf16.msra.mxu0 %v4178
        %4437 = vmatpush.bf16.msra.mxu0 %v4174
        %4438 = vmatmul.bf16.gmra.mxu0 %v3598
        %v4439 = vpop.f32.mrf.mxu0
        %v4440 = vadd.f32 0.0, %v4439
        %v4441 = vpop.f32.mrf.mxu0
        %v4442 = vadd.f32 0.0, %v4441
        %4443 = vmatmul.bf16.gmra.mxu0 %v3602
        %v4444 = vpop.f32.mrf.mxu0
        %v4445 = vadd.f32 0.0, %v4444
        %v4446 = vpop.f32.mrf.mxu0
        %v4447 = vadd.f32 0.0, %v4446
        %4448 = vmatmul.bf16.gmra.mxu0 %v3606
        %v4449 = vpop.f32.mrf.mxu0
        %v4450 = vadd.f32 0.0, %v4449
        %v4451 = vpop.f32.mrf.mxu0
        %v4452 = vadd.f32 0.0, %v4451
        %4453 = vmatmul.bf16.gmra.mxu0 %v3610
        %v4454 = vpop.f32.mrf.mxu0
        %v4455 = vadd.f32 0.0, %v4454
        %v4456 = vpop.f32.mrf.mxu0
        %v4457 = vadd.f32 0.0, %v4456
        %4458 = vmatmul.bf16.gmra.mxu0 %v3614
        %v4459 = vpop.f32.mrf.mxu0
        %v4460 = vadd.f32 0.0, %v4459
        %v4461 = vpop.f32.mrf.mxu0
        %v4462 = vadd.f32 0.0, %v4461
        %4463 = vmatmul.bf16.gmra.mxu0 %v3618
        %v4464 = vpop.f32.mrf.mxu0
        %v4465 = vadd.f32 0.0, %v4464
        %v4466 = vpop.f32.mrf.mxu0
        %v4467 = vadd.f32 0.0, %v4466
        %4468 = vmatmul.bf16.gmra.mxu0 %v3622
        %v4469 = vpop.f32.mrf.mxu0
        %v4470 = vadd.f32 0.0, %v4469
        %v4471 = vpop.f32.mrf.mxu0
        %v4472 = vadd.f32 0.0, %v4471
        %4473 = vmatmul.bf16.gmra.mxu0 %v3626
        %v4474 = vpop.f32.mrf.mxu0
        %v4475 = vadd.f32 0.0, %v4474
        %v4476 = vpop.f32.mrf.mxu0
        %v4477 = vadd.f32 0.0, %v4476
        %4478 = vmatmul.bf16.gmra.mxu0 %v3630
        %v4479 = vpop.f32.mrf.mxu0
        %v4480 = vadd.f32 0.0, %v4479
        %v4481 = vpop.f32.mrf.mxu0
        %v4482 = vadd.f32 0.0, %v4481
        %4483 = vmatmul.bf16.gmra.mxu0 %v3634
        %v4484 = vpop.f32.mrf.mxu0
        %v4485 = vadd.f32 0.0, %v4484
        %v4486 = vpop.f32.mrf.mxu0
        %v4487 = vadd.f32 0.0, %v4486
        %4488 = vmatmul.bf16.gmra.mxu0 %v3638
        %v4489 = vpop.f32.mrf.mxu0
        %v4490 = vadd.f32 0.0, %v4489
        %v4491 = vpop.f32.mrf.mxu0
        %v4492 = vadd.f32 0.0, %v4491
        %4493 = vmatmul.bf16.gmra.mxu0 %v3642
        %v4494 = vpop.f32.mrf.mxu0
        %v4495 = vadd.f32 0.0, %v4494
        %v4496 = vpop.f32.mrf.mxu0
        %v4497 = vadd.f32 0.0, %v4496
        %4498 = vmatmul.bf16.gmra.mxu0 %v3646
        %v4499 = vpop.f32.mrf.mxu0
        %v4500 = vadd.f32 0.0, %v4499
        %v4501 = vpop.f32.mrf.mxu0
        %v4502 = vadd.f32 0.0, %v4501
        %4503 = vmatmul.bf16.gmra.mxu0 %v3650
        %v4504 = vpop.f32.mrf.mxu0
        %v4505 = vadd.f32 0.0, %v4504
        %v4506 = vpop.f32.mrf.mxu0
        %v4507 = vadd.f32 0.0, %v4506
        %4508 = vmatmul.bf16.gmra.mxu0 %v3654
        %v4509 = vpop.f32.mrf.mxu0
        %v4510 = vadd.f32 0.0, %v4509
        %v4511 = vpop.f32.mrf.mxu0
        %v4512 = vadd.f32 0.0, %v4511
        %4513 = vmatmul.bf16.gmra.mxu0 %v3658
        %v4514 = vpop.f32.mrf.mxu0
        %v4515 = vadd.f32 0.0, %v4514
        %v4516 = vpop.f32.mrf.mxu0
        %v4517 = vadd.f32 0.0, %v4516
        %4518 = vdwg.mxu0
        %4519 = vmatpush.bf16.msra.mxu0 %v4234
        %4520 = vmatpush.bf16.msra.mxu0 %v4230
        %4521 = vmatpush.bf16.msra.mxu0 %v4226
        %4522 = vmatpush.bf16.msra.mxu0 %v4222
        %4523 = vmatpush.bf16.msra.mxu0 %v4218
        %4524 = vmatpush.bf16.msra.mxu0 %v4214
        %4525 = vmatpush.bf16.msra.mxu0 %v4210
        %4526 = vmatpush.bf16.msra.mxu0 %v4206
        %4527 = vmatmul.bf16.gmra.mxu0 %v3599
        %v4528 = vpop.f32.mrf.mxu0
        %v4529 = vadd.f32 %v4440, %v4528
        %v4530 = vpop.f32.mrf.mxu0
        %v4531 = vadd.f32 %v4442, %v4530
        %4532 = vmatmul.bf16.gmra.mxu0 %v3603
        %v4533 = vpop.f32.mrf.mxu0
        %v4534 = vadd.f32 %v4445, %v4533
        %v4535 = vpop.f32.mrf.mxu0
        %v4536 = vadd.f32 %v4447, %v4535
        %4537 = vmatmul.bf16.gmra.mxu0 %v3607
        %v4538 = vpop.f32.mrf.mxu0
        %v4539 = vadd.f32 %v4450, %v4538
        %v4540 = vpop.f32.mrf.mxu0
        %v4541 = vadd.f32 %v4452, %v4540
        %4542 = vmatmul.bf16.gmra.mxu0 %v3611
        %v4543 = vpop.f32.mrf.mxu0
        %v4544 = vadd.f32 %v4455, %v4543
        %v4545 = vpop.f32.mrf.mxu0
        %v4546 = vadd.f32 %v4457, %v4545
        %4547 = vmatmul.bf16.gmra.mxu0 %v3615
        %v4548 = vpop.f32.mrf.mxu0
        %v4549 = vadd.f32 %v4460, %v4548
        %v4550 = vpop.f32.mrf.mxu0
        %v4551 = vadd.f32 %v4462, %v4550
        %4552 = vmatmul.bf16.gmra.mxu0 %v3619
        %v4553 = vpop.f32.mrf.mxu0
        %v4554 = vadd.f32 %v4465, %v4553
        %v4555 = vpop.f32.mrf.mxu0
        %v4556 = vadd.f32 %v4467, %v4555
        %4557 = vmatmul.bf16.gmra.mxu0 %v3623
        %v4558 = vpop.f32.mrf.mxu0
        %v4559 = vadd.f32 %v4470, %v4558
        %v4560 = vpop.f32.mrf.mxu0
        %v4561 = vadd.f32 %v4472, %v4560
        %4562 = vmatmul.bf16.gmra.mxu0 %v3627
        %v4563 = vpop.f32.mrf.mxu0
        %v4564 = vadd.f32 %v4475, %v4563
        %v4565 = vpop.f32.mrf.mxu0
        %v4566 = vadd.f32 %v4477, %v4565
        %4567 = vmatmul.bf16.gmra.mxu0 %v3631
        %v4568 = vpop.f32.mrf.mxu0
        %v4569 = vadd.f32 %v4480, %v4568
        %v4570 = vpop.f32.mrf.mxu0
        %v4571 = vadd.f32 %v4482, %v4570
        %4572 = vmatmul.bf16.gmra.mxu0 %v3635
        %v4573 = vpop.f32.mrf.mxu0
        %v4574 = vadd.f32 %v4485, %v4573
        %v4575 = vpop.f32.mrf.mxu0
        %v4576 = vadd.f32 %v4487, %v4575
        %4577 = vmatmul.bf16.gmra.mxu0 %v3639
        %v4578 = vpop.f32.mrf.mxu0
        %v4579 = vadd.f32 %v4490, %v4578
        %v4580 = vpop.f32.mrf.mxu0
        %v4581 = vadd.f32 %v4492, %v4580
        %4582 = vmatmul.bf16.gmra.mxu0 %v3643
        %v4583 = vpop.f32.mrf.mxu0
        %v4584 = vadd.f32 %v4495, %v4583
        %v4585 = vpop.f32.mrf.mxu0
        %v4586 = vadd.f32 %v4497, %v4585
        %4587 = vmatmul.bf16.gmra.mxu0 %v3647
        %v4588 = vpop.f32.mrf.mxu0
        %v4589 = vadd.f32 %v4500, %v4588
        %v4590 = vpop.f32.mrf.mxu0
        %v4591 = vadd.f32 %v4502, %v4590
        %4592 = vmatmul.bf16.gmra.mxu0 %v3651
        %v4593 = vpop.f32.mrf.mxu0
        %v4594 = vadd.f32 %v4505, %v4593
        %v4595 = vpop.f32.mrf.mxu0
        %v4596 = vadd.f32 %v4507, %v4595
        %4597 = vmatmul.bf16.gmra.mxu0 %v3655
        %v4598 = vpop.f32.mrf.mxu0
        %v4599 = vadd.f32 %v4510, %v4598
        %v4600 = vpop.f32.mrf.mxu0
        %v4601 = vadd.f32 %v4512, %v4600
        %4602 = vmatmul.bf16.gmra.mxu0 %v3659
        %v4603 = vpop.f32.mrf.mxu0
        %v4604 = vadd.f32 %v4515, %v4603
        %v4605 = vpop.f32.mrf.mxu0
        %v4606 = vadd.f32 %v4517, %v4605
        %4607 = vdwg.mxu0
        %4608 = vmatpush.bf16.msra.mxu0 %v4266
        %4609 = vmatpush.bf16.msra.mxu0 %v4262
        %4610 = vmatpush.bf16.msra.mxu0 %v4258
        %4611 = vmatpush.bf16.msra.mxu0 %v4254
        %4612 = vmatpush.bf16.msra.mxu0 %v4250
        %4613 = vmatpush.bf16.msra.mxu0 %v4246
        %4614 = vmatpush.bf16.msra.mxu0 %v4242
        %4615 = vmatpush.bf16.msra.mxu0 %v4238
        %4616 = vmatmul.bf16.gmra.mxu0 %v3600
        %v4617 = vpop.f32.mrf.mxu0
        %v4618 = vadd.f32 %v4529, %v4617
        %v4619 = vpop.f32.mrf.mxu0
        %v4620 = vadd.f32 %v4531, %v4619
        %4621 = vmatmul.bf16.gmra.mxu0 %v3604
        %v4622 = vpop.f32.mrf.mxu0
        %v4623 = vadd.f32 %v4534, %v4622
        %v4624 = vpop.f32.mrf.mxu0
        %v4625 = vadd.f32 %v4536, %v4624
        %4626 = vmatmul.bf16.gmra.mxu0 %v3608
        %v4627 = vpop.f32.mrf.mxu0
        %v4628 = vadd.f32 %v4539, %v4627
        %v4629 = vpop.f32.mrf.mxu0
        %v4630 = vadd.f32 %v4541, %v4629
        %4631 = vmatmul.bf16.gmra.mxu0 %v3612
        %v4632 = vpop.f32.mrf.mxu0
        %v4633 = vadd.f32 %v4544, %v4632
        %v4634 = vpop.f32.mrf.mxu0
        %v4635 = vadd.f32 %v4546, %v4634
        %4636 = vmatmul.bf16.gmra.mxu0 %v3616
        %v4637 = vpop.f32.mrf.mxu0
        %v4638 = vadd.f32 %v4549, %v4637
        %v4639 = vpop.f32.mrf.mxu0
        %v4640 = vadd.f32 %v4551, %v4639
        %4641 = vmatmul.bf16.gmra.mxu0 %v3620
        %v4642 = vpop.f32.mrf.mxu0
        %v4643 = vadd.f32 %v4554, %v4642
        %v4644 = vpop.f32.mrf.mxu0
        %v4645 = vadd.f32 %v4556, %v4644
        %4646 = vmatmul.bf16.gmra.mxu0 %v3624
        %v4647 = vpop.f32.mrf.mxu0
        %v4648 = vadd.f32 %v4559, %v4647
        %v4649 = vpop.f32.mrf.mxu0
        %v4650 = vadd.f32 %v4561, %v4649
        %4651 = vmatmul.bf16.gmra.mxu0 %v3628
        %v4652 = vpop.f32.mrf.mxu0
        %v4653 = vadd.f32 %v4564, %v4652
        %v4654 = vpop.f32.mrf.mxu0
        %v4655 = vadd.f32 %v4566, %v4654
        %4656 = vmatmul.bf16.gmra.mxu0 %v3632
        %v4657 = vpop.f32.mrf.mxu0
        %v4658 = vadd.f32 %v4569, %v4657
        %v4659 = vpop.f32.mrf.mxu0
        %v4660 = vadd.f32 %v4571, %v4659
        %4661 = vmatmul.bf16.gmra.mxu0 %v3636
        %v4662 = vpop.f32.mrf.mxu0
        %v4663 = vadd.f32 %v4574, %v4662
        %v4664 = vpop.f32.mrf.mxu0
        %v4665 = vadd.f32 %v4576, %v4664
        %4666 = vmatmul.bf16.gmra.mxu0 %v3640
        %v4667 = vpop.f32.mrf.mxu0
        %v4668 = vadd.f32 %v4579, %v4667
        %v4669 = vpop.f32.mrf.mxu0
        %v4670 = vadd.f32 %v4581, %v4669
        %4671 = vmatmul.bf16.gmra.mxu0 %v3644
        %v4672 = vpop.f32.mrf.mxu0
        %v4673 = vadd.f32 %v4584, %v4672
        %v4674 = vpop.f32.mrf.mxu0
        %v4675 = vadd.f32 %v4586, %v4674
        %4676 = vmatmul.bf16.gmra.mxu0 %v3648
        %v4677 = vpop.f32.mrf.mxu0
        %v4678 = vadd.f32 %v4589, %v4677
        %v4679 = vpop.f32.mrf.mxu0
        %v4680 = vadd.f32 %v4591, %v4679
        %4681 = vmatmul.bf16.gmra.mxu0 %v3652
        %v4682 = vpop.f32.mrf.mxu0
        %v4683 = vadd.f32 %v4594, %v4682
        %v4684 = vpop.f32.mrf.mxu0
        %v4685 = vadd.f32 %v4596, %v4684
        %4686 = vmatmul.bf16.gmra.mxu0 %v3656
        %v4687 = vpop.f32.mrf.mxu0
        %v4688 = vadd.f32 %v4599, %v4687
        %v4689 = vpop.f32.mrf.mxu0
        %v4690 = vadd.f32 %v4601, %v4689
        %4691 = vmatmul.bf16.gmra.mxu0 %v3660
        %v4692 = vpop.f32.mrf.mxu0
        %v4693 = vadd.f32 %v4604, %v4692
        %v4694 = vpop.f32.mrf.mxu0
        %v4695 = vadd.f32 %v4606, %v4694
        %4696 = vdwg.mxu0
        %4697 = vmatpush.bf16.msra.mxu0 %v4298
        %4698 = vmatpush.bf16.msra.mxu0 %v4294
        %4699 = vmatpush.bf16.msra.mxu0 %v4290
        %4700 = vmatpush.bf16.msra.mxu0 %v4286
        %4701 = vmatpush.bf16.msra.mxu0 %v4282
        %4702 = vmatpush.bf16.msra.mxu0 %v4278
        %4703 = vmatpush.bf16.msra.mxu0 %v4274
        %4704 = vmatpush.bf16.msra.mxu0 %v4270
        %4705 = vmatmul.bf16.gmra.mxu0 %v3601
        %v4706 = vpop.f32.mrf.mxu0
        %v4707 = vadd.f32 %v4618, %v4706
        %v4708 = vpop.f32.mrf.mxu0
        %v4709 = vadd.f32 %v4620, %v4708
        %4710 = vmatmul.bf16.gmra.mxu0 %v3605
        %v4711 = vpop.f32.mrf.mxu0
        %v4712 = vadd.f32 %v4623, %v4711
        %v4713 = vpop.f32.mrf.mxu0
        %v4714 = vadd.f32 %v4625, %v4713
        %4715 = vmatmul.bf16.gmra.mxu0 %v3609
        %v4716 = vpop.f32.mrf.mxu0
        %v4717 = vadd.f32 %v4628, %v4716
        %v4718 = vpop.f32.mrf.mxu0
        %v4719 = vadd.f32 %v4630, %v4718
        %4720 = vmatmul.bf16.gmra.mxu0 %v3613
        %v4721 = vpop.f32.mrf.mxu0
        %v4722 = vadd.f32 %v4633, %v4721
        %v4723 = vpop.f32.mrf.mxu0
        %v4724 = vadd.f32 %v4635, %v4723
        %4725 = vmatmul.bf16.gmra.mxu0 %v3617
        %v4726 = vpop.f32.mrf.mxu0
        %v4727 = vadd.f32 %v4638, %v4726
        %v4728 = vpop.f32.mrf.mxu0
        %v4729 = vadd.f32 %v4640, %v4728
        %4730 = vmatmul.bf16.gmra.mxu0 %v3621
        %v4731 = vpop.f32.mrf.mxu0
        %v4732 = vadd.f32 %v4643, %v4731
        %v4733 = vpop.f32.mrf.mxu0
        %v4734 = vadd.f32 %v4645, %v4733
        %4735 = vmatmul.bf16.gmra.mxu0 %v3625
        %v4736 = vpop.f32.mrf.mxu0
        %v4737 = vadd.f32 %v4648, %v4736
        %v4738 = vpop.f32.mrf.mxu0
        %v4739 = vadd.f32 %v4650, %v4738
        %4740 = vmatmul.bf16.gmra.mxu0 %v3629
        %v4741 = vpop.f32.mrf.mxu0
        %v4742 = vadd.f32 %v4653, %v4741
        %v4743 = vpop.f32.mrf.mxu0
        %v4744 = vadd.f32 %v4655, %v4743
        %4745 = vmatmul.bf16.gmra.mxu0 %v3633
        %v4746 = vpop.f32.mrf.mxu0
        %v4747 = vadd.f32 %v4658, %v4746
        %v4748 = vpop.f32.mrf.mxu0
        %v4749 = vadd.f32 %v4660, %v4748
        %4750 = vmatmul.bf16.gmra.mxu0 %v3637
        %v4751 = vpop.f32.mrf.mxu0
        %v4752 = vadd.f32 %v4663, %v4751
        %v4753 = vpop.f32.mrf.mxu0
        %v4754 = vadd.f32 %v4665, %v4753
        %4755 = vmatmul.bf16.gmra.mxu0 %v3641
        %v4756 = vpop.f32.mrf.mxu0
        %v4757 = vadd.f32 %v4668, %v4756
        %v4758 = vpop.f32.mrf.mxu0
        %v4759 = vadd.f32 %v4670, %v4758
        %4760 = vmatmul.bf16.gmra.mxu0 %v3645
        %v4761 = vpop.f32.mrf.mxu0
        %v4762 = vadd.f32 %v4673, %v4761
        %v4763 = vpop.f32.mrf.mxu0
        %v4764 = vadd.f32 %v4675, %v4763
        %4765 = vmatmul.bf16.gmra.mxu0 %v3649
        %v4766 = vpop.f32.mrf.mxu0
        %v4767 = vadd.f32 %v4678, %v4766
        %v4768 = vpop.f32.mrf.mxu0
        %v4769 = vadd.f32 %v4680, %v4768
        %4770 = vmatmul.bf16.gmra.mxu0 %v3653
        %v4771 = vpop.f32.mrf.mxu0
        %v4772 = vadd.f32 %v4683, %v4771
        %v4773 = vpop.f32.mrf.mxu0
        %v4774 = vadd.f32 %v4685, %v4773
        %4775 = vmatmul.bf16.gmra.mxu0 %v3657
        %v4776 = vpop.f32.mrf.mxu0
        %v4777 = vadd.f32 %v4688, %v4776
        %v4778 = vpop.f32.mrf.mxu0
        %v4779 = vadd.f32 %v4690, %v4778
        %4780 = vmatmul.bf16.gmra.mxu0 %v3661
        %v4781 = vpop.f32.mrf.mxu0
        %v4782 = vadd.f32 %v4693, %v4781
        %v4783 = vpop.f32.mrf.mxu0
        %v4784 = vadd.f32 %v4695, %v4783
        %4785 = vdwg.mxu0
        %4786 = vmatpush.bf16.msra.mxu0 %v4203
        %4787 = vmatpush.bf16.msra.mxu0 %v4199
        %4788 = vmatpush.bf16.msra.mxu0 %v4195
        %4789 = vmatpush.bf16.msra.mxu0 %v4191
        %4790 = vmatpush.bf16.msra.mxu0 %v4187
        %4791 = vmatpush.bf16.msra.mxu0 %v4183
        %4792 = vmatpush.bf16.msra.mxu0 %v4179
        %4793 = vmatpush.bf16.msra.mxu0 %v4175
        %4794 = vmatmul.bf16.gmra.mxu0 %v3598
        %v4795 = vpop.f32.mrf.mxu0
        %v4796 = vadd.f32 0.0, %v4795
        %v4797 = vpop.f32.mrf.mxu0
        %v4798 = vadd.f32 0.0, %v4797
        %4799 = vmatmul.bf16.gmra.mxu0 %v3602
        %v4800 = vpop.f32.mrf.mxu0
        %v4801 = vadd.f32 0.0, %v4800
        %v4802 = vpop.f32.mrf.mxu0
        %v4803 = vadd.f32 0.0, %v4802
        %4804 = vmatmul.bf16.gmra.mxu0 %v3606
        %v4805 = vpop.f32.mrf.mxu0
        %v4806 = vadd.f32 0.0, %v4805
        %v4807 = vpop.f32.mrf.mxu0
        %v4808 = vadd.f32 0.0, %v4807
        %4809 = vmatmul.bf16.gmra.mxu0 %v3610
        %v4810 = vpop.f32.mrf.mxu0
        %v4811 = vadd.f32 0.0, %v4810
        %v4812 = vpop.f32.mrf.mxu0
        %v4813 = vadd.f32 0.0, %v4812
        %4814 = vmatmul.bf16.gmra.mxu0 %v3614
        %v4815 = vpop.f32.mrf.mxu0
        %v4816 = vadd.f32 0.0, %v4815
        %v4817 = vpop.f32.mrf.mxu0
        %v4818 = vadd.f32 0.0, %v4817
        %4819 = vmatmul.bf16.gmra.mxu0 %v3618
        %v4820 = vpop.f32.mrf.mxu0
        %v4821 = vadd.f32 0.0, %v4820
        %v4822 = vpop.f32.mrf.mxu0
        %v4823 = vadd.f32 0.0, %v4822
        %4824 = vmatmul.bf16.gmra.mxu0 %v3622
        %v4825 = vpop.f32.mrf.mxu0
        %v4826 = vadd.f32 0.0, %v4825
        %v4827 = vpop.f32.mrf.mxu0
        %v4828 = vadd.f32 0.0, %v4827
        %4829 = vmatmul.bf16.gmra.mxu0 %v3626
        %v4830 = vpop.f32.mrf.mxu0
        %v4831 = vadd.f32 0.0, %v4830
        %v4832 = vpop.f32.mrf.mxu0
        %v4833 = vadd.f32 0.0, %v4832
        %4834 = vmatmul.bf16.gmra.mxu0 %v3630
        %v4835 = vpop.f32.mrf.mxu0
        %v4836 = vadd.f32 0.0, %v4835
        %v4837 = vpop.f32.mrf.mxu0
        %v4838 = vadd.f32 0.0, %v4837
        %4839 = vmatmul.bf16.gmra.mxu0 %v3634
        %v4840 = vpop.f32.mrf.mxu0
        %v4841 = vadd.f32 0.0, %v4840
        %v4842 = vpop.f32.mrf.mxu0
        %v4843 = vadd.f32 0.0, %v4842
        %4844 = vmatmul.bf16.gmra.mxu0 %v3638
        %v4845 = vpop.f32.mrf.mxu0
        %v4846 = vadd.f32 0.0, %v4845
        %v4847 = vpop.f32.mrf.mxu0
        %v4848 = vadd.f32 0.0, %v4847
        %4849 = vmatmul.bf16.gmra.mxu0 %v3642
        %v4850 = vpop.f32.mrf.mxu0
        %v4851 = vadd.f32 0.0, %v4850
        %v4852 = vpop.f32.mrf.mxu0
        %v4853 = vadd.f32 0.0, %v4852
        %4854 = vmatmul.bf16.gmra.mxu0 %v3646
        %v4855 = vpop.f32.mrf.mxu0
        %v4856 = vadd.f32 0.0, %v4855
        %v4857 = vpop.f32.mrf.mxu0
        %v4858 = vadd.f32 0.0, %v4857
        %4859 = vmatmul.bf16.gmra.mxu0 %v3650
        %v4860 = vpop.f32.mrf.mxu0
        %v4861 = vadd.f32 0.0, %v4860
        %v4862 = vpop.f32.mrf.mxu0
        %v4863 = vadd.f32 0.0, %v4862
        %4864 = vmatmul.bf16.gmra.mxu0 %v3654
        %v4865 = vpop.f32.mrf.mxu0
        %v4866 = vadd.f32 0.0, %v4865
        %v4867 = vpop.f32.mrf.mxu0
        %v4868 = vadd.f32 0.0, %v4867
        %4869 = vmatmul.bf16.gmra.mxu0 %v3658
        %v4870 = vpop.f32.mrf.mxu0
        %v4871 = vadd.f32 0.0, %v4870
        %v4872 = vpop.f32.mrf.mxu0
        %v4873 = vadd.f32 0.0, %v4872
        %4874 = vdwg.mxu0
        %4875 = vmatpush.bf16.msra.mxu0 %v4235
        %4876 = vmatpush.bf16.msra.mxu0 %v4231
        %4877 = vmatpush.bf16.msra.mxu0 %v4227
        %4878 = vmatpush.bf16.msra.mxu0 %v4223
        %4879 = vmatpush.bf16.msra.mxu0 %v4219
        %4880 = vmatpush.bf16.msra.mxu0 %v4215
        %4881 = vmatpush.bf16.msra.mxu0 %v4211
        %4882 = vmatpush.bf16.msra.mxu0 %v4207
        %4883 = vmatmul.bf16.gmra.mxu0 %v3599
        %v4884 = vpop.f32.mrf.mxu0
        %v4885 = vadd.f32 %v4796, %v4884
        %v4886 = vpop.f32.mrf.mxu0
        %v4887 = vadd.f32 %v4798, %v4886
        %4888 = vmatmul.bf16.gmra.mxu0 %v3603
        %v4889 = vpop.f32.mrf.mxu0
        %v4890 = vadd.f32 %v4801, %v4889
        %v4891 = vpop.f32.mrf.mxu0
        %v4892 = vadd.f32 %v4803, %v4891
        %4893 = vmatmul.bf16.gmra.mxu0 %v3607
        %v4894 = vpop.f32.mrf.mxu0
        %v4895 = vadd.f32 %v4806, %v4894
        %v4896 = vpop.f32.mrf.mxu0
        %v4897 = vadd.f32 %v4808, %v4896
        %4898 = vmatmul.bf16.gmra.mxu0 %v3611
        %v4899 = vpop.f32.mrf.mxu0
        %v4900 = vadd.f32 %v4811, %v4899
        %v4901 = vpop.f32.mrf.mxu0
        %v4902 = vadd.f32 %v4813, %v4901
        %4903 = vmatmul.bf16.gmra.mxu0 %v3615
        %v4904 = vpop.f32.mrf.mxu0
        %v4905 = vadd.f32 %v4816, %v4904
        %v4906 = vpop.f32.mrf.mxu0
        %v4907 = vadd.f32 %v4818, %v4906
        %4908 = vmatmul.bf16.gmra.mxu0 %v3619
        %v4909 = vpop.f32.mrf.mxu0
        %v4910 = vadd.f32 %v4821, %v4909
        %v4911 = vpop.f32.mrf.mxu0
        %v4912 = vadd.f32 %v4823, %v4911
        %4913 = vmatmul.bf16.gmra.mxu0 %v3623
        %v4914 = vpop.f32.mrf.mxu0
        %v4915 = vadd.f32 %v4826, %v4914
        %v4916 = vpop.f32.mrf.mxu0
        %v4917 = vadd.f32 %v4828, %v4916
        %4918 = vmatmul.bf16.gmra.mxu0 %v3627
        %v4919 = vpop.f32.mrf.mxu0
        %v4920 = vadd.f32 %v4831, %v4919
        %v4921 = vpop.f32.mrf.mxu0
        %v4922 = vadd.f32 %v4833, %v4921
        %4923 = vmatmul.bf16.gmra.mxu0 %v3631
        %v4924 = vpop.f32.mrf.mxu0
        %v4925 = vadd.f32 %v4836, %v4924
        %v4926 = vpop.f32.mrf.mxu0
        %v4927 = vadd.f32 %v4838, %v4926
        %4928 = vmatmul.bf16.gmra.mxu0 %v3635
        %v4929 = vpop.f32.mrf.mxu0
        %v4930 = vadd.f32 %v4841, %v4929
        %v4931 = vpop.f32.mrf.mxu0
        %v4932 = vadd.f32 %v4843, %v4931
        %4933 = vmatmul.bf16.gmra.mxu0 %v3639
        %v4934 = vpop.f32.mrf.mxu0
        %v4935 = vadd.f32 %v4846, %v4934
        %v4936 = vpop.f32.mrf.mxu0
        %v4937 = vadd.f32 %v4848, %v4936
        %4938 = vmatmul.bf16.gmra.mxu0 %v3643
        %v4939 = vpop.f32.mrf.mxu0
        %v4940 = vadd.f32 %v4851, %v4939
        %v4941 = vpop.f32.mrf.mxu0
        %v4942 = vadd.f32 %v4853, %v4941
        %4943 = vmatmul.bf16.gmra.mxu0 %v3647
        %v4944 = vpop.f32.mrf.mxu0
        %v4945 = vadd.f32 %v4856, %v4944
        %v4946 = vpop.f32.mrf.mxu0
        %v4947 = vadd.f32 %v4858, %v4946
        %4948 = vmatmul.bf16.gmra.mxu0 %v3651
        %v4949 = vpop.f32.mrf.mxu0
        %v4950 = vadd.f32 %v4861, %v4949
        %v4951 = vpop.f32.mrf.mxu0
        %v4952 = vadd.f32 %v4863, %v4951
        %4953 = vmatmul.bf16.gmra.mxu0 %v3655
        %v4954 = vpop.f32.mrf.mxu0
        %v4955 = vadd.f32 %v4866, %v4954
        %v4956 = vpop.f32.mrf.mxu0
        %v4957 = vadd.f32 %v4868, %v4956
        %4958 = vmatmul.bf16.gmra.mxu0 %v3659
        %v4959 = vpop.f32.mrf.mxu0
        %v4960 = vadd.f32 %v4871, %v4959
        %v4961 = vpop.f32.mrf.mxu0
        %v4962 = vadd.f32 %v4873, %v4961
        %4963 = vdwg.mxu0
        %4964 = vmatpush.bf16.msra.mxu0 %v4267
        %4965 = vmatpush.bf16.msra.mxu0 %v4263
        %4966 = vmatpush.bf16.msra.mxu0 %v4259
        %4967 = vmatpush.bf16.msra.mxu0 %v4255
        %4968 = vmatpush.bf16.msra.mxu0 %v4251
        %4969 = vmatpush.bf16.msra.mxu0 %v4247
        %4970 = vmatpush.bf16.msra.mxu0 %v4243
        %4971 = vmatpush.bf16.msra.mxu0 %v4239
        %4972 = vmatmul.bf16.gmra.mxu0 %v3600
        %v4973 = vpop.f32.mrf.mxu0
        %v4974 = vadd.f32 %v4885, %v4973
        %v4975 = vpop.f32.mrf.mxu0
        %v4976 = vadd.f32 %v4887, %v4975
        %4977 = vmatmul.bf16.gmra.mxu0 %v3604
        %v4978 = vpop.f32.mrf.mxu0
        %v4979 = vadd.f32 %v4890, %v4978
        %v4980 = vpop.f32.mrf.mxu0
        %v4981 = vadd.f32 %v4892, %v4980
        %4982 = vmatmul.bf16.gmra.mxu0 %v3608
        %v4983 = vpop.f32.mrf.mxu0
        %v4984 = vadd.f32 %v4895, %v4983
        %v4985 = vpop.f32.mrf.mxu0
        %v4986 = vadd.f32 %v4897, %v4985
        %4987 = vmatmul.bf16.gmra.mxu0 %v3612
        %v4988 = vpop.f32.mrf.mxu0
        %v4989 = vadd.f32 %v4900, %v4988
        %v4990 = vpop.f32.mrf.mxu0
        %v4991 = vadd.f32 %v4902, %v4990
        %4992 = vmatmul.bf16.gmra.mxu0 %v3616
        %v4993 = vpop.f32.mrf.mxu0
        %v4994 = vadd.f32 %v4905, %v4993
        %v4995 = vpop.f32.mrf.mxu0
        %v4996 = vadd.f32 %v4907, %v4995
        %4997 = vmatmul.bf16.gmra.mxu0 %v3620
        %v4998 = vpop.f32.mrf.mxu0
        %v4999 = vadd.f32 %v4910, %v4998
        %v5000 = vpop.f32.mrf.mxu0
        %v5001 = vadd.f32 %v4912, %v5000
        %5002 = vmatmul.bf16.gmra.mxu0 %v3624
        %v5003 = vpop.f32.mrf.mxu0
        %v5004 = vadd.f32 %v4915, %v5003
        %v5005 = vpop.f32.mrf.mxu0
        %v5006 = vadd.f32 %v4917, %v5005
        %5007 = vmatmul.bf16.gmra.mxu0 %v3628
        %v5008 = vpop.f32.mrf.mxu0
        %v5009 = vadd.f32 %v4920, %v5008
        %v5010 = vpop.f32.mrf.mxu0
        %v5011 = vadd.f32 %v4922, %v5010
        %5012 = vmatmul.bf16.gmra.mxu0 %v3632
        %v5013 = vpop.f32.mrf.mxu0
        %v5014 = vadd.f32 %v4925, %v5013
        %v5015 = vpop.f32.mrf.mxu0
        %v5016 = vadd.f32 %v4927, %v5015
        %5017 = vmatmul.bf16.gmra.mxu0 %v3636
        %v5018 = vpop.f32.mrf.mxu0
        %v5019 = vadd.f32 %v4930, %v5018
        %v5020 = vpop.f32.mrf.mxu0
        %v5021 = vadd.f32 %v4932, %v5020
        %5022 = vmatmul.bf16.gmra.mxu0 %v3640
        %v5023 = vpop.f32.mrf.mxu0
        %v5024 = vadd.f32 %v4935, %v5023
        %v5025 = vpop.f32.mrf.mxu0
        %v5026 = vadd.f32 %v4937, %v5025
        %5027 = vmatmul.bf16.gmra.mxu0 %v3644
        %v5028 = vpop.f32.mrf.mxu0
        %v5029 = vadd.f32 %v4940, %v5028
        %v5030 = vpop.f32.mrf.mxu0
        %v5031 = vadd.f32 %v4942, %v5030
        %5032 = vmatmul.bf16.gmra.mxu0 %v3648
        %v5033 = vpop.f32.mrf.mxu0
        %v5034 = vadd.f32 %v4945, %v5033
        %v5035 = vpop.f32.mrf.mxu0
        %v5036 = vadd.f32 %v4947, %v5035
        %5037 = vmatmul.bf16.gmra.mxu0 %v3652
        %v5038 = vpop.f32.mrf.mxu0
        %v5039 = vadd.f32 %v4950, %v5038
        %v5040 = vpop.f32.mrf.mxu0
        %v5041 = vadd.f32 %v4952, %v5040
        %5042 = vmatmul.bf16.gmra.mxu0 %v3656
        %v5043 = vpop.f32.mrf.mxu0
        %v5044 = vadd.f32 %v4955, %v5043
        %v5045 = vpop.f32.mrf.mxu0
        %v5046 = vadd.f32 %v4957, %v5045
        %5047 = vmatmul.bf16.gmra.mxu0 %v3660
        %v5048 = vpop.f32.mrf.mxu0
        %v5049 = vadd.f32 %v4960, %v5048
        %v5050 = vpop.f32.mrf.mxu0
        %v5051 = vadd.f32 %v4962, %v5050
        %5052 = vdwg.mxu0
        %5053 = vmatpush.bf16.msra.mxu0 %v4299
        %5054 = vmatpush.bf16.msra.mxu0 %v4295
        %5055 = vmatpush.bf16.msra.mxu0 %v4291
        %5056 = vmatpush.bf16.msra.mxu0 %v4287
        %5057 = vmatpush.bf16.msra.mxu0 %v4283
        %5058 = vmatpush.bf16.msra.mxu0 %v4279
        %5059 = vmatpush.bf16.msra.mxu0 %v4275
        %5060 = vmatpush.bf16.msra.mxu0 %v4271
        %5061 = vmatmul.bf16.gmra.mxu0 %v3601
        %v5062 = vpop.f32.mrf.mxu0
        %v5063 = vadd.f32 %v4974, %v5062
        %v5064 = vpop.f32.mrf.mxu0
        %v5065 = vadd.f32 %v4976, %v5064
        %5066 = vmatmul.bf16.gmra.mxu0 %v3605
        %v5067 = vpop.f32.mrf.mxu0
        %v5068 = vadd.f32 %v4979, %v5067
        %v5069 = vpop.f32.mrf.mxu0
        %v5070 = vadd.f32 %v4981, %v5069
        %5071 = vmatmul.bf16.gmra.mxu0 %v3609
        %v5072 = vpop.f32.mrf.mxu0
        %v5073 = vadd.f32 %v4984, %v5072
        %v5074 = vpop.f32.mrf.mxu0
        %v5075 = vadd.f32 %v4986, %v5074
        %5076 = vmatmul.bf16.gmra.mxu0 %v3613
        %v5077 = vpop.f32.mrf.mxu0
        %v5078 = vadd.f32 %v4989, %v5077
        %v5079 = vpop.f32.mrf.mxu0
        %v5080 = vadd.f32 %v4991, %v5079
        %5081 = vmatmul.bf16.gmra.mxu0 %v3617
        %v5082 = vpop.f32.mrf.mxu0
        %v5083 = vadd.f32 %v4994, %v5082
        %v5084 = vpop.f32.mrf.mxu0
        %v5085 = vadd.f32 %v4996, %v5084
        %5086 = vmatmul.bf16.gmra.mxu0 %v3621
        %v5087 = vpop.f32.mrf.mxu0
        %v5088 = vadd.f32 %v4999, %v5087
        %v5089 = vpop.f32.mrf.mxu0
        %v5090 = vadd.f32 %v5001, %v5089
        %5091 = vmatmul.bf16.gmra.mxu0 %v3625
        %v5092 = vpop.f32.mrf.mxu0
        %v5093 = vadd.f32 %v5004, %v5092
        %v5094 = vpop.f32.mrf.mxu0
        %v5095 = vadd.f32 %v5006, %v5094
        %5096 = vmatmul.bf16.gmra.mxu0 %v3629
        %v5097 = vpop.f32.mrf.mxu0
        %v5098 = vadd.f32 %v5009, %v5097
        %v5099 = vpop.f32.mrf.mxu0
        %v5100 = vadd.f32 %v5011, %v5099
        %5101 = vmatmul.bf16.gmra.mxu0 %v3633
        %v5102 = vpop.f32.mrf.mxu0
        %v5103 = vadd.f32 %v5014, %v5102
        %v5104 = vpop.f32.mrf.mxu0
        %v5105 = vadd.f32 %v5016, %v5104
        %5106 = vmatmul.bf16.gmra.mxu0 %v3637
        %v5107 = vpop.f32.mrf.mxu0
        %v5108 = vadd.f32 %v5019, %v5107
        %v5109 = vpop.f32.mrf.mxu0
        %v5110 = vadd.f32 %v5021, %v5109
        %5111 = vmatmul.bf16.gmra.mxu0 %v3641
        %v5112 = vpop.f32.mrf.mxu0
        %v5113 = vadd.f32 %v5024, %v5112
        %v5114 = vpop.f32.mrf.mxu0
        %v5115 = vadd.f32 %v5026, %v5114
        %5116 = vmatmul.bf16.gmra.mxu0 %v3645
        %v5117 = vpop.f32.mrf.mxu0
        %v5118 = vadd.f32 %v5029, %v5117
        %v5119 = vpop.f32.mrf.mxu0
        %v5120 = vadd.f32 %v5031, %v5119
        %5121 = vmatmul.bf16.gmra.mxu0 %v3649
        %v5122 = vpop.f32.mrf.mxu0
        %v5123 = vadd.f32 %v5034, %v5122
        %v5124 = vpop.f32.mrf.mxu0
        %v5125 = vadd.f32 %v5036, %v5124
        %5126 = vmatmul.bf16.gmra.mxu0 %v3653
        %v5127 = vpop.f32.mrf.mxu0
        %v5128 = vadd.f32 %v5039, %v5127
        %v5129 = vpop.f32.mrf.mxu0
        %v5130 = vadd.f32 %v5041, %v5129
        %5131 = vmatmul.bf16.gmra.mxu0 %v3657
        %v5132 = vpop.f32.mrf.mxu0
        %v5133 = vadd.f32 %v5044, %v5132
        %v5134 = vpop.f32.mrf.mxu0
        %v5135 = vadd.f32 %v5046, %v5134
        %5136 = vmatmul.bf16.gmra.mxu0 %v3661
        %v5137 = vpop.f32.mrf.mxu0
        %v5138 = vadd.f32 %v5049, %v5137
        %v5139 = vpop.f32.mrf.mxu0
        %v5140 = vadd.f32 %v5051, %v5139
        %5141 = vdwg.mxu0
        %5142 = vmatpush.bf16.msra.mxu0 %v4204
        %5143 = vmatpush.bf16.msra.mxu0 %v4200
        %5144 = vmatpush.bf16.msra.mxu0 %v4196
        %5145 = vmatpush.bf16.msra.mxu0 %v4192
        %5146 = vmatpush.bf16.msra.mxu0 %v4188
        %5147 = vmatpush.bf16.msra.mxu0 %v4184
        %5148 = vmatpush.bf16.msra.mxu0 %v4180
        %5149 = vmatpush.bf16.msra.mxu0 %v4176
        %5150 = vmatmul.bf16.gmra.mxu0 %v3598
        %v5151 = vpop.f32.mrf.mxu0
        %v5152 = vadd.f32 0.0, %v5151
        %v5153 = vpop.f32.mrf.mxu0
        %v5154 = vadd.f32 0.0, %v5153
        %5155 = vmatmul.bf16.gmra.mxu0 %v3602
        %v5156 = vpop.f32.mrf.mxu0
        %v5157 = vadd.f32 0.0, %v5156
        %v5158 = vpop.f32.mrf.mxu0
        %v5159 = vadd.f32 0.0, %v5158
        %5160 = vmatmul.bf16.gmra.mxu0 %v3606
        %v5161 = vpop.f32.mrf.mxu0
        %v5162 = vadd.f32 0.0, %v5161
        %v5163 = vpop.f32.mrf.mxu0
        %v5164 = vadd.f32 0.0, %v5163
        %5165 = vmatmul.bf16.gmra.mxu0 %v3610
        %v5166 = vpop.f32.mrf.mxu0
        %v5167 = vadd.f32 0.0, %v5166
        %v5168 = vpop.f32.mrf.mxu0
        %v5169 = vadd.f32 0.0, %v5168
        %5170 = vmatmul.bf16.gmra.mxu0 %v3614
        %v5171 = vpop.f32.mrf.mxu0
        %v5172 = vadd.f32 0.0, %v5171
        %v5173 = vpop.f32.mrf.mxu0
        %v5174 = vadd.f32 0.0, %v5173
        %5175 = vmatmul.bf16.gmra.mxu0 %v3618
        %v5176 = vpop.f32.mrf.mxu0
        %v5177 = vadd.f32 0.0, %v5176
        %v5178 = vpop.f32.mrf.mxu0
        %v5179 = vadd.f32 0.0, %v5178
        %5180 = vmatmul.bf16.gmra.mxu0 %v3622
        %v5181 = vpop.f32.mrf.mxu0
        %v5182 = vadd.f32 0.0, %v5181
        %v5183 = vpop.f32.mrf.mxu0
        %v5184 = vadd.f32 0.0, %v5183
        %5185 = vmatmul.bf16.gmra.mxu0 %v3626
        %v5186 = vpop.f32.mrf.mxu0
        %v5187 = vadd.f32 0.0, %v5186
        %v5188 = vpop.f32.mrf.mxu0
        %v5189 = vadd.f32 0.0, %v5188
        %5190 = vmatmul.bf16.gmra.mxu0 %v3630
        %v5191 = vpop.f32.mrf.mxu0
        %v5192 = vadd.f32 0.0, %v5191
        %v5193 = vpop.f32.mrf.mxu0
        %v5194 = vadd.f32 0.0, %v5193
        %5195 = vmatmul.bf16.gmra.mxu0 %v3634
        %v5196 = vpop.f32.mrf.mxu0
        %v5197 = vadd.f32 0.0, %v5196
        %v5198 = vpop.f32.mrf.mxu0
        %v5199 = vadd.f32 0.0, %v5198
        %5200 = vmatmul.bf16.gmra.mxu0 %v3638
        %v5201 = vpop.f32.mrf.mxu0
        %v5202 = vadd.f32 0.0, %v5201
        %v5203 = vpop.f32.mrf.mxu0
        %v5204 = vadd.f32 0.0, %v5203
        %5205 = vmatmul.bf16.gmra.mxu0 %v3642
        %v5206 = vpop.f32.mrf.mxu0
        %v5207 = vadd.f32 0.0, %v5206
        %v5208 = vpop.f32.mrf.mxu0
        %v5209 = vadd.f32 0.0, %v5208
        %5210 = vmatmul.bf16.gmra.mxu0 %v3646
        %v5211 = vpop.f32.mrf.mxu0
        %v5212 = vadd.f32 0.0, %v5211
        %v5213 = vpop.f32.mrf.mxu0
        %v5214 = vadd.f32 0.0, %v5213
        %5215 = vmatmul.bf16.gmra.mxu0 %v3650
        %v5216 = vpop.f32.mrf.mxu0
        %v5217 = vadd.f32 0.0, %v5216
        %v5218 = vpop.f32.mrf.mxu0
        %v5219 = vadd.f32 0.0, %v5218
        %5220 = vmatmul.bf16.gmra.mxu0 %v3654
        %v5221 = vpop.f32.mrf.mxu0
        %v5222 = vadd.f32 0.0, %v5221
        %v5223 = vpop.f32.mrf.mxu0
        %v5224 = vadd.f32 0.0, %v5223
        %5225 = vmatmul.bf16.gmra.mxu0 %v3658
        %v5226 = vpop.f32.mrf.mxu0
        %v5227 = vadd.f32 0.0, %v5226
        %v5228 = vpop.f32.mrf.mxu0
        %v5229 = vadd.f32 0.0, %v5228
        %5230 = vdwg.mxu0
        %5231 = vmatpush.bf16.msra.mxu0 %v4236
        %5232 = vmatpush.bf16.msra.mxu0 %v4232
        %5233 = vmatpush.bf16.msra.mxu0 %v4228
        %5234 = vmatpush.bf16.msra.mxu0 %v4224
        %5235 = vmatpush.bf16.msra.mxu0 %v4220
        %5236 = vmatpush.bf16.msra.mxu0 %v4216
        %5237 = vmatpush.bf16.msra.mxu0 %v4212
        %5238 = vmatpush.bf16.msra.mxu0 %v4208
        %5239 = vmatmul.bf16.gmra.mxu0 %v3599
        %v5240 = vpop.f32.mrf.mxu0
        %v5241 = vadd.f32 %v5152, %v5240
        %v5242 = vpop.f32.mrf.mxu0
        %v5243 = vadd.f32 %v5154, %v5242
        %5244 = vmatmul.bf16.gmra.mxu0 %v3603
        %v5245 = vpop.f32.mrf.mxu0
        %v5246 = vadd.f32 %v5157, %v5245
        %v5247 = vpop.f32.mrf.mxu0
        %v5248 = vadd.f32 %v5159, %v5247
        %5249 = vmatmul.bf16.gmra.mxu0 %v3607
        %v5250 = vpop.f32.mrf.mxu0
        %v5251 = vadd.f32 %v5162, %v5250
        %v5252 = vpop.f32.mrf.mxu0
        %v5253 = vadd.f32 %v5164, %v5252
        %5254 = vmatmul.bf16.gmra.mxu0 %v3611
        %v5255 = vpop.f32.mrf.mxu0
        %v5256 = vadd.f32 %v5167, %v5255
        %v5257 = vpop.f32.mrf.mxu0
        %v5258 = vadd.f32 %v5169, %v5257
        %5259 = vmatmul.bf16.gmra.mxu0 %v3615
        %v5260 = vpop.f32.mrf.mxu0
        %v5261 = vadd.f32 %v5172, %v5260
        %v5262 = vpop.f32.mrf.mxu0
        %v5263 = vadd.f32 %v5174, %v5262
        %5264 = vmatmul.bf16.gmra.mxu0 %v3619
        %v5265 = vpop.f32.mrf.mxu0
        %v5266 = vadd.f32 %v5177, %v5265
        %v5267 = vpop.f32.mrf.mxu0
        %v5268 = vadd.f32 %v5179, %v5267
        %5269 = vmatmul.bf16.gmra.mxu0 %v3623
        %v5270 = vpop.f32.mrf.mxu0
        %v5271 = vadd.f32 %v5182, %v5270
        %v5272 = vpop.f32.mrf.mxu0
        %v5273 = vadd.f32 %v5184, %v5272
        %5274 = vmatmul.bf16.gmra.mxu0 %v3627
        %v5275 = vpop.f32.mrf.mxu0
        %v5276 = vadd.f32 %v5187, %v5275
        %v5277 = vpop.f32.mrf.mxu0
        %v5278 = vadd.f32 %v5189, %v5277
        %5279 = vmatmul.bf16.gmra.mxu0 %v3631
        %v5280 = vpop.f32.mrf.mxu0
        %v5281 = vadd.f32 %v5192, %v5280
        %v5282 = vpop.f32.mrf.mxu0
        %v5283 = vadd.f32 %v5194, %v5282
        %5284 = vmatmul.bf16.gmra.mxu0 %v3635
        %v5285 = vpop.f32.mrf.mxu0
        %v5286 = vadd.f32 %v5197, %v5285
        %v5287 = vpop.f32.mrf.mxu0
        %v5288 = vadd.f32 %v5199, %v5287
        %5289 = vmatmul.bf16.gmra.mxu0 %v3639
        %v5290 = vpop.f32.mrf.mxu0
        %v5291 = vadd.f32 %v5202, %v5290
        %v5292 = vpop.f32.mrf.mxu0
        %v5293 = vadd.f32 %v5204, %v5292
        %5294 = vmatmul.bf16.gmra.mxu0 %v3643
        %v5295 = vpop.f32.mrf.mxu0
        %v5296 = vadd.f32 %v5207, %v5295
        %v5297 = vpop.f32.mrf.mxu0
        %v5298 = vadd.f32 %v5209, %v5297
        %5299 = vmatmul.bf16.gmra.mxu0 %v3647
        %v5300 = vpop.f32.mrf.mxu0
        %v5301 = vadd.f32 %v5212, %v5300
        %v5302 = vpop.f32.mrf.mxu0
        %v5303 = vadd.f32 %v5214, %v5302
        %5304 = vmatmul.bf16.gmra.mxu0 %v3651
        %v5305 = vpop.f32.mrf.mxu0
        %v5306 = vadd.f32 %v5217, %v5305
        %v5307 = vpop.f32.mrf.mxu0
        %v5308 = vadd.f32 %v5219, %v5307
        %5309 = vmatmul.bf16.gmra.mxu0 %v3655
        %v5310 = vpop.f32.mrf.mxu0
        %v5311 = vadd.f32 %v5222, %v5310
        %v5312 = vpop.f32.mrf.mxu0
        %v5313 = vadd.f32 %v5224, %v5312
        %5314 = vmatmul.bf16.gmra.mxu0 %v3659
        %v5315 = vpop.f32.mrf.mxu0
        %v5316 = vadd.f32 %v5227, %v5315
        %v5317 = vpop.f32.mrf.mxu0
        %v5318 = vadd.f32 %v5229, %v5317
        %5319 = vdwg.mxu0
        %5320 = vmatpush.bf16.msra.mxu0 %v4268
        %5321 = vmatpush.bf16.msra.mxu0 %v4264
        %5322 = vmatpush.bf16.msra.mxu0 %v4260
        %5323 = vmatpush.bf16.msra.mxu0 %v4256
        %5324 = vmatpush.bf16.msra.mxu0 %v4252
        %5325 = vmatpush.bf16.msra.mxu0 %v4248
        %5326 = vmatpush.bf16.msra.mxu0 %v4244
        %5327 = vmatpush.bf16.msra.mxu0 %v4240
        %5328 = vmatmul.bf16.gmra.mxu0 %v3600
        %v5329 = vpop.f32.mrf.mxu0
        %v5330 = vadd.f32 %v5241, %v5329
        %v5331 = vpop.f32.mrf.mxu0
        %v5332 = vadd.f32 %v5243, %v5331
        %5333 = vmatmul.bf16.gmra.mxu0 %v3604
        %v5334 = vpop.f32.mrf.mxu0
        %v5335 = vadd.f32 %v5246, %v5334
        %v5336 = vpop.f32.mrf.mxu0
        %v5337 = vadd.f32 %v5248, %v5336
        %5338 = vmatmul.bf16.gmra.mxu0 %v3608
        %v5339 = vpop.f32.mrf.mxu0
        %v5340 = vadd.f32 %v5251, %v5339
        %v5341 = vpop.f32.mrf.mxu0
        %v5342 = vadd.f32 %v5253, %v5341
        %5343 = vmatmul.bf16.gmra.mxu0 %v3612
        %v5344 = vpop.f32.mrf.mxu0
        %v5345 = vadd.f32 %v5256, %v5344
        %v5346 = vpop.f32.mrf.mxu0
        %v5347 = vadd.f32 %v5258, %v5346
        %5348 = vmatmul.bf16.gmra.mxu0 %v3616
        %v5349 = vpop.f32.mrf.mxu0
        %v5350 = vadd.f32 %v5261, %v5349
        %v5351 = vpop.f32.mrf.mxu0
        %v5352 = vadd.f32 %v5263, %v5351
        %5353 = vmatmul.bf16.gmra.mxu0 %v3620
        %v5354 = vpop.f32.mrf.mxu0
        %v5355 = vadd.f32 %v5266, %v5354
        %v5356 = vpop.f32.mrf.mxu0
        %v5357 = vadd.f32 %v5268, %v5356
        %5358 = vmatmul.bf16.gmra.mxu0 %v3624
        %v5359 = vpop.f32.mrf.mxu0
        %v5360 = vadd.f32 %v5271, %v5359
        %v5361 = vpop.f32.mrf.mxu0
        %v5362 = vadd.f32 %v5273, %v5361
        %5363 = vmatmul.bf16.gmra.mxu0 %v3628
        %v5364 = vpop.f32.mrf.mxu0
        %v5365 = vadd.f32 %v5276, %v5364
        %v5366 = vpop.f32.mrf.mxu0
        %v5367 = vadd.f32 %v5278, %v5366
        %5368 = vmatmul.bf16.gmra.mxu0 %v3632
        %v5369 = vpop.f32.mrf.mxu0
        %v5370 = vadd.f32 %v5281, %v5369
        %v5371 = vpop.f32.mrf.mxu0
        %v5372 = vadd.f32 %v5283, %v5371
        %5373 = vmatmul.bf16.gmra.mxu0 %v3636
        %v5374 = vpop.f32.mrf.mxu0
        %v5375 = vadd.f32 %v5286, %v5374
        %v5376 = vpop.f32.mrf.mxu0
        %v5377 = vadd.f32 %v5288, %v5376
        %5378 = vmatmul.bf16.gmra.mxu0 %v3640
        %v5379 = vpop.f32.mrf.mxu0
        %v5380 = vadd.f32 %v5291, %v5379
        %v5381 = vpop.f32.mrf.mxu0
        %v5382 = vadd.f32 %v5293, %v5381
        %5383 = vmatmul.bf16.gmra.mxu0 %v3644
        %v5384 = vpop.f32.mrf.mxu0
        %v5385 = vadd.f32 %v5296, %v5384
        %v5386 = vpop.f32.mrf.mxu0
        %v5387 = vadd.f32 %v5298, %v5386
        %5388 = vmatmul.bf16.gmra.mxu0 %v3648
        %v5389 = vpop.f32.mrf.mxu0
        %v5390 = vadd.f32 %v5301, %v5389
        %v5391 = vpop.f32.mrf.mxu0
        %v5392 = vadd.f32 %v5303, %v5391
        %5393 = vmatmul.bf16.gmra.mxu0 %v3652
        %v5394 = vpop.f32.mrf.mxu0
        %v5395 = vadd.f32 %v5306, %v5394
        %v5396 = vpop.f32.mrf.mxu0
        %v5397 = vadd.f32 %v5308, %v5396
        %5398 = vmatmul.bf16.gmra.mxu0 %v3656
        %v5399 = vpop.f32.mrf.mxu0
        %v5400 = vadd.f32 %v5311, %v5399
        %v5401 = vpop.f32.mrf.mxu0
        %v5402 = vadd.f32 %v5313, %v5401
        %5403 = vmatmul.bf16.gmra.mxu0 %v3660
        %v5404 = vpop.f32.mrf.mxu0
        %v5405 = vadd.f32 %v5316, %v5404
        %v5406 = vpop.f32.mrf.mxu0
        %v5407 = vadd.f32 %v5318, %v5406
        %5408 = vdwg.mxu0
        %5409 = vmatpush.bf16.msra.mxu0 %v4300
        %5410 = vmatpush.bf16.msra.mxu0 %v4296
        %5411 = vmatpush.bf16.msra.mxu0 %v4292
        %5412 = vmatpush.bf16.msra.mxu0 %v4288
        %5413 = vmatpush.bf16.msra.mxu0 %v4284
        %5414 = vmatpush.bf16.msra.mxu0 %v4280
        %5415 = vmatpush.bf16.msra.mxu0 %v4276
        %5416 = vmatpush.bf16.msra.mxu0 %v4272
        %5417 = vmatmul.bf16.gmra.mxu0 %v3601
        %v5418 = vpop.f32.mrf.mxu0
        %v5419 = vadd.f32 %v5330, %v5418
        %v5420 = vpop.f32.mrf.mxu0
        %v5421 = vadd.f32 %v5332, %v5420
        %5422 = vmatmul.bf16.gmra.mxu0 %v3605
        %v5423 = vpop.f32.mrf.mxu0
        %v5424 = vadd.f32 %v5335, %v5423
        %v5425 = vpop.f32.mrf.mxu0
        %v5426 = vadd.f32 %v5337, %v5425
        %5427 = vmatmul.bf16.gmra.mxu0 %v3609
        %v5428 = vpop.f32.mrf.mxu0
        %v5429 = vadd.f32 %v5340, %v5428
        %v5430 = vpop.f32.mrf.mxu0
        %v5431 = vadd.f32 %v5342, %v5430
        %5432 = vmatmul.bf16.gmra.mxu0 %v3613
        %v5433 = vpop.f32.mrf.mxu0
        %v5434 = vadd.f32 %v5345, %v5433
        %v5435 = vpop.f32.mrf.mxu0
        %v5436 = vadd.f32 %v5347, %v5435
        %5437 = vmatmul.bf16.gmra.mxu0 %v3617
        %v5438 = vpop.f32.mrf.mxu0
        %v5439 = vadd.f32 %v5350, %v5438
        %v5440 = vpop.f32.mrf.mxu0
        %v5441 = vadd.f32 %v5352, %v5440
        %5442 = vmatmul.bf16.gmra.mxu0 %v3621
        %v5443 = vpop.f32.mrf.mxu0
        %v5444 = vadd.f32 %v5355, %v5443
        %v5445 = vpop.f32.mrf.mxu0
        %v5446 = vadd.f32 %v5357, %v5445
        %5447 = vmatmul.bf16.gmra.mxu0 %v3625
        %v5448 = vpop.f32.mrf.mxu0
        %v5449 = vadd.f32 %v5360, %v5448
        %v5450 = vpop.f32.mrf.mxu0
        %v5451 = vadd.f32 %v5362, %v5450
        %5452 = vmatmul.bf16.gmra.mxu0 %v3629
        %v5453 = vpop.f32.mrf.mxu0
        %v5454 = vadd.f32 %v5365, %v5453
        %v5455 = vpop.f32.mrf.mxu0
        %v5456 = vadd.f32 %v5367, %v5455
        %5457 = vmatmul.bf16.gmra.mxu0 %v3633
        %v5458 = vpop.f32.mrf.mxu0
        %v5459 = vadd.f32 %v5370, %v5458
        %v5460 = vpop.f32.mrf.mxu0
        %v5461 = vadd.f32 %v5372, %v5460
        %5462 = vmatmul.bf16.gmra.mxu0 %v3637
        %v5463 = vpop.f32.mrf.mxu0
        %v5464 = vadd.f32 %v5375, %v5463
        %v5465 = vpop.f32.mrf.mxu0
        %v5466 = vadd.f32 %v5377, %v5465
        %5467 = vmatmul.bf16.gmra.mxu0 %v3641
        %v5468 = vpop.f32.mrf.mxu0
        %v5469 = vadd.f32 %v5380, %v5468
        %v5470 = vpop.f32.mrf.mxu0
        %v5471 = vadd.f32 %v5382, %v5470
        %5472 = vmatmul.bf16.gmra.mxu0 %v3645
        %v5473 = vpop.f32.mrf.mxu0
        %v5474 = vadd.f32 %v5385, %v5473
        %v5475 = vpop.f32.mrf.mxu0
        %v5476 = vadd.f32 %v5387, %v5475
        %5477 = vmatmul.bf16.gmra.mxu0 %v3649
        %v5478 = vpop.f32.mrf.mxu0
        %v5479 = vadd.f32 %v5390, %v5478
        %v5480 = vpop.f32.mrf.mxu0
        %v5481 = vadd.f32 %v5392, %v5480
        %5482 = vmatmul.bf16.gmra.mxu0 %v3653
        %v5483 = vpop.f32.mrf.mxu0
        %v5484 = vadd.f32 %v5395, %v5483
        %v5485 = vpop.f32.mrf.mxu0
        %v5486 = vadd.f32 %v5397, %v5485
        %5487 = vmatmul.bf16.gmra.mxu0 %v3657
        %v5488 = vpop.f32.mrf.mxu0
        %v5489 = vadd.f32 %v5400, %v5488
        %v5490 = vpop.f32.mrf.mxu0
        %v5491 = vadd.f32 %v5402, %v5490
        %5492 = vmatmul.bf16.gmra.mxu0 %v3661
        %v5493 = vpop.f32.mrf.mxu0
        %v5494 = vadd.f32 %v5405, %v5493
        %v5495 = vpop.f32.mrf.mxu0
        %v5496 = vadd.f32 %v5407, %v5495
        %5497 = vdwg.mxu0
        %5498 = vmatpush.bf16.msra.mxu0 %v4205
        %5499 = vmatpush.bf16.msra.mxu0 %v4201
        %5500 = vmatpush.bf16.msra.mxu0 %v4197
        %5501 = vmatpush.bf16.msra.mxu0 %v4193
        %5502 = vmatpush.bf16.msra.mxu0 %v4189
        %5503 = vmatpush.bf16.msra.mxu0 %v4185
        %5504 = vmatpush.bf16.msra.mxu0 %v4181
        %5505 = vmatpush.bf16.msra.mxu0 %v4177
        %5506 = vmatmul.bf16.gmra.mxu0 %v3598
        %v5507 = vpop.f32.mrf.mxu0
        %v5508 = vadd.f32 0.0, %v5507
        %v5509 = vpop.f32.mrf.mxu0
        %v5510 = vadd.f32 0.0, %v5509
        %5511 = vmatmul.bf16.gmra.mxu0 %v3602
        %v5512 = vpop.f32.mrf.mxu0
        %v5513 = vadd.f32 0.0, %v5512
        %v5514 = vpop.f32.mrf.mxu0
        %v5515 = vadd.f32 0.0, %v5514
        %5516 = vmatmul.bf16.gmra.mxu0 %v3606
        %v5517 = vpop.f32.mrf.mxu0
        %v5518 = vadd.f32 0.0, %v5517
        %v5519 = vpop.f32.mrf.mxu0
        %v5520 = vadd.f32 0.0, %v5519
        %5521 = vmatmul.bf16.gmra.mxu0 %v3610
        %v5522 = vpop.f32.mrf.mxu0
        %v5523 = vadd.f32 0.0, %v5522
        %v5524 = vpop.f32.mrf.mxu0
        %v5525 = vadd.f32 0.0, %v5524
        %5526 = vmatmul.bf16.gmra.mxu0 %v3614
        %v5527 = vpop.f32.mrf.mxu0
        %v5528 = vadd.f32 0.0, %v5527
        %v5529 = vpop.f32.mrf.mxu0
        %v5530 = vadd.f32 0.0, %v5529
        %5531 = vmatmul.bf16.gmra.mxu0 %v3618
        %v5532 = vpop.f32.mrf.mxu0
        %v5533 = vadd.f32 0.0, %v5532
        %v5534 = vpop.f32.mrf.mxu0
        %v5535 = vadd.f32 0.0, %v5534
        %5536 = vmatmul.bf16.gmra.mxu0 %v3622
        %v5537 = vpop.f32.mrf.mxu0
        %v5538 = vadd.f32 0.0, %v5537
        %v5539 = vpop.f32.mrf.mxu0
        %v5540 = vadd.f32 0.0, %v5539
        %5541 = vmatmul.bf16.gmra.mxu0 %v3626
        %v5542 = vpop.f32.mrf.mxu0
        %v5543 = vadd.f32 0.0, %v5542
        %v5544 = vpop.f32.mrf.mxu0
        %v5545 = vadd.f32 0.0, %v5544
        %5546 = vmatmul.bf16.gmra.mxu0 %v3630
        %v5547 = vpop.f32.mrf.mxu0
        %v5548 = vadd.f32 0.0, %v5547
        %v5549 = vpop.f32.mrf.mxu0
        %v5550 = vadd.f32 0.0, %v5549
        %5551 = vmatmul.bf16.gmra.mxu0 %v3634
        %v5552 = vpop.f32.mrf.mxu0
        %v5553 = vadd.f32 0.0, %v5552
        %v5554 = vpop.f32.mrf.mxu0
        %v5555 = vadd.f32 0.0, %v5554
        %5556 = vmatmul.bf16.gmra.mxu0 %v3638
        %v5557 = vpop.f32.mrf.mxu0
        %v5558 = vadd.f32 0.0, %v5557
        %v5559 = vpop.f32.mrf.mxu0
        %v5560 = vadd.f32 0.0, %v5559
        %5561 = vmatmul.bf16.gmra.mxu0 %v3642
        %v5562 = vpop.f32.mrf.mxu0
        %v5563 = vadd.f32 0.0, %v5562
        %v5564 = vpop.f32.mrf.mxu0
        %v5565 = vadd.f32 0.0, %v5564
        %5566 = vmatmul.bf16.gmra.mxu0 %v3646
        %v5567 = vpop.f32.mrf.mxu0
        %v5568 = vadd.f32 0.0, %v5567
        %v5569 = vpop.f32.mrf.mxu0
        %v5570 = vadd.f32 0.0, %v5569
        %5571 = vmatmul.bf16.gmra.mxu0 %v3650
        %v5572 = vpop.f32.mrf.mxu0
        %v5573 = vadd.f32 0.0, %v5572
        %v5574 = vpop.f32.mrf.mxu0
        %v5575 = vadd.f32 0.0, %v5574
        %5576 = vmatmul.bf16.gmra.mxu0 %v3654
        %v5577 = vpop.f32.mrf.mxu0
        %v5578 = vadd.f32 0.0, %v5577
        %v5579 = vpop.f32.mrf.mxu0
        %v5580 = vadd.f32 0.0, %v5579
        %5581 = vmatmul.bf16.gmra.mxu0 %v3658
        %v5582 = vpop.f32.mrf.mxu0
        %v5583 = vadd.f32 0.0, %v5582
        %v5584 = vpop.f32.mrf.mxu0
        %v5585 = vadd.f32 0.0, %v5584
        %5586 = vdwg.mxu0
        %5587 = vmatpush.bf16.msra.mxu0 %v4237
        %5588 = vmatpush.bf16.msra.mxu0 %v4233
        %5589 = vmatpush.bf16.msra.mxu0 %v4229
        %5590 = vmatpush.bf16.msra.mxu0 %v4225
        %5591 = vmatpush.bf16.msra.mxu0 %v4221
        %5592 = vmatpush.bf16.msra.mxu0 %v4217
        %5593 = vmatpush.bf16.msra.mxu0 %v4213
        %5594 = vmatpush.bf16.msra.mxu0 %v4209
        %5595 = vmatmul.bf16.gmra.mxu0 %v3599
        %v5596 = vpop.f32.mrf.mxu0
        %v5597 = vadd.f32 %v5508, %v5596
        %v5598 = vpop.f32.mrf.mxu0
        %v5599 = vadd.f32 %v5510, %v5598
        %5600 = vmatmul.bf16.gmra.mxu0 %v3603
        %v5601 = vpop.f32.mrf.mxu0
        %v5602 = vadd.f32 %v5513, %v5601
        %v5603 = vpop.f32.mrf.mxu0
        %v5604 = vadd.f32 %v5515, %v5603
        %5605 = vmatmul.bf16.gmra.mxu0 %v3607
        %v5606 = vpop.f32.mrf.mxu0
        %v5607 = vadd.f32 %v5518, %v5606
        %v5608 = vpop.f32.mrf.mxu0
        %v5609 = vadd.f32 %v5520, %v5608
        %5610 = vmatmul.bf16.gmra.mxu0 %v3611
        %v5611 = vpop.f32.mrf.mxu0
        %v5612 = vadd.f32 %v5523, %v5611
        %v5613 = vpop.f32.mrf.mxu0
        %v5614 = vadd.f32 %v5525, %v5613
        %5615 = vmatmul.bf16.gmra.mxu0 %v3615
        %v5616 = vpop.f32.mrf.mxu0
        %v5617 = vadd.f32 %v5528, %v5616
        %v5618 = vpop.f32.mrf.mxu0
        %v5619 = vadd.f32 %v5530, %v5618
        %5620 = vmatmul.bf16.gmra.mxu0 %v3619
        %v5621 = vpop.f32.mrf.mxu0
        %v5622 = vadd.f32 %v5533, %v5621
        %v5623 = vpop.f32.mrf.mxu0
        %v5624 = vadd.f32 %v5535, %v5623
        %5625 = vmatmul.bf16.gmra.mxu0 %v3623
        %v5626 = vpop.f32.mrf.mxu0
        %v5627 = vadd.f32 %v5538, %v5626
        %v5628 = vpop.f32.mrf.mxu0
        %v5629 = vadd.f32 %v5540, %v5628
        %5630 = vmatmul.bf16.gmra.mxu0 %v3627
        %v5631 = vpop.f32.mrf.mxu0
        %v5632 = vadd.f32 %v5543, %v5631
        %v5633 = vpop.f32.mrf.mxu0
        %v5634 = vadd.f32 %v5545, %v5633
        %5635 = vmatmul.bf16.gmra.mxu0 %v3631
        %v5636 = vpop.f32.mrf.mxu0
        %v5637 = vadd.f32 %v5548, %v5636
        %v5638 = vpop.f32.mrf.mxu0
        %v5639 = vadd.f32 %v5550, %v5638
        %5640 = vmatmul.bf16.gmra.mxu0 %v3635
        %v5641 = vpop.f32.mrf.mxu0
        %v5642 = vadd.f32 %v5553, %v5641
        %v5643 = vpop.f32.mrf.mxu0
        %v5644 = vadd.f32 %v5555, %v5643
        %5645 = vmatmul.bf16.gmra.mxu0 %v3639
        %v5646 = vpop.f32.mrf.mxu0
        %v5647 = vadd.f32 %v5558, %v5646
        %v5648 = vpop.f32.mrf.mxu0
        %v5649 = vadd.f32 %v5560, %v5648
        %5650 = vmatmul.bf16.gmra.mxu0 %v3643
        %v5651 = vpop.f32.mrf.mxu0
        %v5652 = vadd.f32 %v5563, %v5651
        %v5653 = vpop.f32.mrf.mxu0
        %v5654 = vadd.f32 %v5565, %v5653
        %5655 = vmatmul.bf16.gmra.mxu0 %v3647
        %v5656 = vpop.f32.mrf.mxu0
        %v5657 = vadd.f32 %v5568, %v5656
        %v5658 = vpop.f32.mrf.mxu0
        %v5659 = vadd.f32 %v5570, %v5658
        %5660 = vmatmul.bf16.gmra.mxu0 %v3651
        %v5661 = vpop.f32.mrf.mxu0
        %v5662 = vadd.f32 %v5573, %v5661
        %v5663 = vpop.f32.mrf.mxu0
        %v5664 = vadd.f32 %v5575, %v5663
        %5665 = vmatmul.bf16.gmra.mxu0 %v3655
        %v5666 = vpop.f32.mrf.mxu0
        %v5667 = vadd.f32 %v5578, %v5666
        %v5668 = vpop.f32.mrf.mxu0
        %v5669 = vadd.f32 %v5580, %v5668
        %5670 = vmatmul.bf16.gmra.mxu0 %v3659
        %v5671 = vpop.f32.mrf.mxu0
        %v5672 = vadd.f32 %v5583, %v5671
        %v5673 = vpop.f32.mrf.mxu0
        %v5674 = vadd.f32 %v5585, %v5673
        %5675 = vdwg.mxu0
        %5676 = vmatpush.bf16.msra.mxu0 %v4269
        %5677 = vmatpush.bf16.msra.mxu0 %v4265
        %5678 = vmatpush.bf16.msra.mxu0 %v4261
        %5679 = vmatpush.bf16.msra.mxu0 %v4257
        %5680 = vmatpush.bf16.msra.mxu0 %v4253
        %5681 = vmatpush.bf16.msra.mxu0 %v4249
        %5682 = vmatpush.bf16.msra.mxu0 %v4245
        %5683 = vmatpush.bf16.msra.mxu0 %v4241
        %5684 = vmatmul.bf16.gmra.mxu0 %v3600
        %v5685 = vpop.f32.mrf.mxu0
        %v5686 = vadd.f32 %v5597, %v5685
        %v5687 = vpop.f32.mrf.mxu0
        %v5688 = vadd.f32 %v5599, %v5687
        %5689 = vmatmul.bf16.gmra.mxu0 %v3604
        %v5690 = vpop.f32.mrf.mxu0
        %v5691 = vadd.f32 %v5602, %v5690
        %v5692 = vpop.f32.mrf.mxu0
        %v5693 = vadd.f32 %v5604, %v5692
        %5694 = vmatmul.bf16.gmra.mxu0 %v3608
        %v5695 = vpop.f32.mrf.mxu0
        %v5696 = vadd.f32 %v5607, %v5695
        %v5697 = vpop.f32.mrf.mxu0
        %v5698 = vadd.f32 %v5609, %v5697
        %5699 = vmatmul.bf16.gmra.mxu0 %v3612
        %v5700 = vpop.f32.mrf.mxu0
        %v5701 = vadd.f32 %v5612, %v5700
        %v5702 = vpop.f32.mrf.mxu0
        %v5703 = vadd.f32 %v5614, %v5702
        %5704 = vmatmul.bf16.gmra.mxu0 %v3616
        %v5705 = vpop.f32.mrf.mxu0
        %v5706 = vadd.f32 %v5617, %v5705
        %v5707 = vpop.f32.mrf.mxu0
        %v5708 = vadd.f32 %v5619, %v5707
        %5709 = vmatmul.bf16.gmra.mxu0 %v3620
        %v5710 = vpop.f32.mrf.mxu0
        %v5711 = vadd.f32 %v5622, %v5710
        %v5712 = vpop.f32.mrf.mxu0
        %v5713 = vadd.f32 %v5624, %v5712
        %5714 = vmatmul.bf16.gmra.mxu0 %v3624
        %v5715 = vpop.f32.mrf.mxu0
        %v5716 = vadd.f32 %v5627, %v5715
        %v5717 = vpop.f32.mrf.mxu0
        %v5718 = vadd.f32 %v5629, %v5717
        %5719 = vmatmul.bf16.gmra.mxu0 %v3628
        %v5720 = vpop.f32.mrf.mxu0
        %v5721 = vadd.f32 %v5632, %v5720
        %v5722 = vpop.f32.mrf.mxu0
        %v5723 = vadd.f32 %v5634, %v5722
        %5724 = vmatmul.bf16.gmra.mxu0 %v3632
        %v5725 = vpop.f32.mrf.mxu0
        %v5726 = vadd.f32 %v5637, %v5725
        %v5727 = vpop.f32.mrf.mxu0
        %v5728 = vadd.f32 %v5639, %v5727
        %5729 = vmatmul.bf16.gmra.mxu0 %v3636
        %v5730 = vpop.f32.mrf.mxu0
        %v5731 = vadd.f32 %v5642, %v5730
        %v5732 = vpop.f32.mrf.mxu0
        %v5733 = vadd.f32 %v5644, %v5732
        %5734 = vmatmul.bf16.gmra.mxu0 %v3640
        %v5735 = vpop.f32.mrf.mxu0
        %v5736 = vadd.f32 %v5647, %v5735
        %v5737 = vpop.f32.mrf.mxu0
        %v5738 = vadd.f32 %v5649, %v5737
        %5739 = vmatmul.bf16.gmra.mxu0 %v3644
        %v5740 = vpop.f32.mrf.mxu0
        %v5741 = vadd.f32 %v5652, %v5740
        %v5742 = vpop.f32.mrf.mxu0
        %v5743 = vadd.f32 %v5654, %v5742
        %5744 = vmatmul.bf16.gmra.mxu0 %v3648
        %v5745 = vpop.f32.mrf.mxu0
        %v5746 = vadd.f32 %v5657, %v5745
        %v5747 = vpop.f32.mrf.mxu0
        %v5748 = vadd.f32 %v5659, %v5747
        %5749 = vmatmul.bf16.gmra.mxu0 %v3652
        %v5750 = vpop.f32.mrf.mxu0
        %v5751 = vadd.f32 %v5662, %v5750
        %v5752 = vpop.f32.mrf.mxu0
        %v5753 = vadd.f32 %v5664, %v5752
        %5754 = vmatmul.bf16.gmra.mxu0 %v3656
        %v5755 = vpop.f32.mrf.mxu0
        %v5756 = vadd.f32 %v5667, %v5755
        %v5757 = vpop.f32.mrf.mxu0
        %v5758 = vadd.f32 %v5669, %v5757
        %5759 = vmatmul.bf16.gmra.mxu0 %v3660
        %v5760 = vpop.f32.mrf.mxu0
        %v5761 = vadd.f32 %v5672, %v5760
        %v5762 = vpop.f32.mrf.mxu0
        %v5763 = vadd.f32 %v5674, %v5762
        %5764 = vdwg.mxu0
        %5765 = vmatpush.bf16.msra.mxu0 %v4301
        %5766 = vmatpush.bf16.msra.mxu0 %v4297
        %5767 = vmatpush.bf16.msra.mxu0 %v4293
        %5768 = vmatpush.bf16.msra.mxu0 %v4289
        %5769 = vmatpush.bf16.msra.mxu0 %v4285
        %5770 = vmatpush.bf16.msra.mxu0 %v4281
        %5771 = vmatpush.bf16.msra.mxu0 %v4277
        %5772 = vmatpush.bf16.msra.mxu0 %v4273
        %5773 = vmatmul.bf16.gmra.mxu0 %v3601
        %v5774 = vpop.f32.mrf.mxu0
        %v5775 = vadd.f32 %v5686, %v5774
        %v5776 = vpop.f32.mrf.mxu0
        %v5777 = vadd.f32 %v5688, %v5776
        %5778 = vmatmul.bf16.gmra.mxu0 %v3605
        %v5779 = vpop.f32.mrf.mxu0
        %v5780 = vadd.f32 %v5691, %v5779
        %v5781 = vpop.f32.mrf.mxu0
        %v5782 = vadd.f32 %v5693, %v5781
        %5783 = vmatmul.bf16.gmra.mxu0 %v3609
        %v5784 = vpop.f32.mrf.mxu0
        %v5785 = vadd.f32 %v5696, %v5784
        %v5786 = vpop.f32.mrf.mxu0
        %v5787 = vadd.f32 %v5698, %v5786
        %5788 = vmatmul.bf16.gmra.mxu0 %v3613
        %v5789 = vpop.f32.mrf.mxu0
        %v5790 = vadd.f32 %v5701, %v5789
        %v5791 = vpop.f32.mrf.mxu0
        %v5792 = vadd.f32 %v5703, %v5791
        %5793 = vmatmul.bf16.gmra.mxu0 %v3617
        %v5794 = vpop.f32.mrf.mxu0
        %v5795 = vadd.f32 %v5706, %v5794
        %v5796 = vpop.f32.mrf.mxu0
        %v5797 = vadd.f32 %v5708, %v5796
        %5798 = vmatmul.bf16.gmra.mxu0 %v3621
        %v5799 = vpop.f32.mrf.mxu0
        %v5800 = vadd.f32 %v5711, %v5799
        %v5801 = vpop.f32.mrf.mxu0
        %v5802 = vadd.f32 %v5713, %v5801
        %5803 = vmatmul.bf16.gmra.mxu0 %v3625
        %v5804 = vpop.f32.mrf.mxu0
        %v5805 = vadd.f32 %v5716, %v5804
        %v5806 = vpop.f32.mrf.mxu0
        %v5807 = vadd.f32 %v5718, %v5806
        %5808 = vmatmul.bf16.gmra.mxu0 %v3629
        %v5809 = vpop.f32.mrf.mxu0
        %v5810 = vadd.f32 %v5721, %v5809
        %v5811 = vpop.f32.mrf.mxu0
        %v5812 = vadd.f32 %v5723, %v5811
        %5813 = vmatmul.bf16.gmra.mxu0 %v3633
        %v5814 = vpop.f32.mrf.mxu0
        %v5815 = vadd.f32 %v5726, %v5814
        %v5816 = vpop.f32.mrf.mxu0
        %v5817 = vadd.f32 %v5728, %v5816
        %5818 = vmatmul.bf16.gmra.mxu0 %v3637
        %v5819 = vpop.f32.mrf.mxu0
        %v5820 = vadd.f32 %v5731, %v5819
        %v5821 = vpop.f32.mrf.mxu0
        %v5822 = vadd.f32 %v5733, %v5821
        %5823 = vmatmul.bf16.gmra.mxu0 %v3641
        %v5824 = vpop.f32.mrf.mxu0
        %v5825 = vadd.f32 %v5736, %v5824
        %v5826 = vpop.f32.mrf.mxu0
        %v5827 = vadd.f32 %v5738, %v5826
        %5828 = vmatmul.bf16.gmra.mxu0 %v3645
        %v5829 = vpop.f32.mrf.mxu0
        %v5830 = vadd.f32 %v5741, %v5829
        %v5831 = vpop.f32.mrf.mxu0
        %v5832 = vadd.f32 %v5743, %v5831
        %5833 = vmatmul.bf16.gmra.mxu0 %v3649
        %v5834 = vpop.f32.mrf.mxu0
        %v5835 = vadd.f32 %v5746, %v5834
        %v5836 = vpop.f32.mrf.mxu0
        %v5837 = vadd.f32 %v5748, %v5836
        %5838 = vmatmul.bf16.gmra.mxu0 %v3653
        %v5839 = vpop.f32.mrf.mxu0
        %v5840 = vadd.f32 %v5751, %v5839
        %v5841 = vpop.f32.mrf.mxu0
        %v5842 = vadd.f32 %v5753, %v5841
        %5843 = vmatmul.bf16.gmra.mxu0 %v3657
        %v5844 = vpop.f32.mrf.mxu0
        %v5845 = vadd.f32 %v5756, %v5844
        %v5846 = vpop.f32.mrf.mxu0
        %v5847 = vadd.f32 %v5758, %v5846
        %5848 = vmatmul.bf16.gmra.mxu0 %v3661
        %v5849 = vpop.f32.mrf.mxu0
        %v5850 = vadd.f32 %v5761, %v5849
        %v5851 = vpop.f32.mrf.mxu0
        %v5852 = vadd.f32 %v5763, %v5851
        %5853 = vdwg.mxu0
        %v5854 = vmax.f32 %v4707, 0.0
        %v5855 = vmax.f32 %v5063, 0.0
        %v5856 = vmax.f32 %v5419, 0.0
        %v5857 = vmax.f32 %v5775, 0.0
        %v5858 = vmax.f32 %v4709, 0.0
        %v5859 = vmax.f32 %v5065, 0.0
        %v5860 = vmax.f32 %v5421, 0.0
        %v5861 = vmax.f32 %v5777, 0.0
        %v5862 = vmax.f32 %v4712, 0.0
        %v5863 = vmax.f32 %v5068, 0.0
        %v5864 = vmax.f32 %v5424, 0.0
        %v5865 = vmax.f32 %v5780, 0.0
        %v5866 = vmax.f32 %v4714, 0.0
        %v5867 = vmax.f32 %v5070, 0.0
        %v5868 = vmax.f32 %v5426, 0.0
        %v5869 = vmax.f32 %v5782, 0.0
        %v5870 = vmax.f32 %v4717, 0.0
        %v5871 = vmax.f32 %v5073, 0.0
        %v5872 = vmax.f32 %v5429, 0.0
        %v5873 = vmax.f32 %v5785, 0.0
        %v5874 = vmax.f32 %v4719, 0.0
        %v5875 = vmax.f32 %v5075, 0.0
        %v5876 = vmax.f32 %v5431, 0.0
        %v5877 = vmax.f32 %v5787, 0.0
        %v5878 = vmax.f32 %v4722, 0.0
        %v5879 = vmax.f32 %v5078, 0.0
        %v5880 = vmax.f32 %v5434, 0.0
        %v5881 = vmax.f32 %v5790, 0.0
        %v5882 = vmax.f32 %v4724, 0.0
        %v5883 = vmax.f32 %v5080, 0.0
        %v5884 = vmax.f32 %v5436, 0.0
        %v5885 = vmax.f32 %v5792, 0.0
        %v5886 = vmax.f32 %v4727, 0.0
        %v5887 = vmax.f32 %v5083, 0.0
        %v5888 = vmax.f32 %v5439, 0.0
        %v5889 = vmax.f32 %v5795, 0.0
        %v5890 = vmax.f32 %v4729, 0.0
        %v5891 = vmax.f32 %v5085, 0.0
        %v5892 = vmax.f32 %v5441, 0.0
        %v5893 = vmax.f32 %v5797, 0.0
        %v5894 = vmax.f32 %v4732, 0.0
        %v5895 = vmax.f32 %v5088, 0.0
        %v5896 = vmax.f32 %v5444, 0.0
        %v5897 = vmax.f32 %v5800, 0.0
        %v5898 = vmax.f32 %v4734, 0.0
        %v5899 = vmax.f32 %v5090, 0.0
        %v5900 = vmax.f32 %v5446, 0.0
        %v5901 = vmax.f32 %v5802, 0.0
        %v5902 = vmax.f32 %v4737, 0.0
        %v5903 = vmax.f32 %v5093, 0.0
        %v5904 = vmax.f32 %v5449, 0.0
        %v5905 = vmax.f32 %v5805, 0.0
        %v5906 = vmax.f32 %v4739, 0.0
        %v5907 = vmax.f32 %v5095, 0.0
        %v5908 = vmax.f32 %v5451, 0.0
        %v5909 = vmax.f32 %v5807, 0.0
        %v5910 = vmax.f32 %v4742, 0.0
        %v5911 = vmax.f32 %v5098, 0.0
        %v5912 = vmax.f32 %v5454, 0.0
        %v5913 = vmax.f32 %v5810, 0.0
        %v5914 = vmax.f32 %v4744, 0.0
        %v5915 = vmax.f32 %v5100, 0.0
        %v5916 = vmax.f32 %v5456, 0.0
        %v5917 = vmax.f32 %v5812, 0.0
        %v5918 = vmax.f32 %v4747, 0.0
        %v5919 = vmax.f32 %v5103, 0.0
        %v5920 = vmax.f32 %v5459, 0.0
        %v5921 = vmax.f32 %v5815, 0.0
        %v5922 = vmax.f32 %v4749, 0.0
        %v5923 = vmax.f32 %v5105, 0.0
        %v5924 = vmax.f32 %v5461, 0.0
        %v5925 = vmax.f32 %v5817, 0.0
        %v5926 = vmax.f32 %v4752, 0.0
        %v5927 = vmax.f32 %v5108, 0.0
        %v5928 = vmax.f32 %v5464, 0.0
        %v5929 = vmax.f32 %v5820, 0.0
        %v5930 = vmax.f32 %v4754, 0.0
        %v5931 = vmax.f32 %v5110, 0.0
        %v5932 = vmax.f32 %v5466, 0.0
        %v5933 = vmax.f32 %v5822, 0.0
        %v5934 = vmax.f32 %v4757, 0.0
        %v5935 = vmax.f32 %v5113, 0.0
        %v5936 = vmax.f32 %v5469, 0.0
        %v5937 = vmax.f32 %v5825, 0.0
        %v5938 = vmax.f32 %v4759, 0.0
        %v5939 = vmax.f32 %v5115, 0.0
        %v5940 = vmax.f32 %v5471, 0.0
        %v5941 = vmax.f32 %v5827, 0.0
        %v5942 = vmax.f32 %v4762, 0.0
        %v5943 = vmax.f32 %v5118, 0.0
        %v5944 = vmax.f32 %v5474, 0.0
        %v5945 = vmax.f32 %v5830, 0.0
        %v5946 = vmax.f32 %v4764, 0.0
        %v5947 = vmax.f32 %v5120, 0.0
        %v5948 = vmax.f32 %v5476, 0.0
        %v5949 = vmax.f32 %v5832, 0.0
        %v5950 = vmax.f32 %v4767, 0.0
        %v5951 = vmax.f32 %v5123, 0.0
        %v5952 = vmax.f32 %v5479, 0.0
        %v5953 = vmax.f32 %v5835, 0.0
        %v5954 = vmax.f32 %v4769, 0.0
        %v5955 = vmax.f32 %v5125, 0.0
        %v5956 = vmax.f32 %v5481, 0.0
        %v5957 = vmax.f32 %v5837, 0.0
        %v5958 = vmax.f32 %v4772, 0.0
        %v5959 = vmax.f32 %v5128, 0.0
        %v5960 = vmax.f32 %v5484, 0.0
        %v5961 = vmax.f32 %v5840, 0.0
        %v5962 = vmax.f32 %v4774, 0.0
        %v5963 = vmax.f32 %v5130, 0.0
        %v5964 = vmax.f32 %v5486, 0.0
        %v5965 = vmax.f32 %v5842, 0.0
        %v5966 = vmax.f32 %v4777, 0.0
        %v5967 = vmax.f32 %v5133, 0.0
        %v5968 = vmax.f32 %v5489, 0.0
        %v5969 = vmax.f32 %v5845, 0.0
        %v5970 = vmax.f32 %v4779, 0.0
        %v5971 = vmax.f32 %v5135, 0.0
        %v5972 = vmax.f32 %v5491, 0.0
        %v5973 = vmax.f32 %v5847, 0.0
        %v5974 = vmax.f32 %v4782, 0.0
        %v5975 = vmax.f32 %v5138, 0.0
        %v5976 = vmax.f32 %v5494, 0.0
        %v5977 = vmax.f32 %v5850, 0.0
        %v5978 = vmax.f32 %v4784, 0.0
        %v5979 = vmax.f32 %v5140, 0.0
        %v5980 = vmax.f32 %v5496, 0.0
        %v5981 = vmax.f32 %v5852, 0.0
        %v5982 = vpack.c.bf16 %v5858, %v5854
        %v5983 = vpack.c.bf16 %v5859, %v5855
        %v5984 = vpack.c.bf16 %v5860, %v5856
        %v5985 = vpack.c.bf16 %v5861, %v5857
        %v5986 = vpack.c.bf16 %v5866, %v5862
        %v5987 = vpack.c.bf16 %v5867, %v5863
        %v5988 = vpack.c.bf16 %v5868, %v5864
        %v5989 = vpack.c.bf16 %v5869, %v5865
        %v5990 = vpack.c.bf16 %v5874, %v5870
        %v5991 = vpack.c.bf16 %v5875, %v5871
        %v5992 = vpack.c.bf16 %v5876, %v5872
        %v5993 = vpack.c.bf16 %v5877, %v5873
        %v5994 = vpack.c.bf16 %v5882, %v5878
        %v5995 = vpack.c.bf16 %v5883, %v5879
        %v5996 = vpack.c.bf16 %v5884, %v5880
        %v5997 = vpack.c.bf16 %v5885, %v5881
        %v5998 = vpack.c.bf16 %v5890, %v5886
        %v5999 = vpack.c.bf16 %v5891, %v5887
        %v6000 = vpack.c.bf16 %v5892, %v5888
        %v6001 = vpack.c.bf16 %v5893, %v5889
        %v6002 = vpack.c.bf16 %v5898, %v5894
        %v6003 = vpack.c.bf16 %v5899, %v5895
        %v6004 = vpack.c.bf16 %v5900, %v5896
        %v6005 = vpack.c.bf16 %v5901, %v5897
        %v6006 = vpack.c.bf16 %v5906, %v5902
        %v6007 = vpack.c.bf16 %v5907, %v5903
        %v6008 = vpack.c.bf16 %v5908, %v5904
        %v6009 = vpack.c.bf16 %v5909, %v5905
        %v6010 = vpack.c.bf16 %v5914, %v5910
        %v6011 = vpack.c.bf16 %v5915, %v5911
        %v6012 = vpack.c.bf16 %v5916, %v5912
        %v6013 = vpack.c.bf16 %v5917, %v5913
        %v6014 = vpack.c.bf16 %v5922, %v5918
        %v6015 = vpack.c.bf16 %v5923, %v5919
        %v6016 = vpack.c.bf16 %v5924, %v5920
        %v6017 = vpack.c.bf16 %v5925, %v5921
        %v6018 = vpack.c.bf16 %v5930, %v5926
        %v6019 = vpack.c.bf16 %v5931, %v5927
        %v6020 = vpack.c.bf16 %v5932, %v5928
        %v6021 = vpack.c.bf16 %v5933, %v5929
        %v6022 = vpack.c.bf16 %v5938, %v5934
        %v6023 = vpack.c.bf16 %v5939, %v5935
        %v6024 = vpack.c.bf16 %v5940, %v5936
        %v6025 = vpack.c.bf16 %v5941, %v5937
        %v6026 = vpack.c.bf16 %v5946, %v5942
        %v6027 = vpack.c.bf16 %v5947, %v5943
        %v6028 = vpack.c.bf16 %v5948, %v5944
        %v6029 = vpack.c.bf16 %v5949, %v5945
        %v6030 = vpack.c.bf16 %v5954, %v5950
        %v6031 = vpack.c.bf16 %v5955, %v5951
        %v6032 = vpack.c.bf16 %v5956, %v5952
        %v6033 = vpack.c.bf16 %v5957, %v5953
        %v6034 = vpack.c.bf16 %v5962, %v5958
        %v6035 = vpack.c.bf16 %v5963, %v5959
        %v6036 = vpack.c.bf16 %v5964, %v5960
        %v6037 = vpack.c.bf16 %v5965, %v5961
        %v6038 = vpack.c.bf16 %v5970, %v5966
        %v6039 = vpack.c.bf16 %v5971, %v5967
        %v6040 = vpack.c.bf16 %v5972, %v5968
        %v6041 = vpack.c.bf16 %v5973, %v5969
        %v6042 = vpack.c.bf16 %v5978, %v5974
        %v6043 = vpack.c.bf16 %v5979, %v5975
        %v6044 = vpack.c.bf16 %v5980, %v5976
        %v6045 = vpack.c.bf16 %v5981, %v5977
        %v6046 = vld [vmem:[#allocation12] sm:$0xff]
        %v6047 = vld [vmem:[#allocation12 + $0x8] sm:$0xff]
        %v6048 = vld [vmem:[#allocation12 + $0x10] sm:$0xff]
        %v6049 = vld [vmem:[#allocation12 + $0x18] sm:$0xff]
        %v6050 = vld [vmem:[#allocation12 + $0x20] sm:$0xff]
        %v6051 = vld [vmem:[#allocation12 + $0x28] sm:$0xff]
        %v6052 = vld [vmem:[#allocation12 + $0x30] sm:$0xff]
        %v6053 = vld [vmem:[#allocation12 + $0x38] sm:$0xff]
        %v6054 = vld [vmem:[#allocation12 + $0x40] sm:$0xff]
        %v6055 = vld [vmem:[#allocation12 + $0x48] sm:$0xff]
        %v6056 = vld [vmem:[#allocation12 + $0x50] sm:$0xff]
        %v6057 = vld [vmem:[#allocation12 + $0x58] sm:$0xff]
        %v6058 = vld [vmem:[#allocation12 + $0x60] sm:$0xff]
        %v6059 = vld [vmem:[#allocation12 + $0x68] sm:$0xff]
        %v6060 = vld [vmem:[#allocation12 + $0x70] sm:$0xff]
        %v6061 = vld [vmem:[#allocation12 + $0x78] sm:$0xff]
        %v6062 = vld [vmem:[#allocation12 + $0x80] sm:$0xff]
        %v6063 = vld [vmem:[#allocation12 + $0x88] sm:$0xff]
        %v6064 = vld [vmem:[#allocation12 + $0x90] sm:$0xff]
        %v6065 = vld [vmem:[#allocation12 + $0x98] sm:$0xff]
        %v6066 = vld [vmem:[#allocation12 + $0xa0] sm:$0xff]
        %v6067 = vld [vmem:[#allocation12 + $0xa8] sm:$0xff]
        %v6068 = vld [vmem:[#allocation12 + $0xb0] sm:$0xff]
        %v6069 = vld [vmem:[#allocation12 + $0xb8] sm:$0xff]
        %v6070 = vld [vmem:[#allocation12 + $0xc0] sm:$0xff]
        %v6071 = vld [vmem:[#allocation12 + $0xc8] sm:$0xff]
        %v6072 = vld [vmem:[#allocation12 + $0xd0] sm:$0xff]
        %v6073 = vld [vmem:[#allocation12 + $0xd8] sm:$0xff]
        %v6074 = vld [vmem:[#allocation12 + $0xe0] sm:$0xff]
        %v6075 = vld [vmem:[#allocation12 + $0xe8] sm:$0xff]
        %v6076 = vld [vmem:[#allocation12 + $0xf0] sm:$0xff]
        %v6077 = vld [vmem:[#allocation12 + $0xf8] sm:$0xff]
        %v6078 = vld [vmem:[#allocation12 + $0x100] sm:$0xff]
        %v6079 = vld [vmem:[#allocation12 + $0x108] sm:$0xff]
        %v6080 = vld [vmem:[#allocation12 + $0x110] sm:$0xff]
        %v6081 = vld [vmem:[#allocation12 + $0x118] sm:$0xff]
        %v6082 = vld [vmem:[#allocation12 + $0x120] sm:$0xff]
        %v6083 = vld [vmem:[#allocation12 + $0x128] sm:$0xff]
        %v6084 = vld [vmem:[#allocation12 + $0x130] sm:$0xff]
        %v6085 = vld [vmem:[#allocation12 + $0x138] sm:$0xff]
        %v6086 = vld [vmem:[#allocation12 + $0x140] sm:$0xff]
        %v6087 = vld [vmem:[#allocation12 + $0x148] sm:$0xff]
        %v6088 = vld [vmem:[#allocation12 + $0x150] sm:$0xff]
        %v6089 = vld [vmem:[#allocation12 + $0x158] sm:$0xff]
        %v6090 = vld [vmem:[#allocation12 + $0x160] sm:$0xff]
        %v6091 = vld [vmem:[#allocation12 + $0x168] sm:$0xff]
        %v6092 = vld [vmem:[#allocation12 + $0x170] sm:$0xff]
        %v6093 = vld [vmem:[#allocation12 + $0x178] sm:$0xff]
        %v6094 = vld [vmem:[#allocation12 + $0x180] sm:$0xff]
        %v6095 = vld [vmem:[#allocation12 + $0x188] sm:$0xff]
        %v6096 = vld [vmem:[#allocation12 + $0x190] sm:$0xff]
        %v6097 = vld [vmem:[#allocation12 + $0x198] sm:$0xff]
        %v6098 = vld [vmem:[#allocation12 + $0x1a0] sm:$0xff]
        %v6099 = vld [vmem:[#allocation12 + $0x1a8] sm:$0xff]
        %v6100 = vld [vmem:[#allocation12 + $0x1b0] sm:$0xff]
        %v6101 = vld [vmem:[#allocation12 + $0x1b8] sm:$0xff]
        %v6102 = vld [vmem:[#allocation12 + $0x1c0] sm:$0xff]
        %v6103 = vld [vmem:[#allocation12 + $0x1c8] sm:$0xff]
        %v6104 = vld [vmem:[#allocation12 + $0x1d0] sm:$0xff]
        %v6105 = vld [vmem:[#allocation12 + $0x1d8] sm:$0xff]
        %v6106 = vld [vmem:[#allocation12 + $0x1e0] sm:$0xff]
        %v6107 = vld [vmem:[#allocation12 + $0x1e8] sm:$0xff]
        %v6108 = vld [vmem:[#allocation12 + $0x1f0] sm:$0xff]
        %v6109 = vld [vmem:[#allocation12 + $0x1f8] sm:$0xff]
        %v6110 = vld [vmem:[#allocation12 + $0x200] sm:$0xff]
        %v6111 = vld [vmem:[#allocation12 + $0x208] sm:$0xff]
        %v6112 = vld [vmem:[#allocation12 + $0x210] sm:$0xff]
        %v6113 = vld [vmem:[#allocation12 + $0x218] sm:$0xff]
        %v6114 = vld [vmem:[#allocation12 + $0x220] sm:$0xff]
        %v6115 = vld [vmem:[#allocation12 + $0x228] sm:$0xff]
        %v6116 = vld [vmem:[#allocation12 + $0x230] sm:$0xff]
        %v6117 = vld [vmem:[#allocation12 + $0x238] sm:$0xff]
        %v6118 = vld [vmem:[#allocation12 + $0x240] sm:$0xff]
        %v6119 = vld [vmem:[#allocation12 + $0x248] sm:$0xff]
        %v6120 = vld [vmem:[#allocation12 + $0x250] sm:$0xff]
        %v6121 = vld [vmem:[#allocation12 + $0x258] sm:$0xff]
        %v6122 = vld [vmem:[#allocation12 + $0x260] sm:$0xff]
        %v6123 = vld [vmem:[#allocation12 + $0x268] sm:$0xff]
        %v6124 = vld [vmem:[#allocation12 + $0x270] sm:$0xff]
        %v6125 = vld [vmem:[#allocation12 + $0x278] sm:$0xff]
        %v6126 = vld [vmem:[#allocation12 + $0x280] sm:$0xff]
        %v6127 = vld [vmem:[#allocation12 + $0x288] sm:$0xff]
        %v6128 = vld [vmem:[#allocation12 + $0x290] sm:$0xff]
        %v6129 = vld [vmem:[#allocation12 + $0x298] sm:$0xff]
        %v6130 = vld [vmem:[#allocation12 + $0x2a0] sm:$0xff]
        %v6131 = vld [vmem:[#allocation12 + $0x2a8] sm:$0xff]
        %v6132 = vld [vmem:[#allocation12 + $0x2b0] sm:$0xff]
        %v6133 = vld [vmem:[#allocation12 + $0x2b8] sm:$0xff]
        %v6134 = vld [vmem:[#allocation12 + $0x2c0] sm:$0xff]
        %v6135 = vld [vmem:[#allocation12 + $0x2c8] sm:$0xff]
        %v6136 = vld [vmem:[#allocation12 + $0x2d0] sm:$0xff]
        %v6137 = vld [vmem:[#allocation12 + $0x2d8] sm:$0xff]
        %v6138 = vld [vmem:[#allocation12 + $0x2e0] sm:$0xff]
        %v6139 = vld [vmem:[#allocation12 + $0x2e8] sm:$0xff]
        %v6140 = vld [vmem:[#allocation12 + $0x2f0] sm:$0xff]
        %v6141 = vld [vmem:[#allocation12 + $0x2f8] sm:$0xff]
        %v6142 = vld [vmem:[#allocation12 + $0x300] sm:$0xff]
        %v6143 = vld [vmem:[#allocation12 + $0x308] sm:$0xff]
        %v6144 = vld [vmem:[#allocation12 + $0x310] sm:$0xff]
        %v6145 = vld [vmem:[#allocation12 + $0x318] sm:$0xff]
        %v6146 = vld [vmem:[#allocation12 + $0x320] sm:$0xff]
        %v6147 = vld [vmem:[#allocation12 + $0x328] sm:$0xff]
        %v6148 = vld [vmem:[#allocation12 + $0x330] sm:$0xff]
        %v6149 = vld [vmem:[#allocation12 + $0x338] sm:$0xff]
        %v6150 = vld [vmem:[#allocation12 + $0x340] sm:$0xff]
        %v6151 = vld [vmem:[#allocation12 + $0x348] sm:$0xff]
        %v6152 = vld [vmem:[#allocation12 + $0x350] sm:$0xff]
        %v6153 = vld [vmem:[#allocation12 + $0x358] sm:$0xff]
        %v6154 = vld [vmem:[#allocation12 + $0x360] sm:$0xff]
        %v6155 = vld [vmem:[#allocation12 + $0x368] sm:$0xff]
        %v6156 = vld [vmem:[#allocation12 + $0x370] sm:$0xff]
        %v6157 = vld [vmem:[#allocation12 + $0x378] sm:$0xff]
        %v6158 = vld [vmem:[#allocation12 + $0x380] sm:$0xff]
        %v6159 = vld [vmem:[#allocation12 + $0x388] sm:$0xff]
        %v6160 = vld [vmem:[#allocation12 + $0x390] sm:$0xff]
        %v6161 = vld [vmem:[#allocation12 + $0x398] sm:$0xff]
        %v6162 = vld [vmem:[#allocation12 + $0x3a0] sm:$0xff]
        %v6163 = vld [vmem:[#allocation12 + $0x3a8] sm:$0xff]
        %v6164 = vld [vmem:[#allocation12 + $0x3b0] sm:$0xff]
        %v6165 = vld [vmem:[#allocation12 + $0x3b8] sm:$0xff]
        %v6166 = vld [vmem:[#allocation12 + $0x3c0] sm:$0xff]
        %v6167 = vld [vmem:[#allocation12 + $0x3c8] sm:$0xff]
        %v6168 = vld [vmem:[#allocation12 + $0x3d0] sm:$0xff]
        %v6169 = vld [vmem:[#allocation12 + $0x3d8] sm:$0xff]
        %v6170 = vld [vmem:[#allocation12 + $0x3e0] sm:$0xff]
        %v6171 = vld [vmem:[#allocation12 + $0x3e8] sm:$0xff]
        %v6172 = vld [vmem:[#allocation12 + $0x3f0] sm:$0xff]
        %v6173 = vld [vmem:[#allocation12 + $0x3f8] sm:$0xff]
        %v6302 = vunpack.c.l.b16 %v6046
        %v6303 = vunpack.c.h.b16 %v6046
        %v6304 = vunpack.c.l.b16 %v6047
        %v6305 = vunpack.c.h.b16 %v6047
        %v6306 = vunpack.c.l.b16 %v6048
        %v6307 = vunpack.c.h.b16 %v6048
        %v6308 = vunpack.c.l.b16 %v6049
        %v6309 = vunpack.c.h.b16 %v6049
        %v6310 = vunpack.c.l.b16 %v6050
        %v6311 = vunpack.c.h.b16 %v6050
        %v6312 = vunpack.c.l.b16 %v6051
        %v6313 = vunpack.c.h.b16 %v6051
        %v6314 = vunpack.c.l.b16 %v6052
        %v6315 = vunpack.c.h.b16 %v6052
        %v6316 = vunpack.c.l.b16 %v6053
        %v6317 = vunpack.c.h.b16 %v6053
        %v6318 = vunpack.c.l.b16 %v6054
        %v6319 = vunpack.c.h.b16 %v6054
        %v6320 = vunpack.c.l.b16 %v6055
        %v6321 = vunpack.c.h.b16 %v6055
        %v6322 = vunpack.c.l.b16 %v6056
        %v6323 = vunpack.c.h.b16 %v6056
        %v6324 = vunpack.c.l.b16 %v6057
        %v6325 = vunpack.c.h.b16 %v6057
        %v6326 = vunpack.c.l.b16 %v6058
        %v6327 = vunpack.c.h.b16 %v6058
        %v6328 = vunpack.c.l.b16 %v6059
        %v6329 = vunpack.c.h.b16 %v6059
        %v6330 = vunpack.c.l.b16 %v6060
        %v6331 = vunpack.c.h.b16 %v6060
        %v6332 = vunpack.c.l.b16 %v6061
        %v6333 = vunpack.c.h.b16 %v6061
        %v6334 = vunpack.c.l.b16 %v6062
        %v6335 = vunpack.c.h.b16 %v6062
        %v6336 = vunpack.c.l.b16 %v6063
        %v6337 = vunpack.c.h.b16 %v6063
        %v6338 = vunpack.c.l.b16 %v6064
        %v6339 = vunpack.c.h.b16 %v6064
        %v6340 = vunpack.c.l.b16 %v6065
        %v6341 = vunpack.c.h.b16 %v6065
        %v6342 = vunpack.c.l.b16 %v6066
        %v6343 = vunpack.c.h.b16 %v6066
        %v6344 = vunpack.c.l.b16 %v6067
        %v6345 = vunpack.c.h.b16 %v6067
        %v6346 = vunpack.c.l.b16 %v6068
        %v6347 = vunpack.c.h.b16 %v6068
        %v6348 = vunpack.c.l.b16 %v6069
        %v6349 = vunpack.c.h.b16 %v6069
        %v6350 = vunpack.c.l.b16 %v6070
        %v6351 = vunpack.c.h.b16 %v6070
        %v6352 = vunpack.c.l.b16 %v6071
        %v6353 = vunpack.c.h.b16 %v6071
        %v6354 = vunpack.c.l.b16 %v6072
        %v6355 = vunpack.c.h.b16 %v6072
        %v6356 = vunpack.c.l.b16 %v6073
        %v6357 = vunpack.c.h.b16 %v6073
        %v6358 = vunpack.c.l.b16 %v6074
        %v6359 = vunpack.c.h.b16 %v6074
        %v6360 = vunpack.c.l.b16 %v6075
        %v6361 = vunpack.c.h.b16 %v6075
        %v6362 = vunpack.c.l.b16 %v6076
        %v6363 = vunpack.c.h.b16 %v6076
        %v6364 = vunpack.c.l.b16 %v6077
        %v6365 = vunpack.c.h.b16 %v6077
        %v6366 = vunpack.c.l.b16 %v6078
        %v6367 = vunpack.c.h.b16 %v6078
        %v6368 = vunpack.c.l.b16 %v6079
        %v6369 = vunpack.c.h.b16 %v6079
        %v6370 = vunpack.c.l.b16 %v6080
        %v6371 = vunpack.c.h.b16 %v6080
        %v6372 = vunpack.c.l.b16 %v6081
        %v6373 = vunpack.c.h.b16 %v6081
        %v6374 = vunpack.c.l.b16 %v6082
        %v6375 = vunpack.c.h.b16 %v6082
        %v6376 = vunpack.c.l.b16 %v6083
        %v6377 = vunpack.c.h.b16 %v6083
        %v6378 = vunpack.c.l.b16 %v6084
        %v6379 = vunpack.c.h.b16 %v6084
        %v6380 = vunpack.c.l.b16 %v6085
        %v6381 = vunpack.c.h.b16 %v6085
        %v6382 = vunpack.c.l.b16 %v6086
        %v6383 = vunpack.c.h.b16 %v6086
        %v6384 = vunpack.c.l.b16 %v6087
        %v6385 = vunpack.c.h.b16 %v6087
        %v6386 = vunpack.c.l.b16 %v6088
        %v6387 = vunpack.c.h.b16 %v6088
        %v6388 = vunpack.c.l.b16 %v6089
        %v6389 = vunpack.c.h.b16 %v6089
        %v6390 = vunpack.c.l.b16 %v6090
        %v6391 = vunpack.c.h.b16 %v6090
        %v6392 = vunpack.c.l.b16 %v6091
        %v6393 = vunpack.c.h.b16 %v6091
        %v6394 = vunpack.c.l.b16 %v6092
        %v6395 = vunpack.c.h.b16 %v6092
        %v6396 = vunpack.c.l.b16 %v6093
        %v6397 = vunpack.c.h.b16 %v6093
        %v6398 = vunpack.c.l.b16 %v6094
        %v6399 = vunpack.c.h.b16 %v6094
        %v6400 = vunpack.c.l.b16 %v6095
        %v6401 = vunpack.c.h.b16 %v6095
        %v6402 = vunpack.c.l.b16 %v6096
        %v6403 = vunpack.c.h.b16 %v6096
        %v6404 = vunpack.c.l.b16 %v6097
        %v6405 = vunpack.c.h.b16 %v6097
        %v6406 = vunpack.c.l.b16 %v6098
        %v6407 = vunpack.c.h.b16 %v6098
        %v6408 = vunpack.c.l.b16 %v6099
        %v6409 = vunpack.c.h.b16 %v6099
        %v6410 = vunpack.c.l.b16 %v6100
        %v6411 = vunpack.c.h.b16 %v6100
        %v6412 = vunpack.c.l.b16 %v6101
        %v6413 = vunpack.c.h.b16 %v6101
        %v6414 = vunpack.c.l.b16 %v6102
        %v6415 = vunpack.c.h.b16 %v6102
        %v6416 = vunpack.c.l.b16 %v6103
        %v6417 = vunpack.c.h.b16 %v6103
        %v6418 = vunpack.c.l.b16 %v6104
        %v6419 = vunpack.c.h.b16 %v6104
        %v6420 = vunpack.c.l.b16 %v6105
        %v6421 = vunpack.c.h.b16 %v6105
        %v6422 = vunpack.c.l.b16 %v6106
        %v6423 = vunpack.c.h.b16 %v6106
        %v6424 = vunpack.c.l.b16 %v6107
        %v6425 = vunpack.c.h.b16 %v6107
        %v6426 = vunpack.c.l.b16 %v6108
        %v6427 = vunpack.c.h.b16 %v6108
        %v6428 = vunpack.c.l.b16 %v6109
        %v6429 = vunpack.c.h.b16 %v6109
        %v6430 = vunpack.c.l.b16 %v6110
        %v6431 = vunpack.c.h.b16 %v6110
        %v6432 = vunpack.c.l.b16 %v6111
        %v6433 = vunpack.c.h.b16 %v6111
        %v6434 = vunpack.c.l.b16 %v6112
        %v6435 = vunpack.c.h.b16 %v6112
        %v6436 = vunpack.c.l.b16 %v6113
        %v6437 = vunpack.c.h.b16 %v6113
        %v6438 = vunpack.c.l.b16 %v6114
        %v6439 = vunpack.c.h.b16 %v6114
        %v6440 = vunpack.c.l.b16 %v6115
        %v6441 = vunpack.c.h.b16 %v6115
        %v6442 = vunpack.c.l.b16 %v6116
        %v6443 = vunpack.c.h.b16 %v6116
        %v6444 = vunpack.c.l.b16 %v6117
        %v6445 = vunpack.c.h.b16 %v6117
        %v6446 = vunpack.c.l.b16 %v6118
        %v6447 = vunpack.c.h.b16 %v6118
        %v6448 = vunpack.c.l.b16 %v6119
        %v6449 = vunpack.c.h.b16 %v6119
        %v6450 = vunpack.c.l.b16 %v6120
        %v6451 = vunpack.c.h.b16 %v6120
        %v6452 = vunpack.c.l.b16 %v6121
        %v6453 = vunpack.c.h.b16 %v6121
        %v6454 = vunpack.c.l.b16 %v6122
        %v6455 = vunpack.c.h.b16 %v6122
        %v6456 = vunpack.c.l.b16 %v6123
        %v6457 = vunpack.c.h.b16 %v6123
        %v6458 = vunpack.c.l.b16 %v6124
        %v6459 = vunpack.c.h.b16 %v6124
        %v6460 = vunpack.c.l.b16 %v6125
        %v6461 = vunpack.c.h.b16 %v6125
        %v6462 = vunpack.c.l.b16 %v6126
        %v6463 = vunpack.c.h.b16 %v6126
        %v6464 = vunpack.c.l.b16 %v6127
        %v6465 = vunpack.c.h.b16 %v6127
        %v6466 = vunpack.c.l.b16 %v6128
        %v6467 = vunpack.c.h.b16 %v6128
        %v6468 = vunpack.c.l.b16 %v6129
        %v6469 = vunpack.c.h.b16 %v6129
        %v6470 = vunpack.c.l.b16 %v6130
        %v6471 = vunpack.c.h.b16 %v6130
        %v6472 = vunpack.c.l.b16 %v6131
        %v6473 = vunpack.c.h.b16 %v6131
        %v6474 = vunpack.c.l.b16 %v6132
        %v6475 = vunpack.c.h.b16 %v6132
        %v6476 = vunpack.c.l.b16 %v6133
        %v6477 = vunpack.c.h.b16 %v6133
        %v6478 = vunpack.c.l.b16 %v6134
        %v6479 = vunpack.c.h.b16 %v6134
        %v6480 = vunpack.c.l.b16 %v6135
        %v6481 = vunpack.c.h.b16 %v6135
        %v6482 = vunpack.c.l.b16 %v6136
        %v6483 = vunpack.c.h.b16 %v6136
        %v6484 = vunpack.c.l.b16 %v6137
        %v6485 = vunpack.c.h.b16 %v6137
        %v6486 = vunpack.c.l.b16 %v6138
        %v6487 = vunpack.c.h.b16 %v6138
        %v6488 = vunpack.c.l.b16 %v6139
        %v6489 = vunpack.c.h.b16 %v6139
        %v6490 = vunpack.c.l.b16 %v6140
        %v6491 = vunpack.c.h.b16 %v6140
        %v6492 = vunpack.c.l.b16 %v6141
        %v6493 = vunpack.c.h.b16 %v6141
        %v6494 = vunpack.c.l.b16 %v6142
        %v6495 = vunpack.c.h.b16 %v6142
        %v6496 = vunpack.c.l.b16 %v6143
        %v6497 = vunpack.c.h.b16 %v6143
        %v6498 = vunpack.c.l.b16 %v6144
        %v6499 = vunpack.c.h.b16 %v6144
        %v6500 = vunpack.c.l.b16 %v6145
        %v6501 = vunpack.c.h.b16 %v6145
        %v6502 = vunpack.c.l.b16 %v6146
        %v6503 = vunpack.c.h.b16 %v6146
        %v6504 = vunpack.c.l.b16 %v6147
        %v6505 = vunpack.c.h.b16 %v6147
        %v6506 = vunpack.c.l.b16 %v6148
        %v6507 = vunpack.c.h.b16 %v6148
        %v6508 = vunpack.c.l.b16 %v6149
        %v6509 = vunpack.c.h.b16 %v6149
        %v6510 = vunpack.c.l.b16 %v6150
        %v6511 = vunpack.c.h.b16 %v6150
        %v6512 = vunpack.c.l.b16 %v6151
        %v6513 = vunpack.c.h.b16 %v6151
        %v6514 = vunpack.c.l.b16 %v6152
        %v6515 = vunpack.c.h.b16 %v6152
        %v6516 = vunpack.c.l.b16 %v6153
        %v6517 = vunpack.c.h.b16 %v6153
        %v6518 = vunpack.c.l.b16 %v6154
        %v6519 = vunpack.c.h.b16 %v6154
        %v6520 = vunpack.c.l.b16 %v6155
        %v6521 = vunpack.c.h.b16 %v6155
        %v6522 = vunpack.c.l.b16 %v6156
        %v6523 = vunpack.c.h.b16 %v6156
        %v6524 = vunpack.c.l.b16 %v6157
        %v6525 = vunpack.c.h.b16 %v6157
        %v6526 = vunpack.c.l.b16 %v6158
        %v6527 = vunpack.c.h.b16 %v6158
        %v6528 = vunpack.c.l.b16 %v6159
        %v6529 = vunpack.c.h.b16 %v6159
        %v6530 = vunpack.c.l.b16 %v6160
        %v6531 = vunpack.c.h.b16 %v6160
        %v6532 = vunpack.c.l.b16 %v6161
        %v6533 = vunpack.c.h.b16 %v6161
        %v6534 = vunpack.c.l.b16 %v6162
        %v6535 = vunpack.c.h.b16 %v6162
        %v6536 = vunpack.c.l.b16 %v6163
        %v6537 = vunpack.c.h.b16 %v6163
        %v6538 = vunpack.c.l.b16 %v6164
        %v6539 = vunpack.c.h.b16 %v6164
        %v6540 = vunpack.c.l.b16 %v6165
        %v6541 = vunpack.c.h.b16 %v6165
        %v6542 = vunpack.c.l.b16 %v6166
        %v6543 = vunpack.c.h.b16 %v6166
        %v6544 = vunpack.c.l.b16 %v6167
        %v6545 = vunpack.c.h.b16 %v6167
        %v6546 = vunpack.c.l.b16 %v6168
        %v6547 = vunpack.c.h.b16 %v6168
        %v6548 = vunpack.c.l.b16 %v6169
        %v6549 = vunpack.c.h.b16 %v6169
        %v6550 = vunpack.c.l.b16 %v6170
        %v6551 = vunpack.c.h.b16 %v6170
        %v6552 = vunpack.c.l.b16 %v6171
        %v6553 = vunpack.c.h.b16 %v6171
        %v6554 = vunpack.c.l.b16 %v6172
        %v6555 = vunpack.c.h.b16 %v6172
        %v6556 = vunpack.c.l.b16 %v6173
        %v6557 = vunpack.c.h.b16 %v6173
        %v6558 = vpack.c.b16 %v6306, %v6302
        %v6559 = vpack.c.b16 %v6307, %v6303
        %v6560 = vpack.c.b16 %v6308, %v6304
        %v6561 = vpack.c.b16 %v6309, %v6305
        %v6562 = vpack.c.b16 %v6314, %v6310
        %v6563 = vpack.c.b16 %v6315, %v6311
        %v6564 = vpack.c.b16 %v6316, %v6312
        %v6565 = vpack.c.b16 %v6317, %v6313
        %v6566 = vpack.c.b16 %v6322, %v6318
        %v6567 = vpack.c.b16 %v6323, %v6319
        %v6568 = vpack.c.b16 %v6324, %v6320
        %v6569 = vpack.c.b16 %v6325, %v6321
        %v6570 = vpack.c.b16 %v6330, %v6326
        %v6571 = vpack.c.b16 %v6331, %v6327
        %v6572 = vpack.c.b16 %v6332, %v6328
        %v6573 = vpack.c.b16 %v6333, %v6329
        %v6574 = vpack.c.b16 %v6338, %v6334
        %v6575 = vpack.c.b16 %v6339, %v6335
        %v6576 = vpack.c.b16 %v6340, %v6336
        %v6577 = vpack.c.b16 %v6341, %v6337
        %v6578 = vpack.c.b16 %v6346, %v6342
        %v6579 = vpack.c.b16 %v6347, %v6343
        %v6580 = vpack.c.b16 %v6348, %v6344
        %v6581 = vpack.c.b16 %v6349, %v6345
        %v6582 = vpack.c.b16 %v6354, %v6350
        %v6583 = vpack.c.b16 %v6355, %v6351
        %v6584 = vpack.c.b16 %v6356, %v6352
        %v6585 = vpack.c.b16 %v6357, %v6353
        %v6586 = vpack.c.b16 %v6362, %v6358
        %v6587 = vpack.c.b16 %v6363, %v6359
        %v6588 = vpack.c.b16 %v6364, %v6360
        %v6589 = vpack.c.b16 %v6365, %v6361
        %v6590 = vpack.c.b16 %v6370, %v6366
        %v6591 = vpack.c.b16 %v6371, %v6367
        %v6592 = vpack.c.b16 %v6372, %v6368
        %v6593 = vpack.c.b16 %v6373, %v6369
        %v6594 = vpack.c.b16 %v6378, %v6374
        %v6595 = vpack.c.b16 %v6379, %v6375
        %v6596 = vpack.c.b16 %v6380, %v6376
        %v6597 = vpack.c.b16 %v6381, %v6377
        %v6598 = vpack.c.b16 %v6386, %v6382
        %v6599 = vpack.c.b16 %v6387, %v6383
        %v6600 = vpack.c.b16 %v6388, %v6384
        %v6601 = vpack.c.b16 %v6389, %v6385
        %v6602 = vpack.c.b16 %v6394, %v6390
        %v6603 = vpack.c.b16 %v6395, %v6391
        %v6604 = vpack.c.b16 %v6396, %v6392
        %v6605 = vpack.c.b16 %v6397, %v6393
        %v6606 = vpack.c.b16 %v6402, %v6398
        %v6607 = vpack.c.b16 %v6403, %v6399
        %v6608 = vpack.c.b16 %v6404, %v6400
        %v6609 = vpack.c.b16 %v6405, %v6401
        %v6610 = vpack.c.b16 %v6410, %v6406
        %v6611 = vpack.c.b16 %v6411, %v6407
        %v6612 = vpack.c.b16 %v6412, %v6408
        %v6613 = vpack.c.b16 %v6413, %v6409
        %v6614 = vpack.c.b16 %v6418, %v6414
        %v6615 = vpack.c.b16 %v6419, %v6415
        %v6616 = vpack.c.b16 %v6420, %v6416
        %v6617 = vpack.c.b16 %v6421, %v6417
        %v6618 = vpack.c.b16 %v6426, %v6422
        %v6619 = vpack.c.b16 %v6427, %v6423
        %v6620 = vpack.c.b16 %v6428, %v6424
        %v6621 = vpack.c.b16 %v6429, %v6425
        %v6622 = vpack.c.b16 %v6434, %v6430
        %v6623 = vpack.c.b16 %v6435, %v6431
        %v6624 = vpack.c.b16 %v6436, %v6432
        %v6625 = vpack.c.b16 %v6437, %v6433
        %v6626 = vpack.c.b16 %v6442, %v6438
        %v6627 = vpack.c.b16 %v6443, %v6439
        %v6628 = vpack.c.b16 %v6444, %v6440
        %v6629 = vpack.c.b16 %v6445, %v6441
        %v6630 = vpack.c.b16 %v6450, %v6446
        %v6631 = vpack.c.b16 %v6451, %v6447
        %v6632 = vpack.c.b16 %v6452, %v6448
        %v6633 = vpack.c.b16 %v6453, %v6449
        %v6634 = vpack.c.b16 %v6458, %v6454
        %v6635 = vpack.c.b16 %v6459, %v6455
        %v6636 = vpack.c.b16 %v6460, %v6456
        %v6637 = vpack.c.b16 %v6461, %v6457
        %v6638 = vpack.c.b16 %v6466, %v6462
        %v6639 = vpack.c.b16 %v6467, %v6463
        %v6640 = vpack.c.b16 %v6468, %v6464
        %v6641 = vpack.c.b16 %v6469, %v6465
        %v6642 = vpack.c.b16 %v6474, %v6470
        %v6643 = vpack.c.b16 %v6475, %v6471
        %v6644 = vpack.c.b16 %v6476, %v6472
        %v6645 = vpack.c.b16 %v6477, %v6473
        %v6646 = vpack.c.b16 %v6482, %v6478
        %v6647 = vpack.c.b16 %v6483, %v6479
        %v6648 = vpack.c.b16 %v6484, %v6480
        %v6649 = vpack.c.b16 %v6485, %v6481
        %v6650 = vpack.c.b16 %v6490, %v6486
        %v6651 = vpack.c.b16 %v6491, %v6487
        %v6652 = vpack.c.b16 %v6492, %v6488
        %v6653 = vpack.c.b16 %v6493, %v6489
        %v6654 = vpack.c.b16 %v6498, %v6494
        %v6655 = vpack.c.b16 %v6499, %v6495
        %v6656 = vpack.c.b16 %v6500, %v6496
        %v6657 = vpack.c.b16 %v6501, %v6497
        %v6658 = vpack.c.b16 %v6506, %v6502
        %v6659 = vpack.c.b16 %v6507, %v6503
        %v6660 = vpack.c.b16 %v6508, %v6504
        %v6661 = vpack.c.b16 %v6509, %v6505
        %v6662 = vpack.c.b16 %v6514, %v6510
        %v6663 = vpack.c.b16 %v6515, %v6511
        %v6664 = vpack.c.b16 %v6516, %v6512
        %v6665 = vpack.c.b16 %v6517, %v6513
        %v6666 = vpack.c.b16 %v6522, %v6518
        %v6667 = vpack.c.b16 %v6523, %v6519
        %v6668 = vpack.c.b16 %v6524, %v6520
        %v6669 = vpack.c.b16 %v6525, %v6521
        %v6670 = vpack.c.b16 %v6530, %v6526
        %v6671 = vpack.c.b16 %v6531, %v6527
        %v6672 = vpack.c.b16 %v6532, %v6528
        %v6673 = vpack.c.b16 %v6533, %v6529
        %v6674 = vpack.c.b16 %v6538, %v6534
        %v6675 = vpack.c.b16 %v6539, %v6535
        %v6676 = vpack.c.b16 %v6540, %v6536
        %v6677 = vpack.c.b16 %v6541, %v6537
        %v6678 = vpack.c.b16 %v6546, %v6542
        %v6679 = vpack.c.b16 %v6547, %v6543
        %v6680 = vpack.c.b16 %v6548, %v6544
        %v6681 = vpack.c.b16 %v6549, %v6545
        %v6682 = vpack.c.b16 %v6554, %v6550
        %v6683 = vpack.c.b16 %v6555, %v6551
        %v6684 = vpack.c.b16 %v6556, %v6552
        %v6685 = vpack.c.b16 %v6557, %v6553
        %6814 = vmatpush.bf16.msra.mxu0 %v6586
        %6815 = vmatpush.bf16.msra.mxu0 %v6582
        %6816 = vmatpush.bf16.msra.mxu0 %v6578
        %6817 = vmatpush.bf16.msra.mxu0 %v6574
        %6818 = vmatpush.bf16.msra.mxu0 %v6570
        %6819 = vmatpush.bf16.msra.mxu0 %v6566
        %6820 = vmatpush.bf16.msra.mxu0 %v6562
        %6821 = vmatpush.bf16.msra.mxu0 %v6558
        %6822 = vmatmul.bf16.gmra.mxu0 %v5982
        %v6823 = vpop.f32.mrf.mxu0
        %v6824 = vadd.f32 0.0, %v6823
        %v6825 = vpop.f32.mrf.mxu0
        %v6826 = vadd.f32 0.0, %v6825
        %6827 = vmatmul.bf16.gmra.mxu0 %v5986
        %v6828 = vpop.f32.mrf.mxu0
        %v6829 = vadd.f32 0.0, %v6828
        %v6830 = vpop.f32.mrf.mxu0
        %v6831 = vadd.f32 0.0, %v6830
        %6832 = vmatmul.bf16.gmra.mxu0 %v5990
        %v6833 = vpop.f32.mrf.mxu0
        %v6834 = vadd.f32 0.0, %v6833
        %v6835 = vpop.f32.mrf.mxu0
        %v6836 = vadd.f32 0.0, %v6835
        %6837 = vmatmul.bf16.gmra.mxu0 %v5994
        %v6838 = vpop.f32.mrf.mxu0
        %v6839 = vadd.f32 0.0, %v6838
        %v6840 = vpop.f32.mrf.mxu0
        %v6841 = vadd.f32 0.0, %v6840
        %6842 = vmatmul.bf16.gmra.mxu0 %v5998
        %v6843 = vpop.f32.mrf.mxu0
        %v6844 = vadd.f32 0.0, %v6843
        %v6845 = vpop.f32.mrf.mxu0
        %v6846 = vadd.f32 0.0, %v6845
        %6847 = vmatmul.bf16.gmra.mxu0 %v6002
        %v6848 = vpop.f32.mrf.mxu0
        %v6849 = vadd.f32 0.0, %v6848
        %v6850 = vpop.f32.mrf.mxu0
        %v6851 = vadd.f32 0.0, %v6850
        %6852 = vmatmul.bf16.gmra.mxu0 %v6006
        %v6853 = vpop.f32.mrf.mxu0
        %v6854 = vadd.f32 0.0, %v6853
        %v6855 = vpop.f32.mrf.mxu0
        %v6856 = vadd.f32 0.0, %v6855
        %6857 = vmatmul.bf16.gmra.mxu0 %v6010
        %v6858 = vpop.f32.mrf.mxu0
        %v6859 = vadd.f32 0.0, %v6858
        %v6860 = vpop.f32.mrf.mxu0
        %v6861 = vadd.f32 0.0, %v6860
        %6862 = vmatmul.bf16.gmra.mxu0 %v6014
        %v6863 = vpop.f32.mrf.mxu0
        %v6864 = vadd.f32 0.0, %v6863
        %v6865 = vpop.f32.mrf.mxu0
        %v6866 = vadd.f32 0.0, %v6865
        %6867 = vmatmul.bf16.gmra.mxu0 %v6018
        %v6868 = vpop.f32.mrf.mxu0
        %v6869 = vadd.f32 0.0, %v6868
        %v6870 = vpop.f32.mrf.mxu0
        %v6871 = vadd.f32 0.0, %v6870
        %6872 = vmatmul.bf16.gmra.mxu0 %v6022
        %v6873 = vpop.f32.mrf.mxu0
        %v6874 = vadd.f32 0.0, %v6873
        %v6875 = vpop.f32.mrf.mxu0
        %v6876 = vadd.f32 0.0, %v6875
        %6877 = vmatmul.bf16.gmra.mxu0 %v6026
        %v6878 = vpop.f32.mrf.mxu0
        %v6879 = vadd.f32 0.0, %v6878
        %v6880 = vpop.f32.mrf.mxu0
        %v6881 = vadd.f32 0.0, %v6880
        %6882 = vmatmul.bf16.gmra.mxu0 %v6030
        %v6883 = vpop.f32.mrf.mxu0
        %v6884 = vadd.f32 0.0, %v6883
        %v6885 = vpop.f32.mrf.mxu0
        %v6886 = vadd.f32 0.0, %v6885
        %6887 = vmatmul.bf16.gmra.mxu0 %v6034
        %v6888 = vpop.f32.mrf.mxu0
        %v6889 = vadd.f32 0.0, %v6888
        %v6890 = vpop.f32.mrf.mxu0
        %v6891 = vadd.f32 0.0, %v6890
        %6892 = vmatmul.bf16.gmra.mxu0 %v6038
        %v6893 = vpop.f32.mrf.mxu0
        %v6894 = vadd.f32 0.0, %v6893
        %v6895 = vpop.f32.mrf.mxu0
        %v6896 = vadd.f32 0.0, %v6895
        %6897 = vmatmul.bf16.gmra.mxu0 %v6042
        %v6898 = vpop.f32.mrf.mxu0
        %v6899 = vadd.f32 0.0, %v6898
        %v6900 = vpop.f32.mrf.mxu0
        %v6901 = vadd.f32 0.0, %v6900
        %6902 = vdwg.mxu0
        %6903 = vmatpush.bf16.msra.mxu0 %v6618
        %6904 = vmatpush.bf16.msra.mxu0 %v6614
        %6905 = vmatpush.bf16.msra.mxu0 %v6610
        %6906 = vmatpush.bf16.msra.mxu0 %v6606
        %6907 = vmatpush.bf16.msra.mxu0 %v6602
        %6908 = vmatpush.bf16.msra.mxu0 %v6598
        %6909 = vmatpush.bf16.msra.mxu0 %v6594
        %6910 = vmatpush.bf16.msra.mxu0 %v6590
        %6911 = vmatmul.bf16.gmra.mxu0 %v5983
        %v6912 = vpop.f32.mrf.mxu0
        %v6913 = vadd.f32 %v6824, %v6912
        %v6914 = vpop.f32.mrf.mxu0
        %v6915 = vadd.f32 %v6826, %v6914
        %6916 = vmatmul.bf16.gmra.mxu0 %v5987
        %v6917 = vpop.f32.mrf.mxu0
        %v6918 = vadd.f32 %v6829, %v6917
        %v6919 = vpop.f32.mrf.mxu0
        %v6920 = vadd.f32 %v6831, %v6919
        %6921 = vmatmul.bf16.gmra.mxu0 %v5991
        %v6922 = vpop.f32.mrf.mxu0
        %v6923 = vadd.f32 %v6834, %v6922
        %v6924 = vpop.f32.mrf.mxu0
        %v6925 = vadd.f32 %v6836, %v6924
        %6926 = vmatmul.bf16.gmra.mxu0 %v5995
        %v6927 = vpop.f32.mrf.mxu0
        %v6928 = vadd.f32 %v6839, %v6927
        %v6929 = vpop.f32.mrf.mxu0
        %v6930 = vadd.f32 %v6841, %v6929
        %6931 = vmatmul.bf16.gmra.mxu0 %v5999
        %v6932 = vpop.f32.mrf.mxu0
        %v6933 = vadd.f32 %v6844, %v6932
        %v6934 = vpop.f32.mrf.mxu0
        %v6935 = vadd.f32 %v6846, %v6934
        %6936 = vmatmul.bf16.gmra.mxu0 %v6003
        %v6937 = vpop.f32.mrf.mxu0
        %v6938 = vadd.f32 %v6849, %v6937
        %v6939 = vpop.f32.mrf.mxu0
        %v6940 = vadd.f32 %v6851, %v6939
        %6941 = vmatmul.bf16.gmra.mxu0 %v6007
        %v6942 = vpop.f32.mrf.mxu0
        %v6943 = vadd.f32 %v6854, %v6942
        %v6944 = vpop.f32.mrf.mxu0
        %v6945 = vadd.f32 %v6856, %v6944
        %6946 = vmatmul.bf16.gmra.mxu0 %v6011
        %v6947 = vpop.f32.mrf.mxu0
        %v6948 = vadd.f32 %v6859, %v6947
        %v6949 = vpop.f32.mrf.mxu0
        %v6950 = vadd.f32 %v6861, %v6949
        %6951 = vmatmul.bf16.gmra.mxu0 %v6015
        %v6952 = vpop.f32.mrf.mxu0
        %v6953 = vadd.f32 %v6864, %v6952
        %v6954 = vpop.f32.mrf.mxu0
        %v6955 = vadd.f32 %v6866, %v6954
        %6956 = vmatmul.bf16.gmra.mxu0 %v6019
        %v6957 = vpop.f32.mrf.mxu0
        %v6958 = vadd.f32 %v6869, %v6957
        %v6959 = vpop.f32.mrf.mxu0
        %v6960 = vadd.f32 %v6871, %v6959
        %6961 = vmatmul.bf16.gmra.mxu0 %v6023
        %v6962 = vpop.f32.mrf.mxu0
        %v6963 = vadd.f32 %v6874, %v6962
        %v6964 = vpop.f32.mrf.mxu0
        %v6965 = vadd.f32 %v6876, %v6964
        %6966 = vmatmul.bf16.gmra.mxu0 %v6027
        %v6967 = vpop.f32.mrf.mxu0
        %v6968 = vadd.f32 %v6879, %v6967
        %v6969 = vpop.f32.mrf.mxu0
        %v6970 = vadd.f32 %v6881, %v6969
        %6971 = vmatmul.bf16.gmra.mxu0 %v6031
        %v6972 = vpop.f32.mrf.mxu0
        %v6973 = vadd.f32 %v6884, %v6972
        %v6974 = vpop.f32.mrf.mxu0
        %v6975 = vadd.f32 %v6886, %v6974
        %6976 = vmatmul.bf16.gmra.mxu0 %v6035
        %v6977 = vpop.f32.mrf.mxu0
        %v6978 = vadd.f32 %v6889, %v6977
        %v6979 = vpop.f32.mrf.mxu0
        %v6980 = vadd.f32 %v6891, %v6979
        %6981 = vmatmul.bf16.gmra.mxu0 %v6039
        %v6982 = vpop.f32.mrf.mxu0
        %v6983 = vadd.f32 %v6894, %v6982
        %v6984 = vpop.f32.mrf.mxu0
        %v6985 = vadd.f32 %v6896, %v6984
        %6986 = vmatmul.bf16.gmra.mxu0 %v6043
        %v6987 = vpop.f32.mrf.mxu0
        %v6988 = vadd.f32 %v6899, %v6987
        %v6989 = vpop.f32.mrf.mxu0
        %v6990 = vadd.f32 %v6901, %v6989
        %6991 = vdwg.mxu0
        %6992 = vmatpush.bf16.msra.mxu0 %v6650
        %6993 = vmatpush.bf16.msra.mxu0 %v6646
        %6994 = vmatpush.bf16.msra.mxu0 %v6642
        %6995 = vmatpush.bf16.msra.mxu0 %v6638
        %6996 = vmatpush.bf16.msra.mxu0 %v6634
        %6997 = vmatpush.bf16.msra.mxu0 %v6630
        %6998 = vmatpush.bf16.msra.mxu0 %v6626
        %6999 = vmatpush.bf16.msra.mxu0 %v6622
        %7000 = vmatmul.bf16.gmra.mxu0 %v5984
        %v7001 = vpop.f32.mrf.mxu0
        %v7002 = vadd.f32 %v6913, %v7001
        %v7003 = vpop.f32.mrf.mxu0
        %v7004 = vadd.f32 %v6915, %v7003
        %7005 = vmatmul.bf16.gmra.mxu0 %v5988
        %v7006 = vpop.f32.mrf.mxu0
        %v7007 = vadd.f32 %v6918, %v7006
        %v7008 = vpop.f32.mrf.mxu0
        %v7009 = vadd.f32 %v6920, %v7008
        %7010 = vmatmul.bf16.gmra.mxu0 %v5992
        %v7011 = vpop.f32.mrf.mxu0
        %v7012 = vadd.f32 %v6923, %v7011
        %v7013 = vpop.f32.mrf.mxu0
        %v7014 = vadd.f32 %v6925, %v7013
        %7015 = vmatmul.bf16.gmra.mxu0 %v5996
        %v7016 = vpop.f32.mrf.mxu0
        %v7017 = vadd.f32 %v6928, %v7016
        %v7018 = vpop.f32.mrf.mxu0
        %v7019 = vadd.f32 %v6930, %v7018
        %7020 = vmatmul.bf16.gmra.mxu0 %v6000
        %v7021 = vpop.f32.mrf.mxu0
        %v7022 = vadd.f32 %v6933, %v7021
        %v7023 = vpop.f32.mrf.mxu0
        %v7024 = vadd.f32 %v6935, %v7023
        %7025 = vmatmul.bf16.gmra.mxu0 %v6004
        %v7026 = vpop.f32.mrf.mxu0
        %v7027 = vadd.f32 %v6938, %v7026
        %v7028 = vpop.f32.mrf.mxu0
        %v7029 = vadd.f32 %v6940, %v7028
        %7030 = vmatmul.bf16.gmra.mxu0 %v6008
        %v7031 = vpop.f32.mrf.mxu0
        %v7032 = vadd.f32 %v6943, %v7031
        %v7033 = vpop.f32.mrf.mxu0
        %v7034 = vadd.f32 %v6945, %v7033
        %7035 = vmatmul.bf16.gmra.mxu0 %v6012
        %v7036 = vpop.f32.mrf.mxu0
        %v7037 = vadd.f32 %v6948, %v7036
        %v7038 = vpop.f32.mrf.mxu0
        %v7039 = vadd.f32 %v6950, %v7038
        %7040 = vmatmul.bf16.gmra.mxu0 %v6016
        %v7041 = vpop.f32.mrf.mxu0
        %v7042 = vadd.f32 %v6953, %v7041
        %v7043 = vpop.f32.mrf.mxu0
        %v7044 = vadd.f32 %v6955, %v7043
        %7045 = vmatmul.bf16.gmra.mxu0 %v6020
        %v7046 = vpop.f32.mrf.mxu0
        %v7047 = vadd.f32 %v6958, %v7046
        %v7048 = vpop.f32.mrf.mxu0
        %v7049 = vadd.f32 %v6960, %v7048
        %7050 = vmatmul.bf16.gmra.mxu0 %v6024
        %v7051 = vpop.f32.mrf.mxu0
        %v7052 = vadd.f32 %v6963, %v7051
        %v7053 = vpop.f32.mrf.mxu0
        %v7054 = vadd.f32 %v6965, %v7053
        %7055 = vmatmul.bf16.gmra.mxu0 %v6028
        %v7056 = vpop.f32.mrf.mxu0
        %v7057 = vadd.f32 %v6968, %v7056
        %v7058 = vpop.f32.mrf.mxu0
        %v7059 = vadd.f32 %v6970, %v7058
        %7060 = vmatmul.bf16.gmra.mxu0 %v6032
        %v7061 = vpop.f32.mrf.mxu0
        %v7062 = vadd.f32 %v6973, %v7061
        %v7063 = vpop.f32.mrf.mxu0
        %v7064 = vadd.f32 %v6975, %v7063
        %7065 = vmatmul.bf16.gmra.mxu0 %v6036
        %v7066 = vpop.f32.mrf.mxu0
        %v7067 = vadd.f32 %v6978, %v7066
        %v7068 = vpop.f32.mrf.mxu0
        %v7069 = vadd.f32 %v6980, %v7068
        %7070 = vmatmul.bf16.gmra.mxu0 %v6040
        %v7071 = vpop.f32.mrf.mxu0
        %v7072 = vadd.f32 %v6983, %v7071
        %v7073 = vpop.f32.mrf.mxu0
        %v7074 = vadd.f32 %v6985, %v7073
        %7075 = vmatmul.bf16.gmra.mxu0 %v6044
        %v7076 = vpop.f32.mrf.mxu0
        %v7077 = vadd.f32 %v6988, %v7076
        %v7078 = vpop.f32.mrf.mxu0
        %v7079 = vadd.f32 %v6990, %v7078
        %7080 = vdwg.mxu0
        %7081 = vmatpush.bf16.msra.mxu0 %v6682
        %7082 = vmatpush.bf16.msra.mxu0 %v6678
        %7083 = vmatpush.bf16.msra.mxu0 %v6674
        %7084 = vmatpush.bf16.msra.mxu0 %v6670
        %7085 = vmatpush.bf16.msra.mxu0 %v6666
        %7086 = vmatpush.bf16.msra.mxu0 %v6662
        %7087 = vmatpush.bf16.msra.mxu0 %v6658
        %7088 = vmatpush.bf16.msra.mxu0 %v6654
        %7089 = vmatmul.bf16.gmra.mxu0 %v5985
        %v7090 = vpop.f32.mrf.mxu0
        %v7091 = vadd.f32 %v7002, %v7090
        %v7092 = vpop.f32.mrf.mxu0
        %v7093 = vadd.f32 %v7004, %v7092
        %7094 = vmatmul.bf16.gmra.mxu0 %v5989
        %v7095 = vpop.f32.mrf.mxu0
        %v7096 = vadd.f32 %v7007, %v7095
        %v7097 = vpop.f32.mrf.mxu0
        %v7098 = vadd.f32 %v7009, %v7097
        %7099 = vmatmul.bf16.gmra.mxu0 %v5993
        %v7100 = vpop.f32.mrf.mxu0
        %v7101 = vadd.f32 %v7012, %v7100
        %v7102 = vpop.f32.mrf.mxu0
        %v7103 = vadd.f32 %v7014, %v7102
        %7104 = vmatmul.bf16.gmra.mxu0 %v5997
        %v7105 = vpop.f32.mrf.mxu0
        %v7106 = vadd.f32 %v7017, %v7105
        %v7107 = vpop.f32.mrf.mxu0
        %v7108 = vadd.f32 %v7019, %v7107
        %7109 = vmatmul.bf16.gmra.mxu0 %v6001
        %v7110 = vpop.f32.mrf.mxu0
        %v7111 = vadd.f32 %v7022, %v7110
        %v7112 = vpop.f32.mrf.mxu0
        %v7113 = vadd.f32 %v7024, %v7112
        %7114 = vmatmul.bf16.gmra.mxu0 %v6005
        %v7115 = vpop.f32.mrf.mxu0
        %v7116 = vadd.f32 %v7027, %v7115
        %v7117 = vpop.f32.mrf.mxu0
        %v7118 = vadd.f32 %v7029, %v7117
        %7119 = vmatmul.bf16.gmra.mxu0 %v6009
        %v7120 = vpop.f32.mrf.mxu0
        %v7121 = vadd.f32 %v7032, %v7120
        %v7122 = vpop.f32.mrf.mxu0
        %v7123 = vadd.f32 %v7034, %v7122
        %7124 = vmatmul.bf16.gmra.mxu0 %v6013
        %v7125 = vpop.f32.mrf.mxu0
        %v7126 = vadd.f32 %v7037, %v7125
        %v7127 = vpop.f32.mrf.mxu0
        %v7128 = vadd.f32 %v7039, %v7127
        %7129 = vmatmul.bf16.gmra.mxu0 %v6017
        %v7130 = vpop.f32.mrf.mxu0
        %v7131 = vadd.f32 %v7042, %v7130
        %v7132 = vpop.f32.mrf.mxu0
        %v7133 = vadd.f32 %v7044, %v7132
        %7134 = vmatmul.bf16.gmra.mxu0 %v6021
        %v7135 = vpop.f32.mrf.mxu0
        %v7136 = vadd.f32 %v7047, %v7135
        %v7137 = vpop.f32.mrf.mxu0
        %v7138 = vadd.f32 %v7049, %v7137
        %7139 = vmatmul.bf16.gmra.mxu0 %v6025
        %v7140 = vpop.f32.mrf.mxu0
        %v7141 = vadd.f32 %v7052, %v7140
        %v7142 = vpop.f32.mrf.mxu0
        %v7143 = vadd.f32 %v7054, %v7142
        %7144 = vmatmul.bf16.gmra.mxu0 %v6029
        %v7145 = vpop.f32.mrf.mxu0
        %v7146 = vadd.f32 %v7057, %v7145
        %v7147 = vpop.f32.mrf.mxu0
        %v7148 = vadd.f32 %v7059, %v7147
        %7149 = vmatmul.bf16.gmra.mxu0 %v6033
        %v7150 = vpop.f32.mrf.mxu0
        %v7151 = vadd.f32 %v7062, %v7150
        %v7152 = vpop.f32.mrf.mxu0
        %v7153 = vadd.f32 %v7064, %v7152
        %7154 = vmatmul.bf16.gmra.mxu0 %v6037
        %v7155 = vpop.f32.mrf.mxu0
        %v7156 = vadd.f32 %v7067, %v7155
        %v7157 = vpop.f32.mrf.mxu0
        %v7158 = vadd.f32 %v7069, %v7157
        %7159 = vmatmul.bf16.gmra.mxu0 %v6041
        %v7160 = vpop.f32.mrf.mxu0
        %v7161 = vadd.f32 %v7072, %v7160
        %v7162 = vpop.f32.mrf.mxu0
        %v7163 = vadd.f32 %v7074, %v7162
        %7164 = vmatmul.bf16.gmra.mxu0 %v6045
        %v7165 = vpop.f32.mrf.mxu0
        %v7166 = vadd.f32 %v7077, %v7165
        %v7167 = vpop.f32.mrf.mxu0
        %v7168 = vadd.f32 %v7079, %v7167
        %7169 = vdwg.mxu0
        %7170 = vmatpush.bf16.msra.mxu0 %v6587
        %7171 = vmatpush.bf16.msra.mxu0 %v6583
        %7172 = vmatpush.bf16.msra.mxu0 %v6579
        %7173 = vmatpush.bf16.msra.mxu0 %v6575
        %7174 = vmatpush.bf16.msra.mxu0 %v6571
        %7175 = vmatpush.bf16.msra.mxu0 %v6567
        %7176 = vmatpush.bf16.msra.mxu0 %v6563
        %7177 = vmatpush.bf16.msra.mxu0 %v6559
        %7178 = vmatmul.bf16.gmra.mxu0 %v5982
        %v7179 = vpop.f32.mrf.mxu0
        %v7180 = vadd.f32 0.0, %v7179
        %v7181 = vpop.f32.mrf.mxu0
        %v7182 = vadd.f32 0.0, %v7181
        %7183 = vmatmul.bf16.gmra.mxu0 %v5986
        %v7184 = vpop.f32.mrf.mxu0
        %v7185 = vadd.f32 0.0, %v7184
        %v7186 = vpop.f32.mrf.mxu0
        %v7187 = vadd.f32 0.0, %v7186
        %7188 = vmatmul.bf16.gmra.mxu0 %v5990
        %v7189 = vpop.f32.mrf.mxu0
        %v7190 = vadd.f32 0.0, %v7189
        %v7191 = vpop.f32.mrf.mxu0
        %v7192 = vadd.f32 0.0, %v7191
        %7193 = vmatmul.bf16.gmra.mxu0 %v5994
        %v7194 = vpop.f32.mrf.mxu0
        %v7195 = vadd.f32 0.0, %v7194
        %v7196 = vpop.f32.mrf.mxu0
        %v7197 = vadd.f32 0.0, %v7196
        %7198 = vmatmul.bf16.gmra.mxu0 %v5998
        %v7199 = vpop.f32.mrf.mxu0
        %v7200 = vadd.f32 0.0, %v7199
        %v7201 = vpop.f32.mrf.mxu0
        %v7202 = vadd.f32 0.0, %v7201
        %7203 = vmatmul.bf16.gmra.mxu0 %v6002
        %v7204 = vpop.f32.mrf.mxu0
        %v7205 = vadd.f32 0.0, %v7204
        %v7206 = vpop.f32.mrf.mxu0
        %v7207 = vadd.f32 0.0, %v7206
        %7208 = vmatmul.bf16.gmra.mxu0 %v6006
        %v7209 = vpop.f32.mrf.mxu0
        %v7210 = vadd.f32 0.0, %v7209
        %v7211 = vpop.f32.mrf.mxu0
        %v7212 = vadd.f32 0.0, %v7211
        %7213 = vmatmul.bf16.gmra.mxu0 %v6010
        %v7214 = vpop.f32.mrf.mxu0
        %v7215 = vadd.f32 0.0, %v7214
        %v7216 = vpop.f32.mrf.mxu0
        %v7217 = vadd.f32 0.0, %v7216
        %7218 = vmatmul.bf16.gmra.mxu0 %v6014
        %v7219 = vpop.f32.mrf.mxu0
        %v7220 = vadd.f32 0.0, %v7219
        %v7221 = vpop.f32.mrf.mxu0
        %v7222 = vadd.f32 0.0, %v7221
        %7223 = vmatmul.bf16.gmra.mxu0 %v6018
        %v7224 = vpop.f32.mrf.mxu0
        %v7225 = vadd.f32 0.0, %v7224
        %v7226 = vpop.f32.mrf.mxu0
        %v7227 = vadd.f32 0.0, %v7226
        %7228 = vmatmul.bf16.gmra.mxu0 %v6022
        %v7229 = vpop.f32.mrf.mxu0
        %v7230 = vadd.f32 0.0, %v7229
        %v7231 = vpop.f32.mrf.mxu0
        %v7232 = vadd.f32 0.0, %v7231
        %7233 = vmatmul.bf16.gmra.mxu0 %v6026
        %v7234 = vpop.f32.mrf.mxu0
        %v7235 = vadd.f32 0.0, %v7234
        %v7236 = vpop.f32.mrf.mxu0
        %v7237 = vadd.f32 0.0, %v7236
        %7238 = vmatmul.bf16.gmra.mxu0 %v6030
        %v7239 = vpop.f32.mrf.mxu0
        %v7240 = vadd.f32 0.0, %v7239
        %v7241 = vpop.f32.mrf.mxu0
        %v7242 = vadd.f32 0.0, %v7241
        %7243 = vmatmul.bf16.gmra.mxu0 %v6034
        %v7244 = vpop.f32.mrf.mxu0
        %v7245 = vadd.f32 0.0, %v7244
        %v7246 = vpop.f32.mrf.mxu0
        %v7247 = vadd.f32 0.0, %v7246
        %7248 = vmatmul.bf16.gmra.mxu0 %v6038
        %v7249 = vpop.f32.mrf.mxu0
        %v7250 = vadd.f32 0.0, %v7249
        %v7251 = vpop.f32.mrf.mxu0
        %v7252 = vadd.f32 0.0, %v7251
        %7253 = vmatmul.bf16.gmra.mxu0 %v6042
        %v7254 = vpop.f32.mrf.mxu0
        %v7255 = vadd.f32 0.0, %v7254
        %v7256 = vpop.f32.mrf.mxu0
        %v7257 = vadd.f32 0.0, %v7256
        %7258 = vdwg.mxu0
        %7259 = vmatpush.bf16.msra.mxu0 %v6619
        %7260 = vmatpush.bf16.msra.mxu0 %v6615
        %7261 = vmatpush.bf16.msra.mxu0 %v6611
        %7262 = vmatpush.bf16.msra.mxu0 %v6607
        %7263 = vmatpush.bf16.msra.mxu0 %v6603
        %7264 = vmatpush.bf16.msra.mxu0 %v6599
        %7265 = vmatpush.bf16.msra.mxu0 %v6595
        %7266 = vmatpush.bf16.msra.mxu0 %v6591
        %7267 = vmatmul.bf16.gmra.mxu0 %v5983
        %v7268 = vpop.f32.mrf.mxu0
        %v7269 = vadd.f32 %v7180, %v7268
        %v7270 = vpop.f32.mrf.mxu0
        %v7271 = vadd.f32 %v7182, %v7270
        %7272 = vmatmul.bf16.gmra.mxu0 %v5987
        %v7273 = vpop.f32.mrf.mxu0
        %v7274 = vadd.f32 %v7185, %v7273
        %v7275 = vpop.f32.mrf.mxu0
        %v7276 = vadd.f32 %v7187, %v7275
        %7277 = vmatmul.bf16.gmra.mxu0 %v5991
        %v7278 = vpop.f32.mrf.mxu0
        %v7279 = vadd.f32 %v7190, %v7278
        %v7280 = vpop.f32.mrf.mxu0
        %v7281 = vadd.f32 %v7192, %v7280
        %7282 = vmatmul.bf16.gmra.mxu0 %v5995
        %v7283 = vpop.f32.mrf.mxu0
        %v7284 = vadd.f32 %v7195, %v7283
        %v7285 = vpop.f32.mrf.mxu0
        %v7286 = vadd.f32 %v7197, %v7285
        %7287 = vmatmul.bf16.gmra.mxu0 %v5999
        %v7288 = vpop.f32.mrf.mxu0
        %v7289 = vadd.f32 %v7200, %v7288
        %v7290 = vpop.f32.mrf.mxu0
        %v7291 = vadd.f32 %v7202, %v7290
        %7292 = vmatmul.bf16.gmra.mxu0 %v6003
        %v7293 = vpop.f32.mrf.mxu0
        %v7294 = vadd.f32 %v7205, %v7293
        %v7295 = vpop.f32.mrf.mxu0
        %v7296 = vadd.f32 %v7207, %v7295
        %7297 = vmatmul.bf16.gmra.mxu0 %v6007
        %v7298 = vpop.f32.mrf.mxu0
        %v7299 = vadd.f32 %v7210, %v7298
        %v7300 = vpop.f32.mrf.mxu0
        %v7301 = vadd.f32 %v7212, %v7300
        %7302 = vmatmul.bf16.gmra.mxu0 %v6011
        %v7303 = vpop.f32.mrf.mxu0
        %v7304 = vadd.f32 %v7215, %v7303
        %v7305 = vpop.f32.mrf.mxu0
        %v7306 = vadd.f32 %v7217, %v7305
        %7307 = vmatmul.bf16.gmra.mxu0 %v6015
        %v7308 = vpop.f32.mrf.mxu0
        %v7309 = vadd.f32 %v7220, %v7308
        %v7310 = vpop.f32.mrf.mxu0
        %v7311 = vadd.f32 %v7222, %v7310
        %7312 = vmatmul.bf16.gmra.mxu0 %v6019
        %v7313 = vpop.f32.mrf.mxu0
        %v7314 = vadd.f32 %v7225, %v7313
        %v7315 = vpop.f32.mrf.mxu0
        %v7316 = vadd.f32 %v7227, %v7315
        %7317 = vmatmul.bf16.gmra.mxu0 %v6023
        %v7318 = vpop.f32.mrf.mxu0
        %v7319 = vadd.f32 %v7230, %v7318
        %v7320 = vpop.f32.mrf.mxu0
        %v7321 = vadd.f32 %v7232, %v7320
        %7322 = vmatmul.bf16.gmra.mxu0 %v6027
        %v7323 = vpop.f32.mrf.mxu0
        %v7324 = vadd.f32 %v7235, %v7323
        %v7325 = vpop.f32.mrf.mxu0
        %v7326 = vadd.f32 %v7237, %v7325
        %7327 = vmatmul.bf16.gmra.mxu0 %v6031
        %v7328 = vpop.f32.mrf.mxu0
        %v7329 = vadd.f32 %v7240, %v7328
        %v7330 = vpop.f32.mrf.mxu0
        %v7331 = vadd.f32 %v7242, %v7330
        %7332 = vmatmul.bf16.gmra.mxu0 %v6035
        %v7333 = vpop.f32.mrf.mxu0
        %v7334 = vadd.f32 %v7245, %v7333
        %v7335 = vpop.f32.mrf.mxu0
        %v7336 = vadd.f32 %v7247, %v7335
        %7337 = vmatmul.bf16.gmra.mxu0 %v6039
        %v7338 = vpop.f32.mrf.mxu0
        %v7339 = vadd.f32 %v7250, %v7338
        %v7340 = vpop.f32.mrf.mxu0
        %v7341 = vadd.f32 %v7252, %v7340
        %7342 = vmatmul.bf16.gmra.mxu0 %v6043
        %v7343 = vpop.f32.mrf.mxu0
        %v7344 = vadd.f32 %v7255, %v7343
        %v7345 = vpop.f32.mrf.mxu0
        %v7346 = vadd.f32 %v7257, %v7345
        %7347 = vdwg.mxu0
        %7348 = vmatpush.bf16.msra.mxu0 %v6651
        %7349 = vmatpush.bf16.msra.mxu0 %v6647
        %7350 = vmatpush.bf16.msra.mxu0 %v6643
        %7351 = vmatpush.bf16.msra.mxu0 %v6639
        %7352 = vmatpush.bf16.msra.mxu0 %v6635
        %7353 = vmatpush.bf16.msra.mxu0 %v6631
        %7354 = vmatpush.bf16.msra.mxu0 %v6627
        %7355 = vmatpush.bf16.msra.mxu0 %v6623
        %7356 = vmatmul.bf16.gmra.mxu0 %v5984
        %v7357 = vpop.f32.mrf.mxu0
        %v7358 = vadd.f32 %v7269, %v7357
        %v7359 = vpop.f32.mrf.mxu0
        %v7360 = vadd.f32 %v7271, %v7359
        %7361 = vmatmul.bf16.gmra.mxu0 %v5988
        %v7362 = vpop.f32.mrf.mxu0
        %v7363 = vadd.f32 %v7274, %v7362
        %v7364 = vpop.f32.mrf.mxu0
        %v7365 = vadd.f32 %v7276, %v7364
        %7366 = vmatmul.bf16.gmra.mxu0 %v5992
        %v7367 = vpop.f32.mrf.mxu0
        %v7368 = vadd.f32 %v7279, %v7367
        %v7369 = vpop.f32.mrf.mxu0
        %v7370 = vadd.f32 %v7281, %v7369
        %7371 = vmatmul.bf16.gmra.mxu0 %v5996
        %v7372 = vpop.f32.mrf.mxu0
        %v7373 = vadd.f32 %v7284, %v7372
        %v7374 = vpop.f32.mrf.mxu0
        %v7375 = vadd.f32 %v7286, %v7374
        %7376 = vmatmul.bf16.gmra.mxu0 %v6000
        %v7377 = vpop.f32.mrf.mxu0
        %v7378 = vadd.f32 %v7289, %v7377
        %v7379 = vpop.f32.mrf.mxu0
        %v7380 = vadd.f32 %v7291, %v7379
        %7381 = vmatmul.bf16.gmra.mxu0 %v6004
        %v7382 = vpop.f32.mrf.mxu0
        %v7383 = vadd.f32 %v7294, %v7382
        %v7384 = vpop.f32.mrf.mxu0
        %v7385 = vadd.f32 %v7296, %v7384
        %7386 = vmatmul.bf16.gmra.mxu0 %v6008
        %v7387 = vpop.f32.mrf.mxu0
        %v7388 = vadd.f32 %v7299, %v7387
        %v7389 = vpop.f32.mrf.mxu0
        %v7390 = vadd.f32 %v7301, %v7389
        %7391 = vmatmul.bf16.gmra.mxu0 %v6012
        %v7392 = vpop.f32.mrf.mxu0
        %v7393 = vadd.f32 %v7304, %v7392
        %v7394 = vpop.f32.mrf.mxu0
        %v7395 = vadd.f32 %v7306, %v7394
        %7396 = vmatmul.bf16.gmra.mxu0 %v6016
        %v7397 = vpop.f32.mrf.mxu0
        %v7398 = vadd.f32 %v7309, %v7397
        %v7399 = vpop.f32.mrf.mxu0
        %v7400 = vadd.f32 %v7311, %v7399
        %7401 = vmatmul.bf16.gmra.mxu0 %v6020
        %v7402 = vpop.f32.mrf.mxu0
        %v7403 = vadd.f32 %v7314, %v7402
        %v7404 = vpop.f32.mrf.mxu0
        %v7405 = vadd.f32 %v7316, %v7404
        %7406 = vmatmul.bf16.gmra.mxu0 %v6024
        %v7407 = vpop.f32.mrf.mxu0
        %v7408 = vadd.f32 %v7319, %v7407
        %v7409 = vpop.f32.mrf.mxu0
        %v7410 = vadd.f32 %v7321, %v7409
        %7411 = vmatmul.bf16.gmra.mxu0 %v6028
        %v7412 = vpop.f32.mrf.mxu0
        %v7413 = vadd.f32 %v7324, %v7412
        %v7414 = vpop.f32.mrf.mxu0
        %v7415 = vadd.f32 %v7326, %v7414
        %7416 = vmatmul.bf16.gmra.mxu0 %v6032
        %v7417 = vpop.f32.mrf.mxu0
        %v7418 = vadd.f32 %v7329, %v7417
        %v7419 = vpop.f32.mrf.mxu0
        %v7420 = vadd.f32 %v7331, %v7419
        %7421 = vmatmul.bf16.gmra.mxu0 %v6036
        %v7422 = vpop.f32.mrf.mxu0
        %v7423 = vadd.f32 %v7334, %v7422
        %v7424 = vpop.f32.mrf.mxu0
        %v7425 = vadd.f32 %v7336, %v7424
        %7426 = vmatmul.bf16.gmra.mxu0 %v6040
        %v7427 = vpop.f32.mrf.mxu0
        %v7428 = vadd.f32 %v7339, %v7427
        %v7429 = vpop.f32.mrf.mxu0
        %v7430 = vadd.f32 %v7341, %v7429
        %7431 = vmatmul.bf16.gmra.mxu0 %v6044
        %v7432 = vpop.f32.mrf.mxu0
        %v7433 = vadd.f32 %v7344, %v7432
        %v7434 = vpop.f32.mrf.mxu0
        %v7435 = vadd.f32 %v7346, %v7434
        %7436 = vdwg.mxu0
        %7437 = vmatpush.bf16.msra.mxu0 %v6683
        %7438 = vmatpush.bf16.msra.mxu0 %v6679
        %7439 = vmatpush.bf16.msra.mxu0 %v6675
        %7440 = vmatpush.bf16.msra.mxu0 %v6671
        %7441 = vmatpush.bf16.msra.mxu0 %v6667
        %7442 = vmatpush.bf16.msra.mxu0 %v6663
        %7443 = vmatpush.bf16.msra.mxu0 %v6659
        %7444 = vmatpush.bf16.msra.mxu0 %v6655
        %7445 = vmatmul.bf16.gmra.mxu0 %v5985
        %v7446 = vpop.f32.mrf.mxu0
        %v7447 = vadd.f32 %v7358, %v7446
        %v7448 = vpop.f32.mrf.mxu0
        %v7449 = vadd.f32 %v7360, %v7448
        %7450 = vmatmul.bf16.gmra.mxu0 %v5989
        %v7451 = vpop.f32.mrf.mxu0
        %v7452 = vadd.f32 %v7363, %v7451
        %v7453 = vpop.f32.mrf.mxu0
        %v7454 = vadd.f32 %v7365, %v7453
        %7455 = vmatmul.bf16.gmra.mxu0 %v5993
        %v7456 = vpop.f32.mrf.mxu0
        %v7457 = vadd.f32 %v7368, %v7456
        %v7458 = vpop.f32.mrf.mxu0
        %v7459 = vadd.f32 %v7370, %v7458
        %7460 = vmatmul.bf16.gmra.mxu0 %v5997
        %v7461 = vpop.f32.mrf.mxu0
        %v7462 = vadd.f32 %v7373, %v7461
        %v7463 = vpop.f32.mrf.mxu0
        %v7464 = vadd.f32 %v7375, %v7463
        %7465 = vmatmul.bf16.gmra.mxu0 %v6001
        %v7466 = vpop.f32.mrf.mxu0
        %v7467 = vadd.f32 %v7378, %v7466
        %v7468 = vpop.f32.mrf.mxu0
        %v7469 = vadd.f32 %v7380, %v7468
        %7470 = vmatmul.bf16.gmra.mxu0 %v6005
        %v7471 = vpop.f32.mrf.mxu0
        %v7472 = vadd.f32 %v7383, %v7471
        %v7473 = vpop.f32.mrf.mxu0
        %v7474 = vadd.f32 %v7385, %v7473
        %7475 = vmatmul.bf16.gmra.mxu0 %v6009
        %v7476 = vpop.f32.mrf.mxu0
        %v7477 = vadd.f32 %v7388, %v7476
        %v7478 = vpop.f32.mrf.mxu0
        %v7479 = vadd.f32 %v7390, %v7478
        %7480 = vmatmul.bf16.gmra.mxu0 %v6013
        %v7481 = vpop.f32.mrf.mxu0
        %v7482 = vadd.f32 %v7393, %v7481
        %v7483 = vpop.f32.mrf.mxu0
        %v7484 = vadd.f32 %v7395, %v7483
        %7485 = vmatmul.bf16.gmra.mxu0 %v6017
        %v7486 = vpop.f32.mrf.mxu0
        %v7487 = vadd.f32 %v7398, %v7486
        %v7488 = vpop.f32.mrf.mxu0
        %v7489 = vadd.f32 %v7400, %v7488
        %7490 = vmatmul.bf16.gmra.mxu0 %v6021
        %v7491 = vpop.f32.mrf.mxu0
        %v7492 = vadd.f32 %v7403, %v7491
        %v7493 = vpop.f32.mrf.mxu0
        %v7494 = vadd.f32 %v7405, %v7493
        %7495 = vmatmul.bf16.gmra.mxu0 %v6025
        %v7496 = vpop.f32.mrf.mxu0
        %v7497 = vadd.f32 %v7408, %v7496
        %v7498 = vpop.f32.mrf.mxu0
        %v7499 = vadd.f32 %v7410, %v7498
        %7500 = vmatmul.bf16.gmra.mxu0 %v6029
        %v7501 = vpop.f32.mrf.mxu0
        %v7502 = vadd.f32 %v7413, %v7501
        %v7503 = vpop.f32.mrf.mxu0
        %v7504 = vadd.f32 %v7415, %v7503
        %7505 = vmatmul.bf16.gmra.mxu0 %v6033
        %v7506 = vpop.f32.mrf.mxu0
        %v7507 = vadd.f32 %v7418, %v7506
        %v7508 = vpop.f32.mrf.mxu0
        %v7509 = vadd.f32 %v7420, %v7508
        %7510 = vmatmul.bf16.gmra.mxu0 %v6037
        %v7511 = vpop.f32.mrf.mxu0
        %v7512 = vadd.f32 %v7423, %v7511
        %v7513 = vpop.f32.mrf.mxu0
        %v7514 = vadd.f32 %v7425, %v7513
        %7515 = vmatmul.bf16.gmra.mxu0 %v6041
        %v7516 = vpop.f32.mrf.mxu0
        %v7517 = vadd.f32 %v7428, %v7516
        %v7518 = vpop.f32.mrf.mxu0
        %v7519 = vadd.f32 %v7430, %v7518
        %7520 = vmatmul.bf16.gmra.mxu0 %v6045
        %v7521 = vpop.f32.mrf.mxu0
        %v7522 = vadd.f32 %v7433, %v7521
        %v7523 = vpop.f32.mrf.mxu0
        %v7524 = vadd.f32 %v7435, %v7523
        %7525 = vdwg.mxu0
        %7526 = vmatpush.bf16.msra.mxu0 %v6588
        %7527 = vmatpush.bf16.msra.mxu0 %v6584
        %7528 = vmatpush.bf16.msra.mxu0 %v6580
        %7529 = vmatpush.bf16.msra.mxu0 %v6576
        %7530 = vmatpush.bf16.msra.mxu0 %v6572
        %7531 = vmatpush.bf16.msra.mxu0 %v6568
        %7532 = vmatpush.bf16.msra.mxu0 %v6564
        %7533 = vmatpush.bf16.msra.mxu0 %v6560
        %7534 = vmatmul.bf16.gmra.mxu0 %v5982
        %v7535 = vpop.f32.mrf.mxu0
        %v7536 = vadd.f32 0.0, %v7535
        %v7537 = vpop.f32.mrf.mxu0
        %v7538 = vadd.f32 0.0, %v7537
        %7539 = vmatmul.bf16.gmra.mxu0 %v5986
        %v7540 = vpop.f32.mrf.mxu0
        %v7541 = vadd.f32 0.0, %v7540
        %v7542 = vpop.f32.mrf.mxu0
        %v7543 = vadd.f32 0.0, %v7542
        %7544 = vmatmul.bf16.gmra.mxu0 %v5990
        %v7545 = vpop.f32.mrf.mxu0
        %v7546 = vadd.f32 0.0, %v7545
        %v7547 = vpop.f32.mrf.mxu0
        %v7548 = vadd.f32 0.0, %v7547
        %7549 = vmatmul.bf16.gmra.mxu0 %v5994
        %v7550 = vpop.f32.mrf.mxu0
        %v7551 = vadd.f32 0.0, %v7550
        %v7552 = vpop.f32.mrf.mxu0
        %v7553 = vadd.f32 0.0, %v7552
        %7554 = vmatmul.bf16.gmra.mxu0 %v5998
        %v7555 = vpop.f32.mrf.mxu0
        %v7556 = vadd.f32 0.0, %v7555
        %v7557 = vpop.f32.mrf.mxu0
        %v7558 = vadd.f32 0.0, %v7557
        %7559 = vmatmul.bf16.gmra.mxu0 %v6002
        %v7560 = vpop.f32.mrf.mxu0
        %v7561 = vadd.f32 0.0, %v7560
        %v7562 = vpop.f32.mrf.mxu0
        %v7563 = vadd.f32 0.0, %v7562
        %7564 = vmatmul.bf16.gmra.mxu0 %v6006
        %v7565 = vpop.f32.mrf.mxu0
        %v7566 = vadd.f32 0.0, %v7565
        %v7567 = vpop.f32.mrf.mxu0
        %v7568 = vadd.f32 0.0, %v7567
        %7569 = vmatmul.bf16.gmra.mxu0 %v6010
        %v7570 = vpop.f32.mrf.mxu0
        %v7571 = vadd.f32 0.0, %v7570
        %v7572 = vpop.f32.mrf.mxu0
        %v7573 = vadd.f32 0.0, %v7572
        %7574 = vmatmul.bf16.gmra.mxu0 %v6014
        %v7575 = vpop.f32.mrf.mxu0
        %v7576 = vadd.f32 0.0, %v7575
        %v7577 = vpop.f32.mrf.mxu0
        %v7578 = vadd.f32 0.0, %v7577
        %7579 = vmatmul.bf16.gmra.mxu0 %v6018
        %v7580 = vpop.f32.mrf.mxu0
        %v7581 = vadd.f32 0.0, %v7580
        %v7582 = vpop.f32.mrf.mxu0
        %v7583 = vadd.f32 0.0, %v7582
        %7584 = vmatmul.bf16.gmra.mxu0 %v6022
        %v7585 = vpop.f32.mrf.mxu0
        %v7586 = vadd.f32 0.0, %v7585
        %v7587 = vpop.f32.mrf.mxu0
        %v7588 = vadd.f32 0.0, %v7587
        %7589 = vmatmul.bf16.gmra.mxu0 %v6026
        %v7590 = vpop.f32.mrf.mxu0
        %v7591 = vadd.f32 0.0, %v7590
        %v7592 = vpop.f32.mrf.mxu0
        %v7593 = vadd.f32 0.0, %v7592
        %7594 = vmatmul.bf16.gmra.mxu0 %v6030
        %v7595 = vpop.f32.mrf.mxu0
        %v7596 = vadd.f32 0.0, %v7595
        %v7597 = vpop.f32.mrf.mxu0
        %v7598 = vadd.f32 0.0, %v7597
        %7599 = vmatmul.bf16.gmra.mxu0 %v6034
        %v7600 = vpop.f32.mrf.mxu0
        %v7601 = vadd.f32 0.0, %v7600
        %v7602 = vpop.f32.mrf.mxu0
        %v7603 = vadd.f32 0.0, %v7602
        %7604 = vmatmul.bf16.gmra.mxu0 %v6038
        %v7605 = vpop.f32.mrf.mxu0
        %v7606 = vadd.f32 0.0, %v7605
        %v7607 = vpop.f32.mrf.mxu0
        %v7608 = vadd.f32 0.0, %v7607
        %7609 = vmatmul.bf16.gmra.mxu0 %v6042
        %v7610 = vpop.f32.mrf.mxu0
        %v7611 = vadd.f32 0.0, %v7610
        %v7612 = vpop.f32.mrf.mxu0
        %v7613 = vadd.f32 0.0, %v7612
        %7614 = vdwg.mxu0
        %7615 = vmatpush.bf16.msra.mxu0 %v6620
        %7616 = vmatpush.bf16.msra.mxu0 %v6616
        %7617 = vmatpush.bf16.msra.mxu0 %v6612
        %7618 = vmatpush.bf16.msra.mxu0 %v6608
        %7619 = vmatpush.bf16.msra.mxu0 %v6604
        %7620 = vmatpush.bf16.msra.mxu0 %v6600
        %7621 = vmatpush.bf16.msra.mxu0 %v6596
        %7622 = vmatpush.bf16.msra.mxu0 %v6592
        %7623 = vmatmul.bf16.gmra.mxu0 %v5983
        %v7624 = vpop.f32.mrf.mxu0
        %v7625 = vadd.f32 %v7536, %v7624
        %v7626 = vpop.f32.mrf.mxu0
        %v7627 = vadd.f32 %v7538, %v7626
        %7628 = vmatmul.bf16.gmra.mxu0 %v5987
        %v7629 = vpop.f32.mrf.mxu0
        %v7630 = vadd.f32 %v7541, %v7629
        %v7631 = vpop.f32.mrf.mxu0
        %v7632 = vadd.f32 %v7543, %v7631
        %7633 = vmatmul.bf16.gmra.mxu0 %v5991
        %v7634 = vpop.f32.mrf.mxu0
        %v7635 = vadd.f32 %v7546, %v7634
        %v7636 = vpop.f32.mrf.mxu0
        %v7637 = vadd.f32 %v7548, %v7636
        %7638 = vmatmul.bf16.gmra.mxu0 %v5995
        %v7639 = vpop.f32.mrf.mxu0
        %v7640 = vadd.f32 %v7551, %v7639
        %v7641 = vpop.f32.mrf.mxu0
        %v7642 = vadd.f32 %v7553, %v7641
        %7643 = vmatmul.bf16.gmra.mxu0 %v5999
        %v7644 = vpop.f32.mrf.mxu0
        %v7645 = vadd.f32 %v7556, %v7644
        %v7646 = vpop.f32.mrf.mxu0
        %v7647 = vadd.f32 %v7558, %v7646
        %7648 = vmatmul.bf16.gmra.mxu0 %v6003
        %v7649 = vpop.f32.mrf.mxu0
        %v7650 = vadd.f32 %v7561, %v7649
        %v7651 = vpop.f32.mrf.mxu0
        %v7652 = vadd.f32 %v7563, %v7651
        %7653 = vmatmul.bf16.gmra.mxu0 %v6007
        %v7654 = vpop.f32.mrf.mxu0
        %v7655 = vadd.f32 %v7566, %v7654
        %v7656 = vpop.f32.mrf.mxu0
        %v7657 = vadd.f32 %v7568, %v7656
        %7658 = vmatmul.bf16.gmra.mxu0 %v6011
        %v7659 = vpop.f32.mrf.mxu0
        %v7660 = vadd.f32 %v7571, %v7659
        %v7661 = vpop.f32.mrf.mxu0
        %v7662 = vadd.f32 %v7573, %v7661
        %7663 = vmatmul.bf16.gmra.mxu0 %v6015
        %v7664 = vpop.f32.mrf.mxu0
        %v7665 = vadd.f32 %v7576, %v7664
        %v7666 = vpop.f32.mrf.mxu0
        %v7667 = vadd.f32 %v7578, %v7666
        %7668 = vmatmul.bf16.gmra.mxu0 %v6019
        %v7669 = vpop.f32.mrf.mxu0
        %v7670 = vadd.f32 %v7581, %v7669
        %v7671 = vpop.f32.mrf.mxu0
        %v7672 = vadd.f32 %v7583, %v7671
        %7673 = vmatmul.bf16.gmra.mxu0 %v6023
        %v7674 = vpop.f32.mrf.mxu0
        %v7675 = vadd.f32 %v7586, %v7674
        %v7676 = vpop.f32.mrf.mxu0
        %v7677 = vadd.f32 %v7588, %v7676
        %7678 = vmatmul.bf16.gmra.mxu0 %v6027
        %v7679 = vpop.f32.mrf.mxu0
        %v7680 = vadd.f32 %v7591, %v7679
        %v7681 = vpop.f32.mrf.mxu0
        %v7682 = vadd.f32 %v7593, %v7681
        %7683 = vmatmul.bf16.gmra.mxu0 %v6031
        %v7684 = vpop.f32.mrf.mxu0
        %v7685 = vadd.f32 %v7596, %v7684
        %v7686 = vpop.f32.mrf.mxu0
        %v7687 = vadd.f32 %v7598, %v7686
        %7688 = vmatmul.bf16.gmra.mxu0 %v6035
        %v7689 = vpop.f32.mrf.mxu0
        %v7690 = vadd.f32 %v7601, %v7689
        %v7691 = vpop.f32.mrf.mxu0
        %v7692 = vadd.f32 %v7603, %v7691
        %7693 = vmatmul.bf16.gmra.mxu0 %v6039
        %v7694 = vpop.f32.mrf.mxu0
        %v7695 = vadd.f32 %v7606, %v7694
        %v7696 = vpop.f32.mrf.mxu0
        %v7697 = vadd.f32 %v7608, %v7696
        %7698 = vmatmul.bf16.gmra.mxu0 %v6043
        %v7699 = vpop.f32.mrf.mxu0
        %v7700 = vadd.f32 %v7611, %v7699
        %v7701 = vpop.f32.mrf.mxu0
        %v7702 = vadd.f32 %v7613, %v7701
        %7703 = vdwg.mxu0
        %7704 = vmatpush.bf16.msra.mxu0 %v6652
        %7705 = vmatpush.bf16.msra.mxu0 %v6648
        %7706 = vmatpush.bf16.msra.mxu0 %v6644
        %7707 = vmatpush.bf16.msra.mxu0 %v6640
        %7708 = vmatpush.bf16.msra.mxu0 %v6636
        %7709 = vmatpush.bf16.msra.mxu0 %v6632
        %7710 = vmatpush.bf16.msra.mxu0 %v6628
        %7711 = vmatpush.bf16.msra.mxu0 %v6624
        %7712 = vmatmul.bf16.gmra.mxu0 %v5984
        %v7713 = vpop.f32.mrf.mxu0
        %v7714 = vadd.f32 %v7625, %v7713
        %v7715 = vpop.f32.mrf.mxu0
        %v7716 = vadd.f32 %v7627, %v7715
        %7717 = vmatmul.bf16.gmra.mxu0 %v5988
        %v7718 = vpop.f32.mrf.mxu0
        %v7719 = vadd.f32 %v7630, %v7718
        %v7720 = vpop.f32.mrf.mxu0
        %v7721 = vadd.f32 %v7632, %v7720
        %7722 = vmatmul.bf16.gmra.mxu0 %v5992
        %v7723 = vpop.f32.mrf.mxu0
        %v7724 = vadd.f32 %v7635, %v7723
        %v7725 = vpop.f32.mrf.mxu0
        %v7726 = vadd.f32 %v7637, %v7725
        %7727 = vmatmul.bf16.gmra.mxu0 %v5996
        %v7728 = vpop.f32.mrf.mxu0
        %v7729 = vadd.f32 %v7640, %v7728
        %v7730 = vpop.f32.mrf.mxu0
        %v7731 = vadd.f32 %v7642, %v7730
        %7732 = vmatmul.bf16.gmra.mxu0 %v6000
        %v7733 = vpop.f32.mrf.mxu0
        %v7734 = vadd.f32 %v7645, %v7733
        %v7735 = vpop.f32.mrf.mxu0
        %v7736 = vadd.f32 %v7647, %v7735
        %7737 = vmatmul.bf16.gmra.mxu0 %v6004
        %v7738 = vpop.f32.mrf.mxu0
        %v7739 = vadd.f32 %v7650, %v7738
        %v7740 = vpop.f32.mrf.mxu0
        %v7741 = vadd.f32 %v7652, %v7740
        %7742 = vmatmul.bf16.gmra.mxu0 %v6008
        %v7743 = vpop.f32.mrf.mxu0
        %v7744 = vadd.f32 %v7655, %v7743
        %v7745 = vpop.f32.mrf.mxu0
        %v7746 = vadd.f32 %v7657, %v7745
        %7747 = vmatmul.bf16.gmra.mxu0 %v6012
        %v7748 = vpop.f32.mrf.mxu0
        %v7749 = vadd.f32 %v7660, %v7748
        %v7750 = vpop.f32.mrf.mxu0
        %v7751 = vadd.f32 %v7662, %v7750
        %7752 = vmatmul.bf16.gmra.mxu0 %v6016
        %v7753 = vpop.f32.mrf.mxu0
        %v7754 = vadd.f32 %v7665, %v7753
        %v7755 = vpop.f32.mrf.mxu0
        %v7756 = vadd.f32 %v7667, %v7755
        %7757 = vmatmul.bf16.gmra.mxu0 %v6020
        %v7758 = vpop.f32.mrf.mxu0
        %v7759 = vadd.f32 %v7670, %v7758
        %v7760 = vpop.f32.mrf.mxu0
        %v7761 = vadd.f32 %v7672, %v7760
        %7762 = vmatmul.bf16.gmra.mxu0 %v6024
        %v7763 = vpop.f32.mrf.mxu0
        %v7764 = vadd.f32 %v7675, %v7763
        %v7765 = vpop.f32.mrf.mxu0
        %v7766 = vadd.f32 %v7677, %v7765
        %7767 = vmatmul.bf16.gmra.mxu0 %v6028
        %v7768 = vpop.f32.mrf.mxu0
        %v7769 = vadd.f32 %v7680, %v7768
        %v7770 = vpop.f32.mrf.mxu0
        %v7771 = vadd.f32 %v7682, %v7770
        %7772 = vmatmul.bf16.gmra.mxu0 %v6032
        %v7773 = vpop.f32.mrf.mxu0
        %v7774 = vadd.f32 %v7685, %v7773
        %v7775 = vpop.f32.mrf.mxu0
        %v7776 = vadd.f32 %v7687, %v7775
        %7777 = vmatmul.bf16.gmra.mxu0 %v6036
        %v7778 = vpop.f32.mrf.mxu0
        %v7779 = vadd.f32 %v7690, %v7778
        %v7780 = vpop.f32.mrf.mxu0
        %v7781 = vadd.f32 %v7692, %v7780
        %7782 = vmatmul.bf16.gmra.mxu0 %v6040
        %v7783 = vpop.f32.mrf.mxu0
        %v7784 = vadd.f32 %v7695, %v7783
        %v7785 = vpop.f32.mrf.mxu0
        %v7786 = vadd.f32 %v7697, %v7785
        %7787 = vmatmul.bf16.gmra.mxu0 %v6044
        %v7788 = vpop.f32.mrf.mxu0
        %v7789 = vadd.f32 %v7700, %v7788
        %v7790 = vpop.f32.mrf.mxu0
        %v7791 = vadd.f32 %v7702, %v7790
        %7792 = vdwg.mxu0
        %7793 = vmatpush.bf16.msra.mxu0 %v6684
        %7794 = vmatpush.bf16.msra.mxu0 %v6680
        %7795 = vmatpush.bf16.msra.mxu0 %v6676
        %7796 = vmatpush.bf16.msra.mxu0 %v6672
        %7797 = vmatpush.bf16.msra.mxu0 %v6668
        %7798 = vmatpush.bf16.msra.mxu0 %v6664
        %7799 = vmatpush.bf16.msra.mxu0 %v6660
        %7800 = vmatpush.bf16.msra.mxu0 %v6656
        %7801 = vmatmul.bf16.gmra.mxu0 %v5985
        %v7802 = vpop.f32.mrf.mxu0
        %v7803 = vadd.f32 %v7714, %v7802
        %v7804 = vpop.f32.mrf.mxu0
        %v7805 = vadd.f32 %v7716, %v7804
        %7806 = vmatmul.bf16.gmra.mxu0 %v5989
        %v7807 = vpop.f32.mrf.mxu0
        %v7808 = vadd.f32 %v7719, %v7807
        %v7809 = vpop.f32.mrf.mxu0
        %v7810 = vadd.f32 %v7721, %v7809
        %7811 = vmatmul.bf16.gmra.mxu0 %v5993
        %v7812 = vpop.f32.mrf.mxu0
        %v7813 = vadd.f32 %v7724, %v7812
        %v7814 = vpop.f32.mrf.mxu0
        %v7815 = vadd.f32 %v7726, %v7814
        %7816 = vmatmul.bf16.gmra.mxu0 %v5997
        %v7817 = vpop.f32.mrf.mxu0
        %v7818 = vadd.f32 %v7729, %v7817
        %v7819 = vpop.f32.mrf.mxu0
        %v7820 = vadd.f32 %v7731, %v7819
        %7821 = vmatmul.bf16.gmra.mxu0 %v6001
        %v7822 = vpop.f32.mrf.mxu0
        %v7823 = vadd.f32 %v7734, %v7822
        %v7824 = vpop.f32.mrf.mxu0
        %v7825 = vadd.f32 %v7736, %v7824
        %7826 = vmatmul.bf16.gmra.mxu0 %v6005
        %v7827 = vpop.f32.mrf.mxu0
        %v7828 = vadd.f32 %v7739, %v7827
        %v7829 = vpop.f32.mrf.mxu0
        %v7830 = vadd.f32 %v7741, %v7829
        %7831 = vmatmul.bf16.gmra.mxu0 %v6009
        %v7832 = vpop.f32.mrf.mxu0
        %v7833 = vadd.f32 %v7744, %v7832
        %v7834 = vpop.f32.mrf.mxu0
        %v7835 = vadd.f32 %v7746, %v7834
        %7836 = vmatmul.bf16.gmra.mxu0 %v6013
        %v7837 = vpop.f32.mrf.mxu0
        %v7838 = vadd.f32 %v7749, %v7837
        %v7839 = vpop.f32.mrf.mxu0
        %v7840 = vadd.f32 %v7751, %v7839
        %7841 = vmatmul.bf16.gmra.mxu0 %v6017
        %v7842 = vpop.f32.mrf.mxu0
        %v7843 = vadd.f32 %v7754, %v7842
        %v7844 = vpop.f32.mrf.mxu0
        %v7845 = vadd.f32 %v7756, %v7844
        %7846 = vmatmul.bf16.gmra.mxu0 %v6021
        %v7847 = vpop.f32.mrf.mxu0
        %v7848 = vadd.f32 %v7759, %v7847
        %v7849 = vpop.f32.mrf.mxu0
        %v7850 = vadd.f32 %v7761, %v7849
        %7851 = vmatmul.bf16.gmra.mxu0 %v6025
        %v7852 = vpop.f32.mrf.mxu0
        %v7853 = vadd.f32 %v7764, %v7852
        %v7854 = vpop.f32.mrf.mxu0
        %v7855 = vadd.f32 %v7766, %v7854
        %7856 = vmatmul.bf16.gmra.mxu0 %v6029
        %v7857 = vpop.f32.mrf.mxu0
        %v7858 = vadd.f32 %v7769, %v7857
        %v7859 = vpop.f32.mrf.mxu0
        %v7860 = vadd.f32 %v7771, %v7859
        %7861 = vmatmul.bf16.gmra.mxu0 %v6033
        %v7862 = vpop.f32.mrf.mxu0
        %v7863 = vadd.f32 %v7774, %v7862
        %v7864 = vpop.f32.mrf.mxu0
        %v7865 = vadd.f32 %v7776, %v7864
        %7866 = vmatmul.bf16.gmra.mxu0 %v6037
        %v7867 = vpop.f32.mrf.mxu0
        %v7868 = vadd.f32 %v7779, %v7867
        %v7869 = vpop.f32.mrf.mxu0
        %v7870 = vadd.f32 %v7781, %v7869
        %7871 = vmatmul.bf16.gmra.mxu0 %v6041
        %v7872 = vpop.f32.mrf.mxu0
        %v7873 = vadd.f32 %v7784, %v7872
        %v7874 = vpop.f32.mrf.mxu0
        %v7875 = vadd.f32 %v7786, %v7874
        %7876 = vmatmul.bf16.gmra.mxu0 %v6045
        %v7877 = vpop.f32.mrf.mxu0
        %v7878 = vadd.f32 %v7789, %v7877
        %v7879 = vpop.f32.mrf.mxu0
        %v7880 = vadd.f32 %v7791, %v7879
        %7881 = vdwg.mxu0
        %7882 = vmatpush.bf16.msra.mxu0 %v6589
        %7883 = vmatpush.bf16.msra.mxu0 %v6585
        %7884 = vmatpush.bf16.msra.mxu0 %v6581
        %7885 = vmatpush.bf16.msra.mxu0 %v6577
        %7886 = vmatpush.bf16.msra.mxu0 %v6573
        %7887 = vmatpush.bf16.msra.mxu0 %v6569
        %7888 = vmatpush.bf16.msra.mxu0 %v6565
        %7889 = vmatpush.bf16.msra.mxu0 %v6561
        %7890 = vmatmul.bf16.gmra.mxu0 %v5982
        %v7891 = vpop.f32.mrf.mxu0
        %v7892 = vadd.f32 0.0, %v7891
        %v7893 = vpop.f32.mrf.mxu0
        %v7894 = vadd.f32 0.0, %v7893
        %7895 = vmatmul.bf16.gmra.mxu0 %v5986
        %v7896 = vpop.f32.mrf.mxu0
        %v7897 = vadd.f32 0.0, %v7896
        %v7898 = vpop.f32.mrf.mxu0
        %v7899 = vadd.f32 0.0, %v7898
        %7900 = vmatmul.bf16.gmra.mxu0 %v5990
        %v7901 = vpop.f32.mrf.mxu0
        %v7902 = vadd.f32 0.0, %v7901
        %v7903 = vpop.f32.mrf.mxu0
        %v7904 = vadd.f32 0.0, %v7903
        %7905 = vmatmul.bf16.gmra.mxu0 %v5994
        %v7906 = vpop.f32.mrf.mxu0
        %v7907 = vadd.f32 0.0, %v7906
        %v7908 = vpop.f32.mrf.mxu0
        %v7909 = vadd.f32 0.0, %v7908
        %7910 = vmatmul.bf16.gmra.mxu0 %v5998
        %v7911 = vpop.f32.mrf.mxu0
        %v7912 = vadd.f32 0.0, %v7911
        %v7913 = vpop.f32.mrf.mxu0
        %v7914 = vadd.f32 0.0, %v7913
        %7915 = vmatmul.bf16.gmra.mxu0 %v6002
        %v7916 = vpop.f32.mrf.mxu0
        %v7917 = vadd.f32 0.0, %v7916
        %v7918 = vpop.f32.mrf.mxu0
        %v7919 = vadd.f32 0.0, %v7918
        %7920 = vmatmul.bf16.gmra.mxu0 %v6006
        %v7921 = vpop.f32.mrf.mxu0
        %v7922 = vadd.f32 0.0, %v7921
        %v7923 = vpop.f32.mrf.mxu0
        %v7924 = vadd.f32 0.0, %v7923
        %7925 = vmatmul.bf16.gmra.mxu0 %v6010
        %v7926 = vpop.f32.mrf.mxu0
        %v7927 = vadd.f32 0.0, %v7926
        %v7928 = vpop.f32.mrf.mxu0
        %v7929 = vadd.f32 0.0, %v7928
        %7930 = vmatmul.bf16.gmra.mxu0 %v6014
        %v7931 = vpop.f32.mrf.mxu0
        %v7932 = vadd.f32 0.0, %v7931
        %v7933 = vpop.f32.mrf.mxu0
        %v7934 = vadd.f32 0.0, %v7933
        %7935 = vmatmul.bf16.gmra.mxu0 %v6018
        %v7936 = vpop.f32.mrf.mxu0
        %v7937 = vadd.f32 0.0, %v7936
        %v7938 = vpop.f32.mrf.mxu0
        %v7939 = vadd.f32 0.0, %v7938
        %7940 = vmatmul.bf16.gmra.mxu0 %v6022
        %v7941 = vpop.f32.mrf.mxu0
        %v7942 = vadd.f32 0.0, %v7941
        %v7943 = vpop.f32.mrf.mxu0
        %v7944 = vadd.f32 0.0, %v7943
        %7945 = vmatmul.bf16.gmra.mxu0 %v6026
        %v7946 = vpop.f32.mrf.mxu0
        %v7947 = vadd.f32 0.0, %v7946
        %v7948 = vpop.f32.mrf.mxu0
        %v7949 = vadd.f32 0.0, %v7948
        %7950 = vmatmul.bf16.gmra.mxu0 %v6030
        %v7951 = vpop.f32.mrf.mxu0
        %v7952 = vadd.f32 0.0, %v7951
        %v7953 = vpop.f32.mrf.mxu0
        %v7954 = vadd.f32 0.0, %v7953
        %7955 = vmatmul.bf16.gmra.mxu0 %v6034
        %v7956 = vpop.f32.mrf.mxu0
        %v7957 = vadd.f32 0.0, %v7956
        %v7958 = vpop.f32.mrf.mxu0
        %v7959 = vadd.f32 0.0, %v7958
        %7960 = vmatmul.bf16.gmra.mxu0 %v6038
        %v7961 = vpop.f32.mrf.mxu0
        %v7962 = vadd.f32 0.0, %v7961
        %v7963 = vpop.f32.mrf.mxu0
        %v7964 = vadd.f32 0.0, %v7963
        %7965 = vmatmul.bf16.gmra.mxu0 %v6042
        %v7966 = vpop.f32.mrf.mxu0
        %v7967 = vadd.f32 0.0, %v7966
        %v7968 = vpop.f32.mrf.mxu0
        %v7969 = vadd.f32 0.0, %v7968
        %7970 = vdwg.mxu0
        %7971 = vmatpush.bf16.msra.mxu0 %v6621
        %7972 = vmatpush.bf16.msra.mxu0 %v6617
        %7973 = vmatpush.bf16.msra.mxu0 %v6613
        %7974 = vmatpush.bf16.msra.mxu0 %v6609
        %7975 = vmatpush.bf16.msra.mxu0 %v6605
        %7976 = vmatpush.bf16.msra.mxu0 %v6601
        %7977 = vmatpush.bf16.msra.mxu0 %v6597
        %7978 = vmatpush.bf16.msra.mxu0 %v6593
        %7979 = vmatmul.bf16.gmra.mxu0 %v5983
        %v7980 = vpop.f32.mrf.mxu0
        %v7981 = vadd.f32 %v7892, %v7980
        %v7982 = vpop.f32.mrf.mxu0
        %v7983 = vadd.f32 %v7894, %v7982
        %7984 = vmatmul.bf16.gmra.mxu0 %v5987
        %v7985 = vpop.f32.mrf.mxu0
        %v7986 = vadd.f32 %v7897, %v7985
        %v7987 = vpop.f32.mrf.mxu0
        %v7988 = vadd.f32 %v7899, %v7987
        %7989 = vmatmul.bf16.gmra.mxu0 %v5991
        %v7990 = vpop.f32.mrf.mxu0
        %v7991 = vadd.f32 %v7902, %v7990
        %v7992 = vpop.f32.mrf.mxu0
        %v7993 = vadd.f32 %v7904, %v7992
        %7994 = vmatmul.bf16.gmra.mxu0 %v5995
        %v7995 = vpop.f32.mrf.mxu0
        %v7996 = vadd.f32 %v7907, %v7995
        %v7997 = vpop.f32.mrf.mxu0
        %v7998 = vadd.f32 %v7909, %v7997
        %7999 = vmatmul.bf16.gmra.mxu0 %v5999
        %v8000 = vpop.f32.mrf.mxu0
        %v8001 = vadd.f32 %v7912, %v8000
        %v8002 = vpop.f32.mrf.mxu0
        %v8003 = vadd.f32 %v7914, %v8002
        %8004 = vmatmul.bf16.gmra.mxu0 %v6003
        %v8005 = vpop.f32.mrf.mxu0
        %v8006 = vadd.f32 %v7917, %v8005
        %v8007 = vpop.f32.mrf.mxu0
        %v8008 = vadd.f32 %v7919, %v8007
        %8009 = vmatmul.bf16.gmra.mxu0 %v6007
        %v8010 = vpop.f32.mrf.mxu0
        %v8011 = vadd.f32 %v7922, %v8010
        %v8012 = vpop.f32.mrf.mxu0
        %v8013 = vadd.f32 %v7924, %v8012
        %8014 = vmatmul.bf16.gmra.mxu0 %v6011
        %v8015 = vpop.f32.mrf.mxu0
        %v8016 = vadd.f32 %v7927, %v8015
        %v8017 = vpop.f32.mrf.mxu0
        %v8018 = vadd.f32 %v7929, %v8017
        %8019 = vmatmul.bf16.gmra.mxu0 %v6015
        %v8020 = vpop.f32.mrf.mxu0
        %v8021 = vadd.f32 %v7932, %v8020
        %v8022 = vpop.f32.mrf.mxu0
        %v8023 = vadd.f32 %v7934, %v8022
        %8024 = vmatmul.bf16.gmra.mxu0 %v6019
        %v8025 = vpop.f32.mrf.mxu0
        %v8026 = vadd.f32 %v7937, %v8025
        %v8027 = vpop.f32.mrf.mxu0
        %v8028 = vadd.f32 %v7939, %v8027
        %8029 = vmatmul.bf16.gmra.mxu0 %v6023
        %v8030 = vpop.f32.mrf.mxu0
        %v8031 = vadd.f32 %v7942, %v8030
        %v8032 = vpop.f32.mrf.mxu0
        %v8033 = vadd.f32 %v7944, %v8032
        %8034 = vmatmul.bf16.gmra.mxu0 %v6027
        %v8035 = vpop.f32.mrf.mxu0
        %v8036 = vadd.f32 %v7947, %v8035
        %v8037 = vpop.f32.mrf.mxu0
        %v8038 = vadd.f32 %v7949, %v8037
        %8039 = vmatmul.bf16.gmra.mxu0 %v6031
        %v8040 = vpop.f32.mrf.mxu0
        %v8041 = vadd.f32 %v7952, %v8040
        %v8042 = vpop.f32.mrf.mxu0
        %v8043 = vadd.f32 %v7954, %v8042
        %8044 = vmatmul.bf16.gmra.mxu0 %v6035
        %v8045 = vpop.f32.mrf.mxu0
        %v8046 = vadd.f32 %v7957, %v8045
        %v8047 = vpop.f32.mrf.mxu0
        %v8048 = vadd.f32 %v7959, %v8047
        %8049 = vmatmul.bf16.gmra.mxu0 %v6039
        %v8050 = vpop.f32.mrf.mxu0
        %v8051 = vadd.f32 %v7962, %v8050
        %v8052 = vpop.f32.mrf.mxu0
        %v8053 = vadd.f32 %v7964, %v8052
        %8054 = vmatmul.bf16.gmra.mxu0 %v6043
        %v8055 = vpop.f32.mrf.mxu0
        %v8056 = vadd.f32 %v7967, %v8055
        %v8057 = vpop.f32.mrf.mxu0
        %v8058 = vadd.f32 %v7969, %v8057
        %8059 = vdwg.mxu0
        %8060 = vmatpush.bf16.msra.mxu0 %v6653
        %8061 = vmatpush.bf16.msra.mxu0 %v6649
        %8062 = vmatpush.bf16.msra.mxu0 %v6645
        %8063 = vmatpush.bf16.msra.mxu0 %v6641
        %8064 = vmatpush.bf16.msra.mxu0 %v6637
        %8065 = vmatpush.bf16.msra.mxu0 %v6633
        %8066 = vmatpush.bf16.msra.mxu0 %v6629
        %8067 = vmatpush.bf16.msra.mxu0 %v6625
        %8068 = vmatmul.bf16.gmra.mxu0 %v5984
        %v8069 = vpop.f32.mrf.mxu0
        %v8070 = vadd.f32 %v7981, %v8069
        %v8071 = vpop.f32.mrf.mxu0
        %v8072 = vadd.f32 %v7983, %v8071
        %8073 = vmatmul.bf16.gmra.mxu0 %v5988
        %v8074 = vpop.f32.mrf.mxu0
        %v8075 = vadd.f32 %v7986, %v8074
        %v8076 = vpop.f32.mrf.mxu0
        %v8077 = vadd.f32 %v7988, %v8076
        %8078 = vmatmul.bf16.gmra.mxu0 %v5992
        %v8079 = vpop.f32.mrf.mxu0
        %v8080 = vadd.f32 %v7991, %v8079
        %v8081 = vpop.f32.mrf.mxu0
        %v8082 = vadd.f32 %v7993, %v8081
        %8083 = vmatmul.bf16.gmra.mxu0 %v5996
        %v8084 = vpop.f32.mrf.mxu0
        %v8085 = vadd.f32 %v7996, %v8084
        %v8086 = vpop.f32.mrf.mxu0
        %v8087 = vadd.f32 %v7998, %v8086
        %8088 = vmatmul.bf16.gmra.mxu0 %v6000
        %v8089 = vpop.f32.mrf.mxu0
        %v8090 = vadd.f32 %v8001, %v8089
        %v8091 = vpop.f32.mrf.mxu0
        %v8092 = vadd.f32 %v8003, %v8091
        %8093 = vmatmul.bf16.gmra.mxu0 %v6004
        %v8094 = vpop.f32.mrf.mxu0
        %v8095 = vadd.f32 %v8006, %v8094
        %v8096 = vpop.f32.mrf.mxu0
        %v8097 = vadd.f32 %v8008, %v8096
        %8098 = vmatmul.bf16.gmra.mxu0 %v6008
        %v8099 = vpop.f32.mrf.mxu0
        %v8100 = vadd.f32 %v8011, %v8099
        %v8101 = vpop.f32.mrf.mxu0
        %v8102 = vadd.f32 %v8013, %v8101
        %8103 = vmatmul.bf16.gmra.mxu0 %v6012
        %v8104 = vpop.f32.mrf.mxu0
        %v8105 = vadd.f32 %v8016, %v8104
        %v8106 = vpop.f32.mrf.mxu0
        %v8107 = vadd.f32 %v8018, %v8106
        %8108 = vmatmul.bf16.gmra.mxu0 %v6016
        %v8109 = vpop.f32.mrf.mxu0
        %v8110 = vadd.f32 %v8021, %v8109
        %v8111 = vpop.f32.mrf.mxu0
        %v8112 = vadd.f32 %v8023, %v8111
        %8113 = vmatmul.bf16.gmra.mxu0 %v6020
        %v8114 = vpop.f32.mrf.mxu0
        %v8115 = vadd.f32 %v8026, %v8114
        %v8116 = vpop.f32.mrf.mxu0
        %v8117 = vadd.f32 %v8028, %v8116
        %8118 = vmatmul.bf16.gmra.mxu0 %v6024
        %v8119 = vpop.f32.mrf.mxu0
        %v8120 = vadd.f32 %v8031, %v8119
        %v8121 = vpop.f32.mrf.mxu0
        %v8122 = vadd.f32 %v8033, %v8121
        %8123 = vmatmul.bf16.gmra.mxu0 %v6028
        %v8124 = vpop.f32.mrf.mxu0
        %v8125 = vadd.f32 %v8036, %v8124
        %v8126 = vpop.f32.mrf.mxu0
        %v8127 = vadd.f32 %v8038, %v8126
        %8128 = vmatmul.bf16.gmra.mxu0 %v6032
        %v8129 = vpop.f32.mrf.mxu0
        %v8130 = vadd.f32 %v8041, %v8129
        %v8131 = vpop.f32.mrf.mxu0
        %v8132 = vadd.f32 %v8043, %v8131
        %8133 = vmatmul.bf16.gmra.mxu0 %v6036
        %v8134 = vpop.f32.mrf.mxu0
        %v8135 = vadd.f32 %v8046, %v8134
        %v8136 = vpop.f32.mrf.mxu0
        %v8137 = vadd.f32 %v8048, %v8136
        %8138 = vmatmul.bf16.gmra.mxu0 %v6040
        %v8139 = vpop.f32.mrf.mxu0
        %v8140 = vadd.f32 %v8051, %v8139
        %v8141 = vpop.f32.mrf.mxu0
        %v8142 = vadd.f32 %v8053, %v8141
        %8143 = vmatmul.bf16.gmra.mxu0 %v6044
        %v8144 = vpop.f32.mrf.mxu0
        %v8145 = vadd.f32 %v8056, %v8144
        %v8146 = vpop.f32.mrf.mxu0
        %v8147 = vadd.f32 %v8058, %v8146
        %8148 = vdwg.mxu0
        %8149 = vmatpush.bf16.msra.mxu0 %v6685
        %8150 = vmatpush.bf16.msra.mxu0 %v6681
        %8151 = vmatpush.bf16.msra.mxu0 %v6677
        %8152 = vmatpush.bf16.msra.mxu0 %v6673
        %8153 = vmatpush.bf16.msra.mxu0 %v6669
        %8154 = vmatpush.bf16.msra.mxu0 %v6665
        %8155 = vmatpush.bf16.msra.mxu0 %v6661
        %8156 = vmatpush.bf16.msra.mxu0 %v6657
        %8157 = vmatmul.bf16.gmra.mxu0 %v5985
        %v8158 = vpop.f32.mrf.mxu0
        %v8159 = vadd.f32 %v8070, %v8158
        %v8160 = vpop.f32.mrf.mxu0
        %v8161 = vadd.f32 %v8072, %v8160
        %8162 = vmatmul.bf16.gmra.mxu0 %v5989
        %v8163 = vpop.f32.mrf.mxu0
        %v8164 = vadd.f32 %v8075, %v8163
        %v8165 = vpop.f32.mrf.mxu0
        %v8166 = vadd.f32 %v8077, %v8165
        %8167 = vmatmul.bf16.gmra.mxu0 %v5993
        %v8168 = vpop.f32.mrf.mxu0
        %v8169 = vadd.f32 %v8080, %v8168
        %v8170 = vpop.f32.mrf.mxu0
        %v8171 = vadd.f32 %v8082, %v8170
        %8172 = vmatmul.bf16.gmra.mxu0 %v5997
        %v8173 = vpop.f32.mrf.mxu0
        %v8174 = vadd.f32 %v8085, %v8173
        %v8175 = vpop.f32.mrf.mxu0
        %v8176 = vadd.f32 %v8087, %v8175
        %8177 = vmatmul.bf16.gmra.mxu0 %v6001
        %v8178 = vpop.f32.mrf.mxu0
        %v8179 = vadd.f32 %v8090, %v8178
        %v8180 = vpop.f32.mrf.mxu0
        %v8181 = vadd.f32 %v8092, %v8180
        %8182 = vmatmul.bf16.gmra.mxu0 %v6005
        %v8183 = vpop.f32.mrf.mxu0
        %v8184 = vadd.f32 %v8095, %v8183
        %v8185 = vpop.f32.mrf.mxu0
        %v8186 = vadd.f32 %v8097, %v8185
        %8187 = vmatmul.bf16.gmra.mxu0 %v6009
        %v8188 = vpop.f32.mrf.mxu0
        %v8189 = vadd.f32 %v8100, %v8188
        %v8190 = vpop.f32.mrf.mxu0
        %v8191 = vadd.f32 %v8102, %v8190
        %8192 = vmatmul.bf16.gmra.mxu0 %v6013
        %v8193 = vpop.f32.mrf.mxu0
        %v8194 = vadd.f32 %v8105, %v8193
        %v8195 = vpop.f32.mrf.mxu0
        %v8196 = vadd.f32 %v8107, %v8195
        %8197 = vmatmul.bf16.gmra.mxu0 %v6017
        %v8198 = vpop.f32.mrf.mxu0
        %v8199 = vadd.f32 %v8110, %v8198
        %v8200 = vpop.f32.mrf.mxu0
        %v8201 = vadd.f32 %v8112, %v8200
        %8202 = vmatmul.bf16.gmra.mxu0 %v6021
        %v8203 = vpop.f32.mrf.mxu0
        %v8204 = vadd.f32 %v8115, %v8203
        %v8205 = vpop.f32.mrf.mxu0
        %v8206 = vadd.f32 %v8117, %v8205
        %8207 = vmatmul.bf16.gmra.mxu0 %v6025
        %v8208 = vpop.f32.mrf.mxu0
        %v8209 = vadd.f32 %v8120, %v8208
        %v8210 = vpop.f32.mrf.mxu0
        %v8211 = vadd.f32 %v8122, %v8210
        %8212 = vmatmul.bf16.gmra.mxu0 %v6029
        %v8213 = vpop.f32.mrf.mxu0
        %v8214 = vadd.f32 %v8125, %v8213
        %v8215 = vpop.f32.mrf.mxu0
        %v8216 = vadd.f32 %v8127, %v8215
        %8217 = vmatmul.bf16.gmra.mxu0 %v6033
        %v8218 = vpop.f32.mrf.mxu0
        %v8219 = vadd.f32 %v8130, %v8218
        %v8220 = vpop.f32.mrf.mxu0
        %v8221 = vadd.f32 %v8132, %v8220
        %8222 = vmatmul.bf16.gmra.mxu0 %v6037
        %v8223 = vpop.f32.mrf.mxu0
        %v8224 = vadd.f32 %v8135, %v8223
        %v8225 = vpop.f32.mrf.mxu0
        %v8226 = vadd.f32 %v8137, %v8225
        %8227 = vmatmul.bf16.gmra.mxu0 %v6041
        %v8228 = vpop.f32.mrf.mxu0
        %v8229 = vadd.f32 %v8140, %v8228
        %v8230 = vpop.f32.mrf.mxu0
        %v8231 = vadd.f32 %v8142, %v8230
        %8232 = vmatmul.bf16.gmra.mxu0 %v6045
        %v8233 = vpop.f32.mrf.mxu0
        %v8234 = vadd.f32 %v8145, %v8233
        %v8235 = vpop.f32.mrf.mxu0
        %v8236 = vadd.f32 %v8147, %v8235
        %8237 = vdwg.mxu0
        %v8238 = vmax.f32 %v7091, 0.0
        %v8239 = vmax.f32 %v7447, 0.0
        %v8240 = vmax.f32 %v7803, 0.0
        %v8241 = vmax.f32 %v8159, 0.0
        %v8242 = vmax.f32 %v7093, 0.0
        %v8243 = vmax.f32 %v7449, 0.0
        %v8244 = vmax.f32 %v7805, 0.0
        %v8245 = vmax.f32 %v8161, 0.0
        %v8246 = vmax.f32 %v7096, 0.0
        %v8247 = vmax.f32 %v7452, 0.0
        %v8248 = vmax.f32 %v7808, 0.0
        %v8249 = vmax.f32 %v8164, 0.0
        %v8250 = vmax.f32 %v7098, 0.0
        %v8251 = vmax.f32 %v7454, 0.0
        %v8252 = vmax.f32 %v7810, 0.0
        %v8253 = vmax.f32 %v8166, 0.0
        %v8254 = vmax.f32 %v7101, 0.0
        %v8255 = vmax.f32 %v7457, 0.0
        %v8256 = vmax.f32 %v7813, 0.0
        %v8257 = vmax.f32 %v8169, 0.0
        %v8258 = vmax.f32 %v7103, 0.0
        %v8259 = vmax.f32 %v7459, 0.0
        %v8260 = vmax.f32 %v7815, 0.0
        %v8261 = vmax.f32 %v8171, 0.0
        %v8262 = vmax.f32 %v7106, 0.0
        %v8263 = vmax.f32 %v7462, 0.0
        %v8264 = vmax.f32 %v7818, 0.0
        %v8265 = vmax.f32 %v8174, 0.0
        %v8266 = vmax.f32 %v7108, 0.0
        %v8267 = vmax.f32 %v7464, 0.0
        %v8268 = vmax.f32 %v7820, 0.0
        %v8269 = vmax.f32 %v8176, 0.0
        %v8270 = vmax.f32 %v7111, 0.0
        %v8271 = vmax.f32 %v7467, 0.0
        %v8272 = vmax.f32 %v7823, 0.0
        %v8273 = vmax.f32 %v8179, 0.0
        %v8274 = vmax.f32 %v7113, 0.0
        %v8275 = vmax.f32 %v7469, 0.0
        %v8276 = vmax.f32 %v7825, 0.0
        %v8277 = vmax.f32 %v8181, 0.0
        %v8278 = vmax.f32 %v7116, 0.0
        %v8279 = vmax.f32 %v7472, 0.0
        %v8280 = vmax.f32 %v7828, 0.0
        %v8281 = vmax.f32 %v8184, 0.0
        %v8282 = vmax.f32 %v7118, 0.0
        %v8283 = vmax.f32 %v7474, 0.0
        %v8284 = vmax.f32 %v7830, 0.0
        %v8285 = vmax.f32 %v8186, 0.0
        %v8286 = vmax.f32 %v7121, 0.0
        %v8287 = vmax.f32 %v7477, 0.0
        %v8288 = vmax.f32 %v7833, 0.0
        %v8289 = vmax.f32 %v8189, 0.0
        %v8290 = vmax.f32 %v7123, 0.0
        %v8291 = vmax.f32 %v7479, 0.0
        %v8292 = vmax.f32 %v7835, 0.0
        %v8293 = vmax.f32 %v8191, 0.0
        %v8294 = vmax.f32 %v7126, 0.0
        %v8295 = vmax.f32 %v7482, 0.0
        %v8296 = vmax.f32 %v7838, 0.0
        %v8297 = vmax.f32 %v8194, 0.0
        %v8298 = vmax.f32 %v7128, 0.0
        %v8299 = vmax.f32 %v7484, 0.0
        %v8300 = vmax.f32 %v7840, 0.0
        %v8301 = vmax.f32 %v8196, 0.0
        %v8302 = vmax.f32 %v7131, 0.0
        %v8303 = vmax.f32 %v7487, 0.0
        %v8304 = vmax.f32 %v7843, 0.0
        %v8305 = vmax.f32 %v8199, 0.0
        %v8306 = vmax.f32 %v7133, 0.0
        %v8307 = vmax.f32 %v7489, 0.0
        %v8308 = vmax.f32 %v7845, 0.0
        %v8309 = vmax.f32 %v8201, 0.0
        %v8310 = vmax.f32 %v7136, 0.0
        %v8311 = vmax.f32 %v7492, 0.0
        %v8312 = vmax.f32 %v7848, 0.0
        %v8313 = vmax.f32 %v8204, 0.0
        %v8314 = vmax.f32 %v7138, 0.0
        %v8315 = vmax.f32 %v7494, 0.0
        %v8316 = vmax.f32 %v7850, 0.0
        %v8317 = vmax.f32 %v8206, 0.0
        %v8318 = vmax.f32 %v7141, 0.0
        %v8319 = vmax.f32 %v7497, 0.0
        %v8320 = vmax.f32 %v7853, 0.0
        %v8321 = vmax.f32 %v8209, 0.0
        %v8322 = vmax.f32 %v7143, 0.0
        %v8323 = vmax.f32 %v7499, 0.0
        %v8324 = vmax.f32 %v7855, 0.0
        %v8325 = vmax.f32 %v8211, 0.0
        %v8326 = vmax.f32 %v7146, 0.0
        %v8327 = vmax.f32 %v7502, 0.0
        %v8328 = vmax.f32 %v7858, 0.0
        %v8329 = vmax.f32 %v8214, 0.0
        %v8330 = vmax.f32 %v7148, 0.0
        %v8331 = vmax.f32 %v7504, 0.0
        %v8332 = vmax.f32 %v7860, 0.0
        %v8333 = vmax.f32 %v8216, 0.0
        %v8334 = vmax.f32 %v7151, 0.0
        %v8335 = vmax.f32 %v7507, 0.0
        %v8336 = vmax.f32 %v7863, 0.0
        %v8337 = vmax.f32 %v8219, 0.0
        %v8338 = vmax.f32 %v7153, 0.0
        %v8339 = vmax.f32 %v7509, 0.0
        %v8340 = vmax.f32 %v7865, 0.0
        %v8341 = vmax.f32 %v8221, 0.0
        %v8342 = vmax.f32 %v7156, 0.0
        %v8343 = vmax.f32 %v7512, 0.0
        %v8344 = vmax.f32 %v7868, 0.0
        %v8345 = vmax.f32 %v8224, 0.0
        %v8346 = vmax.f32 %v7158, 0.0
        %v8347 = vmax.f32 %v7514, 0.0
        %v8348 = vmax.f32 %v7870, 0.0
        %v8349 = vmax.f32 %v8226, 0.0
        %v8350 = vmax.f32 %v7161, 0.0
        %v8351 = vmax.f32 %v7517, 0.0
        %v8352 = vmax.f32 %v7873, 0.0
        %v8353 = vmax.f32 %v8229, 0.0
        %v8354 = vmax.f32 %v7163, 0.0
        %v8355 = vmax.f32 %v7519, 0.0
        %v8356 = vmax.f32 %v7875, 0.0
        %v8357 = vmax.f32 %v8231, 0.0
        %v8358 = vmax.f32 %v7166, 0.0
        %v8359 = vmax.f32 %v7522, 0.0
        %v8360 = vmax.f32 %v7878, 0.0
        %v8361 = vmax.f32 %v8234, 0.0
        %v8362 = vmax.f32 %v7168, 0.0
        %v8363 = vmax.f32 %v7524, 0.0
        %v8364 = vmax.f32 %v7880, 0.0
        %v8365 = vmax.f32 %v8236, 0.0
        %v8366 = vadd.f32 %v3470, %v8238
        %v8367 = vadd.f32 %v3471, %v8239
        %v8368 = vadd.f32 %v3472, %v8240
        %v8369 = vadd.f32 %v3473, %v8241
        %v8370 = vadd.f32 %v3474, %v8242
        %v8371 = vadd.f32 %v3475, %v8243
        %v8372 = vadd.f32 %v3476, %v8244
        %v8373 = vadd.f32 %v3477, %v8245
        %v8374 = vadd.f32 %v3478, %v8246
        %v8375 = vadd.f32 %v3479, %v8247
        %v8376 = vadd.f32 %v3480, %v8248
        %v8377 = vadd.f32 %v3481, %v8249
        %v8378 = vadd.f32 %v3482, %v8250
        %v8379 = vadd.f32 %v3483, %v8251
        %v8380 = vadd.f32 %v3484, %v8252
        %v8381 = vadd.f32 %v3485, %v8253
        %v8382 = vadd.f32 %v3486, %v8254
        %v8383 = vadd.f32 %v3487, %v8255
        %v8384 = vadd.f32 %v3488, %v8256
        %v8385 = vadd.f32 %v3489, %v8257
        %v8386 = vadd.f32 %v3490, %v8258
        %v8387 = vadd.f32 %v3491, %v8259
        %v8388 = vadd.f32 %v3492, %v8260
        %v8389 = vadd.f32 %v3493, %v8261
        %v8390 = vadd.f32 %v3494, %v8262
        %v8391 = vadd.f32 %v3495, %v8263
        %v8392 = vadd.f32 %v3496, %v8264
        %v8393 = vadd.f32 %v3497, %v8265
        %v8394 = vadd.f32 %v3498, %v8266
        %v8395 = vadd.f32 %v3499, %v8267
        %v8396 = vadd.f32 %v3500, %v8268
        %v8397 = vadd.f32 %v3501, %v8269
        %v8398 = vadd.f32 %v3502, %v8270
        %v8399 = vadd.f32 %v3503, %v8271
        %v8400 = vadd.f32 %v3504, %v8272
        %v8401 = vadd.f32 %v3505, %v8273
        %v8402 = vadd.f32 %v3506, %v8274
        %v8403 = vadd.f32 %v3507, %v8275
        %v8404 = vadd.f32 %v3508, %v8276
        %v8405 = vadd.f32 %v3509, %v8277
        %v8406 = vadd.f32 %v3510, %v8278
        %v8407 = vadd.f32 %v3511, %v8279
        %v8408 = vadd.f32 %v3512, %v8280
        %v8409 = vadd.f32 %v3513, %v8281
        %v8410 = vadd.f32 %v3514, %v8282
        %v8411 = vadd.f32 %v3515, %v8283
        %v8412 = vadd.f32 %v3516, %v8284
        %v8413 = vadd.f32 %v3517, %v8285
        %v8414 = vadd.f32 %v3518, %v8286
        %v8415 = vadd.f32 %v3519, %v8287
        %v8416 = vadd.f32 %v3520, %v8288
        %v8417 = vadd.f32 %v3521, %v8289
        %v8418 = vadd.f32 %v3522, %v8290
        %v8419 = vadd.f32 %v3523, %v8291
        %v8420 = vadd.f32 %v3524, %v8292
        %v8421 = vadd.f32 %v3525, %v8293
        %v8422 = vadd.f32 %v3526, %v8294
        %v8423 = vadd.f32 %v3527, %v8295
        %v8424 = vadd.f32 %v3528, %v8296
        %v8425 = vadd.f32 %v3529, %v8297
        %v8426 = vadd.f32 %v3530, %v8298
        %v8427 = vadd.f32 %v3531, %v8299
        %v8428 = vadd.f32 %v3532, %v8300
        %v8429 = vadd.f32 %v3533, %v8301
        %v8430 = vadd.f32 %v3534, %v8302
        %v8431 = vadd.f32 %v3535, %v8303
        %v8432 = vadd.f32 %v3536, %v8304
        %v8433 = vadd.f32 %v3537, %v8305
        %v8434 = vadd.f32 %v3538, %v8306
        %v8435 = vadd.f32 %v3539, %v8307
        %v8436 = vadd.f32 %v3540, %v8308
        %v8437 = vadd.f32 %v3541, %v8309
        %v8438 = vadd.f32 %v3542, %v8310
        %v8439 = vadd.f32 %v3543, %v8311
        %v8440 = vadd.f32 %v3544, %v8312
        %v8441 = vadd.f32 %v3545, %v8313
        %v8442 = vadd.f32 %v3546, %v8314
        %v8443 = vadd.f32 %v3547, %v8315
        %v8444 = vadd.f32 %v3548, %v8316
        %v8445 = vadd.f32 %v3549, %v8317
        %v8446 = vadd.f32 %v3550, %v8318
        %v8447 = vadd.f32 %v3551, %v8319
        %v8448 = vadd.f32 %v3552, %v8320
        %v8449 = vadd.f32 %v3553, %v8321
        %v8450 = vadd.f32 %v3554, %v8322
        %v8451 = vadd.f32 %v3555, %v8323
        %v8452 = vadd.f32 %v3556, %v8324
        %v8453 = vadd.f32 %v3557, %v8325
        %v8454 = vadd.f32 %v3558, %v8326
        %v8455 = vadd.f32 %v3559, %v8327
        %v8456 = vadd.f32 %v3560, %v8328
        %v8457 = vadd.f32 %v3561, %v8329
        %v8458 = vadd.f32 %v3562, %v8330
        %v8459 = vadd.f32 %v3563, %v8331
        %v8460 = vadd.f32 %v3564, %v8332
        %v8461 = vadd.f32 %v3565, %v8333
        %v8462 = vadd.f32 %v3566, %v8334
        %v8463 = vadd.f32 %v3567, %v8335
        %v8464 = vadd.f32 %v3568, %v8336
        %v8465 = vadd.f32 %v3569, %v8337
        %v8466 = vadd.f32 %v3570, %v8338
        %v8467 = vadd.f32 %v3571, %v8339
        %v8468 = vadd.f32 %v3572, %v8340
        %v8469 = vadd.f32 %v3573, %v8341
        %v8470 = vadd.f32 %v3574, %v8342
        %v8471 = vadd.f32 %v3575, %v8343
        %v8472 = vadd.f32 %v3576, %v8344
        %v8473 = vadd.f32 %v3577, %v8345
        %v8474 = vadd.f32 %v3578, %v8346
        %v8475 = vadd.f32 %v3579, %v8347
        %v8476 = vadd.f32 %v3580, %v8348
        %v8477 = vadd.f32 %v3581, %v8349
        %v8478 = vadd.f32 %v3582, %v8350
        %v8479 = vadd.f32 %v3583, %v8351
        %v8480 = vadd.f32 %v3584, %v8352
        %v8481 = vadd.f32 %v3585, %v8353
        %v8482 = vadd.f32 %v3586, %v8354
        %v8483 = vadd.f32 %v3587, %v8355
        %v8484 = vadd.f32 %v3588, %v8356
        %v8485 = vadd.f32 %v3589, %v8357
        %v8486 = vadd.f32 %v3590, %v8358
        %v8487 = vadd.f32 %v3591, %v8359
        %v8488 = vadd.f32 %v3592, %v8360
        %v8489 = vadd.f32 %v3593, %v8361
        %v8490 = vadd.f32 %v3594, %v8362
        %v8491 = vadd.f32 %v3595, %v8363
        %v8492 = vadd.f32 %v3596, %v8364
        %v8493 = vadd.f32 %v3597, %v8365
        %v8494 = vpack.c.bf16 %v8370, %v8366
        %v8495 = vpack.c.bf16 %v8371, %v8367
        %v8496 = vpack.c.bf16 %v8372, %v8368
        %v8497 = vpack.c.bf16 %v8373, %v8369
        %v8498 = vpack.c.bf16 %v8378, %v8374
        %v8499 = vpack.c.bf16 %v8379, %v8375
        %v8500 = vpack.c.bf16 %v8380, %v8376
        %v8501 = vpack.c.bf16 %v8381, %v8377
        %v8502 = vpack.c.bf16 %v8386, %v8382
        %v8503 = vpack.c.bf16 %v8387, %v8383
        %v8504 = vpack.c.bf16 %v8388, %v8384
        %v8505 = vpack.c.bf16 %v8389, %v8385
        %v8506 = vpack.c.bf16 %v8394, %v8390
        %v8507 = vpack.c.bf16 %v8395, %v8391
        %v8508 = vpack.c.bf16 %v8396, %v8392
        %v8509 = vpack.c.bf16 %v8397, %v8393
        %v8510 = vpack.c.bf16 %v8402, %v8398
        %v8511 = vpack.c.bf16 %v8403, %v8399
        %v8512 = vpack.c.bf16 %v8404, %v8400
        %v8513 = vpack.c.bf16 %v8405, %v8401
        %v8514 = vpack.c.bf16 %v8410, %v8406
        %v8515 = vpack.c.bf16 %v8411, %v8407
        %v8516 = vpack.c.bf16 %v8412, %v8408
        %v8517 = vpack.c.bf16 %v8413, %v8409
        %v8518 = vpack.c.bf16 %v8418, %v8414
        %v8519 = vpack.c.bf16 %v8419, %v8415
        %v8520 = vpack.c.bf16 %v8420, %v8416
        %v8521 = vpack.c.bf16 %v8421, %v8417
        %v8522 = vpack.c.bf16 %v8426, %v8422
        %v8523 = vpack.c.bf16 %v8427, %v8423
        %v8524 = vpack.c.bf16 %v8428, %v8424
        %v8525 = vpack.c.bf16 %v8429, %v8425
        %v8526 = vpack.c.bf16 %v8434, %v8430
        %v8527 = vpack.c.bf16 %v8435, %v8431
        %v8528 = vpack.c.bf16 %v8436, %v8432
        %v8529 = vpack.c.bf16 %v8437, %v8433
        %v8530 = vpack.c.bf16 %v8442, %v8438
        %v8531 = vpack.c.bf16 %v8443, %v8439
        %v8532 = vpack.c.bf16 %v8444, %v8440
        %v8533 = vpack.c.bf16 %v8445, %v8441
        %v8534 = vpack.c.bf16 %v8450, %v8446
        %v8535 = vpack.c.bf16 %v8451, %v8447
        %v8536 = vpack.c.bf16 %v8452, %v8448
        %v8537 = vpack.c.bf16 %v8453, %v8449
        %v8538 = vpack.c.bf16 %v8458, %v8454
        %v8539 = vpack.c.bf16 %v8459, %v8455
        %v8540 = vpack.c.bf16 %v8460, %v8456
        %v8541 = vpack.c.bf16 %v8461, %v8457
        %v8542 = vpack.c.bf16 %v8466, %v8462
        %v8543 = vpack.c.bf16 %v8467, %v8463
        %v8544 = vpack.c.bf16 %v8468, %v8464
        %v8545 = vpack.c.bf16 %v8469, %v8465
        %v8546 = vpack.c.bf16 %v8474, %v8470
        %v8547 = vpack.c.bf16 %v8475, %v8471
        %v8548 = vpack.c.bf16 %v8476, %v8472
        %v8549 = vpack.c.bf16 %v8477, %v8473
        %v8550 = vpack.c.bf16 %v8482, %v8478
        %v8551 = vpack.c.bf16 %v8483, %v8479
        %v8552 = vpack.c.bf16 %v8484, %v8480
        %v8553 = vpack.c.bf16 %v8485, %v8481
        %v8554 = vpack.c.bf16 %v8490, %v8486
        %v8555 = vpack.c.bf16 %v8491, %v8487
        %v8556 = vpack.c.bf16 %v8492, %v8488
        %v8557 = vpack.c.bf16 %v8493, %v8489
        %v8558 = vld [vmem:[#allocation14] sm:$0xff]
        %v8559 = vld [vmem:[#allocation14 + $0x8] sm:$0xff]
        %v8560 = vld [vmem:[#allocation14 + $0x10] sm:$0xff]
        %v8561 = vld [vmem:[#allocation14 + $0x18] sm:$0xff]
        %v8562 = vld [vmem:[#allocation14 + $0x20] sm:$0xff]
        %v8563 = vld [vmem:[#allocation14 + $0x28] sm:$0xff]
        %v8564 = vld [vmem:[#allocation14 + $0x30] sm:$0xff]
        %v8565 = vld [vmem:[#allocation14 + $0x38] sm:$0xff]
        %v8566 = vld [vmem:[#allocation14 + $0x40] sm:$0xff]
        %v8567 = vld [vmem:[#allocation14 + $0x48] sm:$0xff]
        %v8568 = vld [vmem:[#allocation14 + $0x50] sm:$0xff]
        %v8569 = vld [vmem:[#allocation14 + $0x58] sm:$0xff]
        %v8570 = vld [vmem:[#allocation14 + $0x60] sm:$0xff]
        %v8571 = vld [vmem:[#allocation14 + $0x68] sm:$0xff]
        %v8572 = vld [vmem:[#allocation14 + $0x70] sm:$0xff]
        %v8573 = vld [vmem:[#allocation14 + $0x78] sm:$0xff]
        %v8574 = vld [vmem:[#allocation14 + $0x80] sm:$0xff]
        %v8575 = vld [vmem:[#allocation14 + $0x88] sm:$0xff]
        %v8576 = vld [vmem:[#allocation14 + $0x90] sm:$0xff]
        %v8577 = vld [vmem:[#allocation14 + $0x98] sm:$0xff]
        %v8578 = vld [vmem:[#allocation14 + $0xa0] sm:$0xff]
        %v8579 = vld [vmem:[#allocation14 + $0xa8] sm:$0xff]
        %v8580 = vld [vmem:[#allocation14 + $0xb0] sm:$0xff]
        %v8581 = vld [vmem:[#allocation14 + $0xb8] sm:$0xff]
        %v8582 = vld [vmem:[#allocation14 + $0xc0] sm:$0xff]
        %v8583 = vld [vmem:[#allocation14 + $0xc8] sm:$0xff]
        %v8584 = vld [vmem:[#allocation14 + $0xd0] sm:$0xff]
        %v8585 = vld [vmem:[#allocation14 + $0xd8] sm:$0xff]
        %v8586 = vld [vmem:[#allocation14 + $0xe0] sm:$0xff]
        %v8587 = vld [vmem:[#allocation14 + $0xe8] sm:$0xff]
        %v8588 = vld [vmem:[#allocation14 + $0xf0] sm:$0xff]
        %v8589 = vld [vmem:[#allocation14 + $0xf8] sm:$0xff]
        %v8590 = vld [vmem:[#allocation14 + $0x100] sm:$0xff]
        %v8591 = vld [vmem:[#allocation14 + $0x108] sm:$0xff]
        %v8592 = vld [vmem:[#allocation14 + $0x110] sm:$0xff]
        %v8593 = vld [vmem:[#allocation14 + $0x118] sm:$0xff]
        %v8594 = vld [vmem:[#allocation14 + $0x120] sm:$0xff]
        %v8595 = vld [vmem:[#allocation14 + $0x128] sm:$0xff]
        %v8596 = vld [vmem:[#allocation14 + $0x130] sm:$0xff]
        %v8597 = vld [vmem:[#allocation14 + $0x138] sm:$0xff]
        %v8598 = vld [vmem:[#allocation14 + $0x140] sm:$0xff]
        %v8599 = vld [vmem:[#allocation14 + $0x148] sm:$0xff]
        %v8600 = vld [vmem:[#allocation14 + $0x150] sm:$0xff]
        %v8601 = vld [vmem:[#allocation14 + $0x158] sm:$0xff]
        %v8602 = vld [vmem:[#allocation14 + $0x160] sm:$0xff]
        %v8603 = vld [vmem:[#allocation14 + $0x168] sm:$0xff]
        %v8604 = vld [vmem:[#allocation14 + $0x170] sm:$0xff]
        %v8605 = vld [vmem:[#allocation14 + $0x178] sm:$0xff]
        %v8606 = vld [vmem:[#allocation14 + $0x180] sm:$0xff]
        %v8607 = vld [vmem:[#allocation14 + $0x188] sm:$0xff]
        %v8608 = vld [vmem:[#allocation14 + $0x190] sm:$0xff]
        %v8609 = vld [vmem:[#allocation14 + $0x198] sm:$0xff]
        %v8610 = vld [vmem:[#allocation14 + $0x1a0] sm:$0xff]
        %v8611 = vld [vmem:[#allocation14 + $0x1a8] sm:$0xff]
        %v8612 = vld [vmem:[#allocation14 + $0x1b0] sm:$0xff]
        %v8613 = vld [vmem:[#allocation14 + $0x1b8] sm:$0xff]
        %v8614 = vld [vmem:[#allocation14 + $0x1c0] sm:$0xff]
        %v8615 = vld [vmem:[#allocation14 + $0x1c8] sm:$0xff]
        %v8616 = vld [vmem:[#allocation14 + $0x1d0] sm:$0xff]
        %v8617 = vld [vmem:[#allocation14 + $0x1d8] sm:$0xff]
        %v8618 = vld [vmem:[#allocation14 + $0x1e0] sm:$0xff]
        %v8619 = vld [vmem:[#allocation14 + $0x1e8] sm:$0xff]
        %v8620 = vld [vmem:[#allocation14 + $0x1f0] sm:$0xff]
        %v8621 = vld [vmem:[#allocation14 + $0x1f8] sm:$0xff]
        %v8622 = vld [vmem:[#allocation15] sm:$0x3]
        %v8624 = vperm.slane %v8622, 0
        %v8625 = vperm.slane %v8622, 1
        %v8692 = vunpack.c.l.b16 %v8558
        %v8693 = vunpack.c.h.b16 %v8558
        %v8694 = vunpack.c.l.b16 %v8559
        %v8695 = vunpack.c.h.b16 %v8559
        %v8696 = vunpack.c.l.b16 %v8560
        %v8697 = vunpack.c.h.b16 %v8560
        %v8698 = vunpack.c.l.b16 %v8561
        %v8699 = vunpack.c.h.b16 %v8561
        %v8700 = vunpack.c.l.b16 %v8562
        %v8701 = vunpack.c.h.b16 %v8562
        %v8702 = vunpack.c.l.b16 %v8563
        %v8703 = vunpack.c.h.b16 %v8563
        %v8704 = vunpack.c.l.b16 %v8564
        %v8705 = vunpack.c.h.b16 %v8564
        %v8706 = vunpack.c.l.b16 %v8565
        %v8707 = vunpack.c.h.b16 %v8565
        %v8708 = vunpack.c.l.b16 %v8566
        %v8709 = vunpack.c.h.b16 %v8566
        %v8710 = vunpack.c.l.b16 %v8567
        %v8711 = vunpack.c.h.b16 %v8567
        %v8712 = vunpack.c.l.b16 %v8568
        %v8713 = vunpack.c.h.b16 %v8568
        %v8714 = vunpack.c.l.b16 %v8569
        %v8715 = vunpack.c.h.b16 %v8569
        %v8716 = vunpack.c.l.b16 %v8570
        %v8717 = vunpack.c.h.b16 %v8570
        %v8718 = vunpack.c.l.b16 %v8571
        %v8719 = vunpack.c.h.b16 %v8571
        %v8720 = vunpack.c.l.b16 %v8572
        %v8721 = vunpack.c.h.b16 %v8572
        %v8722 = vunpack.c.l.b16 %v8573
        %v8723 = vunpack.c.h.b16 %v8573
        %v8724 = vunpack.c.l.b16 %v8574
        %v8725 = vunpack.c.h.b16 %v8574
        %v8726 = vunpack.c.l.b16 %v8575
        %v8727 = vunpack.c.h.b16 %v8575
        %v8728 = vunpack.c.l.b16 %v8576
        %v8729 = vunpack.c.h.b16 %v8576
        %v8730 = vunpack.c.l.b16 %v8577
        %v8731 = vunpack.c.h.b16 %v8577
        %v8732 = vunpack.c.l.b16 %v8578
        %v8733 = vunpack.c.h.b16 %v8578
        %v8734 = vunpack.c.l.b16 %v8579
        %v8735 = vunpack.c.h.b16 %v8579
        %v8736 = vunpack.c.l.b16 %v8580
        %v8737 = vunpack.c.h.b16 %v8580
        %v8738 = vunpack.c.l.b16 %v8581
        %v8739 = vunpack.c.h.b16 %v8581
        %v8740 = vunpack.c.l.b16 %v8582
        %v8741 = vunpack.c.h.b16 %v8582
        %v8742 = vunpack.c.l.b16 %v8583
        %v8743 = vunpack.c.h.b16 %v8583
        %v8744 = vunpack.c.l.b16 %v8584
        %v8745 = vunpack.c.h.b16 %v8584
        %v8746 = vunpack.c.l.b16 %v8585
        %v8747 = vunpack.c.h.b16 %v8585
        %v8748 = vunpack.c.l.b16 %v8586
        %v8749 = vunpack.c.h.b16 %v8586
        %v8750 = vunpack.c.l.b16 %v8587
        %v8751 = vunpack.c.h.b16 %v8587
        %v8752 = vunpack.c.l.b16 %v8588
        %v8753 = vunpack.c.h.b16 %v8588
        %v8754 = vunpack.c.l.b16 %v8589
        %v8755 = vunpack.c.h.b16 %v8589
        %v8756 = vunpack.c.l.b16 %v8590
        %v8757 = vunpack.c.h.b16 %v8590
        %v8758 = vunpack.c.l.b16 %v8591
        %v8759 = vunpack.c.h.b16 %v8591
        %v8760 = vunpack.c.l.b16 %v8592
        %v8761 = vunpack.c.h.b16 %v8592
        %v8762 = vunpack.c.l.b16 %v8593
        %v8763 = vunpack.c.h.b16 %v8593
        %v8764 = vunpack.c.l.b16 %v8594
        %v8765 = vunpack.c.h.b16 %v8594
        %v8766 = vunpack.c.l.b16 %v8595
        %v8767 = vunpack.c.h.b16 %v8595
        %v8768 = vunpack.c.l.b16 %v8596
        %v8769 = vunpack.c.h.b16 %v8596
        %v8770 = vunpack.c.l.b16 %v8597
        %v8771 = vunpack.c.h.b16 %v8597
        %v8772 = vunpack.c.l.b16 %v8598
        %v8773 = vunpack.c.h.b16 %v8598
        %v8774 = vunpack.c.l.b16 %v8599
        %v8775 = vunpack.c.h.b16 %v8599
        %v8776 = vunpack.c.l.b16 %v8600
        %v8777 = vunpack.c.h.b16 %v8600
        %v8778 = vunpack.c.l.b16 %v8601
        %v8779 = vunpack.c.h.b16 %v8601
        %v8780 = vunpack.c.l.b16 %v8602
        %v8781 = vunpack.c.h.b16 %v8602
        %v8782 = vunpack.c.l.b16 %v8603
        %v8783 = vunpack.c.h.b16 %v8603
        %v8784 = vunpack.c.l.b16 %v8604
        %v8785 = vunpack.c.h.b16 %v8604
        %v8786 = vunpack.c.l.b16 %v8605
        %v8787 = vunpack.c.h.b16 %v8605
        %v8788 = vunpack.c.l.b16 %v8606
        %v8789 = vunpack.c.h.b16 %v8606
        %v8790 = vunpack.c.l.b16 %v8607
        %v8791 = vunpack.c.h.b16 %v8607
        %v8792 = vunpack.c.l.b16 %v8608
        %v8793 = vunpack.c.h.b16 %v8608
        %v8794 = vunpack.c.l.b16 %v8609
        %v8795 = vunpack.c.h.b16 %v8609
        %v8796 = vunpack.c.l.b16 %v8610
        %v8797 = vunpack.c.h.b16 %v8610
        %v8798 = vunpack.c.l.b16 %v8611
        %v8799 = vunpack.c.h.b16 %v8611
        %v8800 = vunpack.c.l.b16 %v8612
        %v8801 = vunpack.c.h.b16 %v8612
        %v8802 = vunpack.c.l.b16 %v8613
        %v8803 = vunpack.c.h.b16 %v8613
        %v8804 = vunpack.c.l.b16 %v8614
        %v8805 = vunpack.c.h.b16 %v8614
        %v8806 = vunpack.c.l.b16 %v8615
        %v8807 = vunpack.c.h.b16 %v8615
        %v8808 = vunpack.c.l.b16 %v8616
        %v8809 = vunpack.c.h.b16 %v8616
        %v8810 = vunpack.c.l.b16 %v8617
        %v8811 = vunpack.c.h.b16 %v8617
        %v8812 = vunpack.c.l.b16 %v8618
        %v8813 = vunpack.c.h.b16 %v8618
        %v8814 = vunpack.c.l.b16 %v8619
        %v8815 = vunpack.c.h.b16 %v8619
        %v8816 = vunpack.c.l.b16 %v8620
        %v8817 = vunpack.c.h.b16 %v8620
        %v8818 = vunpack.c.l.b16 %v8621
        %v8819 = vunpack.c.h.b16 %v8621
        %v8820 = vpack.c.b16 %v8694, %v8692
        %v8821 = vpack.c.b16 %v8695, %v8693
        %v8822 = vpack.c.b16 %v8698, %v8696
        %v8823 = vpack.c.b16 %v8699, %v8697
        %v8824 = vpack.c.b16 %v8702, %v8700
        %v8825 = vpack.c.b16 %v8703, %v8701
        %v8826 = vpack.c.b16 %v8706, %v8704
        %v8827 = vpack.c.b16 %v8707, %v8705
        %v8828 = vpack.c.b16 %v8710, %v8708
        %v8829 = vpack.c.b16 %v8711, %v8709
        %v8830 = vpack.c.b16 %v8714, %v8712
        %v8831 = vpack.c.b16 %v8715, %v8713
        %v8832 = vpack.c.b16 %v8718, %v8716
        %v8833 = vpack.c.b16 %v8719, %v8717
        %v8834 = vpack.c.b16 %v8722, %v8720
        %v8835 = vpack.c.b16 %v8723, %v8721
        %v8836 = vpack.c.b16 %v8726, %v8724
        %v8837 = vpack.c.b16 %v8727, %v8725
        %v8838 = vpack.c.b16 %v8730, %v8728
        %v8839 = vpack.c.b16 %v8731, %v8729
        %v8840 = vpack.c.b16 %v8734, %v8732
        %v8841 = vpack.c.b16 %v8735, %v8733
        %v8842 = vpack.c.b16 %v8738, %v8736
        %v8843 = vpack.c.b16 %v8739, %v8737
        %v8844 = vpack.c.b16 %v8742, %v8740
        %v8845 = vpack.c.b16 %v8743, %v8741
        %v8846 = vpack.c.b16 %v8746, %v8744
        %v8847 = vpack.c.b16 %v8747, %v8745
        %v8848 = vpack.c.b16 %v8750, %v8748
        %v8849 = vpack.c.b16 %v8751, %v8749
        %v8850 = vpack.c.b16 %v8754, %v8752
        %v8851 = vpack.c.b16 %v8755, %v8753
        %v8852 = vpack.c.b16 %v8758, %v8756
        %v8853 = vpack.c.b16 %v8759, %v8757
        %v8854 = vpack.c.b16 %v8762, %v8760
        %v8855 = vpack.c.b16 %v8763, %v8761
        %v8856 = vpack.c.b16 %v8766, %v8764
        %v8857 = vpack.c.b16 %v8767, %v8765
        %v8858 = vpack.c.b16 %v8770, %v8768
        %v8859 = vpack.c.b16 %v8771, %v8769
        %v8860 = vpack.c.b16 %v8774, %v8772
        %v8861 = vpack.c.b16 %v8775, %v8773
        %v8862 = vpack.c.b16 %v8778, %v8776
        %v8863 = vpack.c.b16 %v8779, %v8777
        %v8864 = vpack.c.b16 %v8782, %v8780
        %v8865 = vpack.c.b16 %v8783, %v8781
        %v8866 = vpack.c.b16 %v8786, %v8784
        %v8867 = vpack.c.b16 %v8787, %v8785
        %v8868 = vpack.c.b16 %v8790, %v8788
        %v8869 = vpack.c.b16 %v8791, %v8789
        %v8870 = vpack.c.b16 %v8794, %v8792
        %v8871 = vpack.c.b16 %v8795, %v8793
        %v8872 = vpack.c.b16 %v8798, %v8796
        %v8873 = vpack.c.b16 %v8799, %v8797
        %v8874 = vpack.c.b16 %v8802, %v8800
        %v8875 = vpack.c.b16 %v8803, %v8801
        %v8876 = vpack.c.b16 %v8806, %v8804
        %v8877 = vpack.c.b16 %v8807, %v8805
        %v8878 = vpack.c.b16 %v8810, %v8808
        %v8879 = vpack.c.b16 %v8811, %v8809
        %v8880 = vpack.c.b16 %v8814, %v8812
        %v8881 = vpack.c.b16 %v8815, %v8813
        %v8882 = vpack.c.b16 %v8818, %v8816
        %v8883 = vpack.c.b16 %v8819, %v8817
        %8948 = vmatpush.bf16.msra.mxu0 %v8834
        %8949 = vmatpush.bf16.msra.mxu0 %v8832
        %8950 = vmatpush.bf16.msra.mxu0 %v8830
        %8951 = vmatpush.bf16.msra.mxu0 %v8828
        %8952 = vmatpush.bf16.msra.mxu0 %v8826
        %8953 = vmatpush.bf16.msra.mxu0 %v8824
        %8954 = vmatpush.bf16.msra.mxu0 %v8822
        %8955 = vmatpush.bf16.msra.mxu0 %v8820
        %8956 = vmatmul.bf16.gmra.mxu0 %v8494
        %v8957 = vpop.f32.mrf.mxu0
        %v8958 = vadd.f32 %v8624, %v8957
        %v8959 = vpop.f32.mrf.mxu0
        %v8960 = vadd.f32 %v8624, %v8959
        %8961 = vmatmul.bf16.gmra.mxu0 %v8498
        %v8962 = vpop.f32.mrf.mxu0
        %v8963 = vadd.f32 %v8624, %v8962
        %v8964 = vpop.f32.mrf.mxu0
        %v8965 = vadd.f32 %v8624, %v8964
        %8966 = vmatmul.bf16.gmra.mxu0 %v8502
        %v8967 = vpop.f32.mrf.mxu0
        %v8968 = vadd.f32 %v8624, %v8967
        %v8969 = vpop.f32.mrf.mxu0
        %v8970 = vadd.f32 %v8624, %v8969
        %8971 = vmatmul.bf16.gmra.mxu0 %v8506
        %v8972 = vpop.f32.mrf.mxu0
        %v8973 = vadd.f32 %v8624, %v8972
        %v8974 = vpop.f32.mrf.mxu0
        %v8975 = vadd.f32 %v8624, %v8974
        %8976 = vmatmul.bf16.gmra.mxu0 %v8510
        %v8977 = vpop.f32.mrf.mxu0
        %v8978 = vadd.f32 %v8624, %v8977
        %v8979 = vpop.f32.mrf.mxu0
        %v8980 = vadd.f32 %v8624, %v8979
        %8981 = vmatmul.bf16.gmra.mxu0 %v8514
        %v8982 = vpop.f32.mrf.mxu0
        %v8983 = vadd.f32 %v8624, %v8982
        %v8984 = vpop.f32.mrf.mxu0
        %v8985 = vadd.f32 %v8624, %v8984
        %8986 = vmatmul.bf16.gmra.mxu0 %v8518
        %v8987 = vpop.f32.mrf.mxu0
        %v8988 = vadd.f32 %v8624, %v8987
        %v8989 = vpop.f32.mrf.mxu0
        %v8990 = vadd.f32 %v8624, %v8989
        %8991 = vmatmul.bf16.gmra.mxu0 %v8522
        %v8992 = vpop.f32.mrf.mxu0
        %v8993 = vadd.f32 %v8624, %v8992
        %v8994 = vpop.f32.mrf.mxu0
        %v8995 = vadd.f32 %v8624, %v8994
        %8996 = vmatmul.bf16.gmra.mxu0 %v8526
        %v8997 = vpop.f32.mrf.mxu0
        %v8998 = vadd.f32 %v8624, %v8997
        %v8999 = vpop.f32.mrf.mxu0
        %v9000 = vadd.f32 %v8624, %v8999
        %9001 = vmatmul.bf16.gmra.mxu0 %v8530
        %v9002 = vpop.f32.mrf.mxu0
        %v9003 = vadd.f32 %v8624, %v9002
        %v9004 = vpop.f32.mrf.mxu0
        %v9005 = vadd.f32 %v8624, %v9004
        %9006 = vmatmul.bf16.gmra.mxu0 %v8534
        %v9007 = vpop.f32.mrf.mxu0
        %v9008 = vadd.f32 %v8624, %v9007
        %v9009 = vpop.f32.mrf.mxu0
        %v9010 = vadd.f32 %v8624, %v9009
        %9011 = vmatmul.bf16.gmra.mxu0 %v8538
        %v9012 = vpop.f32.mrf.mxu0
        %v9013 = vadd.f32 %v8624, %v9012
        %v9014 = vpop.f32.mrf.mxu0
        %v9015 = vadd.f32 %v8624, %v9014
        %9016 = vmatmul.bf16.gmra.mxu0 %v8542
        %v9017 = vpop.f32.mrf.mxu0
        %v9018 = vadd.f32 %v8624, %v9017
        %v9019 = vpop.f32.mrf.mxu0
        %v9020 = vadd.f32 %v8624, %v9019
        %9021 = vmatmul.bf16.gmra.mxu0 %v8546
        %v9022 = vpop.f32.mrf.mxu0
        %v9023 = vadd.f32 %v8624, %v9022
        %v9024 = vpop.f32.mrf.mxu0
        %v9025 = vadd.f32 %v8624, %v9024
        %9026 = vmatmul.bf16.gmra.mxu0 %v8550
        %v9027 = vpop.f32.mrf.mxu0
        %v9028 = vadd.f32 %v8624, %v9027
        %v9029 = vpop.f32.mrf.mxu0
        %v9030 = vadd.f32 %v8624, %v9029
        %9031 = vmatmul.bf16.gmra.mxu0 %v8554
        %v9032 = vpop.f32.mrf.mxu0
        %v9033 = vadd.f32 %v8624, %v9032
        %v9034 = vpop.f32.mrf.mxu0
        %v9035 = vadd.f32 %v8624, %v9034
        %9036 = vdwg.mxu0
        %9037 = vmatpush.bf16.msra.mxu0 %v8850
        %9038 = vmatpush.bf16.msra.mxu0 %v8848
        %9039 = vmatpush.bf16.msra.mxu0 %v8846
        %9040 = vmatpush.bf16.msra.mxu0 %v8844
        %9041 = vmatpush.bf16.msra.mxu0 %v8842
        %9042 = vmatpush.bf16.msra.mxu0 %v8840
        %9043 = vmatpush.bf16.msra.mxu0 %v8838
        %9044 = vmatpush.bf16.msra.mxu0 %v8836
        %9045 = vmatmul.bf16.gmra.mxu0 %v8495
        %v9046 = vpop.f32.mrf.mxu0
        %v9047 = vadd.f32 %v8958, %v9046
        %v9048 = vpop.f32.mrf.mxu0
        %v9049 = vadd.f32 %v8960, %v9048
        %9050 = vmatmul.bf16.gmra.mxu0 %v8499
        %v9051 = vpop.f32.mrf.mxu0
        %v9052 = vadd.f32 %v8963, %v9051
        %v9053 = vpop.f32.mrf.mxu0
        %v9054 = vadd.f32 %v8965, %v9053
        %9055 = vmatmul.bf16.gmra.mxu0 %v8503
        %v9056 = vpop.f32.mrf.mxu0
        %v9057 = vadd.f32 %v8968, %v9056
        %v9058 = vpop.f32.mrf.mxu0
        %v9059 = vadd.f32 %v8970, %v9058
        %9060 = vmatmul.bf16.gmra.mxu0 %v8507
        %v9061 = vpop.f32.mrf.mxu0
        %v9062 = vadd.f32 %v8973, %v9061
        %v9063 = vpop.f32.mrf.mxu0
        %v9064 = vadd.f32 %v8975, %v9063
        %9065 = vmatmul.bf16.gmra.mxu0 %v8511
        %v9066 = vpop.f32.mrf.mxu0
        %v9067 = vadd.f32 %v8978, %v9066
        %v9068 = vpop.f32.mrf.mxu0
        %v9069 = vadd.f32 %v8980, %v9068
        %9070 = vmatmul.bf16.gmra.mxu0 %v8515
        %v9071 = vpop.f32.mrf.mxu0
        %v9072 = vadd.f32 %v8983, %v9071
        %v9073 = vpop.f32.mrf.mxu0
        %v9074 = vadd.f32 %v8985, %v9073
        %9075 = vmatmul.bf16.gmra.mxu0 %v8519
        %v9076 = vpop.f32.mrf.mxu0
        %v9077 = vadd.f32 %v8988, %v9076
        %v9078 = vpop.f32.mrf.mxu0
        %v9079 = vadd.f32 %v8990, %v9078
        %9080 = vmatmul.bf16.gmra.mxu0 %v8523
        %v9081 = vpop.f32.mrf.mxu0
        %v9082 = vadd.f32 %v8993, %v9081
        %v9083 = vpop.f32.mrf.mxu0
        %v9084 = vadd.f32 %v8995, %v9083
        %9085 = vmatmul.bf16.gmra.mxu0 %v8527
        %v9086 = vpop.f32.mrf.mxu0
        %v9087 = vadd.f32 %v8998, %v9086
        %v9088 = vpop.f32.mrf.mxu0
        %v9089 = vadd.f32 %v9000, %v9088
        %9090 = vmatmul.bf16.gmra.mxu0 %v8531
        %v9091 = vpop.f32.mrf.mxu0
        %v9092 = vadd.f32 %v9003, %v9091
        %v9093 = vpop.f32.mrf.mxu0
        %v9094 = vadd.f32 %v9005, %v9093
        %9095 = vmatmul.bf16.gmra.mxu0 %v8535
        %v9096 = vpop.f32.mrf.mxu0
        %v9097 = vadd.f32 %v9008, %v9096
        %v9098 = vpop.f32.mrf.mxu0
        %v9099 = vadd.f32 %v9010, %v9098
        %9100 = vmatmul.bf16.gmra.mxu0 %v8539
        %v9101 = vpop.f32.mrf.mxu0
        %v9102 = vadd.f32 %v9013, %v9101
        %v9103 = vpop.f32.mrf.mxu0
        %v9104 = vadd.f32 %v9015, %v9103
        %9105 = vmatmul.bf16.gmra.mxu0 %v8543
        %v9106 = vpop.f32.mrf.mxu0
        %v9107 = vadd.f32 %v9018, %v9106
        %v9108 = vpop.f32.mrf.mxu0
        %v9109 = vadd.f32 %v9020, %v9108
        %9110 = vmatmul.bf16.gmra.mxu0 %v8547
        %v9111 = vpop.f32.mrf.mxu0
        %v9112 = vadd.f32 %v9023, %v9111
        %v9113 = vpop.f32.mrf.mxu0
        %v9114 = vadd.f32 %v9025, %v9113
        %9115 = vmatmul.bf16.gmra.mxu0 %v8551
        %v9116 = vpop.f32.mrf.mxu0
        %v9117 = vadd.f32 %v9028, %v9116
        %v9118 = vpop.f32.mrf.mxu0
        %v9119 = vadd.f32 %v9030, %v9118
        %9120 = vmatmul.bf16.gmra.mxu0 %v8555
        %v9121 = vpop.f32.mrf.mxu0
        %v9122 = vadd.f32 %v9033, %v9121
        %v9123 = vpop.f32.mrf.mxu0
        %v9124 = vadd.f32 %v9035, %v9123
        %9125 = vdwg.mxu0
        %9126 = vmatpush.bf16.msra.mxu0 %v8866
        %9127 = vmatpush.bf16.msra.mxu0 %v8864
        %9128 = vmatpush.bf16.msra.mxu0 %v8862
        %9129 = vmatpush.bf16.msra.mxu0 %v8860
        %9130 = vmatpush.bf16.msra.mxu0 %v8858
        %9131 = vmatpush.bf16.msra.mxu0 %v8856
        %9132 = vmatpush.bf16.msra.mxu0 %v8854
        %9133 = vmatpush.bf16.msra.mxu0 %v8852
        %9134 = vmatmul.bf16.gmra.mxu0 %v8496
        %v9135 = vpop.f32.mrf.mxu0
        %v9136 = vadd.f32 %v9047, %v9135
        %v9137 = vpop.f32.mrf.mxu0
        %v9138 = vadd.f32 %v9049, %v9137
        %9139 = vmatmul.bf16.gmra.mxu0 %v8500
        %v9140 = vpop.f32.mrf.mxu0
        %v9141 = vadd.f32 %v9052, %v9140
        %v9142 = vpop.f32.mrf.mxu0
        %v9143 = vadd.f32 %v9054, %v9142
        %9144 = vmatmul.bf16.gmra.mxu0 %v8504
        %v9145 = vpop.f32.mrf.mxu0
        %v9146 = vadd.f32 %v9057, %v9145
        %v9147 = vpop.f32.mrf.mxu0
        %v9148 = vadd.f32 %v9059, %v9147
        %9149 = vmatmul.bf16.gmra.mxu0 %v8508
        %v9150 = vpop.f32.mrf.mxu0
        %v9151 = vadd.f32 %v9062, %v9150
        %v9152 = vpop.f32.mrf.mxu0
        %v9153 = vadd.f32 %v9064, %v9152
        %9154 = vmatmul.bf16.gmra.mxu0 %v8512
        %v9155 = vpop.f32.mrf.mxu0
        %v9156 = vadd.f32 %v9067, %v9155
        %v9157 = vpop.f32.mrf.mxu0
        %v9158 = vadd.f32 %v9069, %v9157
        %9159 = vmatmul.bf16.gmra.mxu0 %v8516
        %v9160 = vpop.f32.mrf.mxu0
        %v9161 = vadd.f32 %v9072, %v9160
        %v9162 = vpop.f32.mrf.mxu0
        %v9163 = vadd.f32 %v9074, %v9162
        %9164 = vmatmul.bf16.gmra.mxu0 %v8520
        %v9165 = vpop.f32.mrf.mxu0
        %v9166 = vadd.f32 %v9077, %v9165
        %v9167 = vpop.f32.mrf.mxu0
        %v9168 = vadd.f32 %v9079, %v9167
        %9169 = vmatmul.bf16.gmra.mxu0 %v8524
        %v9170 = vpop.f32.mrf.mxu0
        %v9171 = vadd.f32 %v9082, %v9170
        %v9172 = vpop.f32.mrf.mxu0
        %v9173 = vadd.f32 %v9084, %v9172
        %9174 = vmatmul.bf16.gmra.mxu0 %v8528
        %v9175 = vpop.f32.mrf.mxu0
        %v9176 = vadd.f32 %v9087, %v9175
        %v9177 = vpop.f32.mrf.mxu0
        %v9178 = vadd.f32 %v9089, %v9177
        %9179 = vmatmul.bf16.gmra.mxu0 %v8532
        %v9180 = vpop.f32.mrf.mxu0
        %v9181 = vadd.f32 %v9092, %v9180
        %v9182 = vpop.f32.mrf.mxu0
        %v9183 = vadd.f32 %v9094, %v9182
        %9184 = vmatmul.bf16.gmra.mxu0 %v8536
        %v9185 = vpop.f32.mrf.mxu0
        %v9186 = vadd.f32 %v9097, %v9185
        %v9187 = vpop.f32.mrf.mxu0
        %v9188 = vadd.f32 %v9099, %v9187
        %9189 = vmatmul.bf16.gmra.mxu0 %v8540
        %v9190 = vpop.f32.mrf.mxu0
        %v9191 = vadd.f32 %v9102, %v9190
        %v9192 = vpop.f32.mrf.mxu0
        %v9193 = vadd.f32 %v9104, %v9192
        %9194 = vmatmul.bf16.gmra.mxu0 %v8544
        %v9195 = vpop.f32.mrf.mxu0
        %v9196 = vadd.f32 %v9107, %v9195
        %v9197 = vpop.f32.mrf.mxu0
        %v9198 = vadd.f32 %v9109, %v9197
        %9199 = vmatmul.bf16.gmra.mxu0 %v8548
        %v9200 = vpop.f32.mrf.mxu0
        %v9201 = vadd.f32 %v9112, %v9200
        %v9202 = vpop.f32.mrf.mxu0
        %v9203 = vadd.f32 %v9114, %v9202
        %9204 = vmatmul.bf16.gmra.mxu0 %v8552
        %v9205 = vpop.f32.mrf.mxu0
        %v9206 = vadd.f32 %v9117, %v9205
        %v9207 = vpop.f32.mrf.mxu0
        %v9208 = vadd.f32 %v9119, %v9207
        %9209 = vmatmul.bf16.gmra.mxu0 %v8556
        %v9210 = vpop.f32.mrf.mxu0
        %v9211 = vadd.f32 %v9122, %v9210
        %v9212 = vpop.f32.mrf.mxu0
        %v9213 = vadd.f32 %v9124, %v9212
        %9214 = vdwg.mxu0
        %9215 = vmatpush.bf16.msra.mxu0 %v8882
        %9216 = vmatpush.bf16.msra.mxu0 %v8880
        %9217 = vmatpush.bf16.msra.mxu0 %v8878
        %9218 = vmatpush.bf16.msra.mxu0 %v8876
        %9219 = vmatpush.bf16.msra.mxu0 %v8874
        %9220 = vmatpush.bf16.msra.mxu0 %v8872
        %9221 = vmatpush.bf16.msra.mxu0 %v8870
        %9222 = vmatpush.bf16.msra.mxu0 %v8868
        %9223 = vmatmul.bf16.gmra.mxu0 %v8497
        %v9224 = vpop.f32.mrf.mxu0
        %v9225 = vadd.f32 %v9136, %v9224
        %v9226 = vpop.f32.mrf.mxu0
        %v9227 = vadd.f32 %v9138, %v9226
        %9228 = vmatmul.bf16.gmra.mxu0 %v8501
        %v9229 = vpop.f32.mrf.mxu0
        %v9230 = vadd.f32 %v9141, %v9229
        %v9231 = vpop.f32.mrf.mxu0
        %v9232 = vadd.f32 %v9143, %v9231
        %9233 = vmatmul.bf16.gmra.mxu0 %v8505
        %v9234 = vpop.f32.mrf.mxu0
        %v9235 = vadd.f32 %v9146, %v9234
        %v9236 = vpop.f32.mrf.mxu0
        %v9237 = vadd.f32 %v9148, %v9236
        %9238 = vmatmul.bf16.gmra.mxu0 %v8509
        %v9239 = vpop.f32.mrf.mxu0
        %v9240 = vadd.f32 %v9151, %v9239
        %v9241 = vpop.f32.mrf.mxu0
        %v9242 = vadd.f32 %v9153, %v9241
        %9243 = vmatmul.bf16.gmra.mxu0 %v8513
        %v9244 = vpop.f32.mrf.mxu0
        %v9245 = vadd.f32 %v9156, %v9244
        %v9246 = vpop.f32.mrf.mxu0
        %v9247 = vadd.f32 %v9158, %v9246
        %9248 = vmatmul.bf16.gmra.mxu0 %v8517
        %v9249 = vpop.f32.mrf.mxu0
        %v9250 = vadd.f32 %v9161, %v9249
        %v9251 = vpop.f32.mrf.mxu0
        %v9252 = vadd.f32 %v9163, %v9251
        %9253 = vmatmul.bf16.gmra.mxu0 %v8521
        %v9254 = vpop.f32.mrf.mxu0
        %v9255 = vadd.f32 %v9166, %v9254
        %v9256 = vpop.f32.mrf.mxu0
        %v9257 = vadd.f32 %v9168, %v9256
        %9258 = vmatmul.bf16.gmra.mxu0 %v8525
        %v9259 = vpop.f32.mrf.mxu0
        %v9260 = vadd.f32 %v9171, %v9259
        %v9261 = vpop.f32.mrf.mxu0
        %v9262 = vadd.f32 %v9173, %v9261
        %9263 = vmatmul.bf16.gmra.mxu0 %v8529
        %v9264 = vpop.f32.mrf.mxu0
        %v9265 = vadd.f32 %v9176, %v9264
        %v9266 = vpop.f32.mrf.mxu0
        %v9267 = vadd.f32 %v9178, %v9266
        %9268 = vmatmul.bf16.gmra.mxu0 %v8533
        %v9269 = vpop.f32.mrf.mxu0
        %v9270 = vadd.f32 %v9181, %v9269
        %v9271 = vpop.f32.mrf.mxu0
        %v9272 = vadd.f32 %v9183, %v9271
        %9273 = vmatmul.bf16.gmra.mxu0 %v8537
        %v9274 = vpop.f32.mrf.mxu0
        %v9275 = vadd.f32 %v9186, %v9274
        %v9276 = vpop.f32.mrf.mxu0
        %v9277 = vadd.f32 %v9188, %v9276
        %9278 = vmatmul.bf16.gmra.mxu0 %v8541
        %v9279 = vpop.f32.mrf.mxu0
        %v9280 = vadd.f32 %v9191, %v9279
        %v9281 = vpop.f32.mrf.mxu0
        %v9282 = vadd.f32 %v9193, %v9281
        %9283 = vmatmul.bf16.gmra.mxu0 %v8545
        %v9284 = vpop.f32.mrf.mxu0
        %v9285 = vadd.f32 %v9196, %v9284
        %v9286 = vpop.f32.mrf.mxu0
        %v9287 = vadd.f32 %v9198, %v9286
        %9288 = vmatmul.bf16.gmra.mxu0 %v8549
        %v9289 = vpop.f32.mrf.mxu0
        %v9290 = vadd.f32 %v9201, %v9289
        %v9291 = vpop.f32.mrf.mxu0
        %v9292 = vadd.f32 %v9203, %v9291
        %9293 = vmatmul.bf16.gmra.mxu0 %v8553
        %v9294 = vpop.f32.mrf.mxu0
        %v9295 = vadd.f32 %v9206, %v9294
        %v9296 = vpop.f32.mrf.mxu0
        %v9297 = vadd.f32 %v9208, %v9296
        %9298 = vmatmul.bf16.gmra.mxu0 %v8557
        %v9299 = vpop.f32.mrf.mxu0
        %v9300 = vadd.f32 %v9211, %v9299
        %v9301 = vpop.f32.mrf.mxu0
        %v9302 = vadd.f32 %v9213, %v9301
        %9303 = vdwg.mxu0
        %9304 = vmatpush.bf16.msra.mxu0 %v8835
        %9305 = vmatpush.bf16.msra.mxu0 %v8833
        %9306 = vmatpush.bf16.msra.mxu0 %v8831
        %9307 = vmatpush.bf16.msra.mxu0 %v8829
        %9308 = vmatpush.bf16.msra.mxu0 %v8827
        %9309 = vmatpush.bf16.msra.mxu0 %v8825
        %9310 = vmatpush.bf16.msra.mxu0 %v8823
        %9311 = vmatpush.bf16.msra.mxu0 %v8821
        %9312 = vmatmul.bf16.gmra.mxu0 %v8494
        %v9313 = vpop.f32.mrf.mxu0
        %v9314 = vadd.f32 %v8625, %v9313
        %v9315 = vpop.f32.mrf.mxu0
        %v9316 = vadd.f32 %v8625, %v9315
        %9317 = vmatmul.bf16.gmra.mxu0 %v8498
        %v9318 = vpop.f32.mrf.mxu0
        %v9319 = vadd.f32 %v8625, %v9318
        %v9320 = vpop.f32.mrf.mxu0
        %v9321 = vadd.f32 %v8625, %v9320
        %9322 = vmatmul.bf16.gmra.mxu0 %v8502
        %v9323 = vpop.f32.mrf.mxu0
        %v9324 = vadd.f32 %v8625, %v9323
        %v9325 = vpop.f32.mrf.mxu0
        %v9326 = vadd.f32 %v8625, %v9325
        %9327 = vmatmul.bf16.gmra.mxu0 %v8506
        %v9328 = vpop.f32.mrf.mxu0
        %v9329 = vadd.f32 %v8625, %v9328
        %v9330 = vpop.f32.mrf.mxu0
        %v9331 = vadd.f32 %v8625, %v9330
        %9332 = vmatmul.bf16.gmra.mxu0 %v8510
        %v9333 = vpop.f32.mrf.mxu0
        %v9334 = vadd.f32 %v8625, %v9333
        %v9335 = vpop.f32.mrf.mxu0
        %v9336 = vadd.f32 %v8625, %v9335
        %9337 = vmatmul.bf16.gmra.mxu0 %v8514
        %v9338 = vpop.f32.mrf.mxu0
        %v9339 = vadd.f32 %v8625, %v9338
        %v9340 = vpop.f32.mrf.mxu0
        %v9341 = vadd.f32 %v8625, %v9340
        %9342 = vmatmul.bf16.gmra.mxu0 %v8518
        %v9343 = vpop.f32.mrf.mxu0
        %v9344 = vadd.f32 %v8625, %v9343
        %v9345 = vpop.f32.mrf.mxu0
        %v9346 = vadd.f32 %v8625, %v9345
        %9347 = vmatmul.bf16.gmra.mxu0 %v8522
        %v9348 = vpop.f32.mrf.mxu0
        %v9349 = vadd.f32 %v8625, %v9348
        %v9350 = vpop.f32.mrf.mxu0
        %v9351 = vadd.f32 %v8625, %v9350
        %9352 = vmatmul.bf16.gmra.mxu0 %v8526
        %v9353 = vpop.f32.mrf.mxu0
        %v9354 = vadd.f32 %v8625, %v9353
        %v9355 = vpop.f32.mrf.mxu0
        %v9356 = vadd.f32 %v8625, %v9355
        %9357 = vmatmul.bf16.gmra.mxu0 %v8530
        %v9358 = vpop.f32.mrf.mxu0
        %v9359 = vadd.f32 %v8625, %v9358
        %v9360 = vpop.f32.mrf.mxu0
        %v9361 = vadd.f32 %v8625, %v9360
        %9362 = vmatmul.bf16.gmra.mxu0 %v8534
        %v9363 = vpop.f32.mrf.mxu0
        %v9364 = vadd.f32 %v8625, %v9363
        %v9365 = vpop.f32.mrf.mxu0
        %v9366 = vadd.f32 %v8625, %v9365
        %9367 = vmatmul.bf16.gmra.mxu0 %v8538
        %v9368 = vpop.f32.mrf.mxu0
        %v9369 = vadd.f32 %v8625, %v9368
        %v9370 = vpop.f32.mrf.mxu0
        %v9371 = vadd.f32 %v8625, %v9370
        %9372 = vmatmul.bf16.gmra.mxu0 %v8542
        %v9373 = vpop.f32.mrf.mxu0
        %v9374 = vadd.f32 %v8625, %v9373
        %v9375 = vpop.f32.mrf.mxu0
        %v9376 = vadd.f32 %v8625, %v9375
        %9377 = vmatmul.bf16.gmra.mxu0 %v8546
        %v9378 = vpop.f32.mrf.mxu0
        %v9379 = vadd.f32 %v8625, %v9378
        %v9380 = vpop.f32.mrf.mxu0
        %v9381 = vadd.f32 %v8625, %v9380
        %9382 = vmatmul.bf16.gmra.mxu0 %v8550
        %v9383 = vpop.f32.mrf.mxu0
        %v9384 = vadd.f32 %v8625, %v9383
        %v9385 = vpop.f32.mrf.mxu0
        %v9386 = vadd.f32 %v8625, %v9385
        %9387 = vmatmul.bf16.gmra.mxu0 %v8554
        %v9388 = vpop.f32.mrf.mxu0
        %v9389 = vadd.f32 %v8625, %v9388
        %v9390 = vpop.f32.mrf.mxu0
        %v9391 = vadd.f32 %v8625, %v9390
        %9392 = vdwg.mxu0
        %9393 = vmatpush.bf16.msra.mxu0 %v8851
        %9394 = vmatpush.bf16.msra.mxu0 %v8849
        %9395 = vmatpush.bf16.msra.mxu0 %v8847
        %9396 = vmatpush.bf16.msra.mxu0 %v8845
        %9397 = vmatpush.bf16.msra.mxu0 %v8843
        %9398 = vmatpush.bf16.msra.mxu0 %v8841
        %9399 = vmatpush.bf16.msra.mxu0 %v8839
        %9400 = vmatpush.bf16.msra.mxu0 %v8837
        %9401 = vmatmul.bf16.gmra.mxu0 %v8495
        %v9402 = vpop.f32.mrf.mxu0
        %v9403 = vadd.f32 %v9314, %v9402
        %v9404 = vpop.f32.mrf.mxu0
        %v9405 = vadd.f32 %v9316, %v9404
        %9406 = vmatmul.bf16.gmra.mxu0 %v8499
        %v9407 = vpop.f32.mrf.mxu0
        %v9408 = vadd.f32 %v9319, %v9407
        %v9409 = vpop.f32.mrf.mxu0
        %v9410 = vadd.f32 %v9321, %v9409
        %9411 = vmatmul.bf16.gmra.mxu0 %v8503
        %v9412 = vpop.f32.mrf.mxu0
        %v9413 = vadd.f32 %v9324, %v9412
        %v9414 = vpop.f32.mrf.mxu0
        %v9415 = vadd.f32 %v9326, %v9414
        %9416 = vmatmul.bf16.gmra.mxu0 %v8507
        %v9417 = vpop.f32.mrf.mxu0
        %v9418 = vadd.f32 %v9329, %v9417
        %v9419 = vpop.f32.mrf.mxu0
        %v9420 = vadd.f32 %v9331, %v9419
        %9421 = vmatmul.bf16.gmra.mxu0 %v8511
        %v9422 = vpop.f32.mrf.mxu0
        %v9423 = vadd.f32 %v9334, %v9422
        %v9424 = vpop.f32.mrf.mxu0
        %v9425 = vadd.f32 %v9336, %v9424
        %9426 = vmatmul.bf16.gmra.mxu0 %v8515
        %v9427 = vpop.f32.mrf.mxu0
        %v9428 = vadd.f32 %v9339, %v9427
        %v9429 = vpop.f32.mrf.mxu0
        %v9430 = vadd.f32 %v9341, %v9429
        %9431 = vmatmul.bf16.gmra.mxu0 %v8519
        %v9432 = vpop.f32.mrf.mxu0
        %v9433 = vadd.f32 %v9344, %v9432
        %v9434 = vpop.f32.mrf.mxu0
        %v9435 = vadd.f32 %v9346, %v9434
        %9436 = vmatmul.bf16.gmra.mxu0 %v8523
        %v9437 = vpop.f32.mrf.mxu0
        %v9438 = vadd.f32 %v9349, %v9437
        %v9439 = vpop.f32.mrf.mxu0
        %v9440 = vadd.f32 %v9351, %v9439
        %9441 = vmatmul.bf16.gmra.mxu0 %v8527
        %v9442 = vpop.f32.mrf.mxu0
        %v9443 = vadd.f32 %v9354, %v9442
        %v9444 = vpop.f32.mrf.mxu0
        %v9445 = vadd.f32 %v9356, %v9444
        %9446 = vmatmul.bf16.gmra.mxu0 %v8531
        %v9447 = vpop.f32.mrf.mxu0
        %v9448 = vadd.f32 %v9359, %v9447
        %v9449 = vpop.f32.mrf.mxu0
        %v9450 = vadd.f32 %v9361, %v9449
        %9451 = vmatmul.bf16.gmra.mxu0 %v8535
        %v9452 = vpop.f32.mrf.mxu0
        %v9453 = vadd.f32 %v9364, %v9452
        %v9454 = vpop.f32.mrf.mxu0
        %v9455 = vadd.f32 %v9366, %v9454
        %9456 = vmatmul.bf16.gmra.mxu0 %v8539
        %v9457 = vpop.f32.mrf.mxu0
        %v9458 = vadd.f32 %v9369, %v9457
        %v9459 = vpop.f32.mrf.mxu0
        %v9460 = vadd.f32 %v9371, %v9459
        %9461 = vmatmul.bf16.gmra.mxu0 %v8543
        %v9462 = vpop.f32.mrf.mxu0
        %v9463 = vadd.f32 %v9374, %v9462
        %v9464 = vpop.f32.mrf.mxu0
        %v9465 = vadd.f32 %v9376, %v9464
        %9466 = vmatmul.bf16.gmra.mxu0 %v8547
        %v9467 = vpop.f32.mrf.mxu0
        %v9468 = vadd.f32 %v9379, %v9467
        %v9469 = vpop.f32.mrf.mxu0
        %v9470 = vadd.f32 %v9381, %v9469
        %9471 = vmatmul.bf16.gmra.mxu0 %v8551
        %v9472 = vpop.f32.mrf.mxu0
        %v9473 = vadd.f32 %v9384, %v9472
        %v9474 = vpop.f32.mrf.mxu0
        %v9475 = vadd.f32 %v9386, %v9474
        %9476 = vmatmul.bf16.gmra.mxu0 %v8555
        %v9477 = vpop.f32.mrf.mxu0
        %v9478 = vadd.f32 %v9389, %v9477
        %v9479 = vpop.f32.mrf.mxu0
        %v9480 = vadd.f32 %v9391, %v9479
        %9481 = vdwg.mxu0
        %9482 = vmatpush.bf16.msra.mxu0 %v8867
        %9483 = vmatpush.bf16.msra.mxu0 %v8865
        %9484 = vmatpush.bf16.msra.mxu0 %v8863
        %9485 = vmatpush.bf16.msra.mxu0 %v8861
        %9486 = vmatpush.bf16.msra.mxu0 %v8859
        %9487 = vmatpush.bf16.msra.mxu0 %v8857
        %9488 = vmatpush.bf16.msra.mxu0 %v8855
        %9489 = vmatpush.bf16.msra.mxu0 %v8853
        %9490 = vmatmul.bf16.gmra.mxu0 %v8496
        %v9491 = vpop.f32.mrf.mxu0
        %v9492 = vadd.f32 %v9403, %v9491
        %v9493 = vpop.f32.mrf.mxu0
        %v9494 = vadd.f32 %v9405, %v9493
        %9495 = vmatmul.bf16.gmra.mxu0 %v8500
        %v9496 = vpop.f32.mrf.mxu0
        %v9497 = vadd.f32 %v9408, %v9496
        %v9498 = vpop.f32.mrf.mxu0
        %v9499 = vadd.f32 %v9410, %v9498
        %9500 = vmatmul.bf16.gmra.mxu0 %v8504
        %v9501 = vpop.f32.mrf.mxu0
        %v9502 = vadd.f32 %v9413, %v9501
        %v9503 = vpop.f32.mrf.mxu0
        %v9504 = vadd.f32 %v9415, %v9503
        %9505 = vmatmul.bf16.gmra.mxu0 %v8508
        %v9506 = vpop.f32.mrf.mxu0
        %v9507 = vadd.f32 %v9418, %v9506
        %v9508 = vpop.f32.mrf.mxu0
        %v9509 = vadd.f32 %v9420, %v9508
        %9510 = vmatmul.bf16.gmra.mxu0 %v8512
        %v9511 = vpop.f32.mrf.mxu0
        %v9512 = vadd.f32 %v9423, %v9511
        %v9513 = vpop.f32.mrf.mxu0
        %v9514 = vadd.f32 %v9425, %v9513
        %9515 = vmatmul.bf16.gmra.mxu0 %v8516
        %v9516 = vpop.f32.mrf.mxu0
        %v9517 = vadd.f32 %v9428, %v9516
        %v9518 = vpop.f32.mrf.mxu0
        %v9519 = vadd.f32 %v9430, %v9518
        %9520 = vmatmul.bf16.gmra.mxu0 %v8520
        %v9521 = vpop.f32.mrf.mxu0
        %v9522 = vadd.f32 %v9433, %v9521
        %v9523 = vpop.f32.mrf.mxu0
        %v9524 = vadd.f32 %v9435, %v9523
        %9525 = vmatmul.bf16.gmra.mxu0 %v8524
        %v9526 = vpop.f32.mrf.mxu0
        %v9527 = vadd.f32 %v9438, %v9526
        %v9528 = vpop.f32.mrf.mxu0
        %v9529 = vadd.f32 %v9440, %v9528
        %9530 = vmatmul.bf16.gmra.mxu0 %v8528
        %v9531 = vpop.f32.mrf.mxu0
        %v9532 = vadd.f32 %v9443, %v9531
        %v9533 = vpop.f32.mrf.mxu0
        %v9534 = vadd.f32 %v9445, %v9533
        %9535 = vmatmul.bf16.gmra.mxu0 %v8532
        %v9536 = vpop.f32.mrf.mxu0
        %v9537 = vadd.f32 %v9448, %v9536
        %v9538 = vpop.f32.mrf.mxu0
        %v9539 = vadd.f32 %v9450, %v9538
        %9540 = vmatmul.bf16.gmra.mxu0 %v8536
        %v9541 = vpop.f32.mrf.mxu0
        %v9542 = vadd.f32 %v9453, %v9541
        %v9543 = vpop.f32.mrf.mxu0
        %v9544 = vadd.f32 %v9455, %v9543
        %9545 = vmatmul.bf16.gmra.mxu0 %v8540
        %v9546 = vpop.f32.mrf.mxu0
        %v9547 = vadd.f32 %v9458, %v9546
        %v9548 = vpop.f32.mrf.mxu0
        %v9549 = vadd.f32 %v9460, %v9548
        %9550 = vmatmul.bf16.gmra.mxu0 %v8544
        %v9551 = vpop.f32.mrf.mxu0
        %v9552 = vadd.f32 %v9463, %v9551
        %v9553 = vpop.f32.mrf.mxu0
        %v9554 = vadd.f32 %v9465, %v9553
        %9555 = vmatmul.bf16.gmra.mxu0 %v8548
        %v9556 = vpop.f32.mrf.mxu0
        %v9557 = vadd.f32 %v9468, %v9556
        %v9558 = vpop.f32.mrf.mxu0
        %v9559 = vadd.f32 %v9470, %v9558
        %9560 = vmatmul.bf16.gmra.mxu0 %v8552
        %v9561 = vpop.f32.mrf.mxu0
        %v9562 = vadd.f32 %v9473, %v9561
        %v9563 = vpop.f32.mrf.mxu0
        %v9564 = vadd.f32 %v9475, %v9563
        %9565 = vmatmul.bf16.gmra.mxu0 %v8556
        %v9566 = vpop.f32.mrf.mxu0
        %v9567 = vadd.f32 %v9478, %v9566
        %v9568 = vpop.f32.mrf.mxu0
        %v9569 = vadd.f32 %v9480, %v9568
        %9570 = vdwg.mxu0
        %9571 = vmatpush.bf16.msra.mxu0 %v8883
        %9572 = vmatpush.bf16.msra.mxu0 %v8881
        %9573 = vmatpush.bf16.msra.mxu0 %v8879
        %9574 = vmatpush.bf16.msra.mxu0 %v8877
        %9575 = vmatpush.bf16.msra.mxu0 %v8875
        %9576 = vmatpush.bf16.msra.mxu0 %v8873
        %9577 = vmatpush.bf16.msra.mxu0 %v8871
        %9578 = vmatpush.bf16.msra.mxu0 %v8869
        %9579 = vmatmul.bf16.gmra.mxu0 %v8497
        %v9580 = vpop.f32.mrf.mxu0
        %v9581 = vadd.f32 %v9492, %v9580
        %v9582 = vpop.f32.mrf.mxu0
        %v9583 = vadd.f32 %v9494, %v9582
        %9584 = vmatmul.bf16.gmra.mxu0 %v8501
        %v9585 = vpop.f32.mrf.mxu0
        %v9586 = vadd.f32 %v9497, %v9585
        %v9587 = vpop.f32.mrf.mxu0
        %v9588 = vadd.f32 %v9499, %v9587
        %9589 = vmatmul.bf16.gmra.mxu0 %v8505
        %v9590 = vpop.f32.mrf.mxu0
        %v9591 = vadd.f32 %v9502, %v9590
        %v9592 = vpop.f32.mrf.mxu0
        %v9593 = vadd.f32 %v9504, %v9592
        %9594 = vmatmul.bf16.gmra.mxu0 %v8509
        %v9595 = vpop.f32.mrf.mxu0
        %v9596 = vadd.f32 %v9507, %v9595
        %v9597 = vpop.f32.mrf.mxu0
        %v9598 = vadd.f32 %v9509, %v9597
        %9599 = vmatmul.bf16.gmra.mxu0 %v8513
        %v9600 = vpop.f32.mrf.mxu0
        %v9601 = vadd.f32 %v9512, %v9600
        %v9602 = vpop.f32.mrf.mxu0
        %v9603 = vadd.f32 %v9514, %v9602
        %9604 = vmatmul.bf16.gmra.mxu0 %v8517
        %v9605 = vpop.f32.mrf.mxu0
        %v9606 = vadd.f32 %v9517, %v9605
        %v9607 = vpop.f32.mrf.mxu0
        %v9608 = vadd.f32 %v9519, %v9607
        %9609 = vmatmul.bf16.gmra.mxu0 %v8521
        %v9610 = vpop.f32.mrf.mxu0
        %v9611 = vadd.f32 %v9522, %v9610
        %v9612 = vpop.f32.mrf.mxu0
        %v9613 = vadd.f32 %v9524, %v9612
        %9614 = vmatmul.bf16.gmra.mxu0 %v8525
        %v9615 = vpop.f32.mrf.mxu0
        %v9616 = vadd.f32 %v9527, %v9615
        %v9617 = vpop.f32.mrf.mxu0
        %v9618 = vadd.f32 %v9529, %v9617
        %9619 = vmatmul.bf16.gmra.mxu0 %v8529
        %v9620 = vpop.f32.mrf.mxu0
        %v9621 = vadd.f32 %v9532, %v9620
        %v9622 = vpop.f32.mrf.mxu0
        %v9623 = vadd.f32 %v9534, %v9622
        %9624 = vmatmul.bf16.gmra.mxu0 %v8533
        %v9625 = vpop.f32.mrf.mxu0
        %v9626 = vadd.f32 %v9537, %v9625
        %v9627 = vpop.f32.mrf.mxu0
        %v9628 = vadd.f32 %v9539, %v9627
        %9629 = vmatmul.bf16.gmra.mxu0 %v8537
        %v9630 = vpop.f32.mrf.mxu0
        %v9631 = vadd.f32 %v9542, %v9630
        %v9632 = vpop.f32.mrf.mxu0
        %v9633 = vadd.f32 %v9544, %v9632
        %9634 = vmatmul.bf16.gmra.mxu0 %v8541
        %v9635 = vpop.f32.mrf.mxu0
        %v9636 = vadd.f32 %v9547, %v9635
        %v9637 = vpop.f32.mrf.mxu0
        %v9638 = vadd.f32 %v9549, %v9637
        %9639 = vmatmul.bf16.gmra.mxu0 %v8545
        %v9640 = vpop.f32.mrf.mxu0
        %v9641 = vadd.f32 %v9552, %v9640
        %v9642 = vpop.f32.mrf.mxu0
        %v9643 = vadd.f32 %v9554, %v9642
        %9644 = vmatmul.bf16.gmra.mxu0 %v8549
        %v9645 = vpop.f32.mrf.mxu0
        %v9646 = vadd.f32 %v9557, %v9645
        %v9647 = vpop.f32.mrf.mxu0
        %v9648 = vadd.f32 %v9559, %v9647
        %9649 = vmatmul.bf16.gmra.mxu0 %v8553
        %v9650 = vpop.f32.mrf.mxu0
        %v9651 = vadd.f32 %v9562, %v9650
        %v9652 = vpop.f32.mrf.mxu0
        %v9653 = vadd.f32 %v9564, %v9652
        %9654 = vmatmul.bf16.gmra.mxu0 %v8557
        %v9655 = vpop.f32.mrf.mxu0
        %v9656 = vadd.f32 %v9567, %v9655
        %v9657 = vpop.f32.mrf.mxu0
        %v9658 = vadd.f32 %v9569, %v9657
        %9659 = vdwg.mxu0
        %v9660 = vtanh.pop %v9225
        %v9661 = vtanh.pop %v9227
        %v9662 = vtanh.pop %v9230
        %v9663 = vtanh.pop %v9232
        %v9664 = vtanh.pop %v9235
        %v9665 = vtanh.pop %v9237
        %v9666 = vtanh.pop %v9240
        %v9667 = vtanh.pop %v9242
        %v9668 = vtanh.pop %v9245
        %v9669 = vtanh.pop %v9247
        %v9670 = vtanh.pop %v9250
        %v9671 = vtanh.pop %v9252
        %v9672 = vtanh.pop %v9255
        %v9673 = vtanh.pop %v9257
        %v9674 = vtanh.pop %v9260
        %v9675 = vtanh.pop %v9262
        %v9676 = vtanh.pop %v9265
        %v9677 = vtanh.pop %v9267
        %v9678 = vtanh.pop %v9270
        %v9679 = vtanh.pop %v9272
        %v9680 = vtanh.pop %v9275
        %v9681 = vtanh.pop %v9277
        %v9682 = vtanh.pop %v9280
        %v9683 = vtanh.pop %v9282
        %v9684 = vtanh.pop %v9285
        %v9685 = vtanh.pop %v9287
        %v9686 = vtanh.pop %v9290
        %v9687 = vtanh.pop %v9292
        %v9688 = vtanh.pop %v9295
        %v9689 = vtanh.pop %v9297
        %v9690 = vtanh.pop %v9300
        %v9691 = vtanh.pop %v9302
        %v9692 = vxor.u32 %v9581, 2147483648
        %v9693 = vxor.u32 %v9583, 2147483648
        %v9694 = vxor.u32 %v9586, 2147483648
        %v9695 = vxor.u32 %v9588, 2147483648
        %v9696 = vxor.u32 %v9591, 2147483648
        %v9697 = vxor.u32 %v9593, 2147483648
        %v9698 = vxor.u32 %v9596, 2147483648
        %v9699 = vxor.u32 %v9598, 2147483648
        %v9700 = vxor.u32 %v9601, 2147483648
        %v9701 = vxor.u32 %v9603, 2147483648
        %v9702 = vxor.u32 %v9606, 2147483648
        %v9703 = vxor.u32 %v9608, 2147483648
        %v9704 = vxor.u32 %v9611, 2147483648
        %v9705 = vxor.u32 %v9613, 2147483648
        %v9706 = vxor.u32 %v9616, 2147483648
        %v9707 = vxor.u32 %v9618, 2147483648
        %v9708 = vxor.u32 %v9621, 2147483648
        %v9709 = vxor.u32 %v9623, 2147483648
        %v9710 = vxor.u32 %v9626, 2147483648
        %v9711 = vxor.u32 %v9628, 2147483648
        %v9712 = vxor.u32 %v9631, 2147483648
        %v9713 = vxor.u32 %v9633, 2147483648
        %v9714 = vxor.u32 %v9636, 2147483648
        %v9715 = vxor.u32 %v9638, 2147483648
        %v9716 = vxor.u32 %v9641, 2147483648
        %v9717 = vxor.u32 %v9643, 2147483648
        %v9718 = vxor.u32 %v9646, 2147483648
        %v9719 = vxor.u32 %v9648, 2147483648
        %v9720 = vxor.u32 %v9651, 2147483648
        %v9721 = vxor.u32 %v9653, 2147483648
        %v9722 = vxor.u32 %v9656, 2147483648
        %v9723 = vxor.u32 %v9658, 2147483648
        %v9724 = vmul.f32 %v9692, 1.442695
        %v9725 = vpow.pop %v9724
        %v9726 = vmul.f32 %v9693, 1.442695
        %v9727 = vpow.pop %v9726
        %v9728 = vmul.f32 %v9694, 1.442695
        %v9729 = vpow.pop %v9728
        %v9730 = vmul.f32 %v9695, 1.442695
        %v9731 = vpow.pop %v9730
        %v9732 = vmul.f32 %v9696, 1.442695
        %v9733 = vpow.pop %v9732
        %v9734 = vmul.f32 %v9697, 1.442695
        %v9735 = vpow.pop %v9734
        %v9736 = vmul.f32 %v9698, 1.442695
        %v9737 = vpow.pop %v9736
        %v9738 = vmul.f32 %v9699, 1.442695
        %v9739 = vpow.pop %v9738
        %v9740 = vmul.f32 %v9700, 1.442695
        %v9741 = vpow.pop %v9740
        %v9742 = vmul.f32 %v9701, 1.442695
        %v9743 = vpow.pop %v9742
        %v9744 = vmul.f32 %v9702, 1.442695
        %v9745 = vpow.pop %v9744
        %v9746 = vmul.f32 %v9703, 1.442695
        %v9747 = vpow.pop %v9746
        %v9748 = vmul.f32 %v9704, 1.442695
        %v9749 = vpow.pop %v9748
        %v9750 = vmul.f32 %v9705, 1.442695
        %v9751 = vpow.pop %v9750
        %v9752 = vmul.f32 %v9706, 1.442695
        %v9753 = vpow.pop %v9752
        %v9754 = vmul.f32 %v9707, 1.442695
        %v9755 = vpow.pop %v9754
        %v9756 = vmul.f32 %v9708, 1.442695
        %v9757 = vpow.pop %v9756
        %v9758 = vmul.f32 %v9709, 1.442695
        %v9759 = vpow.pop %v9758
        %v9760 = vmul.f32 %v9710, 1.442695
        %v9761 = vpow.pop %v9760
        %v9762 = vmul.f32 %v9711, 1.442695
        %v9763 = vpow.pop %v9762
        %v9764 = vmul.f32 %v9712, 1.442695
        %v9765 = vpow.pop %v9764
        %v9766 = vmul.f32 %v9713, 1.442695
        %v9767 = vpow.pop %v9766
        %v9768 = vmul.f32 %v9714, 1.442695
        %v9769 = vpow.pop %v9768
        %v9770 = vmul.f32 %v9715, 1.442695
        %v9771 = vpow.pop %v9770
        %v9772 = vmul.f32 %v9716, 1.442695
        %v9773 = vpow.pop %v9772
        %v9774 = vmul.f32 %v9717, 1.442695
        %v9775 = vpow.pop %v9774
        %v9776 = vmul.f32 %v9718, 1.442695
        %v9777 = vpow.pop %v9776
        %v9778 = vmul.f32 %v9719, 1.442695
        %v9779 = vpow.pop %v9778
        %v9780 = vmul.f32 %v9720, 1.442695
        %v9781 = vpow.pop %v9780
        %v9782 = vmul.f32 %v9721, 1.442695
        %v9783 = vpow.pop %v9782
        %v9784 = vmul.f32 %v9722, 1.442695
        %v9785 = vpow.pop %v9784
        %v9786 = vmul.f32 %v9723, 1.442695
        %v9787 = vpow.pop %v9786
        %v9788 = vadd.f32 %v9725, 1.0
        %v9789 = vadd.f32 %v9727, 1.0
        %v9790 = vadd.f32 %v9729, 1.0
        %v9791 = vadd.f32 %v9731, 1.0
        %v9792 = vadd.f32 %v9733, 1.0
        %v9793 = vadd.f32 %v9735, 1.0
        %v9794 = vadd.f32 %v9737, 1.0
        %v9795 = vadd.f32 %v9739, 1.0
        %v9796 = vadd.f32 %v9741, 1.0
        %v9797 = vadd.f32 %v9743, 1.0
        %v9798 = vadd.f32 %v9745, 1.0
        %v9799 = vadd.f32 %v9747, 1.0
        %v9800 = vadd.f32 %v9749, 1.0
        %v9801 = vadd.f32 %v9751, 1.0
        %v9802 = vadd.f32 %v9753, 1.0
        %v9803 = vadd.f32 %v9755, 1.0
        %v9804 = vadd.f32 %v9757, 1.0
        %v9805 = vadd.f32 %v9759, 1.0
        %v9806 = vadd.f32 %v9761, 1.0
        %v9807 = vadd.f32 %v9763, 1.0
        %v9808 = vadd.f32 %v9765, 1.0
        %v9809 = vadd.f32 %v9767, 1.0
        %v9810 = vadd.f32 %v9769, 1.0
        %v9811 = vadd.f32 %v9771, 1.0
        %v9812 = vadd.f32 %v9773, 1.0
        %v9813 = vadd.f32 %v9775, 1.0
        %v9814 = vadd.f32 %v9777, 1.0
        %v9815 = vadd.f32 %v9779, 1.0
        %v9816 = vadd.f32 %v9781, 1.0
        %v9817 = vadd.f32 %v9783, 1.0
        %v9818 = vadd.f32 %v9785, 1.0
        %v9819 = vadd.f32 %v9787, 1.0
        %v9820 = vrcp.pop %v9788
        %v9821 = vmul.f32 %v9788, %v9820
        %v9822 = vsub.f32 1.0, %v9821
        %v9823 = vmul.f32 %v9820, %v9822
        %v9824 = vadd.f32 %v9820, %v9823
        %vm9825 = vweird.f32 %v9788
        %vm9826 = vweird.f32 %v9820
        %vm9827 = vmor %vm9825, %vm9826
        %v9828 = vsel %vm9827, %v9820, %v9824
        %v9829 = vand.u32 2147483647, %v9788
        %vm9830 = vcmp.eq.f32.partialorder %v9829, 8.507059e+37
        %v9831 = vand.u32 %v9788, 2147483648
        %v9832 = vor.u32 1.1754944e-38, %v9831
        %v9833 = vsel %vm9830, %v9832, %v9828
        %v9834 = vmul.f32 1.0, %v9833
        %v9835 = vrcp.pop %v9789
        %v9836 = vmul.f32 %v9789, %v9835
        %v9837 = vsub.f32 1.0, %v9836
        %v9838 = vmul.f32 %v9835, %v9837
        %v9839 = vadd.f32 %v9835, %v9838
        %vm9840 = vweird.f32 %v9789
        %vm9841 = vweird.f32 %v9835
        %vm9842 = vmor %vm9840, %vm9841
        %v9843 = vsel %vm9842, %v9835, %v9839
        %v9844 = vand.u32 2147483647, %v9789
        %vm9845 = vcmp.eq.f32.partialorder %v9844, 8.507059e+37
        %v9846 = vand.u32 %v9789, 2147483648
        %v9847 = vor.u32 1.1754944e-38, %v9846
        %v9848 = vsel %vm9845, %v9847, %v9843
        %v9849 = vmul.f32 1.0, %v9848
        %v9850 = vrcp.pop %v9790
        %v9851 = vmul.f32 %v9790, %v9850
        %v9852 = vsub.f32 1.0, %v9851
        %v9853 = vmul.f32 %v9850, %v9852
        %v9854 = vadd.f32 %v9850, %v9853
        %vm9855 = vweird.f32 %v9790
        %vm9856 = vweird.f32 %v9850
        %vm9857 = vmor %vm9855, %vm9856
        %v9858 = vsel %vm9857, %v9850, %v9854
        %v9859 = vand.u32 2147483647, %v9790
        %vm9860 = vcmp.eq.f32.partialorder %v9859, 8.507059e+37
        %v9861 = vand.u32 %v9790, 2147483648
        %v9862 = vor.u32 1.1754944e-38, %v9861
        %v9863 = vsel %vm9860, %v9862, %v9858
        %v9864 = vmul.f32 1.0, %v9863
        %v9865 = vrcp.pop %v9791
        %v9866 = vmul.f32 %v9791, %v9865
        %v9867 = vsub.f32 1.0, %v9866
        %v9868 = vmul.f32 %v9865, %v9867
        %v9869 = vadd.f32 %v9865, %v9868
        %vm9870 = vweird.f32 %v9791
        %vm9871 = vweird.f32 %v9865
        %vm9872 = vmor %vm9870, %vm9871
        %v9873 = vsel %vm9872, %v9865, %v9869
        %v9874 = vand.u32 2147483647, %v9791
        %vm9875 = vcmp.eq.f32.partialorder %v9874, 8.507059e+37
        %v9876 = vand.u32 %v9791, 2147483648
        %v9877 = vor.u32 1.1754944e-38, %v9876
        %v9878 = vsel %vm9875, %v9877, %v9873
        %v9879 = vmul.f32 1.0, %v9878
        %v9880 = vrcp.pop %v9792
        %v9881 = vmul.f32 %v9792, %v9880
        %v9882 = vsub.f32 1.0, %v9881
        %v9883 = vmul.f32 %v9880, %v9882
        %v9884 = vadd.f32 %v9880, %v9883
        %vm9885 = vweird.f32 %v9792
        %vm9886 = vweird.f32 %v9880
        %vm9887 = vmor %vm9885, %vm9886
        %v9888 = vsel %vm9887, %v9880, %v9884
        %v9889 = vand.u32 2147483647, %v9792
        %vm9890 = vcmp.eq.f32.partialorder %v9889, 8.507059e+37
        %v9891 = vand.u32 %v9792, 2147483648
        %v9892 = vor.u32 1.1754944e-38, %v9891
        %v9893 = vsel %vm9890, %v9892, %v9888
        %v9894 = vmul.f32 1.0, %v9893
        %v9895 = vrcp.pop %v9793
        %v9896 = vmul.f32 %v9793, %v9895
        %v9897 = vsub.f32 1.0, %v9896
        %v9898 = vmul.f32 %v9895, %v9897
        %v9899 = vadd.f32 %v9895, %v9898
        %vm9900 = vweird.f32 %v9793
        %vm9901 = vweird.f32 %v9895
        %vm9902 = vmor %vm9900, %vm9901
        %v9903 = vsel %vm9902, %v9895, %v9899
        %v9904 = vand.u32 2147483647, %v9793
        %vm9905 = vcmp.eq.f32.partialorder %v9904, 8.507059e+37
        %v9906 = vand.u32 %v9793, 2147483648
        %v9907 = vor.u32 1.1754944e-38, %v9906
        %v9908 = vsel %vm9905, %v9907, %v9903
        %v9909 = vmul.f32 1.0, %v9908
        %v9910 = vrcp.pop %v9794
        %v9911 = vmul.f32 %v9794, %v9910
        %v9912 = vsub.f32 1.0, %v9911
        %v9913 = vmul.f32 %v9910, %v9912
        %v9914 = vadd.f32 %v9910, %v9913
        %vm9915 = vweird.f32 %v9794
        %vm9916 = vweird.f32 %v9910
        %vm9917 = vmor %vm9915, %vm9916
        %v9918 = vsel %vm9917, %v9910, %v9914
        %v9919 = vand.u32 2147483647, %v9794
        %vm9920 = vcmp.eq.f32.partialorder %v9919, 8.507059e+37
        %v9921 = vand.u32 %v9794, 2147483648
        %v9922 = vor.u32 1.1754944e-38, %v9921
        %v9923 = vsel %vm9920, %v9922, %v9918
        %v9924 = vmul.f32 1.0, %v9923
        %v9925 = vrcp.pop %v9795
        %v9926 = vmul.f32 %v9795, %v9925
        %v9927 = vsub.f32 1.0, %v9926
        %v9928 = vmul.f32 %v9925, %v9927
        %v9929 = vadd.f32 %v9925, %v9928
        %vm9930 = vweird.f32 %v9795
        %vm9931 = vweird.f32 %v9925
        %vm9932 = vmor %vm9930, %vm9931
        %v9933 = vsel %vm9932, %v9925, %v9929
        %v9934 = vand.u32 2147483647, %v9795
        %vm9935 = vcmp.eq.f32.partialorder %v9934, 8.507059e+37
        %v9936 = vand.u32 %v9795, 2147483648
        %v9937 = vor.u32 1.1754944e-38, %v9936
        %v9938 = vsel %vm9935, %v9937, %v9933
        %v9939 = vmul.f32 1.0, %v9938
        %v9940 = vrcp.pop %v9796
        %v9941 = vmul.f32 %v9796, %v9940
        %v9942 = vsub.f32 1.0, %v9941
        %v9943 = vmul.f32 %v9940, %v9942
        %v9944 = vadd.f32 %v9940, %v9943
        %vm9945 = vweird.f32 %v9796
        %vm9946 = vweird.f32 %v9940
        %vm9947 = vmor %vm9945, %vm9946
        %v9948 = vsel %vm9947, %v9940, %v9944
        %v9949 = vand.u32 2147483647, %v9796
        %vm9950 = vcmp.eq.f32.partialorder %v9949, 8.507059e+37
        %v9951 = vand.u32 %v9796, 2147483648
        %v9952 = vor.u32 1.1754944e-38, %v9951
        %v9953 = vsel %vm9950, %v9952, %v9948
        %v9954 = vmul.f32 1.0, %v9953
        %v9955 = vrcp.pop %v9797
        %v9956 = vmul.f32 %v9797, %v9955
        %v9957 = vsub.f32 1.0, %v9956
        %v9958 = vmul.f32 %v9955, %v9957
        %v9959 = vadd.f32 %v9955, %v9958
        %vm9960 = vweird.f32 %v9797
        %vm9961 = vweird.f32 %v9955
        %vm9962 = vmor %vm9960, %vm9961
        %v9963 = vsel %vm9962, %v9955, %v9959
        %v9964 = vand.u32 2147483647, %v9797
        %vm9965 = vcmp.eq.f32.partialorder %v9964, 8.507059e+37
        %v9966 = vand.u32 %v9797, 2147483648
        %v9967 = vor.u32 1.1754944e-38, %v9966
        %v9968 = vsel %vm9965, %v9967, %v9963
        %v9969 = vmul.f32 1.0, %v9968
        %v9970 = vrcp.pop %v9798
        %v9971 = vmul.f32 %v9798, %v9970
        %v9972 = vsub.f32 1.0, %v9971
        %v9973 = vmul.f32 %v9970, %v9972
        %v9974 = vadd.f32 %v9970, %v9973
        %vm9975 = vweird.f32 %v9798
        %vm9976 = vweird.f32 %v9970
        %vm9977 = vmor %vm9975, %vm9976
        %v9978 = vsel %vm9977, %v9970, %v9974
        %v9979 = vand.u32 2147483647, %v9798
        %vm9980 = vcmp.eq.f32.partialorder %v9979, 8.507059e+37
        %v9981 = vand.u32 %v9798, 2147483648
        %v9982 = vor.u32 1.1754944e-38, %v9981
        %v9983 = vsel %vm9980, %v9982, %v9978
        %v9984 = vmul.f32 1.0, %v9983
        %v9985 = vrcp.pop %v9799
        %v9986 = vmul.f32 %v9799, %v9985
        %v9987 = vsub.f32 1.0, %v9986
        %v9988 = vmul.f32 %v9985, %v9987
        %v9989 = vadd.f32 %v9985, %v9988
        %vm9990 = vweird.f32 %v9799
        %vm9991 = vweird.f32 %v9985
        %vm9992 = vmor %vm9990, %vm9991
        %v9993 = vsel %vm9992, %v9985, %v9989
        %v9994 = vand.u32 2147483647, %v9799
        %vm9995 = vcmp.eq.f32.partialorder %v9994, 8.507059e+37
        %v9996 = vand.u32 %v9799, 2147483648
        %v9997 = vor.u32 1.1754944e-38, %v9996
        %v9998 = vsel %vm9995, %v9997, %v9993
        %v9999 = vmul.f32 1.0, %v9998
        %v10000 = vrcp.pop %v9800
        %v10001 = vmul.f32 %v9800, %v10000
        %v10002 = vsub.f32 1.0, %v10001
        %v10003 = vmul.f32 %v10000, %v10002
        %v10004 = vadd.f32 %v10000, %v10003
        %vm10005 = vweird.f32 %v9800
        %vm10006 = vweird.f32 %v10000
        %vm10007 = vmor %vm10005, %vm10006
        %v10008 = vsel %vm10007, %v10000, %v10004
        %v10009 = vand.u32 2147483647, %v9800
        %vm10010 = vcmp.eq.f32.partialorder %v10009, 8.507059e+37
        %v10011 = vand.u32 %v9800, 2147483648
        %v10012 = vor.u32 1.1754944e-38, %v10011
        %v10013 = vsel %vm10010, %v10012, %v10008
        %v10014 = vmul.f32 1.0, %v10013
        %v10015 = vrcp.pop %v9801
        %v10016 = vmul.f32 %v9801, %v10015
        %v10017 = vsub.f32 1.0, %v10016
        %v10018 = vmul.f32 %v10015, %v10017
        %v10019 = vadd.f32 %v10015, %v10018
        %vm10020 = vweird.f32 %v9801
        %vm10021 = vweird.f32 %v10015
        %vm10022 = vmor %vm10020, %vm10021
        %v10023 = vsel %vm10022, %v10015, %v10019
        %v10024 = vand.u32 2147483647, %v9801
        %vm10025 = vcmp.eq.f32.partialorder %v10024, 8.507059e+37
        %v10026 = vand.u32 %v9801, 2147483648
        %v10027 = vor.u32 1.1754944e-38, %v10026
        %v10028 = vsel %vm10025, %v10027, %v10023
        %v10029 = vmul.f32 1.0, %v10028
        %v10030 = vrcp.pop %v9802
        %v10031 = vmul.f32 %v9802, %v10030
        %v10032 = vsub.f32 1.0, %v10031
        %v10033 = vmul.f32 %v10030, %v10032
        %v10034 = vadd.f32 %v10030, %v10033
        %vm10035 = vweird.f32 %v9802
        %vm10036 = vweird.f32 %v10030
        %vm10037 = vmor %vm10035, %vm10036
        %v10038 = vsel %vm10037, %v10030, %v10034
        %v10039 = vand.u32 2147483647, %v9802
        %vm10040 = vcmp.eq.f32.partialorder %v10039, 8.507059e+37
        %v10041 = vand.u32 %v9802, 2147483648
        %v10042 = vor.u32 1.1754944e-38, %v10041
        %v10043 = vsel %vm10040, %v10042, %v10038
        %v10044 = vmul.f32 1.0, %v10043
        %v10045 = vrcp.pop %v9803
        %v10046 = vmul.f32 %v9803, %v10045
        %v10047 = vsub.f32 1.0, %v10046
        %v10048 = vmul.f32 %v10045, %v10047
        %v10049 = vadd.f32 %v10045, %v10048
        %vm10050 = vweird.f32 %v9803
        %vm10051 = vweird.f32 %v10045
        %vm10052 = vmor %vm10050, %vm10051
        %v10053 = vsel %vm10052, %v10045, %v10049
        %v10054 = vand.u32 2147483647, %v9803
        %vm10055 = vcmp.eq.f32.partialorder %v10054, 8.507059e+37
        %v10056 = vand.u32 %v9803, 2147483648
        %v10057 = vor.u32 1.1754944e-38, %v10056
        %v10058 = vsel %vm10055, %v10057, %v10053
        %v10059 = vmul.f32 1.0, %v10058
        %v10060 = vrcp.pop %v9804
        %v10061 = vmul.f32 %v9804, %v10060
        %v10062 = vsub.f32 1.0, %v10061
        %v10063 = vmul.f32 %v10060, %v10062
        %v10064 = vadd.f32 %v10060, %v10063
        %vm10065 = vweird.f32 %v9804
        %vm10066 = vweird.f32 %v10060
        %vm10067 = vmor %vm10065, %vm10066
        %v10068 = vsel %vm10067, %v10060, %v10064
        %v10069 = vand.u32 2147483647, %v9804
        %vm10070 = vcmp.eq.f32.partialorder %v10069, 8.507059e+37
        %v10071 = vand.u32 %v9804, 2147483648
        %v10072 = vor.u32 1.1754944e-38, %v10071
        %v10073 = vsel %vm10070, %v10072, %v10068
        %v10074 = vmul.f32 1.0, %v10073
        %v10075 = vrcp.pop %v9805
        %v10076 = vmul.f32 %v9805, %v10075
        %v10077 = vsub.f32 1.0, %v10076
        %v10078 = vmul.f32 %v10075, %v10077
        %v10079 = vadd.f32 %v10075, %v10078
        %vm10080 = vweird.f32 %v9805
        %vm10081 = vweird.f32 %v10075
        %vm10082 = vmor %vm10080, %vm10081
        %v10083 = vsel %vm10082, %v10075, %v10079
        %v10084 = vand.u32 2147483647, %v9805
        %vm10085 = vcmp.eq.f32.partialorder %v10084, 8.507059e+37
        %v10086 = vand.u32 %v9805, 2147483648
        %v10087 = vor.u32 1.1754944e-38, %v10086
        %v10088 = vsel %vm10085, %v10087, %v10083
        %v10089 = vmul.f32 1.0, %v10088
        %v10090 = vrcp.pop %v9806
        %v10091 = vmul.f32 %v9806, %v10090
        %v10092 = vsub.f32 1.0, %v10091
        %v10093 = vmul.f32 %v10090, %v10092
        %v10094 = vadd.f32 %v10090, %v10093
        %vm10095 = vweird.f32 %v9806
        %vm10096 = vweird.f32 %v10090
        %vm10097 = vmor %vm10095, %vm10096
        %v10098 = vsel %vm10097, %v10090, %v10094
        %v10099 = vand.u32 2147483647, %v9806
        %vm10100 = vcmp.eq.f32.partialorder %v10099, 8.507059e+37
        %v10101 = vand.u32 %v9806, 2147483648
        %v10102 = vor.u32 1.1754944e-38, %v10101
        %v10103 = vsel %vm10100, %v10102, %v10098
        %v10104 = vmul.f32 1.0, %v10103
        %v10105 = vrcp.pop %v9807
        %v10106 = vmul.f32 %v9807, %v10105
        %v10107 = vsub.f32 1.0, %v10106
        %v10108 = vmul.f32 %v10105, %v10107
        %v10109 = vadd.f32 %v10105, %v10108
        %vm10110 = vweird.f32 %v9807
        %vm10111 = vweird.f32 %v10105
        %vm10112 = vmor %vm10110, %vm10111
        %v10113 = vsel %vm10112, %v10105, %v10109
        %v10114 = vand.u32 2147483647, %v9807
        %vm10115 = vcmp.eq.f32.partialorder %v10114, 8.507059e+37
        %v10116 = vand.u32 %v9807, 2147483648
        %v10117 = vor.u32 1.1754944e-38, %v10116
        %v10118 = vsel %vm10115, %v10117, %v10113
        %v10119 = vmul.f32 1.0, %v10118
        %v10120 = vrcp.pop %v9808
        %v10121 = vmul.f32 %v9808, %v10120
        %v10122 = vsub.f32 1.0, %v10121
        %v10123 = vmul.f32 %v10120, %v10122
        %v10124 = vadd.f32 %v10120, %v10123
        %vm10125 = vweird.f32 %v9808
        %vm10126 = vweird.f32 %v10120
        %vm10127 = vmor %vm10125, %vm10126
        %v10128 = vsel %vm10127, %v10120, %v10124
        %v10129 = vand.u32 2147483647, %v9808
        %vm10130 = vcmp.eq.f32.partialorder %v10129, 8.507059e+37
        %v10131 = vand.u32 %v9808, 2147483648
        %v10132 = vor.u32 1.1754944e-38, %v10131
        %v10133 = vsel %vm10130, %v10132, %v10128
        %v10134 = vmul.f32 1.0, %v10133
        %v10135 = vrcp.pop %v9809
        %v10136 = vmul.f32 %v9809, %v10135
        %v10137 = vsub.f32 1.0, %v10136
        %v10138 = vmul.f32 %v10135, %v10137
        %v10139 = vadd.f32 %v10135, %v10138
        %vm10140 = vweird.f32 %v9809
        %vm10141 = vweird.f32 %v10135
        %vm10142 = vmor %vm10140, %vm10141
        %v10143 = vsel %vm10142, %v10135, %v10139
        %v10144 = vand.u32 2147483647, %v9809
        %vm10145 = vcmp.eq.f32.partialorder %v10144, 8.507059e+37
        %v10146 = vand.u32 %v9809, 2147483648
        %v10147 = vor.u32 1.1754944e-38, %v10146
        %v10148 = vsel %vm10145, %v10147, %v10143
        %v10149 = vmul.f32 1.0, %v10148
        %v10150 = vrcp.pop %v9810
        %v10151 = vmul.f32 %v9810, %v10150
        %v10152 = vsub.f32 1.0, %v10151
        %v10153 = vmul.f32 %v10150, %v10152
        %v10154 = vadd.f32 %v10150, %v10153
        %vm10155 = vweird.f32 %v9810
        %vm10156 = vweird.f32 %v10150
        %vm10157 = vmor %vm10155, %vm10156
        %v10158 = vsel %vm10157, %v10150, %v10154
        %v10159 = vand.u32 2147483647, %v9810
        %vm10160 = vcmp.eq.f32.partialorder %v10159, 8.507059e+37
        %v10161 = vand.u32 %v9810, 2147483648
        %v10162 = vor.u32 1.1754944e-38, %v10161
        %v10163 = vsel %vm10160, %v10162, %v10158
        %v10164 = vmul.f32 1.0, %v10163
        %v10165 = vrcp.pop %v9811
        %v10166 = vmul.f32 %v9811, %v10165
        %v10167 = vsub.f32 1.0, %v10166
        %v10168 = vmul.f32 %v10165, %v10167
        %v10169 = vadd.f32 %v10165, %v10168
        %vm10170 = vweird.f32 %v9811
        %vm10171 = vweird.f32 %v10165
        %vm10172 = vmor %vm10170, %vm10171
        %v10173 = vsel %vm10172, %v10165, %v10169
        %v10174 = vand.u32 2147483647, %v9811
        %vm10175 = vcmp.eq.f32.partialorder %v10174, 8.507059e+37
        %v10176 = vand.u32 %v9811, 2147483648
        %v10177 = vor.u32 1.1754944e-38, %v10176
        %v10178 = vsel %vm10175, %v10177, %v10173
        %v10179 = vmul.f32 1.0, %v10178
        %v10180 = vrcp.pop %v9812
        %v10181 = vmul.f32 %v9812, %v10180
        %v10182 = vsub.f32 1.0, %v10181
        %v10183 = vmul.f32 %v10180, %v10182
        %v10184 = vadd.f32 %v10180, %v10183
        %vm10185 = vweird.f32 %v9812
        %vm10186 = vweird.f32 %v10180
        %vm10187 = vmor %vm10185, %vm10186
        %v10188 = vsel %vm10187, %v10180, %v10184
        %v10189 = vand.u32 2147483647, %v9812
        %vm10190 = vcmp.eq.f32.partialorder %v10189, 8.507059e+37
        %v10191 = vand.u32 %v9812, 2147483648
        %v10192 = vor.u32 1.1754944e-38, %v10191
        %v10193 = vsel %vm10190, %v10192, %v10188
        %v10194 = vmul.f32 1.0, %v10193
        %v10195 = vrcp.pop %v9813
        %v10196 = vmul.f32 %v9813, %v10195
        %v10197 = vsub.f32 1.0, %v10196
        %v10198 = vmul.f32 %v10195, %v10197
        %v10199 = vadd.f32 %v10195, %v10198
        %vm10200 = vweird.f32 %v9813
        %vm10201 = vweird.f32 %v10195
        %vm10202 = vmor %vm10200, %vm10201
        %v10203 = vsel %vm10202, %v10195, %v10199
        %v10204 = vand.u32 2147483647, %v9813
        %vm10205 = vcmp.eq.f32.partialorder %v10204, 8.507059e+37
        %v10206 = vand.u32 %v9813, 2147483648
        %v10207 = vor.u32 1.1754944e-38, %v10206
        %v10208 = vsel %vm10205, %v10207, %v10203
        %v10209 = vmul.f32 1.0, %v10208
        %v10210 = vrcp.pop %v9814
        %v10211 = vmul.f32 %v9814, %v10210
        %v10212 = vsub.f32 1.0, %v10211
        %v10213 = vmul.f32 %v10210, %v10212
        %v10214 = vadd.f32 %v10210, %v10213
        %vm10215 = vweird.f32 %v9814
        %vm10216 = vweird.f32 %v10210
        %vm10217 = vmor %vm10215, %vm10216
        %v10218 = vsel %vm10217, %v10210, %v10214
        %v10219 = vand.u32 2147483647, %v9814
        %vm10220 = vcmp.eq.f32.partialorder %v10219, 8.507059e+37
        %v10221 = vand.u32 %v9814, 2147483648
        %v10222 = vor.u32 1.1754944e-38, %v10221
        %v10223 = vsel %vm10220, %v10222, %v10218
        %v10224 = vmul.f32 1.0, %v10223
        %v10225 = vrcp.pop %v9815
        %v10226 = vmul.f32 %v9815, %v10225
        %v10227 = vsub.f32 1.0, %v10226
        %v10228 = vmul.f32 %v10225, %v10227
        %v10229 = vadd.f32 %v10225, %v10228
        %vm10230 = vweird.f32 %v9815
        %vm10231 = vweird.f32 %v10225
        %vm10232 = vmor %vm10230, %vm10231
        %v10233 = vsel %vm10232, %v10225, %v10229
        %v10234 = vand.u32 2147483647, %v9815
        %vm10235 = vcmp.eq.f32.partialorder %v10234, 8.507059e+37
        %v10236 = vand.u32 %v9815, 2147483648
        %v10237 = vor.u32 1.1754944e-38, %v10236
        %v10238 = vsel %vm10235, %v10237, %v10233
        %v10239 = vmul.f32 1.0, %v10238
        %v10240 = vrcp.pop %v9816
        %v10241 = vmul.f32 %v9816, %v10240
        %v10242 = vsub.f32 1.0, %v10241
        %v10243 = vmul.f32 %v10240, %v10242
        %v10244 = vadd.f32 %v10240, %v10243
        %vm10245 = vweird.f32 %v9816
        %vm10246 = vweird.f32 %v10240
        %vm10247 = vmor %vm10245, %vm10246
        %v10248 = vsel %vm10247, %v10240, %v10244
        %v10249 = vand.u32 2147483647, %v9816
        %vm10250 = vcmp.eq.f32.partialorder %v10249, 8.507059e+37
        %v10251 = vand.u32 %v9816, 2147483648
        %v10252 = vor.u32 1.1754944e-38, %v10251
        %v10253 = vsel %vm10250, %v10252, %v10248
        %v10254 = vmul.f32 1.0, %v10253
        %v10255 = vrcp.pop %v9817
        %v10256 = vmul.f32 %v9817, %v10255
        %v10257 = vsub.f32 1.0, %v10256
        %v10258 = vmul.f32 %v10255, %v10257
        %v10259 = vadd.f32 %v10255, %v10258
        %vm10260 = vweird.f32 %v9817
        %vm10261 = vweird.f32 %v10255
        %vm10262 = vmor %vm10260, %vm10261
        %v10263 = vsel %vm10262, %v10255, %v10259
        %v10264 = vand.u32 2147483647, %v9817
        %vm10265 = vcmp.eq.f32.partialorder %v10264, 8.507059e+37
        %v10266 = vand.u32 %v9817, 2147483648
        %v10267 = vor.u32 1.1754944e-38, %v10266
        %v10268 = vsel %vm10265, %v10267, %v10263
        %v10269 = vmul.f32 1.0, %v10268
        %v10270 = vrcp.pop %v9818
        %v10271 = vmul.f32 %v9818, %v10270
        %v10272 = vsub.f32 1.0, %v10271
        %v10273 = vmul.f32 %v10270, %v10272
        %v10274 = vadd.f32 %v10270, %v10273
        %vm10275 = vweird.f32 %v9818
        %vm10276 = vweird.f32 %v10270
        %vm10277 = vmor %vm10275, %vm10276
        %v10278 = vsel %vm10277, %v10270, %v10274
        %v10279 = vand.u32 2147483647, %v9818
        %vm10280 = vcmp.eq.f32.partialorder %v10279, 8.507059e+37
        %v10281 = vand.u32 %v9818, 2147483648
        %v10282 = vor.u32 1.1754944e-38, %v10281
        %v10283 = vsel %vm10280, %v10282, %v10278
        %v10284 = vmul.f32 1.0, %v10283
        %v10285 = vrcp.pop %v9819
        %v10286 = vmul.f32 %v9819, %v10285
        %v10287 = vsub.f32 1.0, %v10286
        %v10288 = vmul.f32 %v10285, %v10287
        %v10289 = vadd.f32 %v10285, %v10288
        %vm10290 = vweird.f32 %v9819
        %vm10291 = vweird.f32 %v10285
        %vm10292 = vmor %vm10290, %vm10291
        %v10293 = vsel %vm10292, %v10285, %v10289
        %v10294 = vand.u32 2147483647, %v9819
        %vm10295 = vcmp.eq.f32.partialorder %v10294, 8.507059e+37
        %v10296 = vand.u32 %v9819, 2147483648
        %v10297 = vor.u32 1.1754944e-38, %v10296
        %v10298 = vsel %vm10295, %v10297, %v10293
        %v10299 = vmul.f32 1.0, %v10298
        %v10300 = vmul.f32 %v9660, %v9834
        %v10301 = vmul.f32 %v9661, %v9849
        %v10302 = vmul.f32 %v9662, %v9864
        %v10303 = vmul.f32 %v9663, %v9879
        %v10304 = vmul.f32 %v9664, %v9894
        %v10305 = vmul.f32 %v9665, %v9909
        %v10306 = vmul.f32 %v9666, %v9924
        %v10307 = vmul.f32 %v9667, %v9939
        %v10308 = vmul.f32 %v9668, %v9954
        %v10309 = vmul.f32 %v9669, %v9969
        %v10310 = vmul.f32 %v9670, %v9984
        %v10311 = vmul.f32 %v9671, %v9999
        %v10312 = vmul.f32 %v9672, %v10014
        %v10313 = vmul.f32 %v9673, %v10029
        %v10314 = vmul.f32 %v9674, %v10044
        %v10315 = vmul.f32 %v9675, %v10059
        %v10316 = vmul.f32 %v9676, %v10074
        %v10317 = vmul.f32 %v9677, %v10089
        %v10318 = vmul.f32 %v9678, %v10104
        %v10319 = vmul.f32 %v9679, %v10119
        %v10320 = vmul.f32 %v9680, %v10134
        %v10321 = vmul.f32 %v9681, %v10149
        %v10322 = vmul.f32 %v9682, %v10164
        %v10323 = vmul.f32 %v9683, %v10179
        %v10324 = vmul.f32 %v9684, %v10194
        %v10325 = vmul.f32 %v9685, %v10209
        %v10326 = vmul.f32 %v9686, %v10224
        %v10327 = vmul.f32 %v9687, %v10239
        %v10328 = vmul.f32 %v9688, %v10254
        %v10329 = vmul.f32 %v9689, %v10269
        %v10330 = vmul.f32 %v9690, %v10284
        %v10331 = vmul.f32 %v9691, %v10299
        %v10332 = vld [vmem:[#allocation17] sm:$0x1]
        %v10334 = vperm.slane %v10332, 0
        %v10336 = vmul.f32 %v10300, %v10334
        %v10337 = vmul.f32 %v10301, %v10334
        %v10338 = vmul.f32 %v10302, %v10334
        %v10339 = vmul.f32 %v10303, %v10334
        %v10340 = vmul.f32 %v10304, %v10334
        %v10341 = vmul.f32 %v10305, %v10334
        %v10342 = vmul.f32 %v10306, %v10334
        %v10343 = vmul.f32 %v10307, %v10334
        %v10344 = vmul.f32 %v10308, %v10334
        %v10345 = vmul.f32 %v10309, %v10334
        %v10346 = vmul.f32 %v10310, %v10334
        %v10347 = vmul.f32 %v10311, %v10334
        %v10348 = vmul.f32 %v10312, %v10334
        %v10349 = vmul.f32 %v10313, %v10334
        %v10350 = vmul.f32 %v10314, %v10334
        %v10351 = vmul.f32 %v10315, %v10334
        %v10352 = vmul.f32 %v10316, %v10334
        %v10353 = vmul.f32 %v10317, %v10334
        %v10354 = vmul.f32 %v10318, %v10334
        %v10355 = vmul.f32 %v10319, %v10334
        %v10356 = vmul.f32 %v10320, %v10334
        %v10357 = vmul.f32 %v10321, %v10334
        %v10358 = vmul.f32 %v10322, %v10334
        %v10359 = vmul.f32 %v10323, %v10334
        %v10360 = vmul.f32 %v10324, %v10334
        %v10361 = vmul.f32 %v10325, %v10334
        %v10362 = vmul.f32 %v10326, %v10334
        %v10363 = vmul.f32 %v10327, %v10334
        %v10364 = vmul.f32 %v10328, %v10334
        %v10365 = vmul.f32 %v10329, %v10334
        %v10366 = vmul.f32 %v10330, %v10334
        %v10367 = vmul.f32 %v10331, %v10334
        %10368 = vadd.xlane.f32.xlu0 %v10336
        %v10369 = vpop.xlane.xlu0 %10368
        %10370 = vadd.xlane.f32.xlu0 %v10337
        %v10371 = vpop.xlane.xlu0 %10370
        %10372 = vadd.xlane.f32.xlu0 %v10338
        %v10373 = vpop.xlane.xlu0 %10372
        %10374 = vadd.xlane.f32.xlu0 %v10339
        %v10375 = vpop.xlane.xlu0 %10374
        %10376 = vadd.xlane.f32.xlu0 %v10340
        %v10377 = vpop.xlane.xlu0 %10376
        %10378 = vadd.xlane.f32.xlu0 %v10341
        %v10379 = vpop.xlane.xlu0 %10378
        %10380 = vadd.xlane.f32.xlu0 %v10342
        %v10381 = vpop.xlane.xlu0 %10380
        %10382 = vadd.xlane.f32.xlu0 %v10343
        %v10383 = vpop.xlane.xlu0 %10382
        %10384 = vadd.xlane.f32.xlu0 %v10344
        %v10385 = vpop.xlane.xlu0 %10384
        %10386 = vadd.xlane.f32.xlu0 %v10345
        %v10387 = vpop.xlane.xlu0 %10386
        %10388 = vadd.xlane.f32.xlu0 %v10346
        %v10389 = vpop.xlane.xlu0 %10388
        %10390 = vadd.xlane.f32.xlu0 %v10347
        %v10391 = vpop.xlane.xlu0 %10390
        %10392 = vadd.xlane.f32.xlu0 %v10348
        %v10393 = vpop.xlane.xlu0 %10392
        %10394 = vadd.xlane.f32.xlu0 %v10349
        %v10395 = vpop.xlane.xlu0 %10394
        %10396 = vadd.xlane.f32.xlu0 %v10350
        %v10397 = vpop.xlane.xlu0 %10396
        %10398 = vadd.xlane.f32.xlu0 %v10351
        %v10399 = vpop.xlane.xlu0 %10398
        %10400 = vadd.xlane.f32.xlu0 %v10352
        %v10401 = vpop.xlane.xlu0 %10400
        %10402 = vadd.xlane.f32.xlu0 %v10353
        %v10403 = vpop.xlane.xlu0 %10402
        %10404 = vadd.xlane.f32.xlu0 %v10354
        %v10405 = vpop.xlane.xlu0 %10404
        %10406 = vadd.xlane.f32.xlu0 %v10355
        %v10407 = vpop.xlane.xlu0 %10406
        %10408 = vadd.xlane.f32.xlu0 %v10356
        %v10409 = vpop.xlane.xlu0 %10408
        %10410 = vadd.xlane.f32.xlu0 %v10357
        %v10411 = vpop.xlane.xlu0 %10410
        %10412 = vadd.xlane.f32.xlu0 %v10358
        %v10413 = vpop.xlane.xlu0 %10412
        %10414 = vadd.xlane.f32.xlu0 %v10359
        %v10415 = vpop.xlane.xlu0 %10414
        %10416 = vadd.xlane.f32.xlu0 %v10360
        %v10417 = vpop.xlane.xlu0 %10416
        %10418 = vadd.xlane.f32.xlu0 %v10361
        %v10419 = vpop.xlane.xlu0 %10418
        %10420 = vadd.xlane.f32.xlu0 %v10362
        %v10421 = vpop.xlane.xlu0 %10420
        %10422 = vadd.xlane.f32.xlu0 %v10363
        %v10423 = vpop.xlane.xlu0 %10422
        %10424 = vadd.xlane.f32.xlu0 %v10364
        %v10425 = vpop.xlane.xlu0 %10424
        %10426 = vadd.xlane.f32.xlu0 %v10365
        %v10427 = vpop.xlane.xlu0 %10426
        %10428 = vadd.xlane.f32.xlu0 %v10366
        %v10429 = vpop.xlane.xlu0 %10428
        %10430 = vadd.xlane.f32.xlu0 %v10367
        %v10431 = vpop.xlane.xlu0 %10430
        %s10432 = sld [smem:[#allocation5]]
        %v10433 = vstv %s10432
        %v10434 = vadd.f32 %v10369, %v10433
        %v10435 = vadd.f32 %v10371, %v10433
        %v10436 = vadd.f32 %v10373, %v10433
        %v10437 = vadd.f32 %v10375, %v10433
        %v10438 = vadd.f32 %v10377, %v10433
        %v10439 = vadd.f32 %v10379, %v10433
        %v10440 = vadd.f32 %v10381, %v10433
        %v10441 = vadd.f32 %v10383, %v10433
        %v10442 = vadd.f32 %v10385, %v10433
        %v10443 = vadd.f32 %v10387, %v10433
        %v10444 = vadd.f32 %v10389, %v10433
        %v10445 = vadd.f32 %v10391, %v10433
        %v10446 = vadd.f32 %v10393, %v10433
        %v10447 = vadd.f32 %v10395, %v10433
        %v10448 = vadd.f32 %v10397, %v10433
        %v10449 = vadd.f32 %v10399, %v10433
        %v10450 = vadd.f32 %v10401, %v10433
        %v10451 = vadd.f32 %v10403, %v10433
        %v10452 = vadd.f32 %v10405, %v10433
        %v10453 = vadd.f32 %v10407, %v10433
        %v10454 = vadd.f32 %v10409, %v10433
        %v10455 = vadd.f32 %v10411, %v10433
        %v10456 = vadd.f32 %v10413, %v10433
        %v10457 = vadd.f32 %v10415, %v10433
        %v10458 = vadd.f32 %v10417, %v10433
        %v10459 = vadd.f32 %v10419, %v10433
        %v10460 = vadd.f32 %v10421, %v10433
        %v10461 = vadd.f32 %v10423, %v10433
        %v10462 = vadd.f32 %v10425, %v10433
        %v10463 = vadd.f32 %v10427, %v10433
        %v10464 = vadd.f32 %v10429, %v10433
        %v10465 = vadd.f32 %v10431, %v10433
        %v10466 = vsel %vm766, %v10434, -inf
        %v10467 = vsel %vm767, %v10435, -inf
        %v10468 = vsel %vm768, %v10436, -inf
        %v10469 = vsel %vm769, %v10437, -inf
        %v10470 = vsel %vm770, %v10438, -inf
        %v10471 = vsel %vm771, %v10439, -inf
        %v10472 = vsel %vm772, %v10440, -inf
        %v10473 = vsel %vm773, %v10441, -inf
        %v10474 = vsel %vm774, %v10442, -inf
        %v10475 = vsel %vm775, %v10443, -inf
        %v10476 = vsel %vm776, %v10444, -inf
        %v10477 = vsel %vm777, %v10445, -inf
        %v10478 = vsel %vm778, %v10446, -inf
        %v10479 = vsel %vm779, %v10447, -inf
        %v10480 = vsel %vm780, %v10448, -inf
        %v10481 = vsel %vm781, %v10449, -inf
        %v10482 = vsel %vm782, %v10450, -inf
        %v10483 = vsel %vm783, %v10451, -inf
        %v10484 = vsel %vm784, %v10452, -inf
        %v10485 = vsel %vm785, %v10453, -inf
        %v10486 = vsel %vm786, %v10454, -inf
        %v10487 = vsel %vm787, %v10455, -inf
        %v10488 = vsel %vm788, %v10456, -inf
        %v10489 = vsel %vm789, %v10457, -inf
        %v10490 = vsel %vm790, %v10458, -inf
        %v10491 = vsel %vm791, %v10459, -inf
        %v10492 = vsel %vm792, %v10460, -inf
        %v10493 = vsel %vm793, %v10461, -inf
        %v10494 = vsel %vm794, %v10462, -inf
        %v10495 = vsel %vm795, %v10463, -inf
        %v10496 = vsel %vm796, %v10464, -inf
        %v10497 = vsel %vm797, %v10465, -inf
        %v10498 = vld [vmem:[#allocation2] sm:$0x1]
        %v10499 = vmax.f32 %v10466, %v10470
        %v10500 = vmax.f32 %v10467, %v10471
        %v10501 = vmax.f32 %v10468, %v10472
        %v10502 = vmax.f32 %v10469, %v10473
        %v10503 = vmax.f32 %v10499, %v10474
        %v10504 = vmax.f32 %v10500, %v10475
        %v10505 = vmax.f32 %v10501, %v10476
        %v10506 = vmax.f32 %v10502, %v10477
        %v10507 = vmax.f32 %v10503, %v10478
        %v10508 = vmax.f32 %v10504, %v10479
        %v10509 = vmax.f32 %v10505, %v10480
        %v10510 = vmax.f32 %v10506, %v10481
        %v10511 = vmax.f32 %v10507, %v10482
        %v10512 = vmax.f32 %v10508, %v10483
        %v10513 = vmax.f32 %v10509, %v10484
        %v10514 = vmax.f32 %v10510, %v10485
        %v10515 = vmax.f32 %v10511, %v10486
        %v10516 = vmax.f32 %v10512, %v10487
        %v10517 = vmax.f32 %v10513, %v10488
        %v10518 = vmax.f32 %v10514, %v10489
        %v10519 = vmax.f32 %v10515, %v10490
        %v10520 = vmax.f32 %v10516, %v10491
        %v10521 = vmax.f32 %v10517, %v10492
        %v10522 = vmax.f32 %v10518, %v10493
        %v10523 = vmax.f32 %v10519, %v10494
        %v10524 = vmax.f32 %v10520, %v10495
        %v10525 = vmax.f32 %v10521, %v10496
        %v10526 = vmax.f32 %v10522, %v10497
        %v10527 = vmax.f32 %v10523, %v10524
        %v10528 = vmax.f32 %v10525, %v10526
        %v10529 = vmax.f32 %v10527, %v10528
        %v10530 = vrot.slane %v10529, 4
        %v10531 = vmax.f32 %v10529, %v10530
        %v10532 = vrot.slane %v10531, 2
        %v10533 = vmax.f32 %v10531, %v10532
        %v10534 = vrot.slane %v10533, 1
        %v10535 = vmax.f32 %v10533, %v10534
        %v10536 = vmax.f32 %v10498, %v10535
        %v10537 = vsub.f32 %v10498, %v10536
        %v10538 = vmul.f32 %v10537, 1.442695
        %v10539 = vpow.pop %v10538
        %v10541 = vperm.slane %v10536, 0
        %v10543 = vsub.f32 %v10466, %v10541
        %v10544 = vsub.f32 %v10467, %v10541
        %v10545 = vsub.f32 %v10468, %v10541
        %v10546 = vsub.f32 %v10469, %v10541
        %v10547 = vsub.f32 %v10470, %v10541
        %v10548 = vsub.f32 %v10471, %v10541
        %v10549 = vsub.f32 %v10472, %v10541
        %v10550 = vsub.f32 %v10473, %v10541
        %v10551 = vsub.f32 %v10474, %v10541
        %v10552 = vsub.f32 %v10475, %v10541
        %v10553 = vsub.f32 %v10476, %v10541
        %v10554 = vsub.f32 %v10477, %v10541
        %v10555 = vsub.f32 %v10478, %v10541
        %v10556 = vsub.f32 %v10479, %v10541
        %v10557 = vsub.f32 %v10480, %v10541
        %v10558 = vsub.f32 %v10481, %v10541
        %v10559 = vsub.f32 %v10482, %v10541
        %v10560 = vsub.f32 %v10483, %v10541
        %v10561 = vsub.f32 %v10484, %v10541
        %v10562 = vsub.f32 %v10485, %v10541
        %v10563 = vsub.f32 %v10486, %v10541
        %v10564 = vsub.f32 %v10487, %v10541
        %v10565 = vsub.f32 %v10488, %v10541
        %v10566 = vsub.f32 %v10489, %v10541
        %v10567 = vsub.f32 %v10490, %v10541
        %v10568 = vsub.f32 %v10491, %v10541
        %v10569 = vsub.f32 %v10492, %v10541
        %v10570 = vsub.f32 %v10493, %v10541
        %v10571 = vsub.f32 %v10494, %v10541
        %v10572 = vsub.f32 %v10495, %v10541
        %v10573 = vsub.f32 %v10496, %v10541
        %v10574 = vsub.f32 %v10497, %v10541
        %v10575 = vmul.f32 %v10543, 1.442695
        %v10576 = vpow.pop %v10575
        %v10577 = vmul.f32 %v10544, 1.442695
        %v10578 = vpow.pop %v10577
        %v10579 = vmul.f32 %v10545, 1.442695
        %v10580 = vpow.pop %v10579
        %v10581 = vmul.f32 %v10546, 1.442695
        %v10582 = vpow.pop %v10581
        %v10583 = vmul.f32 %v10547, 1.442695
        %v10584 = vpow.pop %v10583
        %v10585 = vmul.f32 %v10548, 1.442695
        %v10586 = vpow.pop %v10585
        %v10587 = vmul.f32 %v10549, 1.442695
        %v10588 = vpow.pop %v10587
        %v10589 = vmul.f32 %v10550, 1.442695
        %v10590 = vpow.pop %v10589
        %v10591 = vmul.f32 %v10551, 1.442695
        %v10592 = vpow.pop %v10591
        %v10593 = vmul.f32 %v10552, 1.442695
        %v10594 = vpow.pop %v10593
        %v10595 = vmul.f32 %v10553, 1.442695
        %v10596 = vpow.pop %v10595
        %v10597 = vmul.f32 %v10554, 1.442695
        %v10598 = vpow.pop %v10597
        %v10599 = vmul.f32 %v10555, 1.442695
        %v10600 = vpow.pop %v10599
        %v10601 = vmul.f32 %v10556, 1.442695
        %v10602 = vpow.pop %v10601
        %v10603 = vmul.f32 %v10557, 1.442695
        %v10604 = vpow.pop %v10603
        %v10605 = vmul.f32 %v10558, 1.442695
        %v10606 = vpow.pop %v10605
        %v10607 = vmul.f32 %v10559, 1.442695
        %v10608 = vpow.pop %v10607
        %v10609 = vmul.f32 %v10560, 1.442695
        %v10610 = vpow.pop %v10609
        %v10611 = vmul.f32 %v10561, 1.442695
        %v10612 = vpow.pop %v10611
        %v10613 = vmul.f32 %v10562, 1.442695
        %v10614 = vpow.pop %v10613
        %v10615 = vmul.f32 %v10563, 1.442695
        %v10616 = vpow.pop %v10615
        %v10617 = vmul.f32 %v10564, 1.442695
        %v10618 = vpow.pop %v10617
        %v10619 = vmul.f32 %v10565, 1.442695
        %v10620 = vpow.pop %v10619
        %v10621 = vmul.f32 %v10566, 1.442695
        %v10622 = vpow.pop %v10621
        %v10623 = vmul.f32 %v10567, 1.442695
        %v10624 = vpow.pop %v10623
        %v10625 = vmul.f32 %v10568, 1.442695
        %v10626 = vpow.pop %v10625
        %v10627 = vmul.f32 %v10569, 1.442695
        %v10628 = vpow.pop %v10627
        %v10629 = vmul.f32 %v10570, 1.442695
        %v10630 = vpow.pop %v10629
        %v10631 = vmul.f32 %v10571, 1.442695
        %v10632 = vpow.pop %v10631
        %v10633 = vmul.f32 %v10572, 1.442695
        %v10634 = vpow.pop %v10633
        %v10635 = vmul.f32 %v10573, 1.442695
        %v10636 = vpow.pop %v10635
        %v10637 = vmul.f32 %v10574, 1.442695
        %v10638 = vpow.pop %v10637
        %v10639 = vld [vmem:[#allocation3] sm:$0x1]
        %v10640 = vmul.f32 %v10539, %v10639
        %vm10641 = vcmask 7168
        %v10642 = vsel %vm10641, %v10576, 0.0
        %v10643 = vsel %vm10641, %v10578, 0.0
        %v10644 = vadd.f32 %v10642, %v10643
        %v10645 = vsel %vm10641, %v10580, 0.0
        %v10646 = vadd.f32 %v10644, %v10645
        %v10647 = vsel %vm10641, %v10582, 0.0
        %v10648 = vadd.f32 %v10646, %v10647
        %v10649 = vsel %vm10641, %v10584, 0.0
        %v10650 = vadd.f32 %v10648, %v10649
        %v10651 = vsel %vm10641, %v10586, 0.0
        %v10652 = vadd.f32 %v10650, %v10651
        %v10653 = vsel %vm10641, %v10588, 0.0
        %v10654 = vadd.f32 %v10652, %v10653
        %v10655 = vsel %vm10641, %v10590, 0.0
        %v10656 = vadd.f32 %v10654, %v10655
        %v10657 = vsel %vm10641, %v10592, 0.0
        %v10658 = vadd.f32 %v10656, %v10657
        %v10659 = vsel %vm10641, %v10594, 0.0
        %v10660 = vadd.f32 %v10658, %v10659
        %v10661 = vsel %vm10641, %v10596, 0.0
        %v10662 = vadd.f32 %v10660, %v10661
        %v10663 = vsel %vm10641, %v10598, 0.0
        %v10664 = vadd.f32 %v10662, %v10663
        %v10665 = vsel %vm10641, %v10600, 0.0
        %v10666 = vadd.f32 %v10664, %v10665
        %v10667 = vsel %vm10641, %v10602, 0.0
        %v10668 = vadd.f32 %v10666, %v10667
        %v10669 = vsel %vm10641, %v10604, 0.0
        %v10670 = vadd.f32 %v10668, %v10669
        %v10671 = vsel %vm10641, %v10606, 0.0
        %v10672 = vadd.f32 %v10670, %v10671
        %v10673 = vsel %vm10641, %v10608, 0.0
        %v10674 = vadd.f32 %v10672, %v10673
        %v10675 = vsel %vm10641, %v10610, 0.0
        %v10676 = vadd.f32 %v10674, %v10675
        %v10677 = vsel %vm10641, %v10612, 0.0
        %v10678 = vadd.f32 %v10676, %v10677
        %v10679 = vsel %vm10641, %v10614, 0.0
        %v10680 = vadd.f32 %v10678, %v10679
        %v10681 = vsel %vm10641, %v10616, 0.0
        %v10682 = vadd.f32 %v10680, %v10681
        %v10683 = vsel %vm10641, %v10618, 0.0
        %v10684 = vadd.f32 %v10682, %v10683
        %v10685 = vsel %vm10641, %v10620, 0.0
        %v10686 = vadd.f32 %v10684, %v10685
        %v10687 = vsel %vm10641, %v10622, 0.0
        %v10688 = vadd.f32 %v10686, %v10687
        %v10689 = vsel %vm10641, %v10624, 0.0
        %v10690 = vadd.f32 %v10688, %v10689
        %v10691 = vsel %vm10641, %v10626, 0.0
        %v10692 = vadd.f32 %v10690, %v10691
        %v10693 = vsel %vm10641, %v10628, 0.0
        %v10694 = vadd.f32 %v10692, %v10693
        %v10695 = vsel %vm10641, %v10630, 0.0
        %v10696 = vadd.f32 %v10694, %v10695
        %v10697 = vsel %vm10641, %v10632, 0.0
        %v10698 = vadd.f32 %v10696, %v10697
        %v10699 = vsel %vm10641, %v10634, 0.0
        %v10700 = vadd.f32 %v10698, %v10699
        %v10701 = vsel %vm10641, %v10636, 0.0
        %v10702 = vadd.f32 %v10700, %v10701
        %v10703 = vsel %vm10641, %v10638, 0.0
        %v10704 = vadd.f32 %v10702, %v10703
        %v10705 = vrot.slane %v10704, 4
        %v10706 = vadd.f32 %v10704, %v10705
        %v10707 = vrot.slane %v10706, 2
        %v10708 = vadd.f32 %v10706, %v10707
        %v10709 = vrot.slane %v10708, 1
        %v10710 = vadd.f32 %v10708, %v10709
        %v10711 = vadd.f32 %v10640, %v10710
        %vm10712 = vcmask 0
        %10713 = vst.msk [vmem:[#allocation3] sm:$0x1] %vm10712, %v10711
        %10714 = vst.msk [vmem:[#allocation2] sm:$0x1] %vm10712, %v10536
        %v10715 = vld [vmem:[#allocation4] sm:$0xf]
        %10717 = vset.pattern.permute.xlu0 0
        %10718 = vperm.xlu0 %10717, %v10539
        %v10719 = vpop.permute.xlu0 %10718
        %v10721 = vperm.slane %v10719, 0
        %v10722 = vmul.f32 %v10721, %v10715
        %10724 = vset.pattern.permute.xlu0 0
        %10725 = vperm.xlu0 %10724, %v10576
        %v10726 = vpop.permute.xlu0 %10725
        %10729 = vset.pattern.permute.xlu0 0
        %10730 = vperm.xlu0 %10729, %v10578
        %v10731 = vpop.permute.xlu0 %10730
        %10734 = vset.pattern.permute.xlu0 0
        %10735 = vperm.xlu0 %10734, %v10580
        %v10736 = vpop.permute.xlu0 %10735
        %10739 = vset.pattern.permute.xlu0 0
        %10740 = vperm.xlu0 %10739, %v10582
        %v10741 = vpop.permute.xlu0 %10740
        %10744 = vset.pattern.permute.xlu0 0
        %10745 = vperm.xlu0 %10744, %v10584
        %v10746 = vpop.permute.xlu0 %10745
        %10749 = vset.pattern.permute.xlu0 0
        %10750 = vperm.xlu0 %10749, %v10586
        %v10751 = vpop.permute.xlu0 %10750
        %10754 = vset.pattern.permute.xlu0 0
        %10755 = vperm.xlu0 %10754, %v10588
        %v10756 = vpop.permute.xlu0 %10755
        %10759 = vset.pattern.permute.xlu0 0
        %10760 = vperm.xlu0 %10759, %v10590
        %v10761 = vpop.permute.xlu0 %10760
        %10764 = vset.pattern.permute.xlu0 0
        %10765 = vperm.xlu0 %10764, %v10592
        %v10766 = vpop.permute.xlu0 %10765
        %10769 = vset.pattern.permute.xlu0 0
        %10770 = vperm.xlu0 %10769, %v10594
        %v10771 = vpop.permute.xlu0 %10770
        %10774 = vset.pattern.permute.xlu0 0
        %10775 = vperm.xlu0 %10774, %v10596
        %v10776 = vpop.permute.xlu0 %10775
        %10779 = vset.pattern.permute.xlu0 0
        %10780 = vperm.xlu0 %10779, %v10598
        %v10781 = vpop.permute.xlu0 %10780
        %10784 = vset.pattern.permute.xlu0 0
        %10785 = vperm.xlu0 %10784, %v10600
        %v10786 = vpop.permute.xlu0 %10785
        %10789 = vset.pattern.permute.xlu0 0
        %10790 = vperm.xlu0 %10789, %v10602
        %v10791 = vpop.permute.xlu0 %10790
        %10794 = vset.pattern.permute.xlu0 0
        %10795 = vperm.xlu0 %10794, %v10604
        %v10796 = vpop.permute.xlu0 %10795
        %10799 = vset.pattern.permute.xlu0 0
        %10800 = vperm.xlu0 %10799, %v10606
        %v10801 = vpop.permute.xlu0 %10800
        %10804 = vset.pattern.permute.xlu0 0
        %10805 = vperm.xlu0 %10804, %v10608
        %v10806 = vpop.permute.xlu0 %10805
        %10809 = vset.pattern.permute.xlu0 0
        %10810 = vperm.xlu0 %10809, %v10610
        %v10811 = vpop.permute.xlu0 %10810
        %10814 = vset.pattern.permute.xlu0 0
        %10815 = vperm.xlu0 %10814, %v10612
        %v10816 = vpop.permute.xlu0 %10815
        %10819 = vset.pattern.permute.xlu0 0
        %10820 = vperm.xlu0 %10819, %v10614
        %v10821 = vpop.permute.xlu0 %10820
        %10824 = vset.pattern.permute.xlu0 0
        %10825 = vperm.xlu0 %10824, %v10616
        %v10826 = vpop.permute.xlu0 %10825
        %10829 = vset.pattern.permute.xlu0 0
        %10830 = vperm.xlu0 %10829, %v10618
        %v10831 = vpop.permute.xlu0 %10830
        %10834 = vset.pattern.permute.xlu0 0
        %10835 = vperm.xlu0 %10834, %v10620
        %v10836 = vpop.permute.xlu0 %10835
        %10839 = vset.pattern.permute.xlu0 0
        %10840 = vperm.xlu0 %10839, %v10622
        %v10841 = vpop.permute.xlu0 %10840
        %10844 = vset.pattern.permute.xlu0 0
        %10845 = vperm.xlu0 %10844, %v10624
        %v10846 = vpop.permute.xlu0 %10845
        %10849 = vset.pattern.permute.xlu0 0
        %10850 = vperm.xlu0 %10849, %v10626
        %v10851 = vpop.permute.xlu0 %10850
        %10854 = vset.pattern.permute.xlu0 0
        %10855 = vperm.xlu0 %10854, %v10628
        %v10856 = vpop.permute.xlu0 %10855
        %10859 = vset.pattern.permute.xlu0 0
        %10860 = vperm.xlu0 %10859, %v10630
        %v10861 = vpop.permute.xlu0 %10860
        %10864 = vset.pattern.permute.xlu0 0
        %10865 = vperm.xlu0 %10864, %v10632
        %v10866 = vpop.permute.xlu0 %10865
        %10869 = vset.pattern.permute.xlu0 0
        %10870 = vperm.xlu0 %10869, %v10634
        %v10871 = vpop.permute.xlu0 %10870
        %10874 = vset.pattern.permute.xlu0 0
        %10875 = vperm.xlu0 %10874, %v10636
        %v10876 = vpop.permute.xlu0 %10875
        %10879 = vset.pattern.permute.xlu0 0
        %10880 = vperm.xlu0 %10879, %v10638
        %v10881 = vpop.permute.xlu0 %10880
        %v10883 = vmul.f32 %v10726, %v8366
        %v10884 = vmul.f32 %v10726, %v8367
        %v10885 = vmul.f32 %v10726, %v8368
        %v10886 = vmul.f32 %v10726, %v8369
        %v10887 = vmul.f32 %v10731, %v8370
        %v10888 = vmul.f32 %v10731, %v8371
        %v10889 = vmul.f32 %v10731, %v8372
        %v10890 = vmul.f32 %v10731, %v8373
        %v10891 = vmul.f32 %v10736, %v8374
        %v10892 = vmul.f32 %v10736, %v8375
        %v10893 = vmul.f32 %v10736, %v8376
        %v10894 = vmul.f32 %v10736, %v8377
        %v10895 = vmul.f32 %v10741, %v8378
        %v10896 = vmul.f32 %v10741, %v8379
        %v10897 = vmul.f32 %v10741, %v8380
        %v10898 = vmul.f32 %v10741, %v8381
        %v10899 = vmul.f32 %v10746, %v8382
        %v10900 = vmul.f32 %v10746, %v8383
        %v10901 = vmul.f32 %v10746, %v8384
        %v10902 = vmul.f32 %v10746, %v8385
        %v10903 = vmul.f32 %v10751, %v8386
        %v10904 = vmul.f32 %v10751, %v8387
        %v10905 = vmul.f32 %v10751, %v8388
        %v10906 = vmul.f32 %v10751, %v8389
        %v10907 = vmul.f32 %v10756, %v8390
        %v10908 = vmul.f32 %v10756, %v8391
        %v10909 = vmul.f32 %v10756, %v8392
        %v10910 = vmul.f32 %v10756, %v8393
        %v10911 = vmul.f32 %v10761, %v8394
        %v10912 = vmul.f32 %v10761, %v8395
        %v10913 = vmul.f32 %v10761, %v8396
        %v10914 = vmul.f32 %v10761, %v8397
        %v10915 = vmul.f32 %v10766, %v8398
        %v10916 = vmul.f32 %v10766, %v8399
        %v10917 = vmul.f32 %v10766, %v8400
        %v10918 = vmul.f32 %v10766, %v8401
        %v10919 = vmul.f32 %v10771, %v8402
        %v10920 = vmul.f32 %v10771, %v8403
        %v10921 = vmul.f32 %v10771, %v8404
        %v10922 = vmul.f32 %v10771, %v8405
        %v10923 = vmul.f32 %v10776, %v8406
        %v10924 = vmul.f32 %v10776, %v8407
        %v10925 = vmul.f32 %v10776, %v8408
        %v10926 = vmul.f32 %v10776, %v8409
        %v10927 = vmul.f32 %v10781, %v8410
        %v10928 = vmul.f32 %v10781, %v8411
        %v10929 = vmul.f32 %v10781, %v8412
        %v10930 = vmul.f32 %v10781, %v8413
        %v10931 = vmul.f32 %v10786, %v8414
        %v10932 = vmul.f32 %v10786, %v8415
        %v10933 = vmul.f32 %v10786, %v8416
        %v10934 = vmul.f32 %v10786, %v8417
        %v10935 = vmul.f32 %v10791, %v8418
        %v10936 = vmul.f32 %v10791, %v8419
        %v10937 = vmul.f32 %v10791, %v8420
        %v10938 = vmul.f32 %v10791, %v8421
        %v10939 = vmul.f32 %v10796, %v8422
        %v10940 = vmul.f32 %v10796, %v8423
        %v10941 = vmul.f32 %v10796, %v8424
        %v10942 = vmul.f32 %v10796, %v8425
        %v10943 = vmul.f32 %v10801, %v8426
        %v10944 = vmul.f32 %v10801, %v8427
        %v10945 = vmul.f32 %v10801, %v8428
        %v10946 = vmul.f32 %v10801, %v8429
        %v10947 = vmul.f32 %v10806, %v8430
        %v10948 = vmul.f32 %v10806, %v8431
        %v10949 = vmul.f32 %v10806, %v8432
        %v10950 = vmul.f32 %v10806, %v8433
        %v10951 = vmul.f32 %v10811, %v8434
        %v10952 = vmul.f32 %v10811, %v8435
        %v10953 = vmul.f32 %v10811, %v8436
        %v10954 = vmul.f32 %v10811, %v8437
        %v10955 = vmul.f32 %v10816, %v8438
        %v10956 = vmul.f32 %v10816, %v8439
        %v10957 = vmul.f32 %v10816, %v8440
        %v10958 = vmul.f32 %v10816, %v8441
        %v10959 = vmul.f32 %v10821, %v8442
        %v10960 = vmul.f32 %v10821, %v8443
        %v10961 = vmul.f32 %v10821, %v8444
        %v10962 = vmul.f32 %v10821, %v8445
        %v10963 = vmul.f32 %v10826, %v8446
        %v10964 = vmul.f32 %v10826, %v8447
        %v10965 = vmul.f32 %v10826, %v8448
        %v10966 = vmul.f32 %v10826, %v8449
        %v10967 = vmul.f32 %v10831, %v8450
        %v10968 = vmul.f32 %v10831, %v8451
        %v10969 = vmul.f32 %v10831, %v8452
        %v10970 = vmul.f32 %v10831, %v8453
        %v10971 = vmul.f32 %v10836, %v8454
        %v10972 = vmul.f32 %v10836, %v8455
        %v10973 = vmul.f32 %v10836, %v8456
        %v10974 = vmul.f32 %v10836, %v8457
        %v10975 = vmul.f32 %v10841, %v8458
        %v10976 = vmul.f32 %v10841, %v8459
        %v10977 = vmul.f32 %v10841, %v8460
        %v10978 = vmul.f32 %v10841, %v8461
        %v10979 = vmul.f32 %v10846, %v8462
        %v10980 = vmul.f32 %v10846, %v8463
        %v10981 = vmul.f32 %v10846, %v8464
        %v10982 = vmul.f32 %v10846, %v8465
        %v10983 = vmul.f32 %v10851, %v8466
        %v10984 = vmul.f32 %v10851, %v8467
        %v10985 = vmul.f32 %v10851, %v8468
        %v10986 = vmul.f32 %v10851, %v8469
        %v10987 = vmul.f32 %v10856, %v8470
        %v10988 = vmul.f32 %v10856, %v8471
        %v10989 = vmul.f32 %v10856, %v8472
        %v10990 = vmul.f32 %v10856, %v8473
        %v10991 = vmul.f32 %v10861, %v8474
        %v10992 = vmul.f32 %v10861, %v8475
        %v10993 = vmul.f32 %v10861, %v8476
        %v10994 = vmul.f32 %v10861, %v8477
        %v10995 = vmul.f32 %v10866, %v8478
        %v10996 = vmul.f32 %v10866, %v8479
        %v10997 = vmul.f32 %v10866, %v8480
        %v10998 = vmul.f32 %v10866, %v8481
        %v10999 = vmul.f32 %v10871, %v8482
        %v11000 = vmul.f32 %v10871, %v8483
        %v11001 = vmul.f32 %v10871, %v8484
        %v11002 = vmul.f32 %v10871, %v8485
        %v11003 = vmul.f32 %v10876, %v8486
        %v11004 = vmul.f32 %v10876, %v8487
        %v11005 = vmul.f32 %v10876, %v8488
        %v11006 = vmul.f32 %v10876, %v8489
        %v11007 = vmul.f32 %v10881, %v8490
        %v11008 = vmul.f32 %v10881, %v8491
        %v11009 = vmul.f32 %v10881, %v8492
        %v11010 = vmul.f32 %v10881, %v8493
        %11011 = vmatpush.msra.mxu0 %v10943
        %11012 = vmatpush.msra.mxu0 %v10939
        %11013 = vmatpush.msra.mxu0 %v10935
        %11014 = vmatpush.msra.mxu0 %v10931
        %11015 = vmatpush.msra.mxu0 %v10927
        %11016 = vmatpush.msra.mxu0 %v10923
        %11017 = vmatpush.msra.mxu0 %v10919
        %11018 = vmatpush.msra.mxu0 %v10915
        %11019 = vmatpush.msra.mxu0 %v10911
        %11020 = vmatpush.msra.mxu0 %v10907
        %11021 = vmatpush.msra.mxu0 %v10903
        %11022 = vmatpush.msra.mxu0 %v10899
        %11023 = vmatpush.msra.mxu0 %v10895
        %11024 = vmatpush.msra.mxu0 %v10891
        %11025 = vmatpush.msra.mxu0 %v10887
        %11026 = vmatpush.msra.mxu0 %v10883
        %11027 = vmatmul.f32.gmra.mxu0 1.0
        %v11028 = vpop.f32.mrf.mxu0
        %v11029 = vadd.f32 0.0, %v11028
        %11030 = vdwg.mxu0
        %11031 = vmatpush.msra.mxu0 %v11007
        %11032 = vmatpush.msra.mxu0 %v11003
        %11033 = vmatpush.msra.mxu0 %v10999
        %11034 = vmatpush.msra.mxu0 %v10995
        %11035 = vmatpush.msra.mxu0 %v10991
        %11036 = vmatpush.msra.mxu0 %v10987
        %11037 = vmatpush.msra.mxu0 %v10983
        %11038 = vmatpush.msra.mxu0 %v10979
        %11039 = vmatpush.msra.mxu0 %v10975
        %11040 = vmatpush.msra.mxu0 %v10971
        %11041 = vmatpush.msra.mxu0 %v10967
        %11042 = vmatpush.msra.mxu0 %v10963
        %11043 = vmatpush.msra.mxu0 %v10959
        %11044 = vmatpush.msra.mxu0 %v10955
        %11045 = vmatpush.msra.mxu0 %v10951
        %11046 = vmatpush.msra.mxu0 %v10947
        %11047 = vmatmul.f32.gmra.mxu0 1.0
        %v11048 = vpop.f32.mrf.mxu0
        %v11049 = vadd.f32 %v11029, %v11048
        %11050 = vdwg.mxu0
        %11051 = vmatpush.msra.mxu0 %v10944
        %11052 = vmatpush.msra.mxu0 %v10940
        %11053 = vmatpush.msra.mxu0 %v10936
        %11054 = vmatpush.msra.mxu0 %v10932
        %11055 = vmatpush.msra.mxu0 %v10928
        %11056 = vmatpush.msra.mxu0 %v10924
        %11057 = vmatpush.msra.mxu0 %v10920
        %11058 = vmatpush.msra.mxu0 %v10916
        %11059 = vmatpush.msra.mxu0 %v10912
        %11060 = vmatpush.msra.mxu0 %v10908
        %11061 = vmatpush.msra.mxu0 %v10904
        %11062 = vmatpush.msra.mxu0 %v10900
        %11063 = vmatpush.msra.mxu0 %v10896
        %11064 = vmatpush.msra.mxu0 %v10892
        %11065 = vmatpush.msra.mxu0 %v10888
        %11066 = vmatpush.msra.mxu0 %v10884
        %11067 = vmatmul.f32.gmra.mxu0 1.0
        %v11068 = vpop.f32.mrf.mxu0
        %v11069 = vadd.f32 0.0, %v11068
        %11070 = vdwg.mxu0
        %11071 = vmatpush.msra.mxu0 %v11008
        %11072 = vmatpush.msra.mxu0 %v11004
        %11073 = vmatpush.msra.mxu0 %v11000
        %11074 = vmatpush.msra.mxu0 %v10996
        %11075 = vmatpush.msra.mxu0 %v10992
        %11076 = vmatpush.msra.mxu0 %v10988
        %11077 = vmatpush.msra.mxu0 %v10984
        %11078 = vmatpush.msra.mxu0 %v10980
        %11079 = vmatpush.msra.mxu0 %v10976
        %11080 = vmatpush.msra.mxu0 %v10972
        %11081 = vmatpush.msra.mxu0 %v10968
        %11082 = vmatpush.msra.mxu0 %v10964
        %11083 = vmatpush.msra.mxu0 %v10960
        %11084 = vmatpush.msra.mxu0 %v10956
        %11085 = vmatpush.msra.mxu0 %v10952
        %11086 = vmatpush.msra.mxu0 %v10948
        %11087 = vmatmul.f32.gmra.mxu0 1.0
        %v11088 = vpop.f32.mrf.mxu0
        %v11089 = vadd.f32 %v11069, %v11088
        %11090 = vdwg.mxu0
        %11091 = vmatpush.msra.mxu0 %v10945
        %11092 = vmatpush.msra.mxu0 %v10941
        %11093 = vmatpush.msra.mxu0 %v10937
        %11094 = vmatpush.msra.mxu0 %v10933
        %11095 = vmatpush.msra.mxu0 %v10929
        %11096 = vmatpush.msra.mxu0 %v10925
        %11097 = vmatpush.msra.mxu0 %v10921
        %11098 = vmatpush.msra.mxu0 %v10917
        %11099 = vmatpush.msra.mxu0 %v10913
        %11100 = vmatpush.msra.mxu0 %v10909
        %11101 = vmatpush.msra.mxu0 %v10905
        %11102 = vmatpush.msra.mxu0 %v10901
        %11103 = vmatpush.msra.mxu0 %v10897
        %11104 = vmatpush.msra.mxu0 %v10893
        %11105 = vmatpush.msra.mxu0 %v10889
        %11106 = vmatpush.msra.mxu0 %v10885
        %11107 = vmatmul.f32.gmra.mxu0 1.0
        %v11108 = vpop.f32.mrf.mxu0
        %v11109 = vadd.f32 0.0, %v11108
        %11110 = vdwg.mxu0
        %11111 = vmatpush.msra.mxu0 %v11009
        %11112 = vmatpush.msra.mxu0 %v11005
        %11113 = vmatpush.msra.mxu0 %v11001
        %11114 = vmatpush.msra.mxu0 %v10997
        %11115 = vmatpush.msra.mxu0 %v10993
        %11116 = vmatpush.msra.mxu0 %v10989
        %11117 = vmatpush.msra.mxu0 %v10985
        %11118 = vmatpush.msra.mxu0 %v10981
        %11119 = vmatpush.msra.mxu0 %v10977
        %11120 = vmatpush.msra.mxu0 %v10973
        %11121 = vmatpush.msra.mxu0 %v10969
        %11122 = vmatpush.msra.mxu0 %v10965
        %11123 = vmatpush.msra.mxu0 %v10961
        %11124 = vmatpush.msra.mxu0 %v10957
        %11125 = vmatpush.msra.mxu0 %v10953
        %11126 = vmatpush.msra.mxu0 %v10949
        %11127 = vmatmul.f32.gmra.mxu0 1.0
        %v11128 = vpop.f32.mrf.mxu0
        %v11129 = vadd.f32 %v11109, %v11128
        %11130 = vdwg.mxu0
        %11131 = vmatpush.msra.mxu0 %v10946
        %11132 = vmatpush.msra.mxu0 %v10942
        %11133 = vmatpush.msra.mxu0 %v10938
        %11134 = vmatpush.msra.mxu0 %v10934
        %11135 = vmatpush.msra.mxu0 %v10930
        %11136 = vmatpush.msra.mxu0 %v10926
        %11137 = vmatpush.msra.mxu0 %v10922
        %11138 = vmatpush.msra.mxu0 %v10918
        %11139 = vmatpush.msra.mxu0 %v10914
        %11140 = vmatpush.msra.mxu0 %v10910
        %11141 = vmatpush.msra.mxu0 %v10906
        %11142 = vmatpush.msra.mxu0 %v10902
        %11143 = vmatpush.msra.mxu0 %v10898
        %11144 = vmatpush.msra.mxu0 %v10894
        %11145 = vmatpush.msra.mxu0 %v10890
        %11146 = vmatpush.msra.mxu0 %v10886
        %11147 = vmatmul.f32.gmra.mxu0 1.0
        %v11148 = vpop.f32.mrf.mxu0
        %v11149 = vadd.f32 0.0, %v11148
        %11150 = vdwg.mxu0
        %11151 = vmatpush.msra.mxu0 %v11010
        %11152 = vmatpush.msra.mxu0 %v11006
        %11153 = vmatpush.msra.mxu0 %v11002
        %11154 = vmatpush.msra.mxu0 %v10998
        %11155 = vmatpush.msra.mxu0 %v10994
        %11156 = vmatpush.msra.mxu0 %v10990
        %11157 = vmatpush.msra.mxu0 %v10986
        %11158 = vmatpush.msra.mxu0 %v10982
        %11159 = vmatpush.msra.mxu0 %v10978
        %11160 = vmatpush.msra.mxu0 %v10974
        %11161 = vmatpush.msra.mxu0 %v10970
        %11162 = vmatpush.msra.mxu0 %v10966
        %11163 = vmatpush.msra.mxu0 %v10962
        %11164 = vmatpush.msra.mxu0 %v10958
        %11165 = vmatpush.msra.mxu0 %v10954
        %11166 = vmatpush.msra.mxu0 %v10950
        %11167 = vmatmul.f32.gmra.mxu0 1.0
        %v11168 = vpop.f32.mrf.mxu0
        %v11169 = vadd.f32 %v11149, %v11168
        %11170 = vdwg.mxu0
        %v11175 = vrot.slane %v11089, 7
        %v11176 = vrot.slane %v11129, 6
        %v11177 = vrot.slane %v11169, 5
        %vm11178 = vcmask 1040384
        %v11179 = vsel %vm11178, %v11049, %v11175
        %vm11180 = vcmask 1042434
        %v11181 = vsel %vm11180, %v11176, %v11177
        %vm11182 = vcmask 1041408
        %v11183 = vsel %vm11182, %v11179, %v11181
        %v11185 = vadd.f32 %v10722, %v11183
        %v11186 = vlaneseq
        %vm11187 = vcmp.ge.s32.totalorder %v11186, 0
        %vm11188 = vcmp.lt.s32.totalorder %v11186, 512
        %vm11189 = vmand %vm11187, %vm11188
        %11190 = vst.msk [vmem:[#allocation4] sm:$0xf] %vm11189, %v11185
        %p11191 = scmp.eq.s32.totalorder %s30, 2
        // Predicated region
        $region97: #{tpu_custom_call.1} parent=59 // pred_check
          %p11192 = pneg %p11191
        $region98: #{tpu_custom_call.1} parent=59 // pred_check_branch
          %11194 = sbr.rel (%p11192) target = $region100
        $region99: #{tpu_custom_call.1} parent=59 // pred_region
          %v11195 = vld [vmem:[#allocation4] sm:$0xf]
          %v11196 = vld [vmem:[#allocation3] sm:$0x1]
          %v11197 = vrcp.pop %v11196
          %11199 = vset.pattern.permute.xlu0 0
          %11200 = vperm.xlu0 %11199, %v11197
          %v11201 = vpop.permute.xlu0 %11200
          %v11203 = vperm.slane %v11201, 0
          %v11204 = vmul.f32 %v11195, %v11203
          %v11205 = vld [vmem:[%s8] sm:$0xff]
          %v11206 = vld [vmem:[%s8 + $0x8] sm:$0xff]
          %v11207 = vld [vmem:[%s8 + $0x10] sm:$0xff]
          %v11208 = vld [vmem:[%s8 + $0x18] sm:$0xff]
          %v11209 = vld [vmem:[%s8 + $0x20] sm:$0xff]
          %v11210 = vld [vmem:[%s8 + $0x28] sm:$0xff]
          %v11211 = vld [vmem:[%s8 + $0x30] sm:$0xff]
          %v11212 = vld [vmem:[%s8 + $0x38] sm:$0xff]
          %v11213 = vld [vmem:[%s8 + $0x40] sm:$0xff]
          %v11214 = vld [vmem:[%s8 + $0x48] sm:$0xff]
          %v11215 = vld [vmem:[%s8 + $0x50] sm:$0xff]
          %v11216 = vld [vmem:[%s8 + $0x58] sm:$0xff]
          %v11217 = vld [vmem:[%s8 + $0x60] sm:$0xff]
          %v11218 = vld [vmem:[%s8 + $0x68] sm:$0xff]
          %v11219 = vld [vmem:[%s8 + $0x70] sm:$0xff]
          %v11220 = vld [vmem:[%s8 + $0x78] sm:$0xff]
          %v11221 = vld [vmem:[%s8 + $0x80] sm:$0xff]
          %v11222 = vld [vmem:[%s8 + $0x88] sm:$0xff]
          %v11223 = vld [vmem:[%s8 + $0x90] sm:$0xff]
          %v11224 = vld [vmem:[%s8 + $0x98] sm:$0xff]
          %v11225 = vld [vmem:[%s8 + $0xa0] sm:$0xff]
          %v11226 = vld [vmem:[%s8 + $0xa8] sm:$0xff]
          %v11227 = vld [vmem:[%s8 + $0xb0] sm:$0xff]
          %v11228 = vld [vmem:[%s8 + $0xb8] sm:$0xff]
          %v11229 = vld [vmem:[%s8 + $0xc0] sm:$0xff]
          %v11230 = vld [vmem:[%s8 + $0xc8] sm:$0xff]
          %v11231 = vld [vmem:[%s8 + $0xd0] sm:$0xff]
          %v11232 = vld [vmem:[%s8 + $0xd8] sm:$0xff]
          %v11233 = vld [vmem:[%s8 + $0xe0] sm:$0xff]
          %v11234 = vld [vmem:[%s8 + $0xe8] sm:$0xff]
          %v11235 = vld [vmem:[%s8 + $0xf0] sm:$0xff]
          %v11236 = vld [vmem:[%s8 + $0xf8] sm:$0xff]
          %v11237 = vld [vmem:[%s8 + $0x100] sm:$0xff]
          %v11238 = vld [vmem:[%s8 + $0x108] sm:$0xff]
          %v11239 = vld [vmem:[%s8 + $0x110] sm:$0xff]
          %v11240 = vld [vmem:[%s8 + $0x118] sm:$0xff]
          %v11241 = vld [vmem:[%s8 + $0x120] sm:$0xff]
          %v11242 = vld [vmem:[%s8 + $0x128] sm:$0xff]
          %v11243 = vld [vmem:[%s8 + $0x130] sm:$0xff]
          %v11244 = vld [vmem:[%s8 + $0x138] sm:$0xff]
          %v11245 = vld [vmem:[%s8 + $0x140] sm:$0xff]
          %v11246 = vld [vmem:[%s8 + $0x148] sm:$0xff]
          %v11247 = vld [vmem:[%s8 + $0x150] sm:$0xff]
          %v11248 = vld [vmem:[%s8 + $0x158] sm:$0xff]
          %v11249 = vld [vmem:[%s8 + $0x160] sm:$0xff]
          %v11250 = vld [vmem:[%s8 + $0x168] sm:$0xff]
          %v11251 = vld [vmem:[%s8 + $0x170] sm:$0xff]
          %v11252 = vld [vmem:[%s8 + $0x178] sm:$0xff]
          %v11253 = vld [vmem:[%s8 + $0x180] sm:$0xff]
          %v11254 = vld [vmem:[%s8 + $0x188] sm:$0xff]
          %v11255 = vld [vmem:[%s8 + $0x190] sm:$0xff]
          %v11256 = vld [vmem:[%s8 + $0x198] sm:$0xff]
          %v11257 = vld [vmem:[%s8 + $0x1a0] sm:$0xff]
          %v11258 = vld [vmem:[%s8 + $0x1a8] sm:$0xff]
          %v11259 = vld [vmem:[%s8 + $0x1b0] sm:$0xff]
          %v11260 = vld [vmem:[%s8 + $0x1b8] sm:$0xff]
          %v11261 = vld [vmem:[%s8 + $0x1c0] sm:$0xff]
          %v11262 = vld [vmem:[%s8 + $0x1c8] sm:$0xff]
          %v11263 = vld [vmem:[%s8 + $0x1d0] sm:$0xff]
          %v11264 = vld [vmem:[%s8 + $0x1d8] sm:$0xff]
          %v11265 = vld [vmem:[%s8 + $0x1e0] sm:$0xff]
          %v11266 = vld [vmem:[%s8 + $0x1e8] sm:$0xff]
          %v11267 = vld [vmem:[%s8 + $0x1f0] sm:$0xff]
          %v11268 = vld [vmem:[%s8 + $0x1f8] sm:$0xff]
          %v11269 = vld [vmem:[#allocation18] sm:$0x1]
          %v11271 = vperm.slane %v11204, 0
          %v11272 = vperm.slane %v11204, 1
          %v11273 = vperm.slane %v11204, 2
          %v11274 = vperm.slane %v11204, 3
          %11279 = vmatpush.msra.mxu0 %v11220
          %11280 = vmatpush.msra.mxu0 %v11219
          %11281 = vmatpush.msra.mxu0 %v11218
          %11282 = vmatpush.msra.mxu0 %v11217
          %11283 = vmatpush.msra.mxu0 %v11216
          %11284 = vmatpush.msra.mxu0 %v11215
          %11285 = vmatpush.msra.mxu0 %v11214
          %11286 = vmatpush.msra.mxu0 %v11213
          %11287 = vmatpush.msra.mxu0 %v11212
          %11288 = vmatpush.msra.mxu0 %v11211
          %11289 = vmatpush.msra.mxu0 %v11210
          %11290 = vmatpush.msra.mxu0 %v11209
          %11291 = vmatpush.msra.mxu0 %v11208
          %11292 = vmatpush.msra.mxu0 %v11207
          %11293 = vmatpush.msra.mxu0 %v11206
          %11294 = vmatpush.msra.mxu0 %v11205
          %11295 = vmatmul.f32.gmra.mxu0 %v11271
          %v11296 = vpop.f32.mrf.mxu0
          %v11297 = vadd.f32 %v11269, %v11296
          %11298 = vdwg.mxu0
          %11299 = vmatpush.msra.mxu0 %v11236
          %11300 = vmatpush.msra.mxu0 %v11235
          %11301 = vmatpush.msra.mxu0 %v11234
          %11302 = vmatpush.msra.mxu0 %v11233
          %11303 = vmatpush.msra.mxu0 %v11232
          %11304 = vmatpush.msra.mxu0 %v11231
          %11305 = vmatpush.msra.mxu0 %v11230
          %11306 = vmatpush.msra.mxu0 %v11229
          %11307 = vmatpush.msra.mxu0 %v11228
          %11308 = vmatpush.msra.mxu0 %v11227
          %11309 = vmatpush.msra.mxu0 %v11226
          %11310 = vmatpush.msra.mxu0 %v11225
          %11311 = vmatpush.msra.mxu0 %v11224
          %11312 = vmatpush.msra.mxu0 %v11223
          %11313 = vmatpush.msra.mxu0 %v11222
          %11314 = vmatpush.msra.mxu0 %v11221
          %11315 = vmatmul.f32.gmra.mxu0 %v11272
          %v11316 = vpop.f32.mrf.mxu0
          %v11317 = vadd.f32 %v11297, %v11316
          %11318 = vdwg.mxu0
          %11319 = vmatpush.msra.mxu0 %v11252
          %11320 = vmatpush.msra.mxu0 %v11251
          %11321 = vmatpush.msra.mxu0 %v11250
          %11322 = vmatpush.msra.mxu0 %v11249
          %11323 = vmatpush.msra.mxu0 %v11248
          %11324 = vmatpush.msra.mxu0 %v11247
          %11325 = vmatpush.msra.mxu0 %v11246
          %11326 = vmatpush.msra.mxu0 %v11245
          %11327 = vmatpush.msra.mxu0 %v11244
          %11328 = vmatpush.msra.mxu0 %v11243
          %11329 = vmatpush.msra.mxu0 %v11242
          %11330 = vmatpush.msra.mxu0 %v11241
          %11331 = vmatpush.msra.mxu0 %v11240
          %11332 = vmatpush.msra.mxu0 %v11239
          %11333 = vmatpush.msra.mxu0 %v11238
          %11334 = vmatpush.msra.mxu0 %v11237
          %11335 = vmatmul.f32.gmra.mxu0 %v11273
          %v11336 = vpop.f32.mrf.mxu0
          %v11337 = vadd.f32 %v11317, %v11336
          %11338 = vdwg.mxu0
          %11339 = vmatpush.msra.mxu0 %v11268
          %11340 = vmatpush.msra.mxu0 %v11267
          %11341 = vmatpush.msra.mxu0 %v11266
          %11342 = vmatpush.msra.mxu0 %v11265
          %11343 = vmatpush.msra.mxu0 %v11264
          %11344 = vmatpush.msra.mxu0 %v11263
          %11345 = vmatpush.msra.mxu0 %v11262
          %11346 = vmatpush.msra.mxu0 %v11261
          %11347 = vmatpush.msra.mxu0 %v11260
          %11348 = vmatpush.msra.mxu0 %v11259
          %11349 = vmatpush.msra.mxu0 %v11258
          %11350 = vmatpush.msra.mxu0 %v11257
          %11351 = vmatpush.msra.mxu0 %v11256
          %11352 = vmatpush.msra.mxu0 %v11255
          %11353 = vmatpush.msra.mxu0 %v11254
          %11354 = vmatpush.msra.mxu0 %v11253
          %11355 = vmatmul.f32.gmra.mxu0 %v11274
          %v11356 = vpop.f32.mrf.mxu0
          %v11357 = vadd.f32 %v11337, %v11356
          %11358 = vdwg.mxu0
          %vm11359 = vcmask 8192
          %11360 = vst.msk [vmem:[#allocation20] sm:$0x1] %vm11359, %v11357
        $region100: #{tpu_custom_call.1} parent=59 // pred_fallthru
          _
        // Predicated region
        $region101: #{tpu_custom_call.1} parent=59 // pred_check
          %p11361 = pneg %p258
        $region102: #{tpu_custom_call.1} parent=59 // pred_check_branch
          %11363 = sbr.rel (%p11361) target = $region104
        $region103: #{tpu_custom_call.1} parent=59 // pred_region
          %11365 = vsyncadd [#allocation8], 0
          %s11367 = sshll.u32 [#allocation20], 4
          %s11368 = int_to_ptr.vmem [resolvable:$true] %s11367
          %s11369 = sshll.u32 %s10, 4
          %s11370 = int_to_ptr.hbm [resolvable:$true] %s11369
          %11372 = dma.vmem_to_hbm [thread:$0]  %s11368, 16, %s11370, [#allocation8]
        $region104: #{tpu_custom_call.1} parent=59 // pred_fallthru
          _
        // Predicated region
        $region105: #{tpu_custom_call.1} parent=59 // pred_check
          %p11373 = pneg %p258
        $region106: #{tpu_custom_call.1} parent=59 // pred_check_branch
          %11375 = sbr.rel (%p11373) target = $region108
        $region107: #{tpu_custom_call.1} parent=59 // pred_region
          %11377 = dma.done [#allocation8], 16
        $region108: #{tpu_custom_call.1} parent=59 // pred_fallthru
          _
      $region60: #{tpu_custom_call.1} parent=5 // pred_fallthru
        _
      %p11378 = scmp.le.s32.totalorder 2, %s25
      // Predicated region
      $region109: #{tpu_custom_call.1} parent=5 // pred_check
        %p11379 = pneg %p11378
      $region110: #{tpu_custom_call.1} parent=5 // pred_check_branch
        %11381 = sbr.rel (%p11379) target = $region112
      $region111: #{tpu_custom_call.1} parent=5 // pred_region
        %s11382 = ssub.s32 %s25, 2
      $region112: #{tpu_custom_call.1} parent=5 // pred_fallthru
        _
    $region6: #{tpu_custom_call.1} parent=1 // loop_footer
      %s29 = sadd.s32 1, %s25
    $region7: #{tpu_custom_call.1} parent=1 // loop_footer_branch
      %24 = sbr.rel target = $region3
    $region8: #{tpu_custom_call.1} parent=1 // loop_exit
      _
    %11383 = vsyncpa [#allocation7], 1
    %s11384 = scalar_lea.sflag [#allocation7], 1
    %11385 = vsyncpa %s11384, 1
    %11386 = vsyncpa [#allocation10], 1
    %11387 = vsyncpa [#allocation13], 1
    %11388 = vsyncpa [#allocation16], 1
    %11389 = vsyncpa [#allocation19], 1
    %11390 = vsyncpa [#allocation8], 1
    %s11391 = scalar_lea.sflag [#allocation8], 1
    %11392 = vsyncpa %s11391, 1

</llo_original>
